<compile_context>
chip_gen: v7x
topology: tpu7x:2x2x1
jax: 0.10.0
libtpu: 0.0.40
codegen_flags: <defaults>
</compile_context>

<pallas_src>
import jax
import jax.numpy as jnp
from jax.experimental import pallas as pl
from jax.experimental.pallas import tpu as pltpu

_LANE = 128


def _round_up(v, m):
    return (v + m - 1) // m * m


def _vmem_limit_bytes():
    default = 64 * 1024 * 1024
    try:
        cap = getattr(pltpu.get_tpu_info(), "vmem_capacity_bytes", default)
    except Exception:  # no TPU info available -> conservative default
        cap = default
    # leave ~25% headroom for double-buffered I/O blocks + compiler scratch
    return max(32 * 1024 * 1024, min(int(cap) * 3 // 4, 100 * 1024 * 1024))


def csp_block_pallas(x_nchw, params):
    (w1, b1, w2, b2, rw1, rb1, rw2, rb2, w3, b3) = params
    N, Cin, H, W = x_nchw.shape
    Cmid = w1.shape[1]
    Cout = w3.shape[1]
    num_blocks = rw1.shape[0]
    HW = H * W
    cin_p = _round_up(Cin, _LANE)
    cmid_p = _round_up(Cmid, _LANE)
    cout_p = _round_up(Cout, _LANE)
    PAD = _round_up(W + 1, 8)                      # halo rows (sublane aligned)

    # ---- lane-dense packing: NCHW -> (N, H*W, cin_p), matmul operands bf16 --
    x = jnp.transpose(x_nchw, (0, 2, 3, 1)).reshape(N, HW, Cin)
    x = jnp.pad(x, ((0, 0), (0, 0), (0, cin_p - Cin))).astype(jnp.bfloat16)

    def pad2(w, rows, cols):
        return jnp.pad(w, ((0, rows - w.shape[0]), (0, cols - w.shape[1])))

    # conv1 | conv2 fused along the output dim.
    w12p = jnp.concatenate([pad2(w1, cin_p, cmid_p),
                            pad2(w2, cin_p, cmid_p)], axis=1).astype(jnp.bfloat16)
    b12p = jnp.concatenate([pad2(b1.reshape(1, -1), 1, cmid_p),
                            pad2(b2.reshape(1, -1), 1, cmid_p)],
                           axis=1).astype(jnp.float32)

    # conv3 packed so rows [0, cmid_p) act on y1 and rows [cmid_p, 2*cmid_p) on y.
    w3p = jnp.concatenate([pad2(w3[:Cmid], cmid_p, cout_p),
                           pad2(w3[Cmid:], cmid_p, cout_p)],
                          axis=0).astype(jnp.bfloat16)
    b3p = pad2(b3.reshape(1, -1), 1, cout_p).astype(jnp.float32)

    dmid = cmid_p - Cmid
    rw1p = jnp.pad(rw1, ((0, 0), (0, dmid), (0, dmid))).astype(jnp.bfloat16)
    rb1p = jnp.pad(rb1.reshape(num_blocks, 1, Cmid),
                   ((0, 0), (0, 0), (0, dmid))).astype(jnp.float32)
    # (nb, 3, 3, ci, co) -> K-concatenated (nb, 9*cmid_p, cmid_p), tap-major.
    rw2p = jnp.pad(rw2, ((0, 0), (0, 0), (0, 0), (0, dmid), (0, dmid)))
    rw2p = rw2p.reshape(num_blocks, 9 * cmid_p, cmid_p).astype(jnp.bfloat16)
    rb2p = jnp.pad(rb2.reshape(num_blocks, 1, Cmid),
                   ((0, 0), (0, 0), (0, dmid))).astype(jnp.float32)

    def kernel(x_ref, w12_ref, b12_ref, rw1_ref, rb1_ref, rw2_ref, rb2_ref,
               w3_ref, b3_ref, o_ref, pad_ref, s_ref):
        f32 = jnp.float32
        bf16 = jnp.bfloat16

        def silu(v):
            # sigmoid(v) = 0.5*(tanh(v/2)+1): one EUP push per element.
            return 0.5 * v * (1.0 + jnp.tanh(0.5 * v))

        x_img = x_ref[0]                                     # (HW, cin_p) bf16

        # fused conv1|conv2: single MXU pass, then split into the two branches
        z = silu(jnp.dot(x_img, w12_ref[...],
                         preferred_element_type=f32) + b12_ref[...])
        y1_bf = z[:, :cmid_p].astype(bf16)                   # branch 1 (bf16, live)
        y = z[:, cmid_p:]                                    # branch 2, f32 residual acc

        # loop-invariant horizontal edge masks (vertical edges handled by the
        # zero halo rows of pad_ref).
        xx = jax.lax.broadcasted_iota(jnp.int32, (HW, 1), 0) % W
        valid_l = xx >= 1                                    # dx = -1 taps
        valid_r = xx < (W - 1)                               # dx = +1 taps
        zero = jnp.zeros((), f32)

        # zero the halo rows once; the centre region is overwritten per block.
        pad_ref[0:PAD, :] = jnp.zeros((PAD, cmid_p), f32)
        pad_ref[PAD + HW:PAD + HW + PAD, :] = jnp.zeros((PAD, cmid_p), f32)

        for i in range(num_blocks):
            # 1x1 conv of the residual block, written into the haloed scratch.
            t = silu(jnp.dot(y.astype(bf16), rw1_ref[i],
                             preferred_element_type=f32) + rb1_ref[i])
            pad_ref[PAD:PAD + HW, :] = t

            # 3x3 conv = ONE matmul with K = 9*cmid_p: gather the nine shifted
            # operands (bf16) into the lane-concatenated S buffer, then dot.
            for ky in range(3):
                for kx in range(3):
                    off = (ky - 1) * W + (kx - 1)
                    tap = pad_ref[PAD + off:PAD + off + HW, :]
                    if kx == 0:
                        tap = jnp.where(valid_l, tap, zero)
                    elif kx == 2:
                        tap = jnp.where(valid_r, tap, zero)
                    col = (ky * 3 + kx) * cmid_p
                    s_ref[:, col:col + cmid_p] = tap.astype(bf16)

            acc = jnp.dot(s_ref[...], rw2_ref[i], preferred_element_type=f32)
            y = y + silu(acc + rb2_ref[i])                   # residual add (f32)

        # conv3 on [y1 | y]: single K = 2*cmid_p matmul (reuse S buffer lanes).
        s_ref[:, 0:cmid_p] = y1_bf
        s_ref[:, cmid_p:2 * cmid_p] = y.astype(bf16)
        out = silu(jnp.dot(s_ref[:, 0:2 * cmid_p], w3_ref[...],
                           preferred_element_type=f32) + b3_ref[...])
        o_ref[0] = out.astype(o_ref.dtype)                   # lane-dense bf16 store

    def full_spec(a):
        nd = a.ndim
        return pl.BlockSpec(a.shape, lambda n, _nd=nd: (0,) * _nd)

    # TODO(synk): for large feature maps on v7x (64 MiB VMEM), add an H-tiled
    # "parallel" grid axis with a num_blocks-row halo recompute and
    # single-buffered (pl.Buffered(1)) grid-invariant weight specs; whole-image
    # blocks are kept here because one image + weights is far below the limit.
    out = pl.pallas_call(
        kernel,
        out_shape=jax.ShapeDtypeStruct((N, HW, cout_p), jnp.bfloat16),
        grid_spec=pltpu.PrefetchScalarGridSpec(
            num_scalar_prefetch=0,
            grid=(N,),
            in_specs=[
                pl.BlockSpec((1, HW, cin_p), lambda n: (n, 0, 0)),
                full_spec(w12p), full_spec(b12p),
                full_spec(rw1p), full_spec(rb1p),
                full_spec(rw2p), full_spec(rb2p),
                full_spec(w3p), full_spec(b3p),
            ],
            out_specs=pl.BlockSpec((1, HW, cout_p), lambda n: (n, 0, 0)),
            scratch_shapes=[
                pltpu.VMEM((HW + 2 * PAD, cmid_p), jnp.float32),   # haloed t
                pltpu.VMEM((HW, 9 * cmid_p), jnp.bfloat16),        # K-concat operand
            ],
        ),
        compiler_params=pltpu.CompilerParams(
            dimension_semantics=("parallel",),
            vmem_limit_bytes=_vmem_limit_bytes(),
        ),
    )(x, w12p, b12p, rw1p, rb1p, rw2p, rb2p, w3p, b3p)

    out = out.astype(jnp.float32).reshape(N, H, W, cout_p)[..., :Cout]
    return jnp.transpose(out, (0, 3, 1, 2))                  # NHWC -> NCHW


# ----------------------------------------------------------------------------
# Deterministic parameter construction (conv weights + folded BatchNorm).
# ----------------------------------------------------------------------------
def make_params(key, cin, cout, num_blocks, dtype=jnp.float32):
    cmid = cout // 2
    eps = 1e-5

    def bn_fold(c, salt):
        i = jnp.arange(c, dtype=dtype)
        gamma = 1.0 + 0.1 * jnp.cos(i + salt)
        beta = 0.05 * jnp.sin(i + 0.5 * salt)
        mean = 0.02 * i - 0.01 * salt
        var = 1.0 + 0.05 * (i % 3)
        s = gamma / jnp.sqrt(var + eps)
        return s, beta - mean * s

    keys = jax.random.split(key, 3 + 2 * num_blocks)
    w1 = jax.random.normal(keys[0], (cin, cmid), dtype) * 0.3
    w2 = jax.random.normal(keys[1], (cin, cmid), dtype) * 0.3
    w3 = jax.random.normal(keys[2], (2 * cmid, cout), dtype) * 0.3
    s1, b1 = bn_fold(cmid, 1.0); w1 = w1 * s1
    s2, b2 = bn_fold(cmid, 2.0); w2 = w2 * s2
    s3, b3 = bn_fold(cout, 3.0); w3 = w3 * s3

    rw1, rb1, rw2, rb2 = [], [], [], []
    for i in range(num_blocks):
        wa = jax.random.normal(keys[3 + 2 * i], (cmid, cmid), dtype) * 0.3
        wb = jax.random.normal(keys[4 + 2 * i], (3, 3, cmid, cmid), dtype) * 0.15
        sa, ba = bn_fold(cmid, 10.0 + i)
        sb, bb = bn_fold(cmid, 20.0 + i)
        rw1.append(wa * sa); rb1.append(ba)
        rw2.append(wb * sb); rb2.append(bb)

    return (w1, b1, w2, b2,
            jnp.stack(rw1), jnp.stack(rb1), jnp.stack(rw2), jnp.stack(rb2),
            w3, b3)


# ----------------------------------------------------------------------------
# Pure-JAX reference (same folded parameters) for correctness checking.
# ----------------------------------------------------------------------------
def csp_reference(x_nchw, params):
    (w1, b1, w2, b2, rw1, rb1, rw2, rb2, w3, b3) = params
    silu = lambda v: v * jax.nn.sigmoid(v)
    x = jnp.transpose(x_nchw, (0, 2, 3, 1))

    def conv1x1(v, w, b):
        return silu(jnp.einsum('nhwc,cd->nhwd', v, w) + b.reshape(1, 1, 1, -1))

    y1 = conv1x1(x, w1, b1)
    y = conv1x1(x, w2, b2)
    for i in range(rw1.shape[0]):
        t = conv1x1(y, rw1[i], rb1[i])
        c = jax.lax.conv_general_dilated(
            t, rw2[i], window_strides=(1, 1), padding=((1, 1), (1, 1)),
            dimension_numbers=('NHWC', 'HWIO', 'NHWC'))
        y = y + silu(c + rb2[i].reshape(1, 1, 1, -1))
    out = conv1x1(jnp.concatenate([y1, y], axis=-1), w3, b3)
    return jnp.transpose(out, (0, 3, 1, 2))


if __name__ == "__main__":
    key = jax.random.PRNGKey(0)
    k_x, k_p = jax.random.split(key)

    N, Cin, H, W = 2, 4, 16, 16
    Cout, num_blocks = 8, 2

    x = jax.random.normal(k_x, (N, Cin, H, W), jnp.float32)
    params = make_params(k_p, Cin, Cout, num_blocks)

    fwd = jax.jit(csp_block_pallas)
    out = jax.block_until_ready(fwd(x, params))
    ref = csp_reference(x, params)

    assert out.shape == (N, Cout, H, W), out.shape
    max_err = float(jnp.max(jnp.abs(out - ref)))
    if not bool(jnp.allclose(out, ref, atol=5e-2, rtol=5e-2)):
        raise SystemExit(f"mismatch vs reference, max_err={max_err}")
    print("KERNEL_OK")
</pallas_src>

<mosaic_0001>
module attributes {stable_mosaic.version = 11 : i64} {
  func.func @kernel(%arg0: i32, %arg1: memref<1x256x128xbf16, #tpu.memory_space<vmem>>, %arg2: memref<128x256xbf16, #tpu.memory_space<vmem>>, %arg3: memref<1x256xf32, #tpu.memory_space<vmem>>, %arg4: memref<2x128x128xbf16, #tpu.memory_space<vmem>>, %arg5: memref<2x1x128xf32, #tpu.memory_space<vmem>>, %arg6: memref<2x1152x128xbf16, #tpu.memory_space<vmem>>, %arg7: memref<2x1x128xf32, #tpu.memory_space<vmem>>, %arg8: memref<256x128xbf16, #tpu.memory_space<vmem>>, %arg9: memref<1x128xf32, #tpu.memory_space<vmem>>, %arg10: memref<1x256x128xbf16, #tpu.memory_space<vmem>>, %arg11: memref<304x128xf32, #tpu.memory_space<vmem>>, %arg12: memref<256x1152xbf16, #tpu.memory_space<vmem>>) attributes {dimension_semantics = [#tpu.dimension_semantics<parallel>], iteration_bounds = array<i64: 2>, scalar_prefetch = 0 : i64, scratch_operands = 2 : i64, tpu.core_type = #tpu.core_type<tc>, window_params = [{transform_indices = @transform_0, window_bounds = array<i64: 1, 256, 128>}, {pipeline_mode = #tpu.pipeline_mode<synchronous>, transform_indices = @transform_1, window_bounds = array<i64: 128, 256>}, {pipeline_mode = #tpu.pipeline_mode<synchronous>, transform_indices = @transform_2, window_bounds = array<i64: 1, 256>}, {pipeline_mode = #tpu.pipeline_mode<synchronous>, transform_indices = @transform_3, window_bounds = array<i64: 2, 128, 128>}, {pipeline_mode = #tpu.pipeline_mode<synchronous>, transform_indices = @transform_4, window_bounds = array<i64: 2, 1, 128>}, {pipeline_mode = #tpu.pipeline_mode<synchronous>, transform_indices = @transform_5, window_bounds = array<i64: 2, 1152, 128>}, {pipeline_mode = #tpu.pipeline_mode<synchronous>, transform_indices = @transform_6, window_bounds = array<i64: 2, 1, 128>}, {pipeline_mode = #tpu.pipeline_mode<synchronous>, transform_indices = @transform_7, window_bounds = array<i64: 256, 128>}, {pipeline_mode = #tpu.pipeline_mode<synchronous>, transform_indices = @transform_8, window_bounds = array<i64: 1, 128>}, {transform_indices = @transform_9, window_bounds = array<i64: 1, 256, 128>}]} {
    %c0 = arith.constant 0 : index
    %c0_0 = arith.constant 0 : index
    %c0_1 = arith.constant 0 : index
    %0 = vector.load %arg1[%c0, %c0_0, %c0_1] : memref<1x256x128xbf16, #tpu.memory_space<vmem>>, vector<1x256x128xbf16>
    %1 = vector.shape_cast %0 : vector<1x256x128xbf16> to vector<256x128xbf16>
    %c0_2 = arith.constant 0 : index
    %c0_3 = arith.constant 0 : index
    %2 = vector.load %arg2[%c0_2, %c0_3] : memref<128x256xbf16, #tpu.memory_space<vmem>>, vector<128x256xbf16>
    %cst = arith.constant dense<0.000000e+00> : vector<256x256xf32>
    %3 = tpu.matmul %1, %2, %cst {dimension_numbers = #tpu.dot_dimension_numbers<[1], [0], [0], [1], [0, 0, 1, 1], [], []>} : vector<256x128xbf16>, vector<128x256xbf16>, vector<256x256xf32> -> vector<256x256xf32>
    %c0_4 = arith.constant 0 : index
    %c0_5 = arith.constant 0 : index
    %4 = vector.load %arg3[%c0_4, %c0_5] : memref<1x256xf32, #tpu.memory_space<vmem>>, vector<1x256xf32>
    %5 = vector.broadcast %4 : vector<1x256xf32> to vector<256x256xf32>
    %6 = arith.addf %3, %5 : vector<256x256xf32>
    %cst_6 = arith.constant 5.000000e-01 : f32
    %7 = vector.broadcast %cst_6 : f32 to vector<256x256xf32>
    %8 = arith.mulf %7, %6 : vector<256x256xf32>
    %cst_7 = arith.constant 5.000000e-01 : f32
    %9 = vector.broadcast %cst_7 : f32 to vector<256x256xf32>
    %10 = arith.mulf %9, %6 : vector<256x256xf32>
    %11 = math.tanh %10 : vector<256x256xf32>
    %cst_8 = arith.constant 1.000000e+00 : f32
    %12 = vector.broadcast %cst_8 : f32 to vector<256x256xf32>
    %13 = arith.addf %12, %11 : vector<256x256xf32>
    %14 = arith.mulf %8, %13 : vector<256x256xf32>
    %15 = vector.extract_strided_slice %14 {offsets = [0, 0], sizes = [256, 128], strides = [1, 1]} : vector<256x256xf32> to vector<256x128xf32>
    %16 = arith.truncf %15 : vector<256x128xf32> to vector<256x128xbf16>
    %17 = vector.extract_strided_slice %14 {offsets = [0, 128], sizes = [256, 128], strides = [1, 1]} : vector<256x256xf32> to vector<256x128xf32>
    %18 = tpu.iota {dimensions = array<i32: 0>} : vector<256x1xi32>
    %c16_i32 = arith.constant 16 : i32
    %c0_i32 = arith.constant 0 : i32
    %19 = arith.cmpi eq, %c16_i32, %c0_i32 : i32
    %c1_i32 = arith.constant 1 : i32
    %20 = arith.select %19, %c1_i32, %c16_i32 : i32
    %21 = vector.broadcast %20 : i32 to vector<256x1xi32>
    %22 = arith.remsi %18, %21 : vector<256x1xi32>
    %c0_i32_9 = arith.constant 0 : i32
    %23 = vector.broadcast %c0_i32_9 : i32 to vector<256x1xi32>
    %24 = arith.cmpi ne, %22, %23 : vector<256x1xi32>
    %c0_i32_10 = arith.constant 0 : i32
    %25 = vector.broadcast %c0_i32_10 : i32 to vector<256x1xi32>
    %26 = arith.cmpi slt, %22, %25 : vector<256x1xi32>
    %c0_i32_11 = arith.constant 0 : i32
    %27 = arith.cmpi slt, %20, %c0_i32_11 : i32
    %28 = vector.broadcast %27 : i1 to vector<256x1xi1>
    %29 = vector.broadcast %28 : vector<256x1xi1> to vector<256x1xi1>
    %30 = arith.xori %26, %29 : vector<256x1xi1>
    %31 = arith.andi %30, %24 : vector<256x1xi1>
    %32 = vector.broadcast %20 : i32 to vector<256x1xi32>
    %33 = arith.addi %22, %32 : vector<256x1xi32>
    %34 = arith.select %31, %33, %22 : vector<256x1xi1>, vector<256x1xi32>
    %c1_i32_12 = arith.constant 1 : i32
    %35 = vector.broadcast %c1_i32_12 : i32 to vector<256x1xi32>
    %36 = arith.cmpi sge, %34, %35 : vector<256x1xi32>
    %c15_i32 = arith.constant 15 : i32
    %37 = vector.broadcast %c15_i32 : i32 to vector<256x1xi32>
    %38 = arith.cmpi slt, %34, %37 : vector<256x1xi32>
    %cst_13 = arith.constant 0.000000e+00 : f32
    %39 = vector.broadcast %cst_13 : f32 to vector<24x128xf32>
    %c0_14 = arith.constant 0 : index
    %c0_15 = arith.constant 0 : index
    %40 = vector.load %arg11[%c0_14, %c0_15] : memref<304x128xf32, #tpu.memory_space<vmem>>, vector<24x128xf32>
    tpu.vector_store %arg11[%c0_14, %c0_15], %39 {strides = array<i32>} : memref<304x128xf32, #tpu.memory_space<vmem>>, vector<24x128xf32>,
    %cst_16 = arith.constant 0.000000e+00 : f32
    %41 = vector.broadcast %cst_16 : f32 to vector<24x128xf32>
    %c280 = arith.constant 280 : index
    %c0_17 = arith.constant 0 : index
    %42 = vector.load %arg11[%c280, %c0_17] : memref<304x128xf32, #tpu.memory_space<vmem>>, vector<24x128xf32>
    tpu.vector_store %arg11[%c280, %c0_17], %41 {strides = array<i32>} : memref<304x128xf32, #tpu.memory_space<vmem>>, vector<24x128xf32>,
    %43 = arith.truncf %17 : vector<256x128xf32> to vector<256x128xbf16>
    %c0_18 = arith.constant 0 : index
    %c0_19 = arith.constant 0 : index
    %c0_20 = arith.constant 0 : index
    %44 = vector.load %arg4[%c0_18, %c0_19, %c0_20] : memref<2x128x128xbf16, #tpu.memory_space<vmem>>, vector<1x128x128xbf16>
    %45 = vector.shape_cast %44 : vector<1x128x128xbf16> to vector<128x128xbf16>
    %cst_21 = arith.constant dense<0.000000e+00> : vector<256x128xf32>
    %46 = tpu.matmul %43, %45, %cst_21 {dimension_numbers = #tpu.dot_dimension_numbers<[1], [0], [0], [1], [0, 0, 1, 1], [], []>} : vector<256x128xbf16>, vector<128x128xbf16>, vector<256x128xf32> -> vector<256x128xf32>
    %c0_22 = arith.constant 0 : index
    %c0_23 = arith.constant 0 : index
    %c0_24 = arith.constant 0 : index
    %47 = vector.load %arg5[%c0_22, %c0_23, %c0_24] : memref<2x1x128xf32, #tpu.memory_space<vmem>>, vector<1x1x128xf32>
    %48 = vector.shape_cast %47 : vector<1x1x128xf32> to vector<1x128xf32>
    %49 = vector.broadcast %48 : vector<1x128xf32> to vector<256x128xf32>
    %50 = arith.addf %46, %49 : vector<256x128xf32>
    %cst_25 = arith.constant 5.000000e-01 : f32
    %51 = vector.broadcast %cst_25 : f32 to vector<256x128xf32>
    %52 = arith.mulf %51, %50 : vector<256x128xf32>
    %cst_26 = arith.constant 5.000000e-01 : f32
    %53 = vector.broadcast %cst_26 : f32 to vector<256x128xf32>
    %54 = arith.mulf %53, %50 : vector<256x128xf32>
    %55 = math.tanh %54 : vector<256x128xf32>
    %cst_27 = arith.constant 1.000000e+00 : f32
    %56 = vector.broadcast %cst_27 : f32 to vector<256x128xf32>
    %57 = arith.addf %56, %55 : vector<256x128xf32>
    %58 = arith.mulf %52, %57 : vector<256x128xf32>
    %c24 = arith.constant 24 : index
    %c0_28 = arith.constant 0 : index
    %59 = vector.load %arg11[%c24, %c0_28] : memref<304x128xf32, #tpu.memory_space<vmem>>, vector<256x128xf32>
    tpu.vector_store %arg11[%c24, %c0_28], %58 {strides = array<i32>} : memref<304x128xf32, #tpu.memory_space<vmem>>, vector<256x128xf32>,
    %c7 = arith.constant 7 : index
    %c0_29 = arith.constant 0 : index
    %60 = vector.load %arg11[%c7, %c0_29] : memref<304x128xf32, #tpu.memory_space<vmem>>, vector<256x128xf32>
    %cst_30 = arith.constant 0.000000e+00 : f32
    %61 = vector.shape_cast %36 : vector<256x1xi1> to vector<256x1xi1>
    %62 = vector.broadcast %61 : vector<256x1xi1> to vector<256x128xi1>
    %63 = vector.broadcast %cst_30 : f32 to vector<256x128xf32>
    %64 = arith.select %62, %60, %63 : vector<256x128xi1>, vector<256x128xf32>
    %65 = arith.truncf %64 : vector<256x128xf32> to vector<256x128xbf16>
    %c0_31 = arith.constant 0 : index
    %c0_32 = arith.constant 0 : index
    %66 = vector.load %arg12[%c0_31, %c0_32] : memref<256x1152xbf16, #tpu.memory_space<vmem>>, vector<256x128xbf16>
    tpu.vector_store %arg12[%c0_31, %c0_32], %65 {strides = array<i32>} : memref<256x1152xbf16, #tpu.memory_space<vmem>>, vector<256x128xbf16>,
    %c8 = arith.constant 8 : index
    %c0_33 = arith.constant 0 : index
    %67 = vector.load %arg11[%c8, %c0_33] : memref<304x128xf32, #tpu.memory_space<vmem>>, vector<256x128xf32>
    %68 = arith.truncf %67 : vector<256x128xf32> to vector<256x128xbf16>
    %c0_34 = arith.constant 0 : index
    %c128 = arith.constant 128 : index
    %69 = vector.load %arg12[%c0_34, %c128] : memref<256x1152xbf16, #tpu.memory_space<vmem>>, vector<256x128xbf16>
    tpu.vector_store %arg12[%c0_34, %c128], %68 {strides = array<i32>} : memref<256x1152xbf16, #tpu.memory_space<vmem>>, vector<256x128xbf16>,
    %c9 = arith.constant 9 : index
    %c0_35 = arith.constant 0 : index
    %70 = vector.load %arg11[%c9, %c0_35] : memref<304x128xf32, #tpu.memory_space<vmem>>, vector<256x128xf32>
    %cst_36 = arith.constant 0.000000e+00 : f32
    %71 = vector.shape_cast %38 : vector<256x1xi1> to vector<256x1xi1>
    %72 = vector.broadcast %71 : vector<256x1xi1> to vector<256x128xi1>
    %73 = vector.broadcast %cst_36 : f32 to vector<256x128xf32>
    %74 = arith.select %72, %70, %73 : vector<256x128xi1>, vector<256x128xf32>
    %75 = arith.truncf %74 : vector<256x128xf32> to vector<256x128xbf16>
    %c0_37 = arith.constant 0 : index
    %c256 = arith.constant 256 : index
    %76 = vector.load %arg12[%c0_37, %c256] : memref<256x1152xbf16, #tpu.memory_space<vmem>>, vector<256x128xbf16>
    tpu.vector_store %arg12[%c0_37, %c256], %75 {strides = array<i32>} : memref<256x1152xbf16, #tpu.memory_space<vmem>>, vector<256x128xbf16>,
    %c23 = arith.constant 23 : index
    %c0_38 = arith.constant 0 : index
    %77 = vector.load %arg11[%c23, %c0_38] : memref<304x128xf32, #tpu.memory_space<vmem>>, vector<256x128xf32>
    %cst_39 = arith.constant 0.000000e+00 : f32
    %78 = vector.shape_cast %36 : vector<256x1xi1> to vector<256x1xi1>
    %79 = vector.broadcast %78 : vector<256x1xi1> to vector<256x128xi1>
    %80 = vector.broadcast %cst_39 : f32 to vector<256x128xf32>
    %81 = arith.select %79, %77, %80 : vector<256x128xi1>, vector<256x128xf32>
    %82 = arith.truncf %81 : vector<256x128xf32> to vector<256x128xbf16>
    %c0_40 = arith.constant 0 : index
    %c384 = arith.constant 384 : index
    %83 = vector.load %arg12[%c0_40, %c384] : memref<256x1152xbf16, #tpu.memory_space<vmem>>, vector<256x128xbf16>
    tpu.vector_store %arg12[%c0_40, %c384], %82 {strides = array<i32>} : memref<256x1152xbf16, #tpu.memory_space<vmem>>, vector<256x128xbf16>,
    %c24_41 = arith.constant 24 : index
    %c0_42 = arith.constant 0 : index
    %84 = vector.load %arg11[%c24_41, %c0_42] : memref<304x128xf32, #tpu.memory_space<vmem>>, vector<256x128xf32>
    %85 = arith.truncf %84 : vector<256x128xf32> to vector<256x128xbf16>
    %c0_43 = arith.constant 0 : index
    %c512 = arith.constant 512 : index
    %86 = vector.load %arg12[%c0_43, %c512] : memref<256x1152xbf16, #tpu.memory_space<vmem>>, vector<256x128xbf16>
    tpu.vector_store %arg12[%c0_43, %c512], %85 {strides = array<i32>} : memref<256x1152xbf16, #tpu.memory_space<vmem>>, vector<256x128xbf16>,
    %c25 = arith.constant 25 : index
    %c0_44 = arith.constant 0 : index
    %87 = vector.load %arg11[%c25, %c0_44] : memref<304x128xf32, #tpu.memory_space<vmem>>, vector<256x128xf32>
    %cst_45 = arith.constant 0.000000e+00 : f32
    %88 = vector.shape_cast %38 : vector<256x1xi1> to vector<256x1xi1>
    %89 = vector.broadcast %88 : vector<256x1xi1> to vector<256x128xi1>
    %90 = vector.broadcast %cst_45 : f32 to vector<256x128xf32>
    %91 = arith.select %89, %87, %90 : vector<256x128xi1>, vector<256x128xf32>
    %92 = arith.truncf %91 : vector<256x128xf32> to vector<256x128xbf16>
    %c0_46 = arith.constant 0 : index
    %c640 = arith.constant 640 : index
    %93 = vector.load %arg12[%c0_46, %c640] : memref<256x1152xbf16, #tpu.memory_space<vmem>>, vector<256x128xbf16>
    tpu.vector_store %arg12[%c0_46, %c640], %92 {strides = array<i32>} : memref<256x1152xbf16, #tpu.memory_space<vmem>>, vector<256x128xbf16>,
    %c39 = arith.constant 39 : index
    %c0_47 = arith.constant 0 : index
    %94 = vector.load %arg11[%c39, %c0_47] : memref<304x128xf32, #tpu.memory_space<vmem>>, vector<256x128xf32>
    %cst_48 = arith.constant 0.000000e+00 : f32
    %95 = vector.shape_cast %36 : vector<256x1xi1> to vector<256x1xi1>
    %96 = vector.broadcast %95 : vector<256x1xi1> to vector<256x128xi1>
    %97 = vector.broadcast %cst_48 : f32 to vector<256x128xf32>
    %98 = arith.select %96, %94, %97 : vector<256x128xi1>, vector<256x128xf32>
    %99 = arith.truncf %98 : vector<256x128xf32> to vector<256x128xbf16>
    %c0_49 = arith.constant 0 : index
    %c768 = arith.constant 768 : index
    %100 = vector.load %arg12[%c0_49, %c768] : memref<256x1152xbf16, #tpu.memory_space<vmem>>, vector<256x128xbf16>
    tpu.vector_store %arg12[%c0_49, %c768], %99 {strides = array<i32>} : memref<256x1152xbf16, #tpu.memory_space<vmem>>, vector<256x128xbf16>,
    %c40 = arith.constant 40 : index
    %c0_50 = arith.constant 0 : index
    %101 = vector.load %arg11[%c40, %c0_50] : memref<304x128xf32, #tpu.memory_space<vmem>>, vector<256x128xf32>
    %102 = arith.truncf %101 : vector<256x128xf32> to vector<256x128xbf16>
    %c0_51 = arith.constant 0 : index
    %c896 = arith.constant 896 : index
    %103 = vector.load %arg12[%c0_51, %c896] : memref<256x1152xbf16, #tpu.memory_space<vmem>>, vector<256x128xbf16>
    tpu.vector_store %arg12[%c0_51, %c896], %102 {strides = array<i32>} : memref<256x1152xbf16, #tpu.memory_space<vmem>>, vector<256x128xbf16>,
    %c41 = arith.constant 41 : index
    %c0_52 = arith.constant 0 : index
    %104 = vector.load %arg11[%c41, %c0_52] : memref<304x128xf32, #tpu.memory_space<vmem>>, vector<256x128xf32>
    %cst_53 = arith.constant 0.000000e+00 : f32
    %105 = vector.shape_cast %38 : vector<256x1xi1> to vector<256x1xi1>
    %106 = vector.broadcast %105 : vector<256x1xi1> to vector<256x128xi1>
    %107 = vector.broadcast %cst_53 : f32 to vector<256x128xf32>
    %108 = arith.select %106, %104, %107 : vector<256x128xi1>, vector<256x128xf32>
    %109 = arith.truncf %108 : vector<256x128xf32> to vector<256x128xbf16>
    %c0_54 = arith.constant 0 : index
    %c1024 = arith.constant 1024 : index
    %110 = vector.load %arg12[%c0_54, %c1024] : memref<256x1152xbf16, #tpu.memory_space<vmem>>, vector<256x128xbf16>
    tpu.vector_store %arg12[%c0_54, %c1024], %109 {strides = array<i32>} : memref<256x1152xbf16, #tpu.memory_space<vmem>>, vector<256x128xbf16>,
    %c0_55 = arith.constant 0 : index
    %c0_56 = arith.constant 0 : index
    %111 = vector.load %arg12[%c0_55, %c0_56] : memref<256x1152xbf16, #tpu.memory_space<vmem>>, vector<256x1152xbf16>
    %c0_57 = arith.constant 0 : index
    %c0_58 = arith.constant 0 : index
    %c0_59 = arith.constant 0 : index
    %112 = vector.load %arg6[%c0_57, %c0_58, %c0_59] : memref<2x1152x128xbf16, #tpu.memory_space<vmem>>, vector<1x1152x128xbf16>
    %113 = vector.shape_cast %112 : vector<1x1152x128xbf16> to vector<1152x128xbf16>
    %cst_60 = arith.constant dense<0.000000e+00> : vector<256x128xf32>
    %114 = tpu.matmul %111, %113, %cst_60 {dimension_numbers = #tpu.dot_dimension_numbers<[1], [0], [0], [1], [0, 0, 1, 1], [], []>} : vector<256x1152xbf16>, vector<1152x128xbf16>, vector<256x128xf32> -> vector<256x128xf32>
    %c0_61 = arith.constant 0 : index
    %c0_62 = arith.constant 0 : index
    %c0_63 = arith.constant 0 : index
    %115 = vector.load %arg7[%c0_61, %c0_62, %c0_63] : memref<2x1x128xf32, #tpu.memory_space<vmem>>, vector<1x1x128xf32>
    %116 = vector.shape_cast %115 : vector<1x1x128xf32> to vector<1x128xf32>
    %117 = vector.broadcast %116 : vector<1x128xf32> to vector<256x128xf32>
    %118 = arith.addf %114, %117 : vector<256x128xf32>
    %cst_64 = arith.constant 5.000000e-01 : f32
    %119 = vector.broadcast %cst_64 : f32 to vector<256x128xf32>
    %120 = arith.mulf %119, %118 : vector<256x128xf32>
    %cst_65 = arith.constant 5.000000e-01 : f32
    %121 = vector.broadcast %cst_65 : f32 to vector<256x128xf32>
    %122 = arith.mulf %121, %118 : vector<256x128xf32>
    %123 = math.tanh %122 : vector<256x128xf32>
    %cst_66 = arith.constant 1.000000e+00 : f32
    %124 = vector.broadcast %cst_66 : f32 to vector<256x128xf32>
    %125 = arith.addf %124, %123 : vector<256x128xf32>
    %126 = arith.mulf %120, %125 : vector<256x128xf32>
    %127 = arith.addf %17, %126 : vector<256x128xf32>
    %128 = arith.truncf %127 : vector<256x128xf32> to vector<256x128xbf16>
    %c1 = arith.constant 1 : index
    %c0_67 = arith.constant 0 : index
    %c0_68 = arith.constant 0 : index
    %129 = vector.load %arg4[%c1, %c0_67, %c0_68] : memref<2x128x128xbf16, #tpu.memory_space<vmem>>, vector<1x128x128xbf16>
    %130 = vector.shape_cast %129 : vector<1x128x128xbf16> to vector<128x128xbf16>
    %cst_69 = arith.constant dense<0.000000e+00> : vector<256x128xf32>
    %131 = tpu.matmul %128, %130, %cst_69 {dimension_numbers = #tpu.dot_dimension_numbers<[1], [0], [0], [1], [0, 0, 1, 1], [], []>} : vector<256x128xbf16>, vector<128x128xbf16>, vector<256x128xf32> -> vector<256x128xf32>
    %c1_70 = arith.constant 1 : index
    %c0_71 = arith.constant 0 : index
    %c0_72 = arith.constant 0 : index
    %132 = vector.load %arg5[%c1_70, %c0_71, %c0_72] : memref<2x1x128xf32, #tpu.memory_space<vmem>>, vector<1x1x128xf32>
    %133 = vector.shape_cast %132 : vector<1x1x128xf32> to vector<1x128xf32>
    %134 = vector.broadcast %133 : vector<1x128xf32> to vector<256x128xf32>
    %135 = arith.addf %131, %134 : vector<256x128xf32>
    %cst_73 = arith.constant 5.000000e-01 : f32
    %136 = vector.broadcast %cst_73 : f32 to vector<256x128xf32>
    %137 = arith.mulf %136, %135 : vector<256x128xf32>
    %cst_74 = arith.constant 5.000000e-01 : f32
    %138 = vector.broadcast %cst_74 : f32 to vector<256x128xf32>
    %139 = arith.mulf %138, %135 : vector<256x128xf32>
    %140 = math.tanh %139 : vector<256x128xf32>
    %cst_75 = arith.constant 1.000000e+00 : f32
    %141 = vector.broadcast %cst_75 : f32 to vector<256x128xf32>
    %142 = arith.addf %141, %140 : vector<256x128xf32>
    %143 = arith.mulf %137, %142 : vector<256x128xf32>
    %c24_76 = arith.constant 24 : index
    %c0_77 = arith.constant 0 : index
    %144 = vector.load %arg11[%c24_76, %c0_77] : memref<304x128xf32, #tpu.memory_space<vmem>>, vector<256x128xf32>
    tpu.vector_store %arg11[%c24_76, %c0_77], %143 {strides = array<i32>} : memref<304x128xf32, #tpu.memory_space<vmem>>, vector<256x128xf32>,
    %c7_78 = arith.constant 7 : index
    %c0_79 = arith.constant 0 : index
    %145 = vector.load %arg11[%c7_78, %c0_79] : memref<304x128xf32, #tpu.memory_space<vmem>>, vector<256x128xf32>
    %cst_80 = arith.constant 0.000000e+00 : f32
    %146 = vector.shape_cast %36 : vector<256x1xi1> to vector<256x1xi1>
    %147 = vector.broadcast %146 : vector<256x1xi1> to vector<256x128xi1>
    %148 = vector.broadcast %cst_80 : f32 to vector<256x128xf32>
    %149 = arith.select %147, %145, %148 : vector<256x128xi1>, vector<256x128xf32>
    %150 = arith.truncf %149 : vector<256x128xf32> to vector<256x128xbf16>
    %c0_81 = arith.constant 0 : index
    %c0_82 = arith.constant 0 : index
    %151 = vector.load %arg12[%c0_81, %c0_82] : memref<256x1152xbf16, #tpu.memory_space<vmem>>, vector<256x128xbf16>
    tpu.vector_store %arg12[%c0_81, %c0_82], %150 {strides = array<i32>} : memref<256x1152xbf16, #tpu.memory_space<vmem>>, vector<256x128xbf16>,
    %c8_83 = arith.constant 8 : index
    %c0_84 = arith.constant 0 : index
    %152 = vector.load %arg11[%c8_83, %c0_84] : memref<304x128xf32, #tpu.memory_space<vmem>>, vector<256x128xf32>
    %153 = arith.truncf %152 : vector<256x128xf32> to vector<256x128xbf16>
    %c0_85 = arith.constant 0 : index
    %c128_86 = arith.constant 128 : index
    %154 = vector.load %arg12[%c0_85, %c128_86] : memref<256x1152xbf16, #tpu.memory_space<vmem>>, vector<256x128xbf16>
    tpu.vector_store %arg12[%c0_85, %c128_86], %153 {strides = array<i32>} : memref<256x1152xbf16, #tpu.memory_space<vmem>>, vector<256x128xbf16>,
    %c9_87 = arith.constant 9 : index
    %c0_88 = arith.constant 0 : index
    %155 = vector.load %arg11[%c9_87, %c0_88] : memref<304x128xf32, #tpu.memory_space<vmem>>, vector<256x128xf32>
    %cst_89 = arith.constant 0.000000e+00 : f32
    %156 = vector.shape_cast %38 : vector<256x1xi1> to vector<256x1xi1>
    %157 = vector.broadcast %156 : vector<256x1xi1> to vector<256x128xi1>
    %158 = vector.broadcast %cst_89 : f32 to vector<256x128xf32>
    %159 = arith.select %157, %155, %158 : vector<256x128xi1>, vector<256x128xf32>
    %160 = arith.truncf %159 : vector<256x128xf32> to vector<256x128xbf16>
    %c0_90 = arith.constant 0 : index
    %c256_91 = arith.constant 256 : index
    %161 = vector.load %arg12[%c0_90, %c256_91] : memref<256x1152xbf16, #tpu.memory_space<vmem>>, vector<256x128xbf16>
    tpu.vector_store %arg12[%c0_90, %c256_91], %160 {strides = array<i32>} : memref<256x1152xbf16, #tpu.memory_space<vmem>>, vector<256x128xbf16>,
    %c23_92 = arith.constant 23 : index
    %c0_93 = arith.constant 0 : index
    %162 = vector.load %arg11[%c23_92, %c0_93] : memref<304x128xf32, #tpu.memory_space<vmem>>, vector<256x128xf32>
    %cst_94 = arith.constant 0.000000e+00 : f32
    %163 = vector.shape_cast %36 : vector<256x1xi1> to vector<256x1xi1>
    %164 = vector.broadcast %163 : vector<256x1xi1> to vector<256x128xi1>
    %165 = vector.broadcast %cst_94 : f32 to vector<256x128xf32>
    %166 = arith.select %164, %162, %165 : vector<256x128xi1>, vector<256x128xf32>
    %167 = arith.truncf %166 : vector<256x128xf32> to vector<256x128xbf16>
    %c0_95 = arith.constant 0 : index
    %c384_96 = arith.constant 384 : index
    %168 = vector.load %arg12[%c0_95, %c384_96] : memref<256x1152xbf16, #tpu.memory_space<vmem>>, vector<256x128xbf16>
    tpu.vector_store %arg12[%c0_95, %c384_96], %167 {strides = array<i32>} : memref<256x1152xbf16, #tpu.memory_space<vmem>>, vector<256x128xbf16>,
    %c24_97 = arith.constant 24 : index
    %c0_98 = arith.constant 0 : index
    %169 = vector.load %arg11[%c24_97, %c0_98] : memref<304x128xf32, #tpu.memory_space<vmem>>, vector<256x128xf32>
    %170 = arith.truncf %169 : vector<256x128xf32> to vector<256x128xbf16>
    %c0_99 = arith.constant 0 : index
    %c512_100 = arith.constant 512 : index
    %171 = vector.load %arg12[%c0_99, %c512_100] : memref<256x1152xbf16, #tpu.memory_space<vmem>>, vector<256x128xbf16>
    tpu.vector_store %arg12[%c0_99, %c512_100], %170 {strides = array<i32>} : memref<256x1152xbf16, #tpu.memory_space<vmem>>, vector<256x128xbf16>,
    %c25_101 = arith.constant 25 : index
    %c0_102 = arith.constant 0 : index
    %172 = vector.load %arg11[%c25_101, %c0_102] : memref<304x128xf32, #tpu.memory_space<vmem>>, vector<256x128xf32>
    %cst_103 = arith.constant 0.000000e+00 : f32
    %173 = vector.shape_cast %38 : vector<256x1xi1> to vector<256x1xi1>
    %174 = vector.broadcast %173 : vector<256x1xi1> to vector<256x128xi1>
    %175 = vector.broadcast %cst_103 : f32 to vector<256x128xf32>
    %176 = arith.select %174, %172, %175 : vector<256x128xi1>, vector<256x128xf32>
    %177 = arith.truncf %176 : vector<256x128xf32> to vector<256x128xbf16>
    %c0_104 = arith.constant 0 : index
    %c640_105 = arith.constant 640 : index
    %178 = vector.load %arg12[%c0_104, %c640_105] : memref<256x1152xbf16, #tpu.memory_space<vmem>>, vector<256x128xbf16>
    tpu.vector_store %arg12[%c0_104, %c640_105], %177 {strides = array<i32>} : memref<256x1152xbf16, #tpu.memory_space<vmem>>, vector<256x128xbf16>,
    %c39_106 = arith.constant 39 : index
    %c0_107 = arith.constant 0 : index
    %179 = vector.load %arg11[%c39_106, %c0_107] : memref<304x128xf32, #tpu.memory_space<vmem>>, vector<256x128xf32>
    %cst_108 = arith.constant 0.000000e+00 : f32
    %180 = vector.shape_cast %36 : vector<256x1xi1> to vector<256x1xi1>
    %181 = vector.broadcast %180 : vector<256x1xi1> to vector<256x128xi1>
    %182 = vector.broadcast %cst_108 : f32 to vector<256x128xf32>
    %183 = arith.select %181, %179, %182 : vector<256x128xi1>, vector<256x128xf32>
    %184 = arith.truncf %183 : vector<256x128xf32> to vector<256x128xbf16>
    %c0_109 = arith.constant 0 : index
    %c768_110 = arith.constant 768 : index
    %185 = vector.load %arg12[%c0_109, %c768_110] : memref<256x1152xbf16, #tpu.memory_space<vmem>>, vector<256x128xbf16>
    tpu.vector_store %arg12[%c0_109, %c768_110], %184 {strides = array<i32>} : memref<256x1152xbf16, #tpu.memory_space<vmem>>, vector<256x128xbf16>,
    %c40_111 = arith.constant 40 : index
    %c0_112 = arith.constant 0 : index
    %186 = vector.load %arg11[%c40_111, %c0_112] : memref<304x128xf32, #tpu.memory_space<vmem>>, vector<256x128xf32>
    %187 = arith.truncf %186 : vector<256x128xf32> to vector<256x128xbf16>
    %c0_113 = arith.constant 0 : index
    %c896_114 = arith.constant 896 : index
    %188 = vector.load %arg12[%c0_113, %c896_114] : memref<256x1152xbf16, #tpu.memory_space<vmem>>, vector<256x128xbf16>
    tpu.vector_store %arg12[%c0_113, %c896_114], %187 {strides = array<i32>} : memref<256x1152xbf16, #tpu.memory_space<vmem>>, vector<256x128xbf16>,
    %c41_115 = arith.constant 41 : index
    %c0_116 = arith.constant 0 : index
    %189 = vector.load %arg11[%c41_115, %c0_116] : memref<304x128xf32, #tpu.memory_space<vmem>>, vector<256x128xf32>
    %cst_117 = arith.constant 0.000000e+00 : f32
    %190 = vector.shape_cast %38 : vector<256x1xi1> to vector<256x1xi1>
    %191 = vector.broadcast %190 : vector<256x1xi1> to vector<256x128xi1>
    %192 = vector.broadcast %cst_117 : f32 to vector<256x128xf32>
    %193 = arith.select %191, %189, %192 : vector<256x128xi1>, vector<256x128xf32>
    %194 = arith.truncf %193 : vector<256x128xf32> to vector<256x128xbf16>
    %c0_118 = arith.constant 0 : index
    %c1024_119 = arith.constant 1024 : index
    %195 = vector.load %arg12[%c0_118, %c1024_119] : memref<256x1152xbf16, #tpu.memory_space<vmem>>, vector<256x128xbf16>
    tpu.vector_store %arg12[%c0_118, %c1024_119], %194 {strides = array<i32>} : memref<256x1152xbf16, #tpu.memory_space<vmem>>, vector<256x128xbf16>,
    %c0_120 = arith.constant 0 : index
    %c0_121 = arith.constant 0 : index
    %196 = vector.load %arg12[%c0_120, %c0_121] : memref<256x1152xbf16, #tpu.memory_space<vmem>>, vector<256x1152xbf16>
    %c1_122 = arith.constant 1 : index
    %c0_123 = arith.constant 0 : index
    %c0_124 = arith.constant 0 : index
    %197 = vector.load %arg6[%c1_122, %c0_123, %c0_124] : memref<2x1152x128xbf16, #tpu.memory_space<vmem>>, vector<1x1152x128xbf16>
    %198 = vector.shape_cast %197 : vector<1x1152x128xbf16> to vector<1152x128xbf16>
    %cst_125 = arith.constant dense<0.000000e+00> : vector<256x128xf32>
    %199 = tpu.matmul %196, %198, %cst_125 {dimension_numbers = #tpu.dot_dimension_numbers<[1], [0], [0], [1], [0, 0, 1, 1], [], []>} : vector<256x1152xbf16>, vector<1152x128xbf16>, vector<256x128xf32> -> vector<256x128xf32>
    %c1_126 = arith.constant 1 : index
    %c0_127 = arith.constant 0 : index
    %c0_128 = arith.constant 0 : index
    %200 = vector.load %arg7[%c1_126, %c0_127, %c0_128] : memref<2x1x128xf32, #tpu.memory_space<vmem>>, vector<1x1x128xf32>
    %201 = vector.shape_cast %200 : vector<1x1x128xf32> to vector<1x128xf32>
    %202 = vector.broadcast %201 : vector<1x128xf32> to vector<256x128xf32>
    %203 = arith.addf %199, %202 : vector<256x128xf32>
    %cst_129 = arith.constant 5.000000e-01 : f32
    %204 = vector.broadcast %cst_129 : f32 to vector<256x128xf32>
    %205 = arith.mulf %204, %203 : vector<256x128xf32>
    %cst_130 = arith.constant 5.000000e-01 : f32
    %206 = vector.broadcast %cst_130 : f32 to vector<256x128xf32>
    %207 = arith.mulf %206, %203 : vector<256x128xf32>
    %208 = math.tanh %207 : vector<256x128xf32>
    %cst_131 = arith.constant 1.000000e+00 : f32
    %209 = vector.broadcast %cst_131 : f32 to vector<256x128xf32>
    %210 = arith.addf %209, %208 : vector<256x128xf32>
    %211 = arith.mulf %205, %210 : vector<256x128xf32>
    %212 = arith.addf %127, %211 : vector<256x128xf32>
    %c0_132 = arith.constant 0 : index
    %c0_133 = arith.constant 0 : index
    %213 = vector.load %arg12[%c0_132, %c0_133] : memref<256x1152xbf16, #tpu.memory_space<vmem>>, vector<256x128xbf16>
    tpu.vector_store %arg12[%c0_132, %c0_133], %16 {strides = array<i32>} : memref<256x1152xbf16, #tpu.memory_space<vmem>>, vector<256x128xbf16>,
    %214 = arith.truncf %212 : vector<256x128xf32> to vector<256x128xbf16>
    %c0_134 = arith.constant 0 : index
    %c128_135 = arith.constant 128 : index
    %215 = vector.load %arg12[%c0_134, %c128_135] : memref<256x1152xbf16, #tpu.memory_space<vmem>>, vector<256x128xbf16>
    tpu.vector_store %arg12[%c0_134, %c128_135], %214 {strides = array<i32>} : memref<256x1152xbf16, #tpu.memory_space<vmem>>, vector<256x128xbf16>,
    %c0_136 = arith.constant 0 : index
    %c0_137 = arith.constant 0 : index
    %216 = vector.load %arg12[%c0_136, %c0_137] : memref<256x1152xbf16, #tpu.memory_space<vmem>>, vector<256x256xbf16>
    %c0_138 = arith.constant 0 : index
    %c0_139 = arith.constant 0 : index
    %217 = vector.load %arg8[%c0_138, %c0_139] : memref<256x128xbf16, #tpu.memory_space<vmem>>, vector<256x128xbf16>
    %cst_140 = arith.constant dense<0.000000e+00> : vector<256x128xf32>
    %218 = tpu.matmul %216, %217, %cst_140 {dimension_numbers = #tpu.dot_dimension_numbers<[1], [0], [0], [1], [0, 0, 1, 1], [], []>} : vector<256x256xbf16>, vector<256x128xbf16>, vector<256x128xf32> -> vector<256x128xf32>
    %c0_141 = arith.constant 0 : index
    %c0_142 = arith.constant 0 : index
    %219 = vector.load %arg9[%c0_141, %c0_142] : memref<1x128xf32, #tpu.memory_space<vmem>>, vector<1x128xf32>
    %220 = vector.broadcast %219 : vector<1x128xf32> to vector<256x128xf32>
    %221 = arith.addf %218, %220 : vector<256x128xf32>
    %cst_143 = arith.constant 5.000000e-01 : f32
    %222 = vector.broadcast %cst_143 : f32 to vector<256x128xf32>
    %223 = arith.mulf %222, %221 : vector<256x128xf32>
    %cst_144 = arith.constant 5.000000e-01 : f32
    %224 = vector.broadcast %cst_144 : f32 to vector<256x128xf32>
    %225 = arith.mulf %224, %221 : vector<256x128xf32>
    %226 = math.tanh %225 : vector<256x128xf32>
    %cst_145 = arith.constant 1.000000e+00 : f32
    %227 = vector.broadcast %cst_145 : f32 to vector<256x128xf32>
    %228 = arith.addf %227, %226 : vector<256x128xf32>
    %229 = arith.mulf %223, %228 : vector<256x128xf32>
    %230 = arith.truncf %229 : vector<256x128xf32> to vector<256x128xbf16>
    %c0_146 = arith.constant 0 : index
    %c0_147 = arith.constant 0 : index
    %c0_148 = arith.constant 0 : index
    %231 = vector.load %arg10[%c0_146, %c0_147, %c0_148] : memref<1x256x128xbf16, #tpu.memory_space<vmem>>, vector<1x256x128xbf16>
    %232 = vector.shape_cast %231 : vector<1x256x128xbf16> to vector<256x128xbf16>
    %233 = vector.shape_cast %230 : vector<256x128xbf16> to vector<1x256x128xbf16>
    tpu.vector_store %arg10[%c0_146, %c0_147, %c0_148], %233 {strides = array<i32>} : memref<1x256x128xbf16, #tpu.memory_space<vmem>>, vector<1x256x128xbf16>,
    return
  }
  func.func @transform_0(%arg0: i32) -> (i32, i32, i32) {
    %c0_i32 = arith.constant 0 : i32
    %c0_i32_0 = arith.constant 0 : i32
    %c0_i32_1 = arith.constant 0 : i32
    return %arg0, %c0_i32, %c0_i32_0 : i32, i32, i32
  }
  func.func @transform_1(%arg0: i32) -> (i32, i32) {
    %c0_i32 = arith.constant 0 : i32
    %c0_i32_0 = arith.constant 0 : i32
    %c0_i32_1 = arith.constant 0 : i32
    return %c0_i32, %c0_i32_0 : i32, i32
  }
  func.func @transform_2(%arg0: i32) -> (i32, i32) {
    %c0_i32 = arith.constant 0 : i32
    %c0_i32_0 = arith.constant 0 : i32
    %c0_i32_1 = arith.constant 0 : i32
    return %c0_i32, %c0_i32_0 : i32, i32
  }
  func.func @transform_3(%arg0: i32) -> (i32, i32, i32) {
    %c0_i32 = arith.constant 0 : i32
    %c0_i32_0 = arith.constant 0 : i32
    %c0_i32_1 = arith.constant 0 : i32
    %c0_i32_2 = arith.constant 0 : i32
    return %c0_i32, %c0_i32_0, %c0_i32_1 : i32, i32, i32
  }
  func.func @transform_4(%arg0: i32) -> (i32, i32, i32) {
    %c0_i32 = arith.constant 0 : i32
    %c0_i32_0 = arith.constant 0 : i32
    %c0_i32_1 = arith.constant 0 : i32
    %c0_i32_2 = arith.constant 0 : i32
    return %c0_i32, %c0_i32_0, %c0_i32_1 : i32, i32, i32
  }
  func.func @transform_5(%arg0: i32) -> (i32, i32, i32) {
    %c0_i32 = arith.constant 0 : i32
    %c0_i32_0 = arith.constant 0 : i32
    %c0_i32_1 = arith.constant 0 : i32
    %c0_i32_2 = arith.constant 0 : i32
    return %c0_i32, %c0_i32_0, %c0_i32_1 : i32, i32, i32
  }
  func.func @transform_6(%arg0: i32) -> (i32, i32, i32) {
    %c0_i32 = arith.constant 0 : i32
    %c0_i32_0 = arith.constant 0 : i32
    %c0_i32_1 = arith.constant 0 : i32
    %c0_i32_2 = arith.constant 0 : i32
    return %c0_i32, %c0_i32_0, %c0_i32_1 : i32, i32, i32
  }
  func.func @transform_7(%arg0: i32) -> (i32, i32) {
    %c0_i32 = arith.constant 0 : i32
    %c0_i32_0 = arith.constant 0 : i32
    %c0_i32_1 = arith.constant 0 : i32
    return %c0_i32, %c0_i32_0 : i32, i32
  }
  func.func @transform_8(%arg0: i32) -> (i32, i32) {
    %c0_i32 = arith.constant 0 : i32
    %c0_i32_0 = arith.constant 0 : i32
    %c0_i32_1 = arith.constant 0 : i32
    return %c0_i32, %c0_i32_0 : i32, i32
  }
  func.func @transform_9(%arg0: i32) -> (i32, i32, i32) {
    %c0_i32 = arith.constant 0 : i32
    %c0_i32_0 = arith.constant 0 : i32
    %c0_i32_1 = arith.constant 0 : i32
    return %arg0, %c0_i32, %c0_i32_0 : i32, i32, i32
  }
}

</mosaic_0001>

<llo_original>
// kernel: csp_block_pallas.1
$region0: #{csp_block_pallas.1}
  #allocation0 [shape = 'u32[]', space=smem, size = 0x4, offset = 0x4, fixed_abs, tag = 'smem constant byte address 0x4 - core index']
  #allocation1 [shape = 'u32[144,128]{1,0:T(1,128)}', space=vmem, size = 0x12000, scoped, tag = 'internal scratch']
  #allocation2 [shape = 'f32[304,128]{1,0:T(8,128)}', space=vmem, size = 0x26000, scoped, tag = 'scratch operand']
  #allocation3 [shape = 'bf16[256,1152]{1,0:T(16,128)(2,1)}', space=vmem, size = 0x90000, scoped, tag = 'scratch operand']
  %s0 = inlined_call_operand.vmem [shape: bf16[2,256,128], index: 0, kind: input, shape index: {}]
  %s1 = inlined_call_operand.vmem [shape: bf16[128,256], index: 1, kind: input, shape index: {}]
  %s2 = inlined_call_operand.vmem [shape: f32[1,256], index: 2, kind: input, shape index: {}]
  %s3 = inlined_call_operand.vmem [shape: bf16[2,128,128], index: 3, kind: input, shape index: {}]
  %s4 = inlined_call_operand.vmem [shape: f32[2,1,128], index: 4, kind: input, shape index: {}]
  %s5 = inlined_call_operand.vmem [shape: bf16[2,1152,128], index: 5, kind: input, shape index: {}]
  %s6 = inlined_call_operand.vmem [shape: f32[2,1,128], index: 6, kind: input, shape index: {}]
  %s7 = inlined_call_operand.vmem [shape: bf16[256,128], index: 7, kind: input, shape index: {}]
  %s8 = inlined_call_operand.vmem [shape: f32[1,128], index: 8, kind: input, shape index: {}]
  %s9 = inlined_call_operand.vmem [shape: bf16[2,256,128], index: 9, kind: output, shape index: {}]
  %s10 = sld [smem:[#allocation0]]
  $region69: #{csp_block_pallas.1} parent=0
    _
  %s12 = ssub.s32 1, %s10
  %s13 = scalar_select 0, %s12, %s10
  loop: start=0, step=1, limit=4
  $region2: #{csp_block_pallas.1} parent=0 // loop_pre_header
    _
  $region3: #{csp_block_pallas.1} parent=0 // loop_header
    %s15 = sphi 0, %s19
    %p16 = scmp.ge.s32.totalorder %s15, 4
    %s25 = sphi 0, %s27
    %s28 = sphi 0, %s25
    %s29 = sphi 0, %s28
    %s45 = sphi 0, %s29
    %s49 = sphi 0, %s49
    %s51 = sphi 0, %s49
    %s52 = sphi 0, %s51
    %s66 = sphi 0, %s52
    %s70 = sphi 0, %s70
    %s72 = sphi 0, %s70
    %s73 = sphi 0, %s72
    %s87 = sphi 0, %s73
    %s91 = sphi 0, %s91
    %s93 = sphi 0, %s91
    %s94 = sphi 0, %s93
    %s108 = sphi 0, %s94
    %s112 = sphi 0, %s112
    %s114 = sphi 0, %s112
    %s115 = sphi 0, %s114
    %s129 = sphi 0, %s115
    %s133 = sphi 0, %s133
    %s135 = sphi 0, %s133
    %s136 = sphi 0, %s135
    %s150 = sphi 0, %s136
    %s154 = sphi 0, %s154
    %s156 = sphi 0, %s154
    %s157 = sphi 0, %s156
    %s171 = sphi 0, %s157
    %s175 = sphi 0, %s175
    %s177 = sphi 0, %s175
    %s178 = sphi 0, %s177
    %s192 = sphi 0, %s178
    %s196 = sphi 0, %s196
    %s198 = sphi 0, %s196
    %s199 = sphi 0, %s198
    %s213 = sphi 0, %s199
    %s219 = sphi 0, %s221
    %s222 = sphi 0, %s219
    %s223 = sphi 0, %s222
    %s239 = sphi 0, %s223
  $region4: #{csp_block_pallas.1} parent=0 // loop_header_branch
    %18 = sbr.rel (%p16) target = $region8
  $region5: #{csp_block_pallas.1} parent=0 // loop_body
    %s20 = ssub.s32 %s15, 1
    %s21 = ssub.s32 %s15, 2
    %s22 = sadd.s32 %s15, 1
    %s23 = ssub.s32 %s15, %s22
    %p24 = scmp.eq.s32.totalorder %s23, 0
    %s26 = sadd.s32 %s25, 1
    %s27 = scalar_select %p24, %s25, %s26
    %p30 = pneg %p24
    %p31 = scmp.eq.s32.totalorder %s15, 1
    %p32 = por %p30, %p31
    %p33 = scmp.ne.s32.totalorder %s25, %s28
    %p34 = scmp.eq.s32.totalorder %s15, 0
    %p35 = por %p33, %p34
    %p36 = scmp.ne.s32.totalorder %s25, %s28
    %p37 = scmp.eq.s32.totalorder %s20, 1
    %p38 = por %p36, %p37
    %p39 = scmp.ne.s32.totalorder %s28, %s29
    %p40 = scmp.eq.s32.totalorder %s20, 0
    %p41 = por %p39, %p40
    %p42 = scmp.ne.s32.totalorder %s28, %s29
    %p43 = scmp.eq.s32.totalorder %s21, 1
    %p44 = por %p42, %p43
    %p46 = scmp.ne.s32.totalorder %s29, %s45
    %p47 = scmp.eq.s32.totalorder %s21, 0
    %p48 = por %p46, %p47
    %s50 = sadd.s32 %s49, 1
    %p53 = scmp.eq.s32.totalorder %s15, 1
    %p54 = scmp.ne.s32.totalorder %s49, %s51
    %p55 = scmp.eq.s32.totalorder %s15, 0
    %p56 = por %p54, %p55
    %p57 = scmp.ne.s32.totalorder %s49, %s51
    %p58 = scmp.eq.s32.totalorder %s20, 1
    %p59 = por %p57, %p58
    %p60 = scmp.ne.s32.totalorder %s51, %s52
    %p61 = scmp.eq.s32.totalorder %s20, 0
    %p62 = por %p60, %p61
    %p63 = scmp.ne.s32.totalorder %s51, %s52
    %p64 = scmp.eq.s32.totalorder %s21, 1
    %p65 = por %p63, %p64
    %p67 = scmp.ne.s32.totalorder %s52, %s66
    %p68 = scmp.eq.s32.totalorder %s21, 0
    %p69 = por %p67, %p68
    %s71 = sadd.s32 %s70, 1
    %p74 = scmp.eq.s32.totalorder %s15, 1
    %p75 = scmp.ne.s32.totalorder %s70, %s72
    %p76 = scmp.eq.s32.totalorder %s15, 0
    %p77 = por %p75, %p76
    %p78 = scmp.ne.s32.totalorder %s70, %s72
    %p79 = scmp.eq.s32.totalorder %s20, 1
    %p80 = por %p78, %p79
    %p81 = scmp.ne.s32.totalorder %s72, %s73
    %p82 = scmp.eq.s32.totalorder %s20, 0
    %p83 = por %p81, %p82
    %p84 = scmp.ne.s32.totalorder %s72, %s73
    %p85 = scmp.eq.s32.totalorder %s21, 1
    %p86 = por %p84, %p85
    %p88 = scmp.ne.s32.totalorder %s73, %s87
    %p89 = scmp.eq.s32.totalorder %s21, 0
    %p90 = por %p88, %p89
    %s92 = sadd.s32 %s91, 1
    %p95 = scmp.eq.s32.totalorder %s15, 1
    %p96 = scmp.ne.s32.totalorder %s91, %s93
    %p97 = scmp.eq.s32.totalorder %s15, 0
    %p98 = por %p96, %p97
    %p99 = scmp.ne.s32.totalorder %s91, %s93
    %p100 = scmp.eq.s32.totalorder %s20, 1
    %p101 = por %p99, %p100
    %p102 = scmp.ne.s32.totalorder %s93, %s94
    %p103 = scmp.eq.s32.totalorder %s20, 0
    %p104 = por %p102, %p103
    %p105 = scmp.ne.s32.totalorder %s93, %s94
    %p106 = scmp.eq.s32.totalorder %s21, 1
    %p107 = por %p105, %p106
    %p109 = scmp.ne.s32.totalorder %s94, %s108
    %p110 = scmp.eq.s32.totalorder %s21, 0
    %p111 = por %p109, %p110
    %s113 = sadd.s32 %s112, 1
    %p116 = scmp.eq.s32.totalorder %s15, 1
    %p117 = scmp.ne.s32.totalorder %s112, %s114
    %p118 = scmp.eq.s32.totalorder %s15, 0
    %p119 = por %p117, %p118
    %p120 = scmp.ne.s32.totalorder %s112, %s114
    %p121 = scmp.eq.s32.totalorder %s20, 1
    %p122 = por %p120, %p121
    %p123 = scmp.ne.s32.totalorder %s114, %s115
    %p124 = scmp.eq.s32.totalorder %s20, 0
    %p125 = por %p123, %p124
    %p126 = scmp.ne.s32.totalorder %s114, %s115
    %p127 = scmp.eq.s32.totalorder %s21, 1
    %p128 = por %p126, %p127
    %p130 = scmp.ne.s32.totalorder %s115, %s129
    %p131 = scmp.eq.s32.totalorder %s21, 0
    %p132 = por %p130, %p131
    %s134 = sadd.s32 %s133, 1
    %p137 = scmp.eq.s32.totalorder %s15, 1
    %p138 = scmp.ne.s32.totalorder %s133, %s135
    %p139 = scmp.eq.s32.totalorder %s15, 0
    %p140 = por %p138, %p139
    %p141 = scmp.ne.s32.totalorder %s133, %s135
    %p142 = scmp.eq.s32.totalorder %s20, 1
    %p143 = por %p141, %p142
    %p144 = scmp.ne.s32.totalorder %s135, %s136
    %p145 = scmp.eq.s32.totalorder %s20, 0
    %p146 = por %p144, %p145
    %p147 = scmp.ne.s32.totalorder %s135, %s136
    %p148 = scmp.eq.s32.totalorder %s21, 1
    %p149 = por %p147, %p148
    %p151 = scmp.ne.s32.totalorder %s136, %s150
    %p152 = scmp.eq.s32.totalorder %s21, 0
    %p153 = por %p151, %p152
    %s155 = sadd.s32 %s154, 1
    %p158 = scmp.eq.s32.totalorder %s15, 1
    %p159 = scmp.ne.s32.totalorder %s154, %s156
    %p160 = scmp.eq.s32.totalorder %s15, 0
    %p161 = por %p159, %p160
    %p162 = scmp.ne.s32.totalorder %s154, %s156
    %p163 = scmp.eq.s32.totalorder %s20, 1
    %p164 = por %p162, %p163
    %p165 = scmp.ne.s32.totalorder %s156, %s157
    %p166 = scmp.eq.s32.totalorder %s20, 0
    %p167 = por %p165, %p166
    %p168 = scmp.ne.s32.totalorder %s156, %s157
    %p169 = scmp.eq.s32.totalorder %s21, 1
    %p170 = por %p168, %p169
    %p172 = scmp.ne.s32.totalorder %s157, %s171
    %p173 = scmp.eq.s32.totalorder %s21, 0
    %p174 = por %p172, %p173
    %s176 = sadd.s32 %s175, 1
    %p179 = scmp.eq.s32.totalorder %s15, 1
    %p180 = scmp.ne.s32.totalorder %s175, %s177
    %p181 = scmp.eq.s32.totalorder %s15, 0
    %p182 = por %p180, %p181
    %p183 = scmp.ne.s32.totalorder %s175, %s177
    %p184 = scmp.eq.s32.totalorder %s20, 1
    %p185 = por %p183, %p184
    %p186 = scmp.ne.s32.totalorder %s177, %s178
    %p187 = scmp.eq.s32.totalorder %s20, 0
    %p188 = por %p186, %p187
    %p189 = scmp.ne.s32.totalorder %s177, %s178
    %p190 = scmp.eq.s32.totalorder %s21, 1
    %p191 = por %p189, %p190
    %p193 = scmp.ne.s32.totalorder %s178, %s192
    %p194 = scmp.eq.s32.totalorder %s21, 0
    %p195 = por %p193, %p194
    %s197 = sadd.s32 %s196, 1
    %p200 = scmp.eq.s32.totalorder %s15, 1
    %p201 = scmp.ne.s32.totalorder %s196, %s198
    %p202 = scmp.eq.s32.totalorder %s15, 0
    %p203 = por %p201, %p202
    %p204 = scmp.ne.s32.totalorder %s196, %s198
    %p205 = scmp.eq.s32.totalorder %s20, 1
    %p206 = por %p204, %p205
    %p207 = scmp.ne.s32.totalorder %s198, %s199
    %p208 = scmp.eq.s32.totalorder %s20, 0
    %p209 = por %p207, %p208
    %p210 = scmp.ne.s32.totalorder %s198, %s199
    %p211 = scmp.eq.s32.totalorder %s21, 1
    %p212 = por %p210, %p211
    %p214 = scmp.ne.s32.totalorder %s199, %s213
    %p215 = scmp.eq.s32.totalorder %s21, 0
    %p216 = por %p214, %p215
    %s217 = ssub.s32 %s15, %s22
    %p218 = scmp.eq.s32.totalorder %s217, 0
    %s220 = sadd.s32 %s219, 1
    %s221 = scalar_select %p218, %s219, %s220
    %p224 = pneg %p218
    %p225 = scmp.eq.s32.totalorder %s15, 1
    %p226 = por %p224, %p225
    %p227 = scmp.ne.s32.totalorder %s219, %s222
    %p228 = scmp.eq.s32.totalorder %s15, 0
    %p229 = por %p227, %p228
    %p230 = scmp.ne.s32.totalorder %s219, %s222
    %p231 = scmp.eq.s32.totalorder %s20, 1
    %p232 = por %p230, %p231
    %p233 = scmp.ne.s32.totalorder %s222, %s223
    %p234 = scmp.eq.s32.totalorder %s20, 0
    %p235 = por %p233, %p234
    %p236 = scmp.ne.s32.totalorder %s222, %s223
    %p237 = scmp.eq.s32.totalorder %s21, 1
    %p238 = por %p236, %p237
    %p240 = scmp.ne.s32.totalorder %s223, %s239
    %p241 = scmp.eq.s32.totalorder %s21, 0
    %p242 = por %p240, %p241
    %p243 = scmp.le.s32.totalorder 1, %s15
    %p244 = scmp.lt.s32.totalorder %s15, 3
    %p245 = pnand %p243, %p244
    %p246 = pneg %p245
    // Predicated region
    $region9: #{csp_block_pallas.1} parent=5 // pred_check
      _
    $region10: #{csp_block_pallas.1} parent=5 // pred_check_branch
      %248 = sbr.rel (%p245) target = $region12
    $region11: #{csp_block_pallas.1} parent=5 // pred_region
      %s249 = ssub.s32 %s15, 1
      // Predicated region
      $region13: #{csp_block_pallas.1} parent=11 // pred_check
        %p250 = pneg %p62
      $region14: #{csp_block_pallas.1} parent=11 // pred_check_branch
        %252 = sbr.rel (%p250) target = $region16
      $region15: #{csp_block_pallas.1} parent=11 // pred_region
        _
      $region16: #{csp_block_pallas.1} parent=11 // pred_fallthru
        _
      // Predicated region
      $region17: #{csp_block_pallas.1} parent=11 // pred_check
        %p253 = pneg %p83
      $region18: #{csp_block_pallas.1} parent=11 // pred_check_branch
        %255 = sbr.rel (%p253) target = $region20
      $region19: #{csp_block_pallas.1} parent=11 // pred_region
        _
      $region20: #{csp_block_pallas.1} parent=11 // pred_fallthru
        _
      // Predicated region
      $region21: #{csp_block_pallas.1} parent=11 // pred_check
        %p256 = pneg %p104
      $region22: #{csp_block_pallas.1} parent=11 // pred_check_branch
        %258 = sbr.rel (%p256) target = $region24
      $region23: #{csp_block_pallas.1} parent=11 // pred_region
        _
      $region24: #{csp_block_pallas.1} parent=11 // pred_fallthru
        _
      // Predicated region
      $region25: #{csp_block_pallas.1} parent=11 // pred_check
        %p259 = pneg %p125
      $region26: #{csp_block_pallas.1} parent=11 // pred_check_branch
        %261 = sbr.rel (%p259) target = $region28
      $region27: #{csp_block_pallas.1} parent=11 // pred_region
        _
      $region28: #{csp_block_pallas.1} parent=11 // pred_fallthru
        _
      // Predicated region
      $region29: #{csp_block_pallas.1} parent=11 // pred_check
        %p262 = pneg %p146
      $region30: #{csp_block_pallas.1} parent=11 // pred_check_branch
        %264 = sbr.rel (%p262) target = $region32
      $region31: #{csp_block_pallas.1} parent=11 // pred_region
        _
      $region32: #{csp_block_pallas.1} parent=11 // pred_fallthru
        _
      // Predicated region
      $region33: #{csp_block_pallas.1} parent=11 // pred_check
        %p265 = pneg %p167
      $region34: #{csp_block_pallas.1} parent=11 // pred_check_branch
        %267 = sbr.rel (%p265) target = $region36
      $region35: #{csp_block_pallas.1} parent=11 // pred_region
        _
      $region36: #{csp_block_pallas.1} parent=11 // pred_fallthru
        _
      // Predicated region
      $region37: #{csp_block_pallas.1} parent=11 // pred_check
        %p268 = pneg %p188
      $region38: #{csp_block_pallas.1} parent=11 // pred_check_branch
        %270 = sbr.rel (%p268) target = $region40
      $region39: #{csp_block_pallas.1} parent=11 // pred_region
        _
      $region40: #{csp_block_pallas.1} parent=11 // pred_fallthru
        _
      // Predicated region
      $region41: #{csp_block_pallas.1} parent=11 // pred_check
        %p271 = pneg %p209
      $region42: #{csp_block_pallas.1} parent=11 // pred_check_branch
        %273 = sbr.rel (%p271) target = $region44
      $region43: #{csp_block_pallas.1} parent=11 // pred_region
        _
      $region44: #{csp_block_pallas.1} parent=11 // pred_fallthru
        _
    $region12: #{csp_block_pallas.1} parent=5 // pred_fallthru
      _
    %p274 = scmp.lt.s32.totalorder %s15, 2
    // Predicated region
    $region45: #{csp_block_pallas.1} parent=5 // pred_check
      %p275 = pneg %p274
    $region46: #{csp_block_pallas.1} parent=5 // pred_check_branch
      %277 = sbr.rel (%p275) target = $region48
    $region47: #{csp_block_pallas.1} parent=5 // pred_region
      // Predicated region
      $region49: #{csp_block_pallas.1} parent=47 // pred_check
        %p278 = pneg %p35
      $region50: #{csp_block_pallas.1} parent=47 // pred_check_branch
        %280 = sbr.rel (%p278) target = $region52
      $region51: #{csp_block_pallas.1} parent=47 // pred_region
        %p281 = scmp.lt.s32.totalorder %s15, 1
        %s282 = scalar_select %p281, %s15, 1
        %s283 = smul.addr %s282, 32
        %s284 = smul.addr %s283, 4
        %s285 = scalar_lea.vmem %s0, %s284
      $region52: #{csp_block_pallas.1} parent=47 // pred_fallthru
        _
    $region48: #{csp_block_pallas.1} parent=5 // pred_fallthru
      _
    %p286 = scmp.le.s32.totalorder 1, %s15
    %p287 = scmp.lt.s32.totalorder %s15, 3
    %p288 = pnand %p286, %p287
    %p289 = pneg %p288
    // Predicated region
    $region53: #{csp_block_pallas.1} parent=5 // pred_check
      _
    $region54: #{csp_block_pallas.1} parent=5 // pred_check_branch
      %291 = sbr.rel (%p288) target = $region56
    $region55: #{csp_block_pallas.1} parent=5 // pred_region
      %s292 = ssub.s32 %s15, 1
      %p293 = scmp.lt.s32.totalorder %s20, 1
      %s294 = scalar_select %p293, %s20, 1
      %s295 = smul.addr %s294, 32
      %s296 = smul.addr %s295, 4
      %s297 = scalar_lea.vmem %s0, %s296
      %p298 = pneg %p41
      %p299 = pneg %p38
      %p300 = pneg %p62
      %p301 = pneg %p59
      %p302 = pneg %p83
      %p303 = pneg %p80
      %p304 = pneg %p104
      %p305 = pneg %p101
      %p306 = pneg %p125
      %p307 = pneg %p122
      %p308 = pneg %p146
      %p309 = pneg %p143
      %p310 = pneg %p167
      %p311 = pneg %p164
      %p312 = pneg %p188
      %p313 = pneg %p185
      %p314 = pneg %p209
      %p315 = pneg %p206
      %p316 = pneg %p235
      %p317 = pneg %p232
      %p318 = scmp.lt.s32.totalorder %s20, 1
      %s319 = scalar_select %p318, %s20, 1
      %s320 = smul.addr %s319, 32
      %s321 = smul.addr %s320, 4
      %s322 = scalar_lea.vmem %s9, %s321
      %p323 = scmp.lt.s32.totalorder %s20, 1
      %s324 = scalar_select %p323, %s20, 1
      %s325 = smul.addr %s324, 32
      %s326 = smul.addr %s325, 4
      %s327 = scalar_lea.vmem %s0, %s326
      %p328 = scmp.lt.s32.totalorder %s20, 1
      %s329 = scalar_select %p328, %s20, 1
      %s330 = smul.addr %s329, 32
      %s331 = smul.addr %s330, 4
      %s332 = scalar_lea.vmem %s9, %s331
      %v334 = vld [vmem:[%s327] sm:$0xf]
      %v335 = vld [vmem:[%s327 + $0x4] sm:$0xf]
      %v336 = vld [vmem:[%s327 + $0x8] sm:$0xf]
      %v337 = vld [vmem:[%s327 + $0xc] sm:$0xf]
      %v338 = vld [vmem:[%s327 + $0x10] sm:$0xf]
      %v339 = vld [vmem:[%s327 + $0x14] sm:$0xf]
      %v340 = vld [vmem:[%s327 + $0x18] sm:$0xf]
      %v341 = vld [vmem:[%s327 + $0x1c] sm:$0xf]
      %v342 = vld [vmem:[%s327 + $0x20] sm:$0xf]
      %v343 = vld [vmem:[%s327 + $0x24] sm:$0xf]
      %v344 = vld [vmem:[%s327 + $0x28] sm:$0xf]
      %v345 = vld [vmem:[%s327 + $0x2c] sm:$0xf]
      %v346 = vld [vmem:[%s327 + $0x30] sm:$0xf]
      %v347 = vld [vmem:[%s327 + $0x34] sm:$0xf]
      %v348 = vld [vmem:[%s327 + $0x38] sm:$0xf]
      %v349 = vld [vmem:[%s327 + $0x3c] sm:$0xf]
      %v350 = vld [vmem:[%s327 + $0x40] sm:$0xf]
      %v351 = vld [vmem:[%s327 + $0x44] sm:$0xf]
      %v352 = vld [vmem:[%s327 + $0x48] sm:$0xf]
      %v353 = vld [vmem:[%s327 + $0x4c] sm:$0xf]
      %v354 = vld [vmem:[%s327 + $0x50] sm:$0xf]
      %v355 = vld [vmem:[%s327 + $0x54] sm:$0xf]
      %v356 = vld [vmem:[%s327 + $0x58] sm:$0xf]
      %v357 = vld [vmem:[%s327 + $0x5c] sm:$0xf]
      %v358 = vld [vmem:[%s327 + $0x60] sm:$0xf]
      %v359 = vld [vmem:[%s327 + $0x64] sm:$0xf]
      %v360 = vld [vmem:[%s327 + $0x68] sm:$0xf]
      %v361 = vld [vmem:[%s327 + $0x6c] sm:$0xf]
      %v362 = vld [vmem:[%s327 + $0x70] sm:$0xf]
      %v363 = vld [vmem:[%s327 + $0x74] sm:$0xf]
      %v364 = vld [vmem:[%s327 + $0x78] sm:$0xf]
      %v365 = vld [vmem:[%s327 + $0x7c] sm:$0xf]
      %v366 = vld [vmem:[%s1] sm:$0xff]
      %v367 = vld [vmem:[%s1 + $0x8] sm:$0xff]
      %v368 = vld [vmem:[%s1 + $0x10] sm:$0xff]
      %v369 = vld [vmem:[%s1 + $0x18] sm:$0xff]
      %v370 = vld [vmem:[%s1 + $0x20] sm:$0xff]
      %v371 = vld [vmem:[%s1 + $0x28] sm:$0xff]
      %v372 = vld [vmem:[%s1 + $0x30] sm:$0xff]
      %v373 = vld [vmem:[%s1 + $0x38] sm:$0xff]
      %v374 = vld [vmem:[%s1 + $0x40] sm:$0xff]
      %v375 = vld [vmem:[%s1 + $0x48] sm:$0xff]
      %v376 = vld [vmem:[%s1 + $0x50] sm:$0xff]
      %v377 = vld [vmem:[%s1 + $0x58] sm:$0xff]
      %v378 = vld [vmem:[%s1 + $0x60] sm:$0xff]
      %v379 = vld [vmem:[%s1 + $0x68] sm:$0xff]
      %v380 = vld [vmem:[%s1 + $0x70] sm:$0xff]
      %v381 = vld [vmem:[%s1 + $0x78] sm:$0xff]
      %v382 = vld [vmem:[%s2] sm:$0x3]
      %v384 = vlaneseq
      %v385 = vshrl.u32 %v384, 7
      %v386 = vsub.s32 0, %v385
      %v387 = vrot.slane %v382, %v386
      %v388 = vlaneseq
      %v389 = vshrl.u32 %v388, 7
      %v390 = vsub.s32 1, %v389
      %v391 = vrot.slane %v382, %v390
      %v426 = vunpack.c.l.b16 %v334
      %v427 = vunpack.c.l.b16 %v335
      %v428 = vunpack.c.l.b16 %v336
      %v429 = vunpack.c.l.b16 %v337
      %v430 = vunpack.c.l.b16 %v338
      %v431 = vunpack.c.l.b16 %v339
      %v432 = vunpack.c.l.b16 %v340
      %v433 = vunpack.c.l.b16 %v341
      %v434 = vunpack.c.l.b16 %v342
      %v435 = vunpack.c.l.b16 %v343
      %v436 = vunpack.c.l.b16 %v344
      %v437 = vunpack.c.l.b16 %v345
      %v438 = vunpack.c.l.b16 %v346
      %v439 = vunpack.c.l.b16 %v347
      %v440 = vunpack.c.l.b16 %v348
      %v441 = vunpack.c.l.b16 %v349
      %v442 = vunpack.c.l.b16 %v350
      %v443 = vunpack.c.l.b16 %v351
      %v444 = vunpack.c.l.b16 %v352
      %v445 = vunpack.c.l.b16 %v353
      %v446 = vunpack.c.l.b16 %v354
      %v447 = vunpack.c.l.b16 %v355
      %v448 = vunpack.c.l.b16 %v356
      %v449 = vunpack.c.l.b16 %v357
      %v450 = vunpack.c.l.b16 %v358
      %v451 = vunpack.c.l.b16 %v359
      %v452 = vunpack.c.l.b16 %v360
      %v453 = vunpack.c.l.b16 %v361
      %v454 = vunpack.c.l.b16 %v362
      %v455 = vunpack.c.l.b16 %v363
      %v456 = vunpack.c.l.b16 %v364
      %v457 = vunpack.c.l.b16 %v365
      %v458 = vpack.c.b16 %v427, %v426
      %v459 = vpack.c.b16 %v429, %v428
      %v460 = vpack.c.b16 %v431, %v430
      %v461 = vpack.c.b16 %v433, %v432
      %v462 = vpack.c.b16 %v435, %v434
      %v463 = vpack.c.b16 %v437, %v436
      %v464 = vpack.c.b16 %v439, %v438
      %v465 = vpack.c.b16 %v441, %v440
      %v466 = vpack.c.b16 %v443, %v442
      %v467 = vpack.c.b16 %v445, %v444
      %v468 = vpack.c.b16 %v447, %v446
      %v469 = vpack.c.b16 %v449, %v448
      %v470 = vpack.c.b16 %v451, %v450
      %v471 = vpack.c.b16 %v453, %v452
      %v472 = vpack.c.b16 %v455, %v454
      %v473 = vpack.c.b16 %v457, %v456
      %v506 = vunpack.c.l.b16 %v366
      %v507 = vunpack.c.h.b16 %v366
      %v508 = vunpack.c.l.b16 %v367
      %v509 = vunpack.c.h.b16 %v367
      %v510 = vunpack.c.l.b16 %v368
      %v511 = vunpack.c.h.b16 %v368
      %v512 = vunpack.c.l.b16 %v369
      %v513 = vunpack.c.h.b16 %v369
      %v514 = vunpack.c.l.b16 %v370
      %v515 = vunpack.c.h.b16 %v370
      %v516 = vunpack.c.l.b16 %v371
      %v517 = vunpack.c.h.b16 %v371
      %v518 = vunpack.c.l.b16 %v372
      %v519 = vunpack.c.h.b16 %v372
      %v520 = vunpack.c.l.b16 %v373
      %v521 = vunpack.c.h.b16 %v373
      %v522 = vunpack.c.l.b16 %v374
      %v523 = vunpack.c.h.b16 %v374
      %v524 = vunpack.c.l.b16 %v375
      %v525 = vunpack.c.h.b16 %v375
      %v526 = vunpack.c.l.b16 %v376
      %v527 = vunpack.c.h.b16 %v376
      %v528 = vunpack.c.l.b16 %v377
      %v529 = vunpack.c.h.b16 %v377
      %v530 = vunpack.c.l.b16 %v378
      %v531 = vunpack.c.h.b16 %v378
      %v532 = vunpack.c.l.b16 %v379
      %v533 = vunpack.c.h.b16 %v379
      %v534 = vunpack.c.l.b16 %v380
      %v535 = vunpack.c.h.b16 %v380
      %v536 = vunpack.c.l.b16 %v381
      %v537 = vunpack.c.h.b16 %v381
      %v538 = vpack.c.b16 %v508, %v506
      %v539 = vpack.c.b16 %v509, %v507
      %v540 = vpack.c.b16 %v512, %v510
      %v541 = vpack.c.b16 %v513, %v511
      %v542 = vpack.c.b16 %v516, %v514
      %v543 = vpack.c.b16 %v517, %v515
      %v544 = vpack.c.b16 %v520, %v518
      %v545 = vpack.c.b16 %v521, %v519
      %v546 = vpack.c.b16 %v524, %v522
      %v547 = vpack.c.b16 %v525, %v523
      %v548 = vpack.c.b16 %v528, %v526
      %v549 = vpack.c.b16 %v529, %v527
      %v550 = vpack.c.b16 %v532, %v530
      %v551 = vpack.c.b16 %v533, %v531
      %v552 = vpack.c.b16 %v536, %v534
      %v553 = vpack.c.b16 %v537, %v535
      %570 = vmatprep.subr.bf16.mxu0 %v539
      %571 = vmatpush1.bf16.msra.mxu0 %v538
      %572 = vmatprep.subr.bf16.mxu0 %v541
      %573 = vmatpush1.bf16.msra.mxu0 %v540
      %574 = vmatprep.subr.bf16.mxu0 %v543
      %575 = vmatpush1.bf16.msra.mxu0 %v542
      %576 = vmatprep.subr.bf16.mxu0 %v545
      %577 = vmatpush1.bf16.msra.mxu0 %v544
      %578 = vmatprep.subr.bf16.mxu0 %v547
      %579 = vmatpush1.bf16.msra.mxu0 %v546
      %580 = vmatprep.subr.bf16.mxu0 %v549
      %581 = vmatpush1.bf16.msra.mxu0 %v548
      %582 = vmatprep.subr.bf16.mxu0 %v551
      %583 = vmatpush1.bf16.msra.mxu0 %v550
      %584 = vmatprep.subr.bf16.mxu0 %v553
      %585 = vmatpush1.bf16.msra.mxu0 %v552
      %586 = vmatprep.subr.bf16.mxu0 0
      %587 = vmatpush1.bf16.msra.mxu0 0
      %588 = vmatprep.subr.bf16.mxu0 0
      %589 = vmatpush1.bf16.msra.mxu0 0
      %590 = vmatprep.subr.bf16.mxu0 0
      %591 = vmatpush1.bf16.msra.mxu0 0
      %592 = vmatprep.subr.bf16.mxu0 0
      %593 = vmatpush1.bf16.msra.mxu0 0
      %594 = vmatprep.subr.bf16.mxu0 0
      %595 = vmatpush1.bf16.msra.mxu0 0
      %596 = vmatprep.subr.bf16.mxu0 0
      %597 = vmatpush1.bf16.msra.mxu0 0
      %598 = vmatprep.subr.bf16.mxu0 0
      %599 = vmatpush1.bf16.msra.mxu0 0
      %600 = vmatprep.subr.bf16.mxu0 0
      %601 = vmatpush1.bf16.msra.mxu0 0
      %602 = vmatprep.mubr.bf16.mxu0 0
      %603 = vmatmul.mubr.bf16.gmra.mrb[0].mxu0 %v458
      %v604 = vpop.f32.mrb[0].mxu0
      %v605 = vadd.f32 %v387, %v604
      %v606 = vpop.f32.mrb[0].mxu0
      %v607 = vadd.f32 %v391, %v606
      %v608 = vpop.f32.mrb[0].mxu0
      %v609 = vadd.f32 %v387, %v608
      %v610 = vpop.f32.mrb[0].mxu0
      %v611 = vadd.f32 %v391, %v610
      %612 = vmatprep.mubr.bf16.mxu0 0
      %613 = vmatmul.mubr.bf16.gmra.mrb[0].mxu0 %v459
      %v614 = vpop.f32.mrb[0].mxu0
      %v615 = vadd.f32 %v387, %v614
      %v616 = vpop.f32.mrb[0].mxu0
      %v617 = vadd.f32 %v391, %v616
      %v618 = vpop.f32.mrb[0].mxu0
      %v619 = vadd.f32 %v387, %v618
      %v620 = vpop.f32.mrb[0].mxu0
      %v621 = vadd.f32 %v391, %v620
      %622 = vmatprep.mubr.bf16.mxu0 0
      %623 = vmatmul.mubr.bf16.gmra.mrb[0].mxu0 %v460
      %v624 = vpop.f32.mrb[0].mxu0
      %v625 = vadd.f32 %v387, %v624
      %v626 = vpop.f32.mrb[0].mxu0
      %v627 = vadd.f32 %v391, %v626
      %v628 = vpop.f32.mrb[0].mxu0
      %v629 = vadd.f32 %v387, %v628
      %v630 = vpop.f32.mrb[0].mxu0
      %v631 = vadd.f32 %v391, %v630
      %632 = vmatprep.mubr.bf16.mxu0 0
      %633 = vmatmul.mubr.bf16.gmra.mrb[0].mxu0 %v461
      %v634 = vpop.f32.mrb[0].mxu0
      %v635 = vadd.f32 %v387, %v634
      %v636 = vpop.f32.mrb[0].mxu0
      %v637 = vadd.f32 %v391, %v636
      %v638 = vpop.f32.mrb[0].mxu0
      %v639 = vadd.f32 %v387, %v638
      %v640 = vpop.f32.mrb[0].mxu0
      %v641 = vadd.f32 %v391, %v640
      %642 = vmatprep.mubr.bf16.mxu0 0
      %643 = vmatmul.mubr.bf16.gmra.mrb[0].mxu0 %v462
      %v644 = vpop.f32.mrb[0].mxu0
      %v645 = vadd.f32 %v387, %v644
      %v646 = vpop.f32.mrb[0].mxu0
      %v647 = vadd.f32 %v391, %v646
      %v648 = vpop.f32.mrb[0].mxu0
      %v649 = vadd.f32 %v387, %v648
      %v650 = vpop.f32.mrb[0].mxu0
      %v651 = vadd.f32 %v391, %v650
      %652 = vmatprep.mubr.bf16.mxu0 0
      %653 = vmatmul.mubr.bf16.gmra.mrb[0].mxu0 %v463
      %v654 = vpop.f32.mrb[0].mxu0
      %v655 = vadd.f32 %v387, %v654
      %v656 = vpop.f32.mrb[0].mxu0
      %v657 = vadd.f32 %v391, %v656
      %v658 = vpop.f32.mrb[0].mxu0
      %v659 = vadd.f32 %v387, %v658
      %v660 = vpop.f32.mrb[0].mxu0
      %v661 = vadd.f32 %v391, %v660
      %662 = vmatprep.mubr.bf16.mxu0 0
      %663 = vmatmul.mubr.bf16.gmra.mrb[0].mxu0 %v464
      %v664 = vpop.f32.mrb[0].mxu0
      %v665 = vadd.f32 %v387, %v664
      %v666 = vpop.f32.mrb[0].mxu0
      %v667 = vadd.f32 %v391, %v666
      %v668 = vpop.f32.mrb[0].mxu0
      %v669 = vadd.f32 %v387, %v668
      %v670 = vpop.f32.mrb[0].mxu0
      %v671 = vadd.f32 %v391, %v670
      %672 = vmatprep.mubr.bf16.mxu0 0
      %673 = vmatmul.mubr.bf16.gmra.mrb[0].mxu0 %v465
      %v674 = vpop.f32.mrb[0].mxu0
      %v675 = vadd.f32 %v387, %v674
      %v676 = vpop.f32.mrb[0].mxu0
      %v677 = vadd.f32 %v391, %v676
      %v678 = vpop.f32.mrb[0].mxu0
      %v679 = vadd.f32 %v387, %v678
      %v680 = vpop.f32.mrb[0].mxu0
      %v681 = vadd.f32 %v391, %v680
      %682 = vmatprep.mubr.bf16.mxu0 0
      %683 = vmatmul.mubr.bf16.gmra.mrb[0].mxu0 %v466
      %v684 = vpop.f32.mrb[0].mxu0
      %v685 = vadd.f32 %v387, %v684
      %v686 = vpop.f32.mrb[0].mxu0
      %v687 = vadd.f32 %v391, %v686
      %v688 = vpop.f32.mrb[0].mxu0
      %v689 = vadd.f32 %v387, %v688
      %v690 = vpop.f32.mrb[0].mxu0
      %v691 = vadd.f32 %v391, %v690
      %692 = vmatprep.mubr.bf16.mxu0 0
      %693 = vmatmul.mubr.bf16.gmra.mrb[0].mxu0 %v467
      %v694 = vpop.f32.mrb[0].mxu0
      %v695 = vadd.f32 %v387, %v694
      %v696 = vpop.f32.mrb[0].mxu0
      %v697 = vadd.f32 %v391, %v696
      %v698 = vpop.f32.mrb[0].mxu0
      %v699 = vadd.f32 %v387, %v698
      %v700 = vpop.f32.mrb[0].mxu0
      %v701 = vadd.f32 %v391, %v700
      %702 = vmatprep.mubr.bf16.mxu0 0
      %703 = vmatmul.mubr.bf16.gmra.mrb[0].mxu0 %v468
      %v704 = vpop.f32.mrb[0].mxu0
      %v705 = vadd.f32 %v387, %v704
      %v706 = vpop.f32.mrb[0].mxu0
      %v707 = vadd.f32 %v391, %v706
      %v708 = vpop.f32.mrb[0].mxu0
      %v709 = vadd.f32 %v387, %v708
      %v710 = vpop.f32.mrb[0].mxu0
      %v711 = vadd.f32 %v391, %v710
      %712 = vmatprep.mubr.bf16.mxu0 0
      %713 = vmatmul.mubr.bf16.gmra.mrb[0].mxu0 %v469
      %v714 = vpop.f32.mrb[0].mxu0
      %v715 = vadd.f32 %v387, %v714
      %v716 = vpop.f32.mrb[0].mxu0
      %v717 = vadd.f32 %v391, %v716
      %v718 = vpop.f32.mrb[0].mxu0
      %v719 = vadd.f32 %v387, %v718
      %v720 = vpop.f32.mrb[0].mxu0
      %v721 = vadd.f32 %v391, %v720
      %722 = vmatprep.mubr.bf16.mxu0 0
      %723 = vmatmul.mubr.bf16.gmra.mrb[0].mxu0 %v470
      %v724 = vpop.f32.mrb[0].mxu0
      %v725 = vadd.f32 %v387, %v724
      %v726 = vpop.f32.mrb[0].mxu0
      %v727 = vadd.f32 %v391, %v726
      %v728 = vpop.f32.mrb[0].mxu0
      %v729 = vadd.f32 %v387, %v728
      %v730 = vpop.f32.mrb[0].mxu0
      %v731 = vadd.f32 %v391, %v730
      %732 = vmatprep.mubr.bf16.mxu0 0
      %733 = vmatmul.mubr.bf16.gmra.mrb[0].mxu0 %v471
      %v734 = vpop.f32.mrb[0].mxu0
      %v735 = vadd.f32 %v387, %v734
      %v736 = vpop.f32.mrb[0].mxu0
      %v737 = vadd.f32 %v391, %v736
      %v738 = vpop.f32.mrb[0].mxu0
      %v739 = vadd.f32 %v387, %v738
      %v740 = vpop.f32.mrb[0].mxu0
      %v741 = vadd.f32 %v391, %v740
      %742 = vmatprep.mubr.bf16.mxu0 0
      %743 = vmatmul.mubr.bf16.gmra.mrb[0].mxu0 %v472
      %v744 = vpop.f32.mrb[0].mxu0
      %v745 = vadd.f32 %v387, %v744
      %v746 = vpop.f32.mrb[0].mxu0
      %v747 = vadd.f32 %v391, %v746
      %v748 = vpop.f32.mrb[0].mxu0
      %v749 = vadd.f32 %v387, %v748
      %v750 = vpop.f32.mrb[0].mxu0
      %v751 = vadd.f32 %v391, %v750
      %752 = vmatprep.mubr.bf16.mxu0 0
      %753 = vmatmul.mubr.bf16.gmra.mrb[0].mxu0 %v473
      %v754 = vpop.f32.mrb[0].mxu0
      %v755 = vadd.f32 %v387, %v754
      %v756 = vpop.f32.mrb[0].mxu0
      %v757 = vadd.f32 %v391, %v756
      %v758 = vpop.f32.mrb[0].mxu0
      %v759 = vadd.f32 %v387, %v758
      %v760 = vpop.f32.mrb[0].mxu0
      %v761 = vadd.f32 %v391, %v760
      %762 = vdwg.mxu0
      %v763 = vmul.f32 %v605, 0.5
      %v764 = vmul.f32 %v607, 0.5
      %v765 = vmul.f32 %v609, 0.5
      %v766 = vmul.f32 %v611, 0.5
      %v767 = vmul.f32 %v615, 0.5
      %v768 = vmul.f32 %v617, 0.5
      %v769 = vmul.f32 %v619, 0.5
      %v770 = vmul.f32 %v621, 0.5
      %v771 = vmul.f32 %v625, 0.5
      %v772 = vmul.f32 %v627, 0.5
      %v773 = vmul.f32 %v629, 0.5
      %v774 = vmul.f32 %v631, 0.5
      %v775 = vmul.f32 %v635, 0.5
      %v776 = vmul.f32 %v637, 0.5
      %v777 = vmul.f32 %v639, 0.5
      %v778 = vmul.f32 %v641, 0.5
      %v779 = vmul.f32 %v645, 0.5
      %v780 = vmul.f32 %v647, 0.5
      %v781 = vmul.f32 %v649, 0.5
      %v782 = vmul.f32 %v651, 0.5
      %v783 = vmul.f32 %v655, 0.5
      %v784 = vmul.f32 %v657, 0.5
      %v785 = vmul.f32 %v659, 0.5
      %v786 = vmul.f32 %v661, 0.5
      %v787 = vmul.f32 %v665, 0.5
      %v788 = vmul.f32 %v667, 0.5
      %v789 = vmul.f32 %v669, 0.5
      %v790 = vmul.f32 %v671, 0.5
      %v791 = vmul.f32 %v675, 0.5
      %v792 = vmul.f32 %v677, 0.5
      %v793 = vmul.f32 %v679, 0.5
      %v794 = vmul.f32 %v681, 0.5
      %v795 = vmul.f32 %v685, 0.5
      %v796 = vmul.f32 %v687, 0.5
      %v797 = vmul.f32 %v689, 0.5
      %v798 = vmul.f32 %v691, 0.5
      %v799 = vmul.f32 %v695, 0.5
      %v800 = vmul.f32 %v697, 0.5
      %v801 = vmul.f32 %v699, 0.5
      %v802 = vmul.f32 %v701, 0.5
      %v803 = vmul.f32 %v705, 0.5
      %v804 = vmul.f32 %v707, 0.5
      %v805 = vmul.f32 %v709, 0.5
      %v806 = vmul.f32 %v711, 0.5
      %v807 = vmul.f32 %v715, 0.5
      %v808 = vmul.f32 %v717, 0.5
      %v809 = vmul.f32 %v719, 0.5
      %v810 = vmul.f32 %v721, 0.5
      %v811 = vmul.f32 %v725, 0.5
      %v812 = vmul.f32 %v727, 0.5
      %v813 = vmul.f32 %v729, 0.5
      %v814 = vmul.f32 %v731, 0.5
      %v815 = vmul.f32 %v735, 0.5
      %v816 = vmul.f32 %v737, 0.5
      %v817 = vmul.f32 %v739, 0.5
      %v818 = vmul.f32 %v741, 0.5
      %v819 = vmul.f32 %v745, 0.5
      %v820 = vmul.f32 %v747, 0.5
      %v821 = vmul.f32 %v749, 0.5
      %v822 = vmul.f32 %v751, 0.5
      %v823 = vmul.f32 %v755, 0.5
      %v824 = vmul.f32 %v757, 0.5
      %v825 = vmul.f32 %v759, 0.5
      %v826 = vmul.f32 %v761, 0.5
      %v827 = vtanh.pop %v763
      %v828 = vtanh.pop %v764
      %v829 = vtanh.pop %v765
      %v830 = vtanh.pop %v766
      %v831 = vtanh.pop %v767
      %v832 = vtanh.pop %v768
      %v833 = vtanh.pop %v769
      %v834 = vtanh.pop %v770
      %v835 = vtanh.pop %v771
      %v836 = vtanh.pop %v772
      %v837 = vtanh.pop %v773
      %v838 = vtanh.pop %v774
      %v839 = vtanh.pop %v775
      %v840 = vtanh.pop %v776
      %v841 = vtanh.pop %v777
      %v842 = vtanh.pop %v778
      %v843 = vtanh.pop %v779
      %v844 = vtanh.pop %v780
      %v845 = vtanh.pop %v781
      %v846 = vtanh.pop %v782
      %v847 = vtanh.pop %v783
      %v848 = vtanh.pop %v784
      %v849 = vtanh.pop %v785
      %v850 = vtanh.pop %v786
      %v851 = vtanh.pop %v787
      %v852 = vtanh.pop %v788
      %v853 = vtanh.pop %v789
      %v854 = vtanh.pop %v790
      %v855 = vtanh.pop %v791
      %v856 = vtanh.pop %v792
      %v857 = vtanh.pop %v793
      %v858 = vtanh.pop %v794
      %v859 = vtanh.pop %v795
      %v860 = vtanh.pop %v796
      %v861 = vtanh.pop %v797
      %v862 = vtanh.pop %v798
      %v863 = vtanh.pop %v799
      %v864 = vtanh.pop %v800
      %v865 = vtanh.pop %v801
      %v866 = vtanh.pop %v802
      %v867 = vtanh.pop %v803
      %v868 = vtanh.pop %v804
      %v869 = vtanh.pop %v805
      %v870 = vtanh.pop %v806
      %v871 = vtanh.pop %v807
      %v872 = vtanh.pop %v808
      %v873 = vtanh.pop %v809
      %v874 = vtanh.pop %v810
      %v875 = vtanh.pop %v811
      %v876 = vtanh.pop %v812
      %v877 = vtanh.pop %v813
      %v878 = vtanh.pop %v814
      %v879 = vtanh.pop %v815
      %v880 = vtanh.pop %v816
      %v881 = vtanh.pop %v817
      %v882 = vtanh.pop %v818
      %v883 = vtanh.pop %v819
      %v884 = vtanh.pop %v820
      %v885 = vtanh.pop %v821
      %v886 = vtanh.pop %v822
      %v887 = vtanh.pop %v823
      %v888 = vtanh.pop %v824
      %v889 = vtanh.pop %v825
      %v890 = vtanh.pop %v826
      %v891 = vadd.f32 %v827, 1.0
      %v892 = vadd.f32 %v828, 1.0
      %v893 = vadd.f32 %v829, 1.0
      %v894 = vadd.f32 %v830, 1.0
      %v895 = vadd.f32 %v831, 1.0
      %v896 = vadd.f32 %v832, 1.0
      %v897 = vadd.f32 %v833, 1.0
      %v898 = vadd.f32 %v834, 1.0
      %v899 = vadd.f32 %v835, 1.0
      %v900 = vadd.f32 %v836, 1.0
      %v901 = vadd.f32 %v837, 1.0
      %v902 = vadd.f32 %v838, 1.0
      %v903 = vadd.f32 %v839, 1.0
      %v904 = vadd.f32 %v840, 1.0
      %v905 = vadd.f32 %v841, 1.0
      %v906 = vadd.f32 %v842, 1.0
      %v907 = vadd.f32 %v843, 1.0
      %v908 = vadd.f32 %v844, 1.0
      %v909 = vadd.f32 %v845, 1.0
      %v910 = vadd.f32 %v846, 1.0
      %v911 = vadd.f32 %v847, 1.0
      %v912 = vadd.f32 %v848, 1.0
      %v913 = vadd.f32 %v849, 1.0
      %v914 = vadd.f32 %v850, 1.0
      %v915 = vadd.f32 %v851, 1.0
      %v916 = vadd.f32 %v852, 1.0
      %v917 = vadd.f32 %v853, 1.0
      %v918 = vadd.f32 %v854, 1.0
      %v919 = vadd.f32 %v855, 1.0
      %v920 = vadd.f32 %v856, 1.0
      %v921 = vadd.f32 %v857, 1.0
      %v922 = vadd.f32 %v858, 1.0
      %v923 = vadd.f32 %v859, 1.0
      %v924 = vadd.f32 %v860, 1.0
      %v925 = vadd.f32 %v861, 1.0
      %v926 = vadd.f32 %v862, 1.0
      %v927 = vadd.f32 %v863, 1.0
      %v928 = vadd.f32 %v864, 1.0
      %v929 = vadd.f32 %v865, 1.0
      %v930 = vadd.f32 %v866, 1.0
      %v931 = vadd.f32 %v867, 1.0
      %v932 = vadd.f32 %v868, 1.0
      %v933 = vadd.f32 %v869, 1.0
      %v934 = vadd.f32 %v870, 1.0
      %v935 = vadd.f32 %v871, 1.0
      %v936 = vadd.f32 %v872, 1.0
      %v937 = vadd.f32 %v873, 1.0
      %v938 = vadd.f32 %v874, 1.0
      %v939 = vadd.f32 %v875, 1.0
      %v940 = vadd.f32 %v876, 1.0
      %v941 = vadd.f32 %v877, 1.0
      %v942 = vadd.f32 %v878, 1.0
      %v943 = vadd.f32 %v879, 1.0
      %v944 = vadd.f32 %v880, 1.0
      %v945 = vadd.f32 %v881, 1.0
      %v946 = vadd.f32 %v882, 1.0
      %v947 = vadd.f32 %v883, 1.0
      %v948 = vadd.f32 %v884, 1.0
      %v949 = vadd.f32 %v885, 1.0
      %v950 = vadd.f32 %v886, 1.0
      %v951 = vadd.f32 %v887, 1.0
      %v952 = vadd.f32 %v888, 1.0
      %v953 = vadd.f32 %v889, 1.0
      %v954 = vadd.f32 %v890, 1.0
      %v955 = vmul.f32 %v763, %v891
      %v956 = vmul.f32 %v764, %v892
      %v957 = vmul.f32 %v765, %v893
      %v958 = vmul.f32 %v766, %v894
      %v959 = vmul.f32 %v767, %v895
      %v960 = vmul.f32 %v768, %v896
      %v961 = vmul.f32 %v769, %v897
      %v962 = vmul.f32 %v770, %v898
      %v963 = vmul.f32 %v771, %v899
      %v964 = vmul.f32 %v772, %v900
      %v965 = vmul.f32 %v773, %v901
      %v966 = vmul.f32 %v774, %v902
      %v967 = vmul.f32 %v775, %v903
      %v968 = vmul.f32 %v776, %v904
      %v969 = vmul.f32 %v777, %v905
      %v970 = vmul.f32 %v778, %v906
      %v971 = vmul.f32 %v779, %v907
      %v972 = vmul.f32 %v780, %v908
      %v973 = vmul.f32 %v781, %v909
      %v974 = vmul.f32 %v782, %v910
      %v975 = vmul.f32 %v783, %v911
      %v976 = vmul.f32 %v784, %v912
      %v977 = vmul.f32 %v785, %v913
      %v978 = vmul.f32 %v786, %v914
      %v979 = vmul.f32 %v787, %v915
      %v980 = vmul.f32 %v788, %v916
      %v981 = vmul.f32 %v789, %v917
      %v982 = vmul.f32 %v790, %v918
      %v983 = vmul.f32 %v791, %v919
      %v984 = vmul.f32 %v792, %v920
      %v985 = vmul.f32 %v793, %v921
      %v986 = vmul.f32 %v794, %v922
      %v987 = vmul.f32 %v795, %v923
      %v988 = vmul.f32 %v796, %v924
      %v989 = vmul.f32 %v797, %v925
      %v990 = vmul.f32 %v798, %v926
      %v991 = vmul.f32 %v799, %v927
      %v992 = vmul.f32 %v800, %v928
      %v993 = vmul.f32 %v801, %v929
      %v994 = vmul.f32 %v802, %v930
      %v995 = vmul.f32 %v803, %v931
      %v996 = vmul.f32 %v804, %v932
      %v997 = vmul.f32 %v805, %v933
      %v998 = vmul.f32 %v806, %v934
      %v999 = vmul.f32 %v807, %v935
      %v1000 = vmul.f32 %v808, %v936
      %v1001 = vmul.f32 %v809, %v937
      %v1002 = vmul.f32 %v810, %v938
      %v1003 = vmul.f32 %v811, %v939
      %v1004 = vmul.f32 %v812, %v940
      %v1005 = vmul.f32 %v813, %v941
      %v1006 = vmul.f32 %v814, %v942
      %v1007 = vmul.f32 %v815, %v943
      %v1008 = vmul.f32 %v816, %v944
      %v1009 = vmul.f32 %v817, %v945
      %v1010 = vmul.f32 %v818, %v946
      %v1011 = vmul.f32 %v819, %v947
      %v1012 = vmul.f32 %v820, %v948
      %v1013 = vmul.f32 %v821, %v949
      %v1014 = vmul.f32 %v822, %v950
      %v1015 = vmul.f32 %v823, %v951
      %v1016 = vmul.f32 %v824, %v952
      %v1017 = vmul.f32 %v825, %v953
      %v1018 = vmul.f32 %v826, %v954
      %v1019 = vpack.c.bf16 %v957, %v955
      %v1020 = vpack.c.bf16 %v961, %v959
      %v1021 = vpack.c.bf16 %v965, %v963
      %v1022 = vpack.c.bf16 %v969, %v967
      %v1023 = vpack.c.bf16 %v973, %v971
      %v1024 = vpack.c.bf16 %v977, %v975
      %v1025 = vpack.c.bf16 %v981, %v979
      %v1026 = vpack.c.bf16 %v985, %v983
      %v1027 = vpack.c.bf16 %v989, %v987
      %v1028 = vpack.c.bf16 %v993, %v991
      %v1029 = vpack.c.bf16 %v997, %v995
      %v1030 = vpack.c.bf16 %v1001, %v999
      %v1031 = vpack.c.bf16 %v1005, %v1003
      %v1032 = vpack.c.bf16 %v1009, %v1007
      %v1033 = vpack.c.bf16 %v1013, %v1011
      %v1034 = vpack.c.bf16 %v1017, %v1015
      %v1035 = vlaneseq
      %v1036 = vshrl.u32 %v1035, 7
      %v1037 = vadd.s32 %v1036, 8
      %v1038 = vadd.s32 %v1036, 16
      %v1039 = vadd.s32 %v1036, 24
      %v1040 = vadd.s32 %v1036, 32
      %v1041 = vadd.s32 %v1036, 40
      %v1042 = vadd.s32 %v1036, 48
      %v1043 = vadd.s32 %v1036, 56
      %v1044 = vadd.s32 %v1036, 64
      %v1045 = vadd.s32 %v1036, 72
      %v1046 = vadd.s32 %v1036, 80
      %v1047 = vadd.s32 %v1036, 88
      %v1048 = vadd.s32 %v1036, 96
      %v1049 = vadd.s32 %v1036, 104
      %v1050 = vadd.s32 %v1036, 112
      %v1051 = vadd.s32 %v1036, 120
      %v1052 = vadd.s32 %v1036, 128
      %v1053 = vadd.s32 %v1036, 136
      %v1054 = vadd.s32 %v1036, 144
      %v1055 = vadd.s32 %v1036, 152
      %v1056 = vadd.s32 %v1036, 160
      %v1057 = vadd.s32 %v1036, 168
      %v1058 = vadd.s32 %v1036, 176
      %v1059 = vadd.s32 %v1036, 184
      %v1060 = vadd.s32 %v1036, 192
      %v1061 = vadd.s32 %v1036, 200
      %v1062 = vadd.s32 %v1036, 208
      %v1063 = vadd.s32 %v1036, 216
      %v1064 = vadd.s32 %v1036, 224
      %v1065 = vadd.s32 %v1036, 232
      %v1066 = vadd.s32 %v1036, 240
      %v1067 = vadd.s32 %v1036, 248
      %vm1068 = vcmp.lt.s32.totalorder %v1036, 0
      %v1069 = vsub.s32 0, %v1036
      %v1070 = vsel %vm1068, %v1069, %v1036
      %v1071 = vshrl.u32 %v1070, 4
      %v1072 = vand.u32 %v1070, 15
      %v1073 = vsub.s32 0, %v1072
      %v1074 = vsel %vm1068, %v1073, %v1072
      %vm1075 = vcmp.lt.s32.totalorder %v1037, 0
      %v1076 = vsub.s32 0, %v1037
      %v1077 = vsel %vm1075, %v1076, %v1037
      %v1078 = vshrl.u32 %v1077, 4
      %v1079 = vand.u32 %v1077, 15
      %v1080 = vsub.s32 0, %v1079
      %v1081 = vsel %vm1075, %v1080, %v1079
      %vm1082 = vcmp.lt.s32.totalorder %v1038, 0
      %v1083 = vsub.s32 0, %v1038
      %v1084 = vsel %vm1082, %v1083, %v1038
      %v1085 = vshrl.u32 %v1084, 4
      %v1086 = vand.u32 %v1084, 15
      %v1087 = vsub.s32 0, %v1086
      %v1088 = vsel %vm1082, %v1087, %v1086
      %vm1089 = vcmp.lt.s32.totalorder %v1039, 0
      %v1090 = vsub.s32 0, %v1039
      %v1091 = vsel %vm1089, %v1090, %v1039
      %v1092 = vshrl.u32 %v1091, 4
      %v1093 = vand.u32 %v1091, 15
      %v1094 = vsub.s32 0, %v1093
      %v1095 = vsel %vm1089, %v1094, %v1093
      %vm1096 = vcmp.lt.s32.totalorder %v1040, 0
      %v1097 = vsub.s32 0, %v1040
      %v1098 = vsel %vm1096, %v1097, %v1040
      %v1099 = vshrl.u32 %v1098, 4
      %v1100 = vand.u32 %v1098, 15
      %v1101 = vsub.s32 0, %v1100
      %v1102 = vsel %vm1096, %v1101, %v1100
      %vm1103 = vcmp.lt.s32.totalorder %v1041, 0
      %v1104 = vsub.s32 0, %v1041
      %v1105 = vsel %vm1103, %v1104, %v1041
      %v1106 = vshrl.u32 %v1105, 4
      %v1107 = vand.u32 %v1105, 15
      %v1108 = vsub.s32 0, %v1107
      %v1109 = vsel %vm1103, %v1108, %v1107
      %vm1110 = vcmp.lt.s32.totalorder %v1042, 0
      %v1111 = vsub.s32 0, %v1042
      %v1112 = vsel %vm1110, %v1111, %v1042
      %v1113 = vshrl.u32 %v1112, 4
      %v1114 = vand.u32 %v1112, 15
      %v1115 = vsub.s32 0, %v1114
      %v1116 = vsel %vm1110, %v1115, %v1114
      %vm1117 = vcmp.lt.s32.totalorder %v1043, 0
      %v1118 = vsub.s32 0, %v1043
      %v1119 = vsel %vm1117, %v1118, %v1043
      %v1120 = vshrl.u32 %v1119, 4
      %v1121 = vand.u32 %v1119, 15
      %v1122 = vsub.s32 0, %v1121
      %v1123 = vsel %vm1117, %v1122, %v1121
      %vm1124 = vcmp.lt.s32.totalorder %v1044, 0
      %v1125 = vsub.s32 0, %v1044
      %v1126 = vsel %vm1124, %v1125, %v1044
      %v1127 = vshrl.u32 %v1126, 4
      %v1128 = vand.u32 %v1126, 15
      %v1129 = vsub.s32 0, %v1128
      %v1130 = vsel %vm1124, %v1129, %v1128
      %vm1131 = vcmp.lt.s32.totalorder %v1045, 0
      %v1132 = vsub.s32 0, %v1045
      %v1133 = vsel %vm1131, %v1132, %v1045
      %v1134 = vshrl.u32 %v1133, 4
      %v1135 = vand.u32 %v1133, 15
      %v1136 = vsub.s32 0, %v1135
      %v1137 = vsel %vm1131, %v1136, %v1135
      %vm1138 = vcmp.lt.s32.totalorder %v1046, 0
      %v1139 = vsub.s32 0, %v1046
      %v1140 = vsel %vm1138, %v1139, %v1046
      %v1141 = vshrl.u32 %v1140, 4
      %v1142 = vand.u32 %v1140, 15
      %v1143 = vsub.s32 0, %v1142
      %v1144 = vsel %vm1138, %v1143, %v1142
      %vm1145 = vcmp.lt.s32.totalorder %v1047, 0
      %v1146 = vsub.s32 0, %v1047
      %v1147 = vsel %vm1145, %v1146, %v1047
      %v1148 = vshrl.u32 %v1147, 4
      %v1149 = vand.u32 %v1147, 15
      %v1150 = vsub.s32 0, %v1149
      %v1151 = vsel %vm1145, %v1150, %v1149
      %vm1152 = vcmp.lt.s32.totalorder %v1048, 0
      %v1153 = vsub.s32 0, %v1048
      %v1154 = vsel %vm1152, %v1153, %v1048
      %v1155 = vshrl.u32 %v1154, 4
      %v1156 = vand.u32 %v1154, 15
      %v1157 = vsub.s32 0, %v1156
      %v1158 = vsel %vm1152, %v1157, %v1156
      %vm1159 = vcmp.lt.s32.totalorder %v1049, 0
      %v1160 = vsub.s32 0, %v1049
      %v1161 = vsel %vm1159, %v1160, %v1049
      %v1162 = vshrl.u32 %v1161, 4
      %v1163 = vand.u32 %v1161, 15
      %v1164 = vsub.s32 0, %v1163
      %v1165 = vsel %vm1159, %v1164, %v1163
      %vm1166 = vcmp.lt.s32.totalorder %v1050, 0
      %v1167 = vsub.s32 0, %v1050
      %v1168 = vsel %vm1166, %v1167, %v1050
      %v1169 = vshrl.u32 %v1168, 4
      %v1170 = vand.u32 %v1168, 15
      %v1171 = vsub.s32 0, %v1170
      %v1172 = vsel %vm1166, %v1171, %v1170
      %vm1173 = vcmp.lt.s32.totalorder %v1051, 0
      %v1174 = vsub.s32 0, %v1051
      %v1175 = vsel %vm1173, %v1174, %v1051
      %v1176 = vshrl.u32 %v1175, 4
      %v1177 = vand.u32 %v1175, 15
      %v1178 = vsub.s32 0, %v1177
      %v1179 = vsel %vm1173, %v1178, %v1177
      %vm1180 = vcmp.lt.s32.totalorder %v1052, 0
      %v1181 = vsub.s32 0, %v1052
      %v1182 = vsel %vm1180, %v1181, %v1052
      %v1183 = vshrl.u32 %v1182, 4
      %v1184 = vand.u32 %v1182, 15
      %v1185 = vsub.s32 0, %v1184
      %v1186 = vsel %vm1180, %v1185, %v1184
      %vm1187 = vcmp.lt.s32.totalorder %v1053, 0
      %v1188 = vsub.s32 0, %v1053
      %v1189 = vsel %vm1187, %v1188, %v1053
      %v1190 = vshrl.u32 %v1189, 4
      %v1191 = vand.u32 %v1189, 15
      %v1192 = vsub.s32 0, %v1191
      %v1193 = vsel %vm1187, %v1192, %v1191
      %vm1194 = vcmp.lt.s32.totalorder %v1054, 0
      %v1195 = vsub.s32 0, %v1054
      %v1196 = vsel %vm1194, %v1195, %v1054
      %v1197 = vshrl.u32 %v1196, 4
      %v1198 = vand.u32 %v1196, 15
      %v1199 = vsub.s32 0, %v1198
      %v1200 = vsel %vm1194, %v1199, %v1198
      %vm1201 = vcmp.lt.s32.totalorder %v1055, 0
      %v1202 = vsub.s32 0, %v1055
      %v1203 = vsel %vm1201, %v1202, %v1055
      %v1204 = vshrl.u32 %v1203, 4
      %v1205 = vand.u32 %v1203, 15
      %v1206 = vsub.s32 0, %v1205
      %v1207 = vsel %vm1201, %v1206, %v1205
      %vm1208 = vcmp.lt.s32.totalorder %v1056, 0
      %v1209 = vsub.s32 0, %v1056
      %v1210 = vsel %vm1208, %v1209, %v1056
      %v1211 = vshrl.u32 %v1210, 4
      %v1212 = vand.u32 %v1210, 15
      %v1213 = vsub.s32 0, %v1212
      %v1214 = vsel %vm1208, %v1213, %v1212
      %vm1215 = vcmp.lt.s32.totalorder %v1057, 0
      %v1216 = vsub.s32 0, %v1057
      %v1217 = vsel %vm1215, %v1216, %v1057
      %v1218 = vshrl.u32 %v1217, 4
      %v1219 = vand.u32 %v1217, 15
      %v1220 = vsub.s32 0, %v1219
      %v1221 = vsel %vm1215, %v1220, %v1219
      %vm1222 = vcmp.lt.s32.totalorder %v1058, 0
      %v1223 = vsub.s32 0, %v1058
      %v1224 = vsel %vm1222, %v1223, %v1058
      %v1225 = vshrl.u32 %v1224, 4
      %v1226 = vand.u32 %v1224, 15
      %v1227 = vsub.s32 0, %v1226
      %v1228 = vsel %vm1222, %v1227, %v1226
      %vm1229 = vcmp.lt.s32.totalorder %v1059, 0
      %v1230 = vsub.s32 0, %v1059
      %v1231 = vsel %vm1229, %v1230, %v1059
      %v1232 = vshrl.u32 %v1231, 4
      %v1233 = vand.u32 %v1231, 15
      %v1234 = vsub.s32 0, %v1233
      %v1235 = vsel %vm1229, %v1234, %v1233
      %vm1236 = vcmp.lt.s32.totalorder %v1060, 0
      %v1237 = vsub.s32 0, %v1060
      %v1238 = vsel %vm1236, %v1237, %v1060
      %v1239 = vshrl.u32 %v1238, 4
      %v1240 = vand.u32 %v1238, 15
      %v1241 = vsub.s32 0, %v1240
      %v1242 = vsel %vm1236, %v1241, %v1240
      %vm1243 = vcmp.lt.s32.totalorder %v1061, 0
      %v1244 = vsub.s32 0, %v1061
      %v1245 = vsel %vm1243, %v1244, %v1061
      %v1246 = vshrl.u32 %v1245, 4
      %v1247 = vand.u32 %v1245, 15
      %v1248 = vsub.s32 0, %v1247
      %v1249 = vsel %vm1243, %v1248, %v1247
      %vm1250 = vcmp.lt.s32.totalorder %v1062, 0
      %v1251 = vsub.s32 0, %v1062
      %v1252 = vsel %vm1250, %v1251, %v1062
      %v1253 = vshrl.u32 %v1252, 4
      %v1254 = vand.u32 %v1252, 15
      %v1255 = vsub.s32 0, %v1254
      %v1256 = vsel %vm1250, %v1255, %v1254
      %vm1257 = vcmp.lt.s32.totalorder %v1063, 0
      %v1258 = vsub.s32 0, %v1063
      %v1259 = vsel %vm1257, %v1258, %v1063
      %v1260 = vshrl.u32 %v1259, 4
      %v1261 = vand.u32 %v1259, 15
      %v1262 = vsub.s32 0, %v1261
      %v1263 = vsel %vm1257, %v1262, %v1261
      %vm1264 = vcmp.lt.s32.totalorder %v1064, 0
      %v1265 = vsub.s32 0, %v1064
      %v1266 = vsel %vm1264, %v1265, %v1064
      %v1267 = vshrl.u32 %v1266, 4
      %v1268 = vand.u32 %v1266, 15
      %v1269 = vsub.s32 0, %v1268
      %v1270 = vsel %vm1264, %v1269, %v1268
      %vm1271 = vcmp.lt.s32.totalorder %v1065, 0
      %v1272 = vsub.s32 0, %v1065
      %v1273 = vsel %vm1271, %v1272, %v1065
      %v1274 = vshrl.u32 %v1273, 4
      %v1275 = vand.u32 %v1273, 15
      %v1276 = vsub.s32 0, %v1275
      %v1277 = vsel %vm1271, %v1276, %v1275
      %vm1278 = vcmp.lt.s32.totalorder %v1066, 0
      %v1279 = vsub.s32 0, %v1066
      %v1280 = vsel %vm1278, %v1279, %v1066
      %v1281 = vshrl.u32 %v1280, 4
      %v1282 = vand.u32 %v1280, 15
      %v1283 = vsub.s32 0, %v1282
      %v1284 = vsel %vm1278, %v1283, %v1282
      %vm1285 = vcmp.lt.s32.totalorder %v1067, 0
      %v1286 = vsub.s32 0, %v1067
      %v1287 = vsel %vm1285, %v1286, %v1067
      %v1288 = vshrl.u32 %v1287, 4
      %v1289 = vand.u32 %v1287, 15
      %v1290 = vsub.s32 0, %v1289
      %v1291 = vsel %vm1285, %v1290, %v1289
      %vm1292 = vcmp.ne.s32.totalorder %v1074, 0
      %vm1293 = vcmp.ne.s32.totalorder %v1081, 0
      %vm1294 = vcmp.ne.s32.totalorder %v1088, 0
      %vm1295 = vcmp.ne.s32.totalorder %v1095, 0
      %vm1296 = vcmp.ne.s32.totalorder %v1102, 0
      %vm1297 = vcmp.ne.s32.totalorder %v1109, 0
      %vm1298 = vcmp.ne.s32.totalorder %v1116, 0
      %vm1299 = vcmp.ne.s32.totalorder %v1123, 0
      %vm1300 = vcmp.ne.s32.totalorder %v1130, 0
      %vm1301 = vcmp.ne.s32.totalorder %v1137, 0
      %vm1302 = vcmp.ne.s32.totalorder %v1144, 0
      %vm1303 = vcmp.ne.s32.totalorder %v1151, 0
      %vm1304 = vcmp.ne.s32.totalorder %v1158, 0
      %vm1305 = vcmp.ne.s32.totalorder %v1165, 0
      %vm1306 = vcmp.ne.s32.totalorder %v1172, 0
      %vm1307 = vcmp.ne.s32.totalorder %v1179, 0
      %vm1308 = vcmp.ne.s32.totalorder %v1186, 0
      %vm1309 = vcmp.ne.s32.totalorder %v1193, 0
      %vm1310 = vcmp.ne.s32.totalorder %v1200, 0
      %vm1311 = vcmp.ne.s32.totalorder %v1207, 0
      %vm1312 = vcmp.ne.s32.totalorder %v1214, 0
      %vm1313 = vcmp.ne.s32.totalorder %v1221, 0
      %vm1314 = vcmp.ne.s32.totalorder %v1228, 0
      %vm1315 = vcmp.ne.s32.totalorder %v1235, 0
      %vm1316 = vcmp.ne.s32.totalorder %v1242, 0
      %vm1317 = vcmp.ne.s32.totalorder %v1249, 0
      %vm1318 = vcmp.ne.s32.totalorder %v1256, 0
      %vm1319 = vcmp.ne.s32.totalorder %v1263, 0
      %vm1320 = vcmp.ne.s32.totalorder %v1270, 0
      %vm1321 = vcmp.ne.s32.totalorder %v1277, 0
      %vm1322 = vcmp.ne.s32.totalorder %v1284, 0
      %vm1323 = vcmp.ne.s32.totalorder %v1291, 0
      %vm1324 = vcmp.lt.s32.totalorder %v1074, 0
      %vm1325 = vcmp.lt.s32.totalorder %v1081, 0
      %vm1326 = vcmp.lt.s32.totalorder %v1088, 0
      %vm1327 = vcmp.lt.s32.totalorder %v1095, 0
      %vm1328 = vcmp.lt.s32.totalorder %v1102, 0
      %vm1329 = vcmp.lt.s32.totalorder %v1109, 0
      %vm1330 = vcmp.lt.s32.totalorder %v1116, 0
      %vm1331 = vcmp.lt.s32.totalorder %v1123, 0
      %vm1332 = vcmp.lt.s32.totalorder %v1130, 0
      %vm1333 = vcmp.lt.s32.totalorder %v1137, 0
      %vm1334 = vcmp.lt.s32.totalorder %v1144, 0
      %vm1335 = vcmp.lt.s32.totalorder %v1151, 0
      %vm1336 = vcmp.lt.s32.totalorder %v1158, 0
      %vm1337 = vcmp.lt.s32.totalorder %v1165, 0
      %vm1338 = vcmp.lt.s32.totalorder %v1172, 0
      %vm1339 = vcmp.lt.s32.totalorder %v1179, 0
      %vm1340 = vcmp.lt.s32.totalorder %v1186, 0
      %vm1341 = vcmp.lt.s32.totalorder %v1193, 0
      %vm1342 = vcmp.lt.s32.totalorder %v1200, 0
      %vm1343 = vcmp.lt.s32.totalorder %v1207, 0
      %vm1344 = vcmp.lt.s32.totalorder %v1214, 0
      %vm1345 = vcmp.lt.s32.totalorder %v1221, 0
      %vm1346 = vcmp.lt.s32.totalorder %v1228, 0
      %vm1347 = vcmp.lt.s32.totalorder %v1235, 0
      %vm1348 = vcmp.lt.s32.totalorder %v1242, 0
      %vm1349 = vcmp.lt.s32.totalorder %v1249, 0
      %vm1350 = vcmp.lt.s32.totalorder %v1256, 0
      %vm1351 = vcmp.lt.s32.totalorder %v1263, 0
      %vm1352 = vcmp.lt.s32.totalorder %v1270, 0
      %vm1353 = vcmp.lt.s32.totalorder %v1277, 0
      %vm1354 = vcmp.lt.s32.totalorder %v1284, 0
      %vm1355 = vcmp.lt.s32.totalorder %v1291, 0
      %vm1356 = vmand %vm1324, %vm1292
      %vm1357 = vmand %vm1325, %vm1293
      %vm1358 = vmand %vm1326, %vm1294
      %vm1359 = vmand %vm1327, %vm1295
      %vm1360 = vmand %vm1328, %vm1296
      %vm1361 = vmand %vm1329, %vm1297
      %vm1362 = vmand %vm1330, %vm1298
      %vm1363 = vmand %vm1331, %vm1299
      %vm1364 = vmand %vm1332, %vm1300
      %vm1365 = vmand %vm1333, %vm1301
      %vm1366 = vmand %vm1334, %vm1302
      %vm1367 = vmand %vm1335, %vm1303
      %vm1368 = vmand %vm1336, %vm1304
      %vm1369 = vmand %vm1337, %vm1305
      %vm1370 = vmand %vm1338, %vm1306
      %vm1371 = vmand %vm1339, %vm1307
      %vm1372 = vmand %vm1340, %vm1308
      %vm1373 = vmand %vm1341, %vm1309
      %vm1374 = vmand %vm1342, %vm1310
      %vm1375 = vmand %vm1343, %vm1311
      %vm1376 = vmand %vm1344, %vm1312
      %vm1377 = vmand %vm1345, %vm1313
      %vm1378 = vmand %vm1346, %vm1314
      %vm1379 = vmand %vm1347, %vm1315
      %vm1380 = vmand %vm1348, %vm1316
      %vm1381 = vmand %vm1349, %vm1317
      %vm1382 = vmand %vm1350, %vm1318
      %vm1383 = vmand %vm1351, %vm1319
      %vm1384 = vmand %vm1352, %vm1320
      %vm1385 = vmand %vm1353, %vm1321
      %vm1386 = vmand %vm1354, %vm1322
      %vm1387 = vmand %vm1355, %vm1323
      %v1388 = vadd.s32 %v1074, 16
      %v1389 = vadd.s32 %v1081, 16
      %v1390 = vadd.s32 %v1088, 16
      %v1391 = vadd.s32 %v1095, 16
      %v1392 = vadd.s32 %v1102, 16
      %v1393 = vadd.s32 %v1109, 16
      %v1394 = vadd.s32 %v1116, 16
      %v1395 = vadd.s32 %v1123, 16
      %v1396 = vadd.s32 %v1130, 16
      %v1397 = vadd.s32 %v1137, 16
      %v1398 = vadd.s32 %v1144, 16
      %v1399 = vadd.s32 %v1151, 16
      %v1400 = vadd.s32 %v1158, 16
      %v1401 = vadd.s32 %v1165, 16
      %v1402 = vadd.s32 %v1172, 16
      %v1403 = vadd.s32 %v1179, 16
      %v1404 = vadd.s32 %v1186, 16
      %v1405 = vadd.s32 %v1193, 16
      %v1406 = vadd.s32 %v1200, 16
      %v1407 = vadd.s32 %v1207, 16
      %v1408 = vadd.s32 %v1214, 16
      %v1409 = vadd.s32 %v1221, 16
      %v1410 = vadd.s32 %v1228, 16
      %v1411 = vadd.s32 %v1235, 16
      %v1412 = vadd.s32 %v1242, 16
      %v1413 = vadd.s32 %v1249, 16
      %v1414 = vadd.s32 %v1256, 16
      %v1415 = vadd.s32 %v1263, 16
      %v1416 = vadd.s32 %v1270, 16
      %v1417 = vadd.s32 %v1277, 16
      %v1418 = vadd.s32 %v1284, 16
      %v1419 = vadd.s32 %v1291, 16
      %v1420 = vsel %vm1356, %v1388, %v1074
      %v1421 = vsel %vm1357, %v1389, %v1081
      %v1422 = vsel %vm1358, %v1390, %v1088
      %v1423 = vsel %vm1359, %v1391, %v1095
      %v1424 = vsel %vm1360, %v1392, %v1102
      %v1425 = vsel %vm1361, %v1393, %v1109
      %v1426 = vsel %vm1362, %v1394, %v1116
      %v1427 = vsel %vm1363, %v1395, %v1123
      %v1428 = vsel %vm1364, %v1396, %v1130
      %v1429 = vsel %vm1365, %v1397, %v1137
      %v1430 = vsel %vm1366, %v1398, %v1144
      %v1431 = vsel %vm1367, %v1399, %v1151
      %v1432 = vsel %vm1368, %v1400, %v1158
      %v1433 = vsel %vm1369, %v1401, %v1165
      %v1434 = vsel %vm1370, %v1402, %v1172
      %v1435 = vsel %vm1371, %v1403, %v1179
      %v1436 = vsel %vm1372, %v1404, %v1186
      %v1437 = vsel %vm1373, %v1405, %v1193
      %v1438 = vsel %vm1374, %v1406, %v1200
      %v1439 = vsel %vm1375, %v1407, %v1207
      %v1440 = vsel %vm1376, %v1408, %v1214
      %v1441 = vsel %vm1377, %v1409, %v1221
      %v1442 = vsel %vm1378, %v1410, %v1228
      %v1443 = vsel %vm1379, %v1411, %v1235
      %v1444 = vsel %vm1380, %v1412, %v1242
      %v1445 = vsel %vm1381, %v1413, %v1249
      %v1446 = vsel %vm1382, %v1414, %v1256
      %v1447 = vsel %vm1383, %v1415, %v1263
      %v1448 = vsel %vm1384, %v1416, %v1270
      %v1449 = vsel %vm1385, %v1417, %v1277
      %v1450 = vsel %vm1386, %v1418, %v1284
      %v1451 = vsel %vm1387, %v1419, %v1291
      %vm1452 = vcmp.ge.s32.totalorder %v1420, 1
      %vm1453 = vcmp.ge.s32.totalorder %v1421, 1
      %vm1454 = vcmp.ge.s32.totalorder %v1422, 1
      %vm1455 = vcmp.ge.s32.totalorder %v1423, 1
      %vm1456 = vcmp.ge.s32.totalorder %v1424, 1
      %vm1457 = vcmp.ge.s32.totalorder %v1425, 1
      %vm1458 = vcmp.ge.s32.totalorder %v1426, 1
      %vm1459 = vcmp.ge.s32.totalorder %v1427, 1
      %vm1460 = vcmp.ge.s32.totalorder %v1428, 1
      %vm1461 = vcmp.ge.s32.totalorder %v1429, 1
      %vm1462 = vcmp.ge.s32.totalorder %v1430, 1
      %vm1463 = vcmp.ge.s32.totalorder %v1431, 1
      %vm1464 = vcmp.ge.s32.totalorder %v1432, 1
      %vm1465 = vcmp.ge.s32.totalorder %v1433, 1
      %vm1466 = vcmp.ge.s32.totalorder %v1434, 1
      %vm1467 = vcmp.ge.s32.totalorder %v1435, 1
      %vm1468 = vcmp.ge.s32.totalorder %v1436, 1
      %vm1469 = vcmp.ge.s32.totalorder %v1437, 1
      %vm1470 = vcmp.ge.s32.totalorder %v1438, 1
      %vm1471 = vcmp.ge.s32.totalorder %v1439, 1
      %vm1472 = vcmp.ge.s32.totalorder %v1440, 1
      %vm1473 = vcmp.ge.s32.totalorder %v1441, 1
      %vm1474 = vcmp.ge.s32.totalorder %v1442, 1
      %vm1475 = vcmp.ge.s32.totalorder %v1443, 1
      %vm1476 = vcmp.ge.s32.totalorder %v1444, 1
      %vm1477 = vcmp.ge.s32.totalorder %v1445, 1
      %vm1478 = vcmp.ge.s32.totalorder %v1446, 1
      %vm1479 = vcmp.ge.s32.totalorder %v1447, 1
      %vm1480 = vcmp.ge.s32.totalorder %v1448, 1
      %vm1481 = vcmp.ge.s32.totalorder %v1449, 1
      %vm1482 = vcmp.ge.s32.totalorder %v1450, 1
      %vm1483 = vcmp.ge.s32.totalorder %v1451, 1
      %vm1484 = vcmp.lt.s32.totalorder %v1420, 15
      %vm1485 = vcmp.lt.s32.totalorder %v1421, 15
      %vm1486 = vcmp.lt.s32.totalorder %v1422, 15
      %vm1487 = vcmp.lt.s32.totalorder %v1423, 15
      %vm1488 = vcmp.lt.s32.totalorder %v1424, 15
      %vm1489 = vcmp.lt.s32.totalorder %v1425, 15
      %vm1490 = vcmp.lt.s32.totalorder %v1426, 15
      %vm1491 = vcmp.lt.s32.totalorder %v1427, 15
      %vm1492 = vcmp.lt.s32.totalorder %v1428, 15
      %vm1493 = vcmp.lt.s32.totalorder %v1429, 15
      %vm1494 = vcmp.lt.s32.totalorder %v1430, 15
      %vm1495 = vcmp.lt.s32.totalorder %v1431, 15
      %vm1496 = vcmp.lt.s32.totalorder %v1432, 15
      %vm1497 = vcmp.lt.s32.totalorder %v1433, 15
      %vm1498 = vcmp.lt.s32.totalorder %v1434, 15
      %vm1499 = vcmp.lt.s32.totalorder %v1435, 15
      %vm1500 = vcmp.lt.s32.totalorder %v1436, 15
      %vm1501 = vcmp.lt.s32.totalorder %v1437, 15
      %vm1502 = vcmp.lt.s32.totalorder %v1438, 15
      %vm1503 = vcmp.lt.s32.totalorder %v1439, 15
      %vm1504 = vcmp.lt.s32.totalorder %v1440, 15
      %vm1505 = vcmp.lt.s32.totalorder %v1441, 15
      %vm1506 = vcmp.lt.s32.totalorder %v1442, 15
      %vm1507 = vcmp.lt.s32.totalorder %v1443, 15
      %vm1508 = vcmp.lt.s32.totalorder %v1444, 15
      %vm1509 = vcmp.lt.s32.totalorder %v1445, 15
      %vm1510 = vcmp.lt.s32.totalorder %v1446, 15
      %vm1511 = vcmp.lt.s32.totalorder %v1447, 15
      %vm1512 = vcmp.lt.s32.totalorder %v1448, 15
      %vm1513 = vcmp.lt.s32.totalorder %v1449, 15
      %vm1514 = vcmp.lt.s32.totalorder %v1450, 15
      %vm1515 = vcmp.lt.s32.totalorder %v1451, 15
      %1516 = vst [vmem:[#allocation2] sm:$0xff] 0.0
      %1517 = vst [vmem:[#allocation2 + $0x8] sm:$0xff] 0.0
      %1518 = vst [vmem:[#allocation2 + $0x10] sm:$0xff] 0.0
      %1519 = vst [vmem:[#allocation2 + $0x118] sm:$0xff] 0.0
      %1520 = vst [vmem:[#allocation2 + $0x120] sm:$0xff] 0.0
      %1521 = vst [vmem:[#allocation2 + $0x128] sm:$0xff] 0.0
      %v1522 = vpack.c.bf16 %v958, %v956
      %v1523 = vpack.c.bf16 %v962, %v960
      %v1524 = vpack.c.bf16 %v966, %v964
      %v1525 = vpack.c.bf16 %v970, %v968
      %v1526 = vpack.c.bf16 %v974, %v972
      %v1527 = vpack.c.bf16 %v978, %v976
      %v1528 = vpack.c.bf16 %v982, %v980
      %v1529 = vpack.c.bf16 %v986, %v984
      %v1530 = vpack.c.bf16 %v990, %v988
      %v1531 = vpack.c.bf16 %v994, %v992
      %v1532 = vpack.c.bf16 %v998, %v996
      %v1533 = vpack.c.bf16 %v1002, %v1000
      %v1534 = vpack.c.bf16 %v1006, %v1004
      %v1535 = vpack.c.bf16 %v1010, %v1008
      %v1536 = vpack.c.bf16 %v1014, %v1012
      %v1537 = vpack.c.bf16 %v1018, %v1016
      %v1538 = vld [vmem:[%s3] sm:$0xf]
      %v1539 = vld [vmem:[%s3 + $0x4] sm:$0xf]
      %v1540 = vld [vmem:[%s3 + $0x8] sm:$0xf]
      %v1541 = vld [vmem:[%s3 + $0xc] sm:$0xf]
      %v1542 = vld [vmem:[%s3 + $0x10] sm:$0xf]
      %v1543 = vld [vmem:[%s3 + $0x14] sm:$0xf]
      %v1544 = vld [vmem:[%s3 + $0x18] sm:$0xf]
      %v1545 = vld [vmem:[%s3 + $0x1c] sm:$0xf]
      %v1546 = vld [vmem:[%s3 + $0x20] sm:$0xf]
      %v1547 = vld [vmem:[%s3 + $0x24] sm:$0xf]
      %v1548 = vld [vmem:[%s3 + $0x28] sm:$0xf]
      %v1549 = vld [vmem:[%s3 + $0x2c] sm:$0xf]
      %v1550 = vld [vmem:[%s3 + $0x30] sm:$0xf]
      %v1551 = vld [vmem:[%s3 + $0x34] sm:$0xf]
      %v1552 = vld [vmem:[%s3 + $0x38] sm:$0xf]
      %v1553 = vld [vmem:[%s3 + $0x3c] sm:$0xf]
      %v1554 = vld [vmem:[%s4] sm:$0x1]
      %v1556 = vlaneseq
      %v1557 = vshrl.u32 %v1556, 7
      %v1558 = vsub.s32 0, %v1557
      %v1559 = vrot.slane %v1554, %v1558
      %v1577 = vunpack.c.l.b16 %v1538
      %v1578 = vunpack.c.l.b16 %v1539
      %v1579 = vunpack.c.l.b16 %v1540
      %v1580 = vunpack.c.l.b16 %v1541
      %v1581 = vunpack.c.l.b16 %v1542
      %v1582 = vunpack.c.l.b16 %v1543
      %v1583 = vunpack.c.l.b16 %v1544
      %v1584 = vunpack.c.l.b16 %v1545
      %v1585 = vunpack.c.l.b16 %v1546
      %v1586 = vunpack.c.l.b16 %v1547
      %v1587 = vunpack.c.l.b16 %v1548
      %v1588 = vunpack.c.l.b16 %v1549
      %v1589 = vunpack.c.l.b16 %v1550
      %v1590 = vunpack.c.l.b16 %v1551
      %v1591 = vunpack.c.l.b16 %v1552
      %v1592 = vunpack.c.l.b16 %v1553
      %v1593 = vpack.c.b16 %v1578, %v1577
      %v1594 = vpack.c.b16 %v1580, %v1579
      %v1595 = vpack.c.b16 %v1582, %v1581
      %v1596 = vpack.c.b16 %v1584, %v1583
      %v1597 = vpack.c.b16 %v1586, %v1585
      %v1598 = vpack.c.b16 %v1588, %v1587
      %v1599 = vpack.c.b16 %v1590, %v1589
      %v1600 = vpack.c.b16 %v1592, %v1591
      %1609 = vmatprep.subr.bf16.mxu0 0
      %1610 = vmatpush1.bf16.msra.mxu0 %v1593
      %1611 = vmatprep.subr.bf16.mxu0 0
      %1612 = vmatpush1.bf16.msra.mxu0 %v1594
      %1613 = vmatprep.subr.bf16.mxu0 0
      %1614 = vmatpush1.bf16.msra.mxu0 %v1595
      %1615 = vmatprep.subr.bf16.mxu0 0
      %1616 = vmatpush1.bf16.msra.mxu0 %v1596
      %1617 = vmatprep.subr.bf16.mxu0 0
      %1618 = vmatpush1.bf16.msra.mxu0 %v1597
      %1619 = vmatprep.subr.bf16.mxu0 0
      %1620 = vmatpush1.bf16.msra.mxu0 %v1598
      %1621 = vmatprep.subr.bf16.mxu0 0
      %1622 = vmatpush1.bf16.msra.mxu0 %v1599
      %1623 = vmatprep.subr.bf16.mxu0 0
      %1624 = vmatpush1.bf16.msra.mxu0 %v1600
      %1625 = vmatprep.subr.bf16.mxu0 0
      %1626 = vmatpush1.bf16.msra.mxu0 0
      %1627 = vmatprep.subr.bf16.mxu0 0
      %1628 = vmatpush1.bf16.msra.mxu0 0
      %1629 = vmatprep.subr.bf16.mxu0 0
      %1630 = vmatpush1.bf16.msra.mxu0 0
      %1631 = vmatprep.subr.bf16.mxu0 0
      %1632 = vmatpush1.bf16.msra.mxu0 0
      %1633 = vmatprep.subr.bf16.mxu0 0
      %1634 = vmatpush1.bf16.msra.mxu0 0
      %1635 = vmatprep.subr.bf16.mxu0 0
      %1636 = vmatpush1.bf16.msra.mxu0 0
      %1637 = vmatprep.subr.bf16.mxu0 0
      %1638 = vmatpush1.bf16.msra.mxu0 0
      %1639 = vmatprep.subr.bf16.mxu0 0
      %1640 = vmatpush1.bf16.msra.mxu0 0
      %1641 = vmatprep.mubr.bf16.mxu0 0
      %1642 = vmatmul.mubr.bf16.gmra.mrb[0].mxu0 %v1522
      %v1643 = vpop.f32.mrb[0].mxu0
      %v1644 = vadd.f32 %v1559, %v1643
      %v1645 = vpop.f32.mrb[0].mxu0
      %v1646 = vpop.f32.mrb[0].mxu0
      %v1647 = vadd.f32 %v1559, %v1646
      %v1648 = vpop.f32.mrb[0].mxu0
      %1649 = vmatprep.mubr.bf16.mxu0 0
      %1650 = vmatmul.mubr.bf16.gmra.mrb[0].mxu0 %v1523
      %v1651 = vpop.f32.mrb[0].mxu0
      %v1652 = vadd.f32 %v1559, %v1651
      %v1653 = vpop.f32.mrb[0].mxu0
      %v1654 = vpop.f32.mrb[0].mxu0
      %v1655 = vadd.f32 %v1559, %v1654
      %v1656 = vpop.f32.mrb[0].mxu0
      %1657 = vmatprep.mubr.bf16.mxu0 0
      %1658 = vmatmul.mubr.bf16.gmra.mrb[0].mxu0 %v1524
      %v1659 = vpop.f32.mrb[0].mxu0
      %v1660 = vadd.f32 %v1559, %v1659
      %v1661 = vpop.f32.mrb[0].mxu0
      %v1662 = vpop.f32.mrb[0].mxu0
      %v1663 = vadd.f32 %v1559, %v1662
      %v1664 = vpop.f32.mrb[0].mxu0
      %1665 = vmatprep.mubr.bf16.mxu0 0
      %1666 = vmatmul.mubr.bf16.gmra.mrb[0].mxu0 %v1525
      %v1667 = vpop.f32.mrb[0].mxu0
      %v1668 = vadd.f32 %v1559, %v1667
      %v1669 = vpop.f32.mrb[0].mxu0
      %v1670 = vpop.f32.mrb[0].mxu0
      %v1671 = vadd.f32 %v1559, %v1670
      %v1672 = vpop.f32.mrb[0].mxu0
      %1673 = vmatprep.mubr.bf16.mxu0 0
      %1674 = vmatmul.mubr.bf16.gmra.mrb[0].mxu0 %v1526
      %v1675 = vpop.f32.mrb[0].mxu0
      %v1676 = vadd.f32 %v1559, %v1675
      %v1677 = vpop.f32.mrb[0].mxu0
      %v1678 = vpop.f32.mrb[0].mxu0
      %v1679 = vadd.f32 %v1559, %v1678
      %v1680 = vpop.f32.mrb[0].mxu0
      %1681 = vmatprep.mubr.bf16.mxu0 0
      %1682 = vmatmul.mubr.bf16.gmra.mrb[0].mxu0 %v1527
      %v1683 = vpop.f32.mrb[0].mxu0
      %v1684 = vadd.f32 %v1559, %v1683
      %v1685 = vpop.f32.mrb[0].mxu0
      %v1686 = vpop.f32.mrb[0].mxu0
      %v1687 = vadd.f32 %v1559, %v1686
      %v1688 = vpop.f32.mrb[0].mxu0
      %1689 = vmatprep.mubr.bf16.mxu0 0
      %1690 = vmatmul.mubr.bf16.gmra.mrb[0].mxu0 %v1528
      %v1691 = vpop.f32.mrb[0].mxu0
      %v1692 = vadd.f32 %v1559, %v1691
      %v1693 = vpop.f32.mrb[0].mxu0
      %v1694 = vpop.f32.mrb[0].mxu0
      %v1695 = vadd.f32 %v1559, %v1694
      %v1696 = vpop.f32.mrb[0].mxu0
      %1697 = vmatprep.mubr.bf16.mxu0 0
      %1698 = vmatmul.mubr.bf16.gmra.mrb[0].mxu0 %v1529
      %v1699 = vpop.f32.mrb[0].mxu0
      %v1700 = vadd.f32 %v1559, %v1699
      %v1701 = vpop.f32.mrb[0].mxu0
      %v1702 = vpop.f32.mrb[0].mxu0
      %v1703 = vadd.f32 %v1559, %v1702
      %v1704 = vpop.f32.mrb[0].mxu0
      %1705 = vmatprep.mubr.bf16.mxu0 0
      %1706 = vmatmul.mubr.bf16.gmra.mrb[0].mxu0 %v1530
      %v1707 = vpop.f32.mrb[0].mxu0
      %v1708 = vadd.f32 %v1559, %v1707
      %v1709 = vpop.f32.mrb[0].mxu0
      %v1710 = vpop.f32.mrb[0].mxu0
      %v1711 = vadd.f32 %v1559, %v1710
      %v1712 = vpop.f32.mrb[0].mxu0
      %1713 = vmatprep.mubr.bf16.mxu0 0
      %1714 = vmatmul.mubr.bf16.gmra.mrb[0].mxu0 %v1531
      %v1715 = vpop.f32.mrb[0].mxu0
      %v1716 = vadd.f32 %v1559, %v1715
      %v1717 = vpop.f32.mrb[0].mxu0
      %v1718 = vpop.f32.mrb[0].mxu0
      %v1719 = vadd.f32 %v1559, %v1718
      %v1720 = vpop.f32.mrb[0].mxu0
      %1721 = vmatprep.mubr.bf16.mxu0 0
      %1722 = vmatmul.mubr.bf16.gmra.mrb[0].mxu0 %v1532
      %v1723 = vpop.f32.mrb[0].mxu0
      %v1724 = vadd.f32 %v1559, %v1723
      %v1725 = vpop.f32.mrb[0].mxu0
      %v1726 = vpop.f32.mrb[0].mxu0
      %v1727 = vadd.f32 %v1559, %v1726
      %v1728 = vpop.f32.mrb[0].mxu0
      %1729 = vmatprep.mubr.bf16.mxu0 0
      %1730 = vmatmul.mubr.bf16.gmra.mrb[0].mxu0 %v1533
      %v1731 = vpop.f32.mrb[0].mxu0
      %v1732 = vadd.f32 %v1559, %v1731
      %v1733 = vpop.f32.mrb[0].mxu0
      %v1734 = vpop.f32.mrb[0].mxu0
      %v1735 = vadd.f32 %v1559, %v1734
      %v1736 = vpop.f32.mrb[0].mxu0
      %1737 = vmatprep.mubr.bf16.mxu0 0
      %1738 = vmatmul.mubr.bf16.gmra.mrb[0].mxu0 %v1534
      %v1739 = vpop.f32.mrb[0].mxu0
      %v1740 = vadd.f32 %v1559, %v1739
      %v1741 = vpop.f32.mrb[0].mxu0
      %v1742 = vpop.f32.mrb[0].mxu0
      %v1743 = vadd.f32 %v1559, %v1742
      %v1744 = vpop.f32.mrb[0].mxu0
      %1745 = vmatprep.mubr.bf16.mxu0 0
      %1746 = vmatmul.mubr.bf16.gmra.mrb[0].mxu0 %v1535
      %v1747 = vpop.f32.mrb[0].mxu0
      %v1748 = vadd.f32 %v1559, %v1747
      %v1749 = vpop.f32.mrb[0].mxu0
      %v1750 = vpop.f32.mrb[0].mxu0
      %v1751 = vadd.f32 %v1559, %v1750
      %v1752 = vpop.f32.mrb[0].mxu0
      %1753 = vmatprep.mubr.bf16.mxu0 0
      %1754 = vmatmul.mubr.bf16.gmra.mrb[0].mxu0 %v1536
      %v1755 = vpop.f32.mrb[0].mxu0
      %v1756 = vadd.f32 %v1559, %v1755
      %v1757 = vpop.f32.mrb[0].mxu0
      %v1758 = vpop.f32.mrb[0].mxu0
      %v1759 = vadd.f32 %v1559, %v1758
      %v1760 = vpop.f32.mrb[0].mxu0
      %1761 = vmatprep.mubr.bf16.mxu0 0
      %1762 = vmatmul.mubr.bf16.gmra.mrb[0].mxu0 %v1537
      %v1763 = vpop.f32.mrb[0].mxu0
      %v1764 = vadd.f32 %v1559, %v1763
      %v1765 = vpop.f32.mrb[0].mxu0
      %v1766 = vpop.f32.mrb[0].mxu0
      %v1767 = vadd.f32 %v1559, %v1766
      %v1768 = vpop.f32.mrb[0].mxu0
      %1769 = vdwg.mxu0
      %v1770 = vmul.f32 %v1644, 0.5
      %v1771 = vmul.f32 %v1647, 0.5
      %v1772 = vmul.f32 %v1652, 0.5
      %v1773 = vmul.f32 %v1655, 0.5
      %v1774 = vmul.f32 %v1660, 0.5
      %v1775 = vmul.f32 %v1663, 0.5
      %v1776 = vmul.f32 %v1668, 0.5
      %v1777 = vmul.f32 %v1671, 0.5
      %v1778 = vmul.f32 %v1676, 0.5
      %v1779 = vmul.f32 %v1679, 0.5
      %v1780 = vmul.f32 %v1684, 0.5
      %v1781 = vmul.f32 %v1687, 0.5
      %v1782 = vmul.f32 %v1692, 0.5
      %v1783 = vmul.f32 %v1695, 0.5
      %v1784 = vmul.f32 %v1700, 0.5
      %v1785 = vmul.f32 %v1703, 0.5
      %v1786 = vmul.f32 %v1708, 0.5
      %v1787 = vmul.f32 %v1711, 0.5
      %v1788 = vmul.f32 %v1716, 0.5
      %v1789 = vmul.f32 %v1719, 0.5
      %v1790 = vmul.f32 %v1724, 0.5
      %v1791 = vmul.f32 %v1727, 0.5
      %v1792 = vmul.f32 %v1732, 0.5
      %v1793 = vmul.f32 %v1735, 0.5
      %v1794 = vmul.f32 %v1740, 0.5
      %v1795 = vmul.f32 %v1743, 0.5
      %v1796 = vmul.f32 %v1748, 0.5
      %v1797 = vmul.f32 %v1751, 0.5
      %v1798 = vmul.f32 %v1756, 0.5
      %v1799 = vmul.f32 %v1759, 0.5
      %v1800 = vmul.f32 %v1764, 0.5
      %v1801 = vmul.f32 %v1767, 0.5
      %v1802 = vtanh.pop %v1770
      %v1803 = vtanh.pop %v1771
      %v1804 = vtanh.pop %v1772
      %v1805 = vtanh.pop %v1773
      %v1806 = vtanh.pop %v1774
      %v1807 = vtanh.pop %v1775
      %v1808 = vtanh.pop %v1776
      %v1809 = vtanh.pop %v1777
      %v1810 = vtanh.pop %v1778
      %v1811 = vtanh.pop %v1779
      %v1812 = vtanh.pop %v1780
      %v1813 = vtanh.pop %v1781
      %v1814 = vtanh.pop %v1782
      %v1815 = vtanh.pop %v1783
      %v1816 = vtanh.pop %v1784
      %v1817 = vtanh.pop %v1785
      %v1818 = vtanh.pop %v1786
      %v1819 = vtanh.pop %v1787
      %v1820 = vtanh.pop %v1788
      %v1821 = vtanh.pop %v1789
      %v1822 = vtanh.pop %v1790
      %v1823 = vtanh.pop %v1791
      %v1824 = vtanh.pop %v1792
      %v1825 = vtanh.pop %v1793
      %v1826 = vtanh.pop %v1794
      %v1827 = vtanh.pop %v1795
      %v1828 = vtanh.pop %v1796
      %v1829 = vtanh.pop %v1797
      %v1830 = vtanh.pop %v1798
      %v1831 = vtanh.pop %v1799
      %v1832 = vtanh.pop %v1800
      %v1833 = vtanh.pop %v1801
      %v1834 = vadd.f32 %v1802, 1.0
      %v1835 = vadd.f32 %v1803, 1.0
      %v1836 = vadd.f32 %v1804, 1.0
      %v1837 = vadd.f32 %v1805, 1.0
      %v1838 = vadd.f32 %v1806, 1.0
      %v1839 = vadd.f32 %v1807, 1.0
      %v1840 = vadd.f32 %v1808, 1.0
      %v1841 = vadd.f32 %v1809, 1.0
      %v1842 = vadd.f32 %v1810, 1.0
      %v1843 = vadd.f32 %v1811, 1.0
      %v1844 = vadd.f32 %v1812, 1.0
      %v1845 = vadd.f32 %v1813, 1.0
      %v1846 = vadd.f32 %v1814, 1.0
      %v1847 = vadd.f32 %v1815, 1.0
      %v1848 = vadd.f32 %v1816, 1.0
      %v1849 = vadd.f32 %v1817, 1.0
      %v1850 = vadd.f32 %v1818, 1.0
      %v1851 = vadd.f32 %v1819, 1.0
      %v1852 = vadd.f32 %v1820, 1.0
      %v1853 = vadd.f32 %v1821, 1.0
      %v1854 = vadd.f32 %v1822, 1.0
      %v1855 = vadd.f32 %v1823, 1.0
      %v1856 = vadd.f32 %v1824, 1.0
      %v1857 = vadd.f32 %v1825, 1.0
      %v1858 = vadd.f32 %v1826, 1.0
      %v1859 = vadd.f32 %v1827, 1.0
      %v1860 = vadd.f32 %v1828, 1.0
      %v1861 = vadd.f32 %v1829, 1.0
      %v1862 = vadd.f32 %v1830, 1.0
      %v1863 = vadd.f32 %v1831, 1.0
      %v1864 = vadd.f32 %v1832, 1.0
      %v1865 = vadd.f32 %v1833, 1.0
      %v1866 = vmul.f32 %v1770, %v1834
      %v1867 = vmul.f32 %v1771, %v1835
      %v1868 = vmul.f32 %v1772, %v1836
      %v1869 = vmul.f32 %v1773, %v1837
      %v1870 = vmul.f32 %v1774, %v1838
      %v1871 = vmul.f32 %v1775, %v1839
      %v1872 = vmul.f32 %v1776, %v1840
      %v1873 = vmul.f32 %v1777, %v1841
      %v1874 = vmul.f32 %v1778, %v1842
      %v1875 = vmul.f32 %v1779, %v1843
      %v1876 = vmul.f32 %v1780, %v1844
      %v1877 = vmul.f32 %v1781, %v1845
      %v1878 = vmul.f32 %v1782, %v1846
      %v1879 = vmul.f32 %v1783, %v1847
      %v1880 = vmul.f32 %v1784, %v1848
      %v1881 = vmul.f32 %v1785, %v1849
      %v1882 = vmul.f32 %v1786, %v1850
      %v1883 = vmul.f32 %v1787, %v1851
      %v1884 = vmul.f32 %v1788, %v1852
      %v1885 = vmul.f32 %v1789, %v1853
      %v1886 = vmul.f32 %v1790, %v1854
      %v1887 = vmul.f32 %v1791, %v1855
      %v1888 = vmul.f32 %v1792, %v1856
      %v1889 = vmul.f32 %v1793, %v1857
      %v1890 = vmul.f32 %v1794, %v1858
      %v1891 = vmul.f32 %v1795, %v1859
      %v1892 = vmul.f32 %v1796, %v1860
      %v1893 = vmul.f32 %v1797, %v1861
      %v1894 = vmul.f32 %v1798, %v1862
      %v1895 = vmul.f32 %v1799, %v1863
      %v1896 = vmul.f32 %v1800, %v1864
      %v1897 = vmul.f32 %v1801, %v1865
      %1898 = vst [vmem:[#allocation2 + $0x18] sm:$0xff] %v1866
      %1899 = vst [vmem:[#allocation2 + $0x20] sm:$0xff] %v1867
      %1900 = vst [vmem:[#allocation2 + $0x28] sm:$0xff] %v1868
      %1901 = vst [vmem:[#allocation2 + $0x30] sm:$0xff] %v1869
      %1902 = vst [vmem:[#allocation2 + $0x38] sm:$0xff] %v1870
      %1903 = vst [vmem:[#allocation2 + $0x40] sm:$0xff] %v1871
      %1904 = vst [vmem:[#allocation2 + $0x48] sm:$0xff] %v1872
      %1905 = vst [vmem:[#allocation2 + $0x50] sm:$0xff] %v1873
      %1906 = vst [vmem:[#allocation2 + $0x58] sm:$0xff] %v1874
      %1907 = vst [vmem:[#allocation2 + $0x60] sm:$0xff] %v1875
      %1908 = vst [vmem:[#allocation2 + $0x68] sm:$0xff] %v1876
      %1909 = vst [vmem:[#allocation2 + $0x70] sm:$0xff] %v1877
      %1910 = vst [vmem:[#allocation2 + $0x78] sm:$0xff] %v1878
      %1911 = vst [vmem:[#allocation2 + $0x80] sm:$0xff] %v1879
      %1912 = vst [vmem:[#allocation2 + $0x88] sm:$0xff] %v1880
      %1913 = vst [vmem:[#allocation2 + $0x90] sm:$0xff] %v1881
      %1914 = vst [vmem:[#allocation2 + $0x98] sm:$0xff] %v1882
      %1915 = vst [vmem:[#allocation2 + $0xa0] sm:$0xff] %v1883
      %1916 = vst [vmem:[#allocation2 + $0xa8] sm:$0xff] %v1884
      %1917 = vst [vmem:[#allocation2 + $0xb0] sm:$0xff] %v1885
      %1918 = vst [vmem:[#allocation2 + $0xb8] sm:$0xff] %v1886
      %1919 = vst [vmem:[#allocation2 + $0xc0] sm:$0xff] %v1887
      %1920 = vst [vmem:[#allocation2 + $0xc8] sm:$0xff] %v1888
      %1921 = vst [vmem:[#allocation2 + $0xd0] sm:$0xff] %v1889
      %1922 = vst [vmem:[#allocation2 + $0xd8] sm:$0xff] %v1890
      %1923 = vst [vmem:[#allocation2 + $0xe0] sm:$0xff] %v1891
      %1924 = vst [vmem:[#allocation2 + $0xe8] sm:$0xff] %v1892
      %1925 = vst [vmem:[#allocation2 + $0xf0] sm:$0xff] %v1893
      %1926 = vst [vmem:[#allocation2 + $0xf8] sm:$0xff] %v1894
      %1927 = vst [vmem:[#allocation2 + $0x100] sm:$0xff] %v1895
      %1928 = vst [vmem:[#allocation2 + $0x108] sm:$0xff] %v1896
      %1929 = vst [vmem:[#allocation2 + $0x110] sm:$0xff] %v1897
      %v1930 = vld [vmem:[#allocation2 + $0x7] sm:$0xff]
      %v1931 = vld [vmem:[#allocation2 + $0xf] sm:$0xff]
      %v1932 = vld [vmem:[#allocation2 + $0x17] sm:$0xff]
      %v1933 = vld [vmem:[#allocation2 + $0x1f] sm:$0xff]
      %v1934 = vld [vmem:[#allocation2 + $0x27] sm:$0xff]
      %v1935 = vld [vmem:[#allocation2 + $0x2f] sm:$0xff]
      %v1936 = vld [vmem:[#allocation2 + $0x37] sm:$0xff]
      %v1937 = vld [vmem:[#allocation2 + $0x3f] sm:$0xff]
      %v1938 = vld [vmem:[#allocation2 + $0x47] sm:$0xff]
      %v1939 = vld [vmem:[#allocation2 + $0x4f] sm:$0xff]
      %v1940 = vld [vmem:[#allocation2 + $0x57] sm:$0xff]
      %v1941 = vld [vmem:[#allocation2 + $0x5f] sm:$0xff]
      %v1942 = vld [vmem:[#allocation2 + $0x67] sm:$0xff]
      %v1943 = vld [vmem:[#allocation2 + $0x6f] sm:$0xff]
      %v1944 = vld [vmem:[#allocation2 + $0x77] sm:$0xff]
      %v1945 = vld [vmem:[#allocation2 + $0x7f] sm:$0xff]
      %v1946 = vld [vmem:[#allocation2 + $0x87] sm:$0xff]
      %v1947 = vld [vmem:[#allocation2 + $0x8f] sm:$0xff]
      %v1948 = vld [vmem:[#allocation2 + $0x97] sm:$0xff]
      %v1949 = vld [vmem:[#allocation2 + $0x9f] sm:$0xff]
      %v1950 = vld [vmem:[#allocation2 + $0xa7] sm:$0xff]
      %v1951 = vld [vmem:[#allocation2 + $0xaf] sm:$0xff]
      %v1952 = vld [vmem:[#allocation2 + $0xb7] sm:$0xff]
      %v1953 = vld [vmem:[#allocation2 + $0xbf] sm:$0xff]
      %v1954 = vld [vmem:[#allocation2 + $0xc7] sm:$0xff]
      %v1955 = vld [vmem:[#allocation2 + $0xcf] sm:$0xff]
      %v1956 = vld [vmem:[#allocation2 + $0xd7] sm:$0xff]
      %v1957 = vld [vmem:[#allocation2 + $0xdf] sm:$0xff]
      %v1958 = vld [vmem:[#allocation2 + $0xe7] sm:$0xff]
      %v1959 = vld [vmem:[#allocation2 + $0xef] sm:$0xff]
      %v1960 = vld [vmem:[#allocation2 + $0xf7] sm:$0xff]
      %v1961 = vld [vmem:[#allocation2 + $0xff] sm:$0xff]
      %v1962 = vsel %vm1452, 1, 0
      %v1963 = vsel %vm1453, 1, 0
      %v1964 = vsel %vm1454, 1, 0
      %v1965 = vsel %vm1455, 1, 0
      %v1966 = vsel %vm1456, 1, 0
      %v1967 = vsel %vm1457, 1, 0
      %v1968 = vsel %vm1458, 1, 0
      %v1969 = vsel %vm1459, 1, 0
      %v1970 = vsel %vm1460, 1, 0
      %v1971 = vsel %vm1461, 1, 0
      %v1972 = vsel %vm1462, 1, 0
      %v1973 = vsel %vm1463, 1, 0
      %v1974 = vsel %vm1464, 1, 0
      %v1975 = vsel %vm1465, 1, 0
      %v1976 = vsel %vm1466, 1, 0
      %v1977 = vsel %vm1467, 1, 0
      %v1978 = vsel %vm1468, 1, 0
      %v1979 = vsel %vm1469, 1, 0
      %v1980 = vsel %vm1470, 1, 0
      %v1981 = vsel %vm1471, 1, 0
      %v1982 = vsel %vm1472, 1, 0
      %v1983 = vsel %vm1473, 1, 0
      %v1984 = vsel %vm1474, 1, 0
      %v1985 = vsel %vm1475, 1, 0
      %v1986 = vsel %vm1476, 1, 0
      %v1987 = vsel %vm1477, 1, 0
      %v1988 = vsel %vm1478, 1, 0
      %v1989 = vsel %vm1479, 1, 0
      %v1990 = vsel %vm1480, 1, 0
      %v1991 = vsel %vm1481, 1, 0
      %v1992 = vsel %vm1482, 1, 0
      %v1993 = vsel %vm1483, 1, 0
      %vm1994 = vcmp.eq.s32.totalorder %v1962, 1
      %vm1995 = vcmp.eq.s32.totalorder %v1963, 1
      %vm1996 = vcmp.eq.s32.totalorder %v1964, 1
      %vm1997 = vcmp.eq.s32.totalorder %v1965, 1
      %vm1998 = vcmp.eq.s32.totalorder %v1966, 1
      %vm1999 = vcmp.eq.s32.totalorder %v1967, 1
      %vm2000 = vcmp.eq.s32.totalorder %v1968, 1
      %vm2001 = vcmp.eq.s32.totalorder %v1969, 1
      %vm2002 = vcmp.eq.s32.totalorder %v1970, 1
      %vm2003 = vcmp.eq.s32.totalorder %v1971, 1
      %vm2004 = vcmp.eq.s32.totalorder %v1972, 1
      %vm2005 = vcmp.eq.s32.totalorder %v1973, 1
      %vm2006 = vcmp.eq.s32.totalorder %v1974, 1
      %vm2007 = vcmp.eq.s32.totalorder %v1975, 1
      %vm2008 = vcmp.eq.s32.totalorder %v1976, 1
      %vm2009 = vcmp.eq.s32.totalorder %v1977, 1
      %vm2010 = vcmp.eq.s32.totalorder %v1978, 1
      %vm2011 = vcmp.eq.s32.totalorder %v1979, 1
      %vm2012 = vcmp.eq.s32.totalorder %v1980, 1
      %vm2013 = vcmp.eq.s32.totalorder %v1981, 1
      %vm2014 = vcmp.eq.s32.totalorder %v1982, 1
      %vm2015 = vcmp.eq.s32.totalorder %v1983, 1
      %vm2016 = vcmp.eq.s32.totalorder %v1984, 1
      %vm2017 = vcmp.eq.s32.totalorder %v1985, 1
      %vm2018 = vcmp.eq.s32.totalorder %v1986, 1
      %vm2019 = vcmp.eq.s32.totalorder %v1987, 1
      %vm2020 = vcmp.eq.s32.totalorder %v1988, 1
      %vm2021 = vcmp.eq.s32.totalorder %v1989, 1
      %vm2022 = vcmp.eq.s32.totalorder %v1990, 1
      %vm2023 = vcmp.eq.s32.totalorder %v1991, 1
      %vm2024 = vcmp.eq.s32.totalorder %v1992, 1
      %vm2025 = vcmp.eq.s32.totalorder %v1993, 1
      %v2026 = vsel %vm1994, %v1930, 0.0
      %v2027 = vsel %vm1995, %v1931, 0.0
      %v2028 = vsel %vm1996, %v1932, 0.0
      %v2029 = vsel %vm1997, %v1933, 0.0
      %v2030 = vsel %vm1998, %v1934, 0.0
      %v2031 = vsel %vm1999, %v1935, 0.0
      %v2032 = vsel %vm2000, %v1936, 0.0
      %v2033 = vsel %vm2001, %v1937, 0.0
      %v2034 = vsel %vm2002, %v1938, 0.0
      %v2035 = vsel %vm2003, %v1939, 0.0
      %v2036 = vsel %vm2004, %v1940, 0.0
      %v2037 = vsel %vm2005, %v1941, 0.0
      %v2038 = vsel %vm2006, %v1942, 0.0
      %v2039 = vsel %vm2007, %v1943, 0.0
      %v2040 = vsel %vm2008, %v1944, 0.0
      %v2041 = vsel %vm2009, %v1945, 0.0
      %v2042 = vsel %vm2010, %v1946, 0.0
      %v2043 = vsel %vm2011, %v1947, 0.0
      %v2044 = vsel %vm2012, %v1948, 0.0
      %v2045 = vsel %vm2013, %v1949, 0.0
      %v2046 = vsel %vm2014, %v1950, 0.0
      %v2047 = vsel %vm2015, %v1951, 0.0
      %v2048 = vsel %vm2016, %v1952, 0.0
      %v2049 = vsel %vm2017, %v1953, 0.0
      %v2050 = vsel %vm2018, %v1954, 0.0
      %v2051 = vsel %vm2019, %v1955, 0.0
      %v2052 = vsel %vm2020, %v1956, 0.0
      %v2053 = vsel %vm2021, %v1957, 0.0
      %v2054 = vsel %vm2022, %v1958, 0.0
      %v2055 = vsel %vm2023, %v1959, 0.0
      %v2056 = vsel %vm2024, %v1960, 0.0
      %v2057 = vsel %vm2025, %v1961, 0.0
      %v2058 = vpack.c.bf16 %v2027, %v2026
      %v2059 = vpack.c.bf16 %v2029, %v2028
      %v2060 = vpack.c.bf16 %v2031, %v2030
      %v2061 = vpack.c.bf16 %v2033, %v2032
      %v2062 = vpack.c.bf16 %v2035, %v2034
      %v2063 = vpack.c.bf16 %v2037, %v2036
      %v2064 = vpack.c.bf16 %v2039, %v2038
      %v2065 = vpack.c.bf16 %v2041, %v2040
      %v2066 = vpack.c.bf16 %v2043, %v2042
      %v2067 = vpack.c.bf16 %v2045, %v2044
      %v2068 = vpack.c.bf16 %v2047, %v2046
      %v2069 = vpack.c.bf16 %v2049, %v2048
      %v2070 = vpack.c.bf16 %v2051, %v2050
      %v2071 = vpack.c.bf16 %v2053, %v2052
      %v2072 = vpack.c.bf16 %v2055, %v2054
      %v2073 = vpack.c.bf16 %v2057, %v2056
      %2074 = vst [vmem:[#allocation3] sm:$0xff] %v2058
      %2075 = vst [vmem:[#allocation3 + $0x48] sm:$0xff] %v2059
      %2076 = vst [vmem:[#allocation3 + $0x90] sm:$0xff] %v2060
      %2077 = vst [vmem:[#allocation3 + $0xd8] sm:$0xff] %v2061
      %2078 = vst [vmem:[#allocation3 + $0x120] sm:$0xff] %v2062
      %2079 = vst [vmem:[#allocation3 + $0x168] sm:$0xff] %v2063
      %2080 = vst [vmem:[#allocation3 + $0x1b0] sm:$0xff] %v2064
      %2081 = vst [vmem:[#allocation3 + $0x1f8] sm:$0xff] %v2065
      %2082 = vst [vmem:[#allocation3 + $0x240] sm:$0xff] %v2066
      %2083 = vst [vmem:[#allocation3 + $0x288] sm:$0xff] %v2067
      %2084 = vst [vmem:[#allocation3 + $0x2d0] sm:$0xff] %v2068
      %2085 = vst [vmem:[#allocation3 + $0x318] sm:$0xff] %v2069
      %2086 = vst [vmem:[#allocation3 + $0x360] sm:$0xff] %v2070
      %2087 = vst [vmem:[#allocation3 + $0x3a8] sm:$0xff] %v2071
      %2088 = vst [vmem:[#allocation3 + $0x3f0] sm:$0xff] %v2072
      %2089 = vst [vmem:[#allocation3 + $0x438] sm:$0xff] %v2073
      %v2090 = vld [vmem:[#allocation2 + $0x8] sm:$0xff]
      %v2091 = vld [vmem:[#allocation2 + $0x10] sm:$0xff]
      %v2092 = vld [vmem:[#allocation2 + $0x18] sm:$0xff]
      %v2093 = vld [vmem:[#allocation2 + $0x20] sm:$0xff]
      %v2094 = vld [vmem:[#allocation2 + $0x28] sm:$0xff]
      %v2095 = vld [vmem:[#allocation2 + $0x30] sm:$0xff]
      %v2096 = vld [vmem:[#allocation2 + $0x38] sm:$0xff]
      %v2097 = vld [vmem:[#allocation2 + $0x40] sm:$0xff]
      %v2098 = vld [vmem:[#allocation2 + $0x48] sm:$0xff]
      %v2099 = vld [vmem:[#allocation2 + $0x50] sm:$0xff]
      %v2100 = vld [vmem:[#allocation2 + $0x58] sm:$0xff]
      %v2101 = vld [vmem:[#allocation2 + $0x60] sm:$0xff]
      %v2102 = vld [vmem:[#allocation2 + $0x68] sm:$0xff]
      %v2103 = vld [vmem:[#allocation2 + $0x70] sm:$0xff]
      %v2104 = vld [vmem:[#allocation2 + $0x78] sm:$0xff]
      %v2105 = vld [vmem:[#allocation2 + $0x80] sm:$0xff]
      %v2106 = vld [vmem:[#allocation2 + $0x88] sm:$0xff]
      %v2107 = vld [vmem:[#allocation2 + $0x90] sm:$0xff]
      %v2108 = vld [vmem:[#allocation2 + $0x98] sm:$0xff]
      %v2109 = vld [vmem:[#allocation2 + $0xa0] sm:$0xff]
      %v2110 = vld [vmem:[#allocation2 + $0xa8] sm:$0xff]
      %v2111 = vld [vmem:[#allocation2 + $0xb0] sm:$0xff]
      %v2112 = vld [vmem:[#allocation2 + $0xb8] sm:$0xff]
      %v2113 = vld [vmem:[#allocation2 + $0xc0] sm:$0xff]
      %v2114 = vld [vmem:[#allocation2 + $0xc8] sm:$0xff]
      %v2115 = vld [vmem:[#allocation2 + $0xd0] sm:$0xff]
      %v2116 = vld [vmem:[#allocation2 + $0xd8] sm:$0xff]
      %v2117 = vld [vmem:[#allocation2 + $0xe0] sm:$0xff]
      %v2118 = vld [vmem:[#allocation2 + $0xe8] sm:$0xff]
      %v2119 = vld [vmem:[#allocation2 + $0xf0] sm:$0xff]
      %v2120 = vld [vmem:[#allocation2 + $0xf8] sm:$0xff]
      %v2121 = vld [vmem:[#allocation2 + $0x100] sm:$0xff]
      %v2122 = vpack.c.bf16 %v2091, %v2090
      %v2123 = vpack.c.bf16 %v2093, %v2092
      %v2124 = vpack.c.bf16 %v2095, %v2094
      %v2125 = vpack.c.bf16 %v2097, %v2096
      %v2126 = vpack.c.bf16 %v2099, %v2098
      %v2127 = vpack.c.bf16 %v2101, %v2100
      %v2128 = vpack.c.bf16 %v2103, %v2102
      %v2129 = vpack.c.bf16 %v2105, %v2104
      %v2130 = vpack.c.bf16 %v2107, %v2106
      %v2131 = vpack.c.bf16 %v2109, %v2108
      %v2132 = vpack.c.bf16 %v2111, %v2110
      %v2133 = vpack.c.bf16 %v2113, %v2112
      %v2134 = vpack.c.bf16 %v2115, %v2114
      %v2135 = vpack.c.bf16 %v2117, %v2116
      %v2136 = vpack.c.bf16 %v2119, %v2118
      %v2137 = vpack.c.bf16 %v2121, %v2120
      %2138 = vst [vmem:[#allocation3 + $0x8] sm:$0xff] %v2122
      %2139 = vst [vmem:[#allocation3 + $0x50] sm:$0xff] %v2123
      %2140 = vst [vmem:[#allocation3 + $0x98] sm:$0xff] %v2124
      %2141 = vst [vmem:[#allocation3 + $0xe0] sm:$0xff] %v2125
      %2142 = vst [vmem:[#allocation3 + $0x128] sm:$0xff] %v2126
      %2143 = vst [vmem:[#allocation3 + $0x170] sm:$0xff] %v2127
      %2144 = vst [vmem:[#allocation3 + $0x1b8] sm:$0xff] %v2128
      %2145 = vst [vmem:[#allocation3 + $0x200] sm:$0xff] %v2129
      %2146 = vst [vmem:[#allocation3 + $0x248] sm:$0xff] %v2130
      %2147 = vst [vmem:[#allocation3 + $0x290] sm:$0xff] %v2131
      %2148 = vst [vmem:[#allocation3 + $0x2d8] sm:$0xff] %v2132
      %2149 = vst [vmem:[#allocation3 + $0x320] sm:$0xff] %v2133
      %2150 = vst [vmem:[#allocation3 + $0x368] sm:$0xff] %v2134
      %2151 = vst [vmem:[#allocation3 + $0x3b0] sm:$0xff] %v2135
      %2152 = vst [vmem:[#allocation3 + $0x3f8] sm:$0xff] %v2136
      %2153 = vst [vmem:[#allocation3 + $0x440] sm:$0xff] %v2137
      %v2154 = vld [vmem:[#allocation2 + $0x9] sm:$0xff]
      %v2155 = vld [vmem:[#allocation2 + $0x11] sm:$0xff]
      %v2156 = vld [vmem:[#allocation2 + $0x19] sm:$0xff]
      %v2157 = vld [vmem:[#allocation2 + $0x21] sm:$0xff]
      %v2158 = vld [vmem:[#allocation2 + $0x29] sm:$0xff]
      %v2159 = vld [vmem:[#allocation2 + $0x31] sm:$0xff]
      %v2160 = vld [vmem:[#allocation2 + $0x39] sm:$0xff]
      %v2161 = vld [vmem:[#allocation2 + $0x41] sm:$0xff]
      %v2162 = vld [vmem:[#allocation2 + $0x49] sm:$0xff]
      %v2163 = vld [vmem:[#allocation2 + $0x51] sm:$0xff]
      %v2164 = vld [vmem:[#allocation2 + $0x59] sm:$0xff]
      %v2165 = vld [vmem:[#allocation2 + $0x61] sm:$0xff]
      %v2166 = vld [vmem:[#allocation2 + $0x69] sm:$0xff]
      %v2167 = vld [vmem:[#allocation2 + $0x71] sm:$0xff]
      %v2168 = vld [vmem:[#allocation2 + $0x79] sm:$0xff]
      %v2169 = vld [vmem:[#allocation2 + $0x81] sm:$0xff]
      %v2170 = vld [vmem:[#allocation2 + $0x89] sm:$0xff]
      %v2171 = vld [vmem:[#allocation2 + $0x91] sm:$0xff]
      %v2172 = vld [vmem:[#allocation2 + $0x99] sm:$0xff]
      %v2173 = vld [vmem:[#allocation2 + $0xa1] sm:$0xff]
      %v2174 = vld [vmem:[#allocation2 + $0xa9] sm:$0xff]
      %v2175 = vld [vmem:[#allocation2 + $0xb1] sm:$0xff]
      %v2176 = vld [vmem:[#allocation2 + $0xb9] sm:$0xff]
      %v2177 = vld [vmem:[#allocation2 + $0xc1] sm:$0xff]
      %v2178 = vld [vmem:[#allocation2 + $0xc9] sm:$0xff]
      %v2179 = vld [vmem:[#allocation2 + $0xd1] sm:$0xff]
      %v2180 = vld [vmem:[#allocation2 + $0xd9] sm:$0xff]
      %v2181 = vld [vmem:[#allocation2 + $0xe1] sm:$0xff]
      %v2182 = vld [vmem:[#allocation2 + $0xe9] sm:$0xff]
      %v2183 = vld [vmem:[#allocation2 + $0xf1] sm:$0xff]
      %v2184 = vld [vmem:[#allocation2 + $0xf9] sm:$0xff]
      %v2185 = vld [vmem:[#allocation2 + $0x101] sm:$0xff]
      %v2186 = vsel %vm1484, 1, 0
      %v2187 = vsel %vm1485, 1, 0
      %v2188 = vsel %vm1486, 1, 0
      %v2189 = vsel %vm1487, 1, 0
      %v2190 = vsel %vm1488, 1, 0
      %v2191 = vsel %vm1489, 1, 0
      %v2192 = vsel %vm1490, 1, 0
      %v2193 = vsel %vm1491, 1, 0
      %v2194 = vsel %vm1492, 1, 0
      %v2195 = vsel %vm1493, 1, 0
      %v2196 = vsel %vm1494, 1, 0
      %v2197 = vsel %vm1495, 1, 0
      %v2198 = vsel %vm1496, 1, 0
      %v2199 = vsel %vm1497, 1, 0
      %v2200 = vsel %vm1498, 1, 0
      %v2201 = vsel %vm1499, 1, 0
      %v2202 = vsel %vm1500, 1, 0
      %v2203 = vsel %vm1501, 1, 0
      %v2204 = vsel %vm1502, 1, 0
      %v2205 = vsel %vm1503, 1, 0
      %v2206 = vsel %vm1504, 1, 0
      %v2207 = vsel %vm1505, 1, 0
      %v2208 = vsel %vm1506, 1, 0
      %v2209 = vsel %vm1507, 1, 0
      %v2210 = vsel %vm1508, 1, 0
      %v2211 = vsel %vm1509, 1, 0
      %v2212 = vsel %vm1510, 1, 0
      %v2213 = vsel %vm1511, 1, 0
      %v2214 = vsel %vm1512, 1, 0
      %v2215 = vsel %vm1513, 1, 0
      %v2216 = vsel %vm1514, 1, 0
      %v2217 = vsel %vm1515, 1, 0
      %vm2218 = vcmp.eq.s32.totalorder %v2186, 1
      %vm2219 = vcmp.eq.s32.totalorder %v2187, 1
      %vm2220 = vcmp.eq.s32.totalorder %v2188, 1
      %vm2221 = vcmp.eq.s32.totalorder %v2189, 1
      %vm2222 = vcmp.eq.s32.totalorder %v2190, 1
      %vm2223 = vcmp.eq.s32.totalorder %v2191, 1
      %vm2224 = vcmp.eq.s32.totalorder %v2192, 1
      %vm2225 = vcmp.eq.s32.totalorder %v2193, 1
      %vm2226 = vcmp.eq.s32.totalorder %v2194, 1
      %vm2227 = vcmp.eq.s32.totalorder %v2195, 1
      %vm2228 = vcmp.eq.s32.totalorder %v2196, 1
      %vm2229 = vcmp.eq.s32.totalorder %v2197, 1
      %vm2230 = vcmp.eq.s32.totalorder %v2198, 1
      %vm2231 = vcmp.eq.s32.totalorder %v2199, 1
      %vm2232 = vcmp.eq.s32.totalorder %v2200, 1
      %vm2233 = vcmp.eq.s32.totalorder %v2201, 1
      %vm2234 = vcmp.eq.s32.totalorder %v2202, 1
      %vm2235 = vcmp.eq.s32.totalorder %v2203, 1
      %vm2236 = vcmp.eq.s32.totalorder %v2204, 1
      %vm2237 = vcmp.eq.s32.totalorder %v2205, 1
      %vm2238 = vcmp.eq.s32.totalorder %v2206, 1
      %vm2239 = vcmp.eq.s32.totalorder %v2207, 1
      %vm2240 = vcmp.eq.s32.totalorder %v2208, 1
      %vm2241 = vcmp.eq.s32.totalorder %v2209, 1
      %vm2242 = vcmp.eq.s32.totalorder %v2210, 1
      %vm2243 = vcmp.eq.s32.totalorder %v2211, 1
      %vm2244 = vcmp.eq.s32.totalorder %v2212, 1
      %vm2245 = vcmp.eq.s32.totalorder %v2213, 1
      %vm2246 = vcmp.eq.s32.totalorder %v2214, 1
      %vm2247 = vcmp.eq.s32.totalorder %v2215, 1
      %vm2248 = vcmp.eq.s32.totalorder %v2216, 1
      %vm2249 = vcmp.eq.s32.totalorder %v2217, 1
      %v2250 = vsel %vm2218, %v2154, 0.0
      %v2251 = vsel %vm2219, %v2155, 0.0
      %v2252 = vsel %vm2220, %v2156, 0.0
      %v2253 = vsel %vm2221, %v2157, 0.0
      %v2254 = vsel %vm2222, %v2158, 0.0
      %v2255 = vsel %vm2223, %v2159, 0.0
      %v2256 = vsel %vm2224, %v2160, 0.0
      %v2257 = vsel %vm2225, %v2161, 0.0
      %v2258 = vsel %vm2226, %v2162, 0.0
      %v2259 = vsel %vm2227, %v2163, 0.0
      %v2260 = vsel %vm2228, %v2164, 0.0
      %v2261 = vsel %vm2229, %v2165, 0.0
      %v2262 = vsel %vm2230, %v2166, 0.0
      %v2263 = vsel %vm2231, %v2167, 0.0
      %v2264 = vsel %vm2232, %v2168, 0.0
      %v2265 = vsel %vm2233, %v2169, 0.0
      %v2266 = vsel %vm2234, %v2170, 0.0
      %v2267 = vsel %vm2235, %v2171, 0.0
      %v2268 = vsel %vm2236, %v2172, 0.0
      %v2269 = vsel %vm2237, %v2173, 0.0
      %v2270 = vsel %vm2238, %v2174, 0.0
      %v2271 = vsel %vm2239, %v2175, 0.0
      %v2272 = vsel %vm2240, %v2176, 0.0
      %v2273 = vsel %vm2241, %v2177, 0.0
      %v2274 = vsel %vm2242, %v2178, 0.0
      %v2275 = vsel %vm2243, %v2179, 0.0
      %v2276 = vsel %vm2244, %v2180, 0.0
      %v2277 = vsel %vm2245, %v2181, 0.0
      %v2278 = vsel %vm2246, %v2182, 0.0
      %v2279 = vsel %vm2247, %v2183, 0.0
      %v2280 = vsel %vm2248, %v2184, 0.0
      %v2281 = vsel %vm2249, %v2185, 0.0
      %v2282 = vpack.c.bf16 %v2251, %v2250
      %v2283 = vpack.c.bf16 %v2253, %v2252
      %v2284 = vpack.c.bf16 %v2255, %v2254
      %v2285 = vpack.c.bf16 %v2257, %v2256
      %v2286 = vpack.c.bf16 %v2259, %v2258
      %v2287 = vpack.c.bf16 %v2261, %v2260
      %v2288 = vpack.c.bf16 %v2263, %v2262
      %v2289 = vpack.c.bf16 %v2265, %v2264
      %v2290 = vpack.c.bf16 %v2267, %v2266
      %v2291 = vpack.c.bf16 %v2269, %v2268
      %v2292 = vpack.c.bf16 %v2271, %v2270
      %v2293 = vpack.c.bf16 %v2273, %v2272
      %v2294 = vpack.c.bf16 %v2275, %v2274
      %v2295 = vpack.c.bf16 %v2277, %v2276
      %v2296 = vpack.c.bf16 %v2279, %v2278
      %v2297 = vpack.c.bf16 %v2281, %v2280
      %2298 = vst [vmem:[#allocation3 + $0x10] sm:$0xff] %v2282
      %2299 = vst [vmem:[#allocation3 + $0x58] sm:$0xff] %v2283
      %2300 = vst [vmem:[#allocation3 + $0xa0] sm:$0xff] %v2284
      %2301 = vst [vmem:[#allocation3 + $0xe8] sm:$0xff] %v2285
      %2302 = vst [vmem:[#allocation3 + $0x130] sm:$0xff] %v2286
      %2303 = vst [vmem:[#allocation3 + $0x178] sm:$0xff] %v2287
      %2304 = vst [vmem:[#allocation3 + $0x1c0] sm:$0xff] %v2288
      %2305 = vst [vmem:[#allocation3 + $0x208] sm:$0xff] %v2289
      %2306 = vst [vmem:[#allocation3 + $0x250] sm:$0xff] %v2290
      %2307 = vst [vmem:[#allocation3 + $0x298] sm:$0xff] %v2291
      %2308 = vst [vmem:[#allocation3 + $0x2e0] sm:$0xff] %v2292
      %2309 = vst [vmem:[#allocation3 + $0x328] sm:$0xff] %v2293
      %2310 = vst [vmem:[#allocation3 + $0x370] sm:$0xff] %v2294
      %2311 = vst [vmem:[#allocation3 + $0x3b8] sm:$0xff] %v2295
      %2312 = vst [vmem:[#allocation3 + $0x400] sm:$0xff] %v2296
      %2313 = vst [vmem:[#allocation3 + $0x448] sm:$0xff] %v2297
      %v2314 = vld [vmem:[#allocation2 + $0x17] sm:$0xff]
      %v2315 = vld [vmem:[#allocation2 + $0x1f] sm:$0xff]
      %v2316 = vld [vmem:[#allocation2 + $0x27] sm:$0xff]
      %v2317 = vld [vmem:[#allocation2 + $0x2f] sm:$0xff]
      %v2318 = vld [vmem:[#allocation2 + $0x37] sm:$0xff]
      %v2319 = vld [vmem:[#allocation2 + $0x3f] sm:$0xff]
      %v2320 = vld [vmem:[#allocation2 + $0x47] sm:$0xff]
      %v2321 = vld [vmem:[#allocation2 + $0x4f] sm:$0xff]
      %v2322 = vld [vmem:[#allocation2 + $0x57] sm:$0xff]
      %v2323 = vld [vmem:[#allocation2 + $0x5f] sm:$0xff]
      %v2324 = vld [vmem:[#allocation2 + $0x67] sm:$0xff]
      %v2325 = vld [vmem:[#allocation2 + $0x6f] sm:$0xff]
      %v2326 = vld [vmem:[#allocation2 + $0x77] sm:$0xff]
      %v2327 = vld [vmem:[#allocation2 + $0x7f] sm:$0xff]
      %v2328 = vld [vmem:[#allocation2 + $0x87] sm:$0xff]
      %v2329 = vld [vmem:[#allocation2 + $0x8f] sm:$0xff]
      %v2330 = vld [vmem:[#allocation2 + $0x97] sm:$0xff]
      %v2331 = vld [vmem:[#allocation2 + $0x9f] sm:$0xff]
      %v2332 = vld [vmem:[#allocation2 + $0xa7] sm:$0xff]
      %v2333 = vld [vmem:[#allocation2 + $0xaf] sm:$0xff]
      %v2334 = vld [vmem:[#allocation2 + $0xb7] sm:$0xff]
      %v2335 = vld [vmem:[#allocation2 + $0xbf] sm:$0xff]
      %v2336 = vld [vmem:[#allocation2 + $0xc7] sm:$0xff]
      %v2337 = vld [vmem:[#allocation2 + $0xcf] sm:$0xff]
      %v2338 = vld [vmem:[#allocation2 + $0xd7] sm:$0xff]
      %v2339 = vld [vmem:[#allocation2 + $0xdf] sm:$0xff]
      %v2340 = vld [vmem:[#allocation2 + $0xe7] sm:$0xff]
      %v2341 = vld [vmem:[#allocation2 + $0xef] sm:$0xff]
      %v2342 = vld [vmem:[#allocation2 + $0xf7] sm:$0xff]
      %v2343 = vld [vmem:[#allocation2 + $0xff] sm:$0xff]
      %v2344 = vld [vmem:[#allocation2 + $0x107] sm:$0xff]
      %v2345 = vld [vmem:[#allocation2 + $0x10f] sm:$0xff]
      %v2346 = vsel %vm1994, %v2314, 0.0
      %v2347 = vsel %vm1995, %v2315, 0.0
      %v2348 = vsel %vm1996, %v2316, 0.0
      %v2349 = vsel %vm1997, %v2317, 0.0
      %v2350 = vsel %vm1998, %v2318, 0.0
      %v2351 = vsel %vm1999, %v2319, 0.0
      %v2352 = vsel %vm2000, %v2320, 0.0
      %v2353 = vsel %vm2001, %v2321, 0.0
      %v2354 = vsel %vm2002, %v2322, 0.0
      %v2355 = vsel %vm2003, %v2323, 0.0
      %v2356 = vsel %vm2004, %v2324, 0.0
      %v2357 = vsel %vm2005, %v2325, 0.0
      %v2358 = vsel %vm2006, %v2326, 0.0
      %v2359 = vsel %vm2007, %v2327, 0.0
      %v2360 = vsel %vm2008, %v2328, 0.0
      %v2361 = vsel %vm2009, %v2329, 0.0
      %v2362 = vsel %vm2010, %v2330, 0.0
      %v2363 = vsel %vm2011, %v2331, 0.0
      %v2364 = vsel %vm2012, %v2332, 0.0
      %v2365 = vsel %vm2013, %v2333, 0.0
      %v2366 = vsel %vm2014, %v2334, 0.0
      %v2367 = vsel %vm2015, %v2335, 0.0
      %v2368 = vsel %vm2016, %v2336, 0.0
      %v2369 = vsel %vm2017, %v2337, 0.0
      %v2370 = vsel %vm2018, %v2338, 0.0
      %v2371 = vsel %vm2019, %v2339, 0.0
      %v2372 = vsel %vm2020, %v2340, 0.0
      %v2373 = vsel %vm2021, %v2341, 0.0
      %v2374 = vsel %vm2022, %v2342, 0.0
      %v2375 = vsel %vm2023, %v2343, 0.0
      %v2376 = vsel %vm2024, %v2344, 0.0
      %v2377 = vsel %vm2025, %v2345, 0.0
      %v2378 = vpack.c.bf16 %v2347, %v2346
      %v2379 = vpack.c.bf16 %v2349, %v2348
      %v2380 = vpack.c.bf16 %v2351, %v2350
      %v2381 = vpack.c.bf16 %v2353, %v2352
      %v2382 = vpack.c.bf16 %v2355, %v2354
      %v2383 = vpack.c.bf16 %v2357, %v2356
      %v2384 = vpack.c.bf16 %v2359, %v2358
      %v2385 = vpack.c.bf16 %v2361, %v2360
      %v2386 = vpack.c.bf16 %v2363, %v2362
      %v2387 = vpack.c.bf16 %v2365, %v2364
      %v2388 = vpack.c.bf16 %v2367, %v2366
      %v2389 = vpack.c.bf16 %v2369, %v2368
      %v2390 = vpack.c.bf16 %v2371, %v2370
      %v2391 = vpack.c.bf16 %v2373, %v2372
      %v2392 = vpack.c.bf16 %v2375, %v2374
      %v2393 = vpack.c.bf16 %v2377, %v2376
      %2394 = vst [vmem:[#allocation3 + $0x18] sm:$0xff] %v2378
      %2395 = vst [vmem:[#allocation3 + $0x60] sm:$0xff] %v2379
      %2396 = vst [vmem:[#allocation3 + $0xa8] sm:$0xff] %v2380
      %2397 = vst [vmem:[#allocation3 + $0xf0] sm:$0xff] %v2381
      %2398 = vst [vmem:[#allocation3 + $0x138] sm:$0xff] %v2382
      %2399 = vst [vmem:[#allocation3 + $0x180] sm:$0xff] %v2383
      %2400 = vst [vmem:[#allocation3 + $0x1c8] sm:$0xff] %v2384
      %2401 = vst [vmem:[#allocation3 + $0x210] sm:$0xff] %v2385
      %2402 = vst [vmem:[#allocation3 + $0x258] sm:$0xff] %v2386
      %2403 = vst [vmem:[#allocation3 + $0x2a0] sm:$0xff] %v2387
      %2404 = vst [vmem:[#allocation3 + $0x2e8] sm:$0xff] %v2388
      %2405 = vst [vmem:[#allocation3 + $0x330] sm:$0xff] %v2389
      %2406 = vst [vmem:[#allocation3 + $0x378] sm:$0xff] %v2390
      %2407 = vst [vmem:[#allocation3 + $0x3c0] sm:$0xff] %v2391
      %2408 = vst [vmem:[#allocation3 + $0x408] sm:$0xff] %v2392
      %2409 = vst [vmem:[#allocation3 + $0x450] sm:$0xff] %v2393
      %v2410 = vld [vmem:[#allocation2 + $0x18] sm:$0xff]
      %v2411 = vld [vmem:[#allocation2 + $0x20] sm:$0xff]
      %v2412 = vld [vmem:[#allocation2 + $0x28] sm:$0xff]
      %v2413 = vld [vmem:[#allocation2 + $0x30] sm:$0xff]
      %v2414 = vld [vmem:[#allocation2 + $0x38] sm:$0xff]
      %v2415 = vld [vmem:[#allocation2 + $0x40] sm:$0xff]
      %v2416 = vld [vmem:[#allocation2 + $0x48] sm:$0xff]
      %v2417 = vld [vmem:[#allocation2 + $0x50] sm:$0xff]
      %v2418 = vld [vmem:[#allocation2 + $0x58] sm:$0xff]
      %v2419 = vld [vmem:[#allocation2 + $0x60] sm:$0xff]
      %v2420 = vld [vmem:[#allocation2 + $0x68] sm:$0xff]
      %v2421 = vld [vmem:[#allocation2 + $0x70] sm:$0xff]
      %v2422 = vld [vmem:[#allocation2 + $0x78] sm:$0xff]
      %v2423 = vld [vmem:[#allocation2 + $0x80] sm:$0xff]
      %v2424 = vld [vmem:[#allocation2 + $0x88] sm:$0xff]
      %v2425 = vld [vmem:[#allocation2 + $0x90] sm:$0xff]
      %v2426 = vld [vmem:[#allocation2 + $0x98] sm:$0xff]
      %v2427 = vld [vmem:[#allocation2 + $0xa0] sm:$0xff]
      %v2428 = vld [vmem:[#allocation2 + $0xa8] sm:$0xff]
      %v2429 = vld [vmem:[#allocation2 + $0xb0] sm:$0xff]
      %v2430 = vld [vmem:[#allocation2 + $0xb8] sm:$0xff]
      %v2431 = vld [vmem:[#allocation2 + $0xc0] sm:$0xff]
      %v2432 = vld [vmem:[#allocation2 + $0xc8] sm:$0xff]
      %v2433 = vld [vmem:[#allocation2 + $0xd0] sm:$0xff]
      %v2434 = vld [vmem:[#allocation2 + $0xd8] sm:$0xff]
      %v2435 = vld [vmem:[#allocation2 + $0xe0] sm:$0xff]
      %v2436 = vld [vmem:[#allocation2 + $0xe8] sm:$0xff]
      %v2437 = vld [vmem:[#allocation2 + $0xf0] sm:$0xff]
      %v2438 = vld [vmem:[#allocation2 + $0xf8] sm:$0xff]
      %v2439 = vld [vmem:[#allocation2 + $0x100] sm:$0xff]
      %v2440 = vld [vmem:[#allocation2 + $0x108] sm:$0xff]
      %v2441 = vld [vmem:[#allocation2 + $0x110] sm:$0xff]
      %v2442 = vpack.c.bf16 %v2411, %v2410
      %v2443 = vpack.c.bf16 %v2413, %v2412
      %v2444 = vpack.c.bf16 %v2415, %v2414
      %v2445 = vpack.c.bf16 %v2417, %v2416
      %v2446 = vpack.c.bf16 %v2419, %v2418
      %v2447 = vpack.c.bf16 %v2421, %v2420
      %v2448 = vpack.c.bf16 %v2423, %v2422
      %v2449 = vpack.c.bf16 %v2425, %v2424
      %v2450 = vpack.c.bf16 %v2427, %v2426
      %v2451 = vpack.c.bf16 %v2429, %v2428
      %v2452 = vpack.c.bf16 %v2431, %v2430
      %v2453 = vpack.c.bf16 %v2433, %v2432
      %v2454 = vpack.c.bf16 %v2435, %v2434
      %v2455 = vpack.c.bf16 %v2437, %v2436
      %v2456 = vpack.c.bf16 %v2439, %v2438
      %v2457 = vpack.c.bf16 %v2441, %v2440
      %2458 = vst [vmem:[#allocation3 + $0x20] sm:$0xff] %v2442
      %2459 = vst [vmem:[#allocation3 + $0x68] sm:$0xff] %v2443
      %2460 = vst [vmem:[#allocation3 + $0xb0] sm:$0xff] %v2444
      %2461 = vst [vmem:[#allocation3 + $0xf8] sm:$0xff] %v2445
      %2462 = vst [vmem:[#allocation3 + $0x140] sm:$0xff] %v2446
      %2463 = vst [vmem:[#allocation3 + $0x188] sm:$0xff] %v2447
      %2464 = vst [vmem:[#allocation3 + $0x1d0] sm:$0xff] %v2448
      %2465 = vst [vmem:[#allocation3 + $0x218] sm:$0xff] %v2449
      %2466 = vst [vmem:[#allocation3 + $0x260] sm:$0xff] %v2450
      %2467 = vst [vmem:[#allocation3 + $0x2a8] sm:$0xff] %v2451
      %2468 = vst [vmem:[#allocation3 + $0x2f0] sm:$0xff] %v2452
      %2469 = vst [vmem:[#allocation3 + $0x338] sm:$0xff] %v2453
      %2470 = vst [vmem:[#allocation3 + $0x380] sm:$0xff] %v2454
      %2471 = vst [vmem:[#allocation3 + $0x3c8] sm:$0xff] %v2455
      %2472 = vst [vmem:[#allocation3 + $0x410] sm:$0xff] %v2456
      %2473 = vst [vmem:[#allocation3 + $0x458] sm:$0xff] %v2457
      %v2474 = vld [vmem:[#allocation2 + $0x19] sm:$0xff]
      %v2475 = vld [vmem:[#allocation2 + $0x21] sm:$0xff]
      %v2476 = vld [vmem:[#allocation2 + $0x29] sm:$0xff]
      %v2477 = vld [vmem:[#allocation2 + $0x31] sm:$0xff]
      %v2478 = vld [vmem:[#allocation2 + $0x39] sm:$0xff]
      %v2479 = vld [vmem:[#allocation2 + $0x41] sm:$0xff]
      %v2480 = vld [vmem:[#allocation2 + $0x49] sm:$0xff]
      %v2481 = vld [vmem:[#allocation2 + $0x51] sm:$0xff]
      %v2482 = vld [vmem:[#allocation2 + $0x59] sm:$0xff]
      %v2483 = vld [vmem:[#allocation2 + $0x61] sm:$0xff]
      %v2484 = vld [vmem:[#allocation2 + $0x69] sm:$0xff]
      %v2485 = vld [vmem:[#allocation2 + $0x71] sm:$0xff]
      %v2486 = vld [vmem:[#allocation2 + $0x79] sm:$0xff]
      %v2487 = vld [vmem:[#allocation2 + $0x81] sm:$0xff]
      %v2488 = vld [vmem:[#allocation2 + $0x89] sm:$0xff]
      %v2489 = vld [vmem:[#allocation2 + $0x91] sm:$0xff]
      %v2490 = vld [vmem:[#allocation2 + $0x99] sm:$0xff]
      %v2491 = vld [vmem:[#allocation2 + $0xa1] sm:$0xff]
      %v2492 = vld [vmem:[#allocation2 + $0xa9] sm:$0xff]
      %v2493 = vld [vmem:[#allocation2 + $0xb1] sm:$0xff]
      %v2494 = vld [vmem:[#allocation2 + $0xb9] sm:$0xff]
      %v2495 = vld [vmem:[#allocation2 + $0xc1] sm:$0xff]
      %v2496 = vld [vmem:[#allocation2 + $0xc9] sm:$0xff]
      %v2497 = vld [vmem:[#allocation2 + $0xd1] sm:$0xff]
      %v2498 = vld [vmem:[#allocation2 + $0xd9] sm:$0xff]
      %v2499 = vld [vmem:[#allocation2 + $0xe1] sm:$0xff]
      %v2500 = vld [vmem:[#allocation2 + $0xe9] sm:$0xff]
      %v2501 = vld [vmem:[#allocation2 + $0xf1] sm:$0xff]
      %v2502 = vld [vmem:[#allocation2 + $0xf9] sm:$0xff]
      %v2503 = vld [vmem:[#allocation2 + $0x101] sm:$0xff]
      %v2504 = vld [vmem:[#allocation2 + $0x109] sm:$0xff]
      %v2505 = vld [vmem:[#allocation2 + $0x111] sm:$0xff]
      %v2506 = vsel %vm2218, %v2474, 0.0
      %v2507 = vsel %vm2219, %v2475, 0.0
      %v2508 = vsel %vm2220, %v2476, 0.0
      %v2509 = vsel %vm2221, %v2477, 0.0
      %v2510 = vsel %vm2222, %v2478, 0.0
      %v2511 = vsel %vm2223, %v2479, 0.0
      %v2512 = vsel %vm2224, %v2480, 0.0
      %v2513 = vsel %vm2225, %v2481, 0.0
      %v2514 = vsel %vm2226, %v2482, 0.0
      %v2515 = vsel %vm2227, %v2483, 0.0
      %v2516 = vsel %vm2228, %v2484, 0.0
      %v2517 = vsel %vm2229, %v2485, 0.0
      %v2518 = vsel %vm2230, %v2486, 0.0
      %v2519 = vsel %vm2231, %v2487, 0.0
      %v2520 = vsel %vm2232, %v2488, 0.0
      %v2521 = vsel %vm2233, %v2489, 0.0
      %v2522 = vsel %vm2234, %v2490, 0.0
      %v2523 = vsel %vm2235, %v2491, 0.0
      %v2524 = vsel %vm2236, %v2492, 0.0
      %v2525 = vsel %vm2237, %v2493, 0.0
      %v2526 = vsel %vm2238, %v2494, 0.0
      %v2527 = vsel %vm2239, %v2495, 0.0
      %v2528 = vsel %vm2240, %v2496, 0.0
      %v2529 = vsel %vm2241, %v2497, 0.0
      %v2530 = vsel %vm2242, %v2498, 0.0
      %v2531 = vsel %vm2243, %v2499, 0.0
      %v2532 = vsel %vm2244, %v2500, 0.0
      %v2533 = vsel %vm2245, %v2501, 0.0
      %v2534 = vsel %vm2246, %v2502, 0.0
      %v2535 = vsel %vm2247, %v2503, 0.0
      %v2536 = vsel %vm2248, %v2504, 0.0
      %v2537 = vsel %vm2249, %v2505, 0.0
      %v2538 = vpack.c.bf16 %v2507, %v2506
      %v2539 = vpack.c.bf16 %v2509, %v2508
      %v2540 = vpack.c.bf16 %v2511, %v2510
      %v2541 = vpack.c.bf16 %v2513, %v2512
      %v2542 = vpack.c.bf16 %v2515, %v2514
      %v2543 = vpack.c.bf16 %v2517, %v2516
      %v2544 = vpack.c.bf16 %v2519, %v2518
      %v2545 = vpack.c.bf16 %v2521, %v2520
      %v2546 = vpack.c.bf16 %v2523, %v2522
      %v2547 = vpack.c.bf16 %v2525, %v2524
      %v2548 = vpack.c.bf16 %v2527, %v2526
      %v2549 = vpack.c.bf16 %v2529, %v2528
      %v2550 = vpack.c.bf16 %v2531, %v2530
      %v2551 = vpack.c.bf16 %v2533, %v2532
      %v2552 = vpack.c.bf16 %v2535, %v2534
      %v2553 = vpack.c.bf16 %v2537, %v2536
      %2554 = vst [vmem:[#allocation3 + $0x28] sm:$0xff] %v2538
      %2555 = vst [vmem:[#allocation3 + $0x70] sm:$0xff] %v2539
      %2556 = vst [vmem:[#allocation3 + $0xb8] sm:$0xff] %v2540
      %2557 = vst [vmem:[#allocation3 + $0x100] sm:$0xff] %v2541
      %2558 = vst [vmem:[#allocation3 + $0x148] sm:$0xff] %v2542
      %2559 = vst [vmem:[#allocation3 + $0x190] sm:$0xff] %v2543
      %2560 = vst [vmem:[#allocation3 + $0x1d8] sm:$0xff] %v2544
      %2561 = vst [vmem:[#allocation3 + $0x220] sm:$0xff] %v2545
      %2562 = vst [vmem:[#allocation3 + $0x268] sm:$0xff] %v2546
      %2563 = vst [vmem:[#allocation3 + $0x2b0] sm:$0xff] %v2547
      %2564 = vst [vmem:[#allocation3 + $0x2f8] sm:$0xff] %v2548
      %2565 = vst [vmem:[#allocation3 + $0x340] sm:$0xff] %v2549
      %2566 = vst [vmem:[#allocation3 + $0x388] sm:$0xff] %v2550
      %2567 = vst [vmem:[#allocation3 + $0x3d0] sm:$0xff] %v2551
      %2568 = vst [vmem:[#allocation3 + $0x418] sm:$0xff] %v2552
      %2569 = vst [vmem:[#allocation3 + $0x460] sm:$0xff] %v2553
      %v2570 = vld [vmem:[#allocation2 + $0x27] sm:$0xff]
      %v2571 = vld [vmem:[#allocation2 + $0x2f] sm:$0xff]
      %v2572 = vld [vmem:[#allocation2 + $0x37] sm:$0xff]
      %v2573 = vld [vmem:[#allocation2 + $0x3f] sm:$0xff]
      %v2574 = vld [vmem:[#allocation2 + $0x47] sm:$0xff]
      %v2575 = vld [vmem:[#allocation2 + $0x4f] sm:$0xff]
      %v2576 = vld [vmem:[#allocation2 + $0x57] sm:$0xff]
      %v2577 = vld [vmem:[#allocation2 + $0x5f] sm:$0xff]
      %v2578 = vld [vmem:[#allocation2 + $0x67] sm:$0xff]
      %v2579 = vld [vmem:[#allocation2 + $0x6f] sm:$0xff]
      %v2580 = vld [vmem:[#allocation2 + $0x77] sm:$0xff]
      %v2581 = vld [vmem:[#allocation2 + $0x7f] sm:$0xff]
      %v2582 = vld [vmem:[#allocation2 + $0x87] sm:$0xff]
      %v2583 = vld [vmem:[#allocation2 + $0x8f] sm:$0xff]
      %v2584 = vld [vmem:[#allocation2 + $0x97] sm:$0xff]
      %v2585 = vld [vmem:[#allocation2 + $0x9f] sm:$0xff]
      %v2586 = vld [vmem:[#allocation2 + $0xa7] sm:$0xff]
      %v2587 = vld [vmem:[#allocation2 + $0xaf] sm:$0xff]
      %v2588 = vld [vmem:[#allocation2 + $0xb7] sm:$0xff]
      %v2589 = vld [vmem:[#allocation2 + $0xbf] sm:$0xff]
      %v2590 = vld [vmem:[#allocation2 + $0xc7] sm:$0xff]
      %v2591 = vld [vmem:[#allocation2 + $0xcf] sm:$0xff]
      %v2592 = vld [vmem:[#allocation2 + $0xd7] sm:$0xff]
      %v2593 = vld [vmem:[#allocation2 + $0xdf] sm:$0xff]
      %v2594 = vld [vmem:[#allocation2 + $0xe7] sm:$0xff]
      %v2595 = vld [vmem:[#allocation2 + $0xef] sm:$0xff]
      %v2596 = vld [vmem:[#allocation2 + $0xf7] sm:$0xff]
      %v2597 = vld [vmem:[#allocation2 + $0xff] sm:$0xff]
      %v2598 = vld [vmem:[#allocation2 + $0x107] sm:$0xff]
      %v2599 = vld [vmem:[#allocation2 + $0x10f] sm:$0xff]
      %v2600 = vld [vmem:[#allocation2 + $0x117] sm:$0xff]
      %v2601 = vld [vmem:[#allocation2 + $0x11f] sm:$0xff]
      %v2602 = vsel %vm1994, %v2570, 0.0
      %v2603 = vsel %vm1995, %v2571, 0.0
      %v2604 = vsel %vm1996, %v2572, 0.0
      %v2605 = vsel %vm1997, %v2573, 0.0
      %v2606 = vsel %vm1998, %v2574, 0.0
      %v2607 = vsel %vm1999, %v2575, 0.0
      %v2608 = vsel %vm2000, %v2576, 0.0
      %v2609 = vsel %vm2001, %v2577, 0.0
      %v2610 = vsel %vm2002, %v2578, 0.0
      %v2611 = vsel %vm2003, %v2579, 0.0
      %v2612 = vsel %vm2004, %v2580, 0.0
      %v2613 = vsel %vm2005, %v2581, 0.0
      %v2614 = vsel %vm2006, %v2582, 0.0
      %v2615 = vsel %vm2007, %v2583, 0.0
      %v2616 = vsel %vm2008, %v2584, 0.0
      %v2617 = vsel %vm2009, %v2585, 0.0
      %v2618 = vsel %vm2010, %v2586, 0.0
      %v2619 = vsel %vm2011, %v2587, 0.0
      %v2620 = vsel %vm2012, %v2588, 0.0
      %v2621 = vsel %vm2013, %v2589, 0.0
      %v2622 = vsel %vm2014, %v2590, 0.0
      %v2623 = vsel %vm2015, %v2591, 0.0
      %v2624 = vsel %vm2016, %v2592, 0.0
      %v2625 = vsel %vm2017, %v2593, 0.0
      %v2626 = vsel %vm2018, %v2594, 0.0
      %v2627 = vsel %vm2019, %v2595, 0.0
      %v2628 = vsel %vm2020, %v2596, 0.0
      %v2629 = vsel %vm2021, %v2597, 0.0
      %v2630 = vsel %vm2022, %v2598, 0.0
      %v2631 = vsel %vm2023, %v2599, 0.0
      %v2632 = vsel %vm2024, %v2600, 0.0
      %v2633 = vsel %vm2025, %v2601, 0.0
      %v2634 = vpack.c.bf16 %v2603, %v2602
      %v2635 = vpack.c.bf16 %v2605, %v2604
      %v2636 = vpack.c.bf16 %v2607, %v2606
      %v2637 = vpack.c.bf16 %v2609, %v2608
      %v2638 = vpack.c.bf16 %v2611, %v2610
      %v2639 = vpack.c.bf16 %v2613, %v2612
      %v2640 = vpack.c.bf16 %v2615, %v2614
      %v2641 = vpack.c.bf16 %v2617, %v2616
      %v2642 = vpack.c.bf16 %v2619, %v2618
      %v2643 = vpack.c.bf16 %v2621, %v2620
      %v2644 = vpack.c.bf16 %v2623, %v2622
      %v2645 = vpack.c.bf16 %v2625, %v2624
      %v2646 = vpack.c.bf16 %v2627, %v2626
      %v2647 = vpack.c.bf16 %v2629, %v2628
      %v2648 = vpack.c.bf16 %v2631, %v2630
      %v2649 = vpack.c.bf16 %v2633, %v2632
      %2650 = vst [vmem:[#allocation3 + $0x30] sm:$0xff] %v2634
      %2651 = vst [vmem:[#allocation3 + $0x78] sm:$0xff] %v2635
      %2652 = vst [vmem:[#allocation3 + $0xc0] sm:$0xff] %v2636
      %2653 = vst [vmem:[#allocation3 + $0x108] sm:$0xff] %v2637
      %2654 = vst [vmem:[#allocation3 + $0x150] sm:$0xff] %v2638
      %2655 = vst [vmem:[#allocation3 + $0x198] sm:$0xff] %v2639
      %2656 = vst [vmem:[#allocation3 + $0x1e0] sm:$0xff] %v2640
      %2657 = vst [vmem:[#allocation3 + $0x228] sm:$0xff] %v2641
      %2658 = vst [vmem:[#allocation3 + $0x270] sm:$0xff] %v2642
      %2659 = vst [vmem:[#allocation3 + $0x2b8] sm:$0xff] %v2643
      %2660 = vst [vmem:[#allocation3 + $0x300] sm:$0xff] %v2644
      %2661 = vst [vmem:[#allocation3 + $0x348] sm:$0xff] %v2645
      %2662 = vst [vmem:[#allocation3 + $0x390] sm:$0xff] %v2646
      %2663 = vst [vmem:[#allocation3 + $0x3d8] sm:$0xff] %v2647
      %2664 = vst [vmem:[#allocation3 + $0x420] sm:$0xff] %v2648
      %2665 = vst [vmem:[#allocation3 + $0x468] sm:$0xff] %v2649
      %v2666 = vld [vmem:[#allocation2 + $0x28] sm:$0xff]
      %v2667 = vld [vmem:[#allocation2 + $0x30] sm:$0xff]
      %v2668 = vld [vmem:[#allocation2 + $0x38] sm:$0xff]
      %v2669 = vld [vmem:[#allocation2 + $0x40] sm:$0xff]
      %v2670 = vld [vmem:[#allocation2 + $0x48] sm:$0xff]
      %v2671 = vld [vmem:[#allocation2 + $0x50] sm:$0xff]
      %v2672 = vld [vmem:[#allocation2 + $0x58] sm:$0xff]
      %v2673 = vld [vmem:[#allocation2 + $0x60] sm:$0xff]
      %v2674 = vld [vmem:[#allocation2 + $0x68] sm:$0xff]
      %v2675 = vld [vmem:[#allocation2 + $0x70] sm:$0xff]
      %v2676 = vld [vmem:[#allocation2 + $0x78] sm:$0xff]
      %v2677 = vld [vmem:[#allocation2 + $0x80] sm:$0xff]
      %v2678 = vld [vmem:[#allocation2 + $0x88] sm:$0xff]
      %v2679 = vld [vmem:[#allocation2 + $0x90] sm:$0xff]
      %v2680 = vld [vmem:[#allocation2 + $0x98] sm:$0xff]
      %v2681 = vld [vmem:[#allocation2 + $0xa0] sm:$0xff]
      %v2682 = vld [vmem:[#allocation2 + $0xa8] sm:$0xff]
      %v2683 = vld [vmem:[#allocation2 + $0xb0] sm:$0xff]
      %v2684 = vld [vmem:[#allocation2 + $0xb8] sm:$0xff]
      %v2685 = vld [vmem:[#allocation2 + $0xc0] sm:$0xff]
      %v2686 = vld [vmem:[#allocation2 + $0xc8] sm:$0xff]
      %v2687 = vld [vmem:[#allocation2 + $0xd0] sm:$0xff]
      %v2688 = vld [vmem:[#allocation2 + $0xd8] sm:$0xff]
      %v2689 = vld [vmem:[#allocation2 + $0xe0] sm:$0xff]
      %v2690 = vld [vmem:[#allocation2 + $0xe8] sm:$0xff]
      %v2691 = vld [vmem:[#allocation2 + $0xf0] sm:$0xff]
      %v2692 = vld [vmem:[#allocation2 + $0xf8] sm:$0xff]
      %v2693 = vld [vmem:[#allocation2 + $0x100] sm:$0xff]
      %v2694 = vld [vmem:[#allocation2 + $0x108] sm:$0xff]
      %v2695 = vld [vmem:[#allocation2 + $0x110] sm:$0xff]
      %v2696 = vld [vmem:[#allocation2 + $0x118] sm:$0xff]
      %v2697 = vld [vmem:[#allocation2 + $0x120] sm:$0xff]
      %v2698 = vpack.c.bf16 %v2667, %v2666
      %v2699 = vpack.c.bf16 %v2669, %v2668
      %v2700 = vpack.c.bf16 %v2671, %v2670
      %v2701 = vpack.c.bf16 %v2673, %v2672
      %v2702 = vpack.c.bf16 %v2675, %v2674
      %v2703 = vpack.c.bf16 %v2677, %v2676
      %v2704 = vpack.c.bf16 %v2679, %v2678
      %v2705 = vpack.c.bf16 %v2681, %v2680
      %v2706 = vpack.c.bf16 %v2683, %v2682
      %v2707 = vpack.c.bf16 %v2685, %v2684
      %v2708 = vpack.c.bf16 %v2687, %v2686
      %v2709 = vpack.c.bf16 %v2689, %v2688
      %v2710 = vpack.c.bf16 %v2691, %v2690
      %v2711 = vpack.c.bf16 %v2693, %v2692
      %v2712 = vpack.c.bf16 %v2695, %v2694
      %v2713 = vpack.c.bf16 %v2697, %v2696
      %2714 = vst [vmem:[#allocation3 + $0x38] sm:$0xff] %v2698
      %2715 = vst [vmem:[#allocation3 + $0x80] sm:$0xff] %v2699
      %2716 = vst [vmem:[#allocation3 + $0xc8] sm:$0xff] %v2700
      %2717 = vst [vmem:[#allocation3 + $0x110] sm:$0xff] %v2701
      %2718 = vst [vmem:[#allocation3 + $0x158] sm:$0xff] %v2702
      %2719 = vst [vmem:[#allocation3 + $0x1a0] sm:$0xff] %v2703
      %2720 = vst [vmem:[#allocation3 + $0x1e8] sm:$0xff] %v2704
      %2721 = vst [vmem:[#allocation3 + $0x230] sm:$0xff] %v2705
      %2722 = vst [vmem:[#allocation3 + $0x278] sm:$0xff] %v2706
      %2723 = vst [vmem:[#allocation3 + $0x2c0] sm:$0xff] %v2707
      %2724 = vst [vmem:[#allocation3 + $0x308] sm:$0xff] %v2708
      %2725 = vst [vmem:[#allocation3 + $0x350] sm:$0xff] %v2709
      %2726 = vst [vmem:[#allocation3 + $0x398] sm:$0xff] %v2710
      %2727 = vst [vmem:[#allocation3 + $0x3e0] sm:$0xff] %v2711
      %2728 = vst [vmem:[#allocation3 + $0x428] sm:$0xff] %v2712
      %2729 = vst [vmem:[#allocation3 + $0x470] sm:$0xff] %v2713
      %v2730 = vld [vmem:[#allocation2 + $0x29] sm:$0xff]
      %v2731 = vld [vmem:[#allocation2 + $0x31] sm:$0xff]
      %v2732 = vld [vmem:[#allocation2 + $0x39] sm:$0xff]
      %v2733 = vld [vmem:[#allocation2 + $0x41] sm:$0xff]
      %v2734 = vld [vmem:[#allocation2 + $0x49] sm:$0xff]
      %v2735 = vld [vmem:[#allocation2 + $0x51] sm:$0xff]
      %v2736 = vld [vmem:[#allocation2 + $0x59] sm:$0xff]
      %v2737 = vld [vmem:[#allocation2 + $0x61] sm:$0xff]
      %v2738 = vld [vmem:[#allocation2 + $0x69] sm:$0xff]
      %v2739 = vld [vmem:[#allocation2 + $0x71] sm:$0xff]
      %v2740 = vld [vmem:[#allocation2 + $0x79] sm:$0xff]
      %v2741 = vld [vmem:[#allocation2 + $0x81] sm:$0xff]
      %v2742 = vld [vmem:[#allocation2 + $0x89] sm:$0xff]
      %v2743 = vld [vmem:[#allocation2 + $0x91] sm:$0xff]
      %v2744 = vld [vmem:[#allocation2 + $0x99] sm:$0xff]
      %v2745 = vld [vmem:[#allocation2 + $0xa1] sm:$0xff]
      %v2746 = vld [vmem:[#allocation2 + $0xa9] sm:$0xff]
      %v2747 = vld [vmem:[#allocation2 + $0xb1] sm:$0xff]
      %v2748 = vld [vmem:[#allocation2 + $0xb9] sm:$0xff]
      %v2749 = vld [vmem:[#allocation2 + $0xc1] sm:$0xff]
      %v2750 = vld [vmem:[#allocation2 + $0xc9] sm:$0xff]
      %v2751 = vld [vmem:[#allocation2 + $0xd1] sm:$0xff]
      %v2752 = vld [vmem:[#allocation2 + $0xd9] sm:$0xff]
      %v2753 = vld [vmem:[#allocation2 + $0xe1] sm:$0xff]
      %v2754 = vld [vmem:[#allocation2 + $0xe9] sm:$0xff]
      %v2755 = vld [vmem:[#allocation2 + $0xf1] sm:$0xff]
      %v2756 = vld [vmem:[#allocation2 + $0xf9] sm:$0xff]
      %v2757 = vld [vmem:[#allocation2 + $0x101] sm:$0xff]
      %v2758 = vld [vmem:[#allocation2 + $0x109] sm:$0xff]
      %v2759 = vld [vmem:[#allocation2 + $0x111] sm:$0xff]
      %v2760 = vld [vmem:[#allocation2 + $0x119] sm:$0xff]
      %v2761 = vld [vmem:[#allocation2 + $0x121] sm:$0xff]
      %v2762 = vsel %vm2218, %v2730, 0.0
      %v2763 = vsel %vm2219, %v2731, 0.0
      %v2764 = vsel %vm2220, %v2732, 0.0
      %v2765 = vsel %vm2221, %v2733, 0.0
      %v2766 = vsel %vm2222, %v2734, 0.0
      %v2767 = vsel %vm2223, %v2735, 0.0
      %v2768 = vsel %vm2224, %v2736, 0.0
      %v2769 = vsel %vm2225, %v2737, 0.0
      %v2770 = vsel %vm2226, %v2738, 0.0
      %v2771 = vsel %vm2227, %v2739, 0.0
      %v2772 = vsel %vm2228, %v2740, 0.0
      %v2773 = vsel %vm2229, %v2741, 0.0
      %v2774 = vsel %vm2230, %v2742, 0.0
      %v2775 = vsel %vm2231, %v2743, 0.0
      %v2776 = vsel %vm2232, %v2744, 0.0
      %v2777 = vsel %vm2233, %v2745, 0.0
      %v2778 = vsel %vm2234, %v2746, 0.0
      %v2779 = vsel %vm2235, %v2747, 0.0
      %v2780 = vsel %vm2236, %v2748, 0.0
      %v2781 = vsel %vm2237, %v2749, 0.0
      %v2782 = vsel %vm2238, %v2750, 0.0
      %v2783 = vsel %vm2239, %v2751, 0.0
      %v2784 = vsel %vm2240, %v2752, 0.0
      %v2785 = vsel %vm2241, %v2753, 0.0
      %v2786 = vsel %vm2242, %v2754, 0.0
      %v2787 = vsel %vm2243, %v2755, 0.0
      %v2788 = vsel %vm2244, %v2756, 0.0
      %v2789 = vsel %vm2245, %v2757, 0.0
      %v2790 = vsel %vm2246, %v2758, 0.0
      %v2791 = vsel %vm2247, %v2759, 0.0
      %v2792 = vsel %vm2248, %v2760, 0.0
      %v2793 = vsel %vm2249, %v2761, 0.0
      %v2794 = vpack.c.bf16 %v2763, %v2762
      %v2795 = vpack.c.bf16 %v2765, %v2764
      %v2796 = vpack.c.bf16 %v2767, %v2766
      %v2797 = vpack.c.bf16 %v2769, %v2768
      %v2798 = vpack.c.bf16 %v2771, %v2770
      %v2799 = vpack.c.bf16 %v2773, %v2772
      %v2800 = vpack.c.bf16 %v2775, %v2774
      %v2801 = vpack.c.bf16 %v2777, %v2776
      %v2802 = vpack.c.bf16 %v2779, %v2778
      %v2803 = vpack.c.bf16 %v2781, %v2780
      %v2804 = vpack.c.bf16 %v2783, %v2782
      %v2805 = vpack.c.bf16 %v2785, %v2784
      %v2806 = vpack.c.bf16 %v2787, %v2786
      %v2807 = vpack.c.bf16 %v2789, %v2788
      %v2808 = vpack.c.bf16 %v2791, %v2790
      %v2809 = vpack.c.bf16 %v2793, %v2792
      %2810 = vst [vmem:[#allocation3 + $0x40] sm:$0xff] %v2794
      %2811 = vst [vmem:[#allocation3 + $0x88] sm:$0xff] %v2795
      %2812 = vst [vmem:[#allocation3 + $0xd0] sm:$0xff] %v2796
      %2813 = vst [vmem:[#allocation3 + $0x118] sm:$0xff] %v2797
      %2814 = vst [vmem:[#allocation3 + $0x160] sm:$0xff] %v2798
      %2815 = vst [vmem:[#allocation3 + $0x1a8] sm:$0xff] %v2799
      %2816 = vst [vmem:[#allocation3 + $0x1f0] sm:$0xff] %v2800
      %2817 = vst [vmem:[#allocation3 + $0x238] sm:$0xff] %v2801
      %2818 = vst [vmem:[#allocation3 + $0x280] sm:$0xff] %v2802
      %2819 = vst [vmem:[#allocation3 + $0x2c8] sm:$0xff] %v2803
      %2820 = vst [vmem:[#allocation3 + $0x310] sm:$0xff] %v2804
      %2821 = vst [vmem:[#allocation3 + $0x358] sm:$0xff] %v2805
      %2822 = vst [vmem:[#allocation3 + $0x3a0] sm:$0xff] %v2806
      %2823 = vst [vmem:[#allocation3 + $0x3e8] sm:$0xff] %v2807
      %2824 = vst [vmem:[#allocation3 + $0x430] sm:$0xff] %v2808
      %2825 = vst [vmem:[#allocation3 + $0x478] sm:$0xff] %v2809
      %v2826 = vld [vmem:[#allocation3] sm:$0xff]
      %v2827 = vld [vmem:[#allocation3 + $0x8] sm:$0xff]
      %v2828 = vld [vmem:[#allocation3 + $0x10] sm:$0xff]
      %v2829 = vld [vmem:[#allocation3 + $0x18] sm:$0xff]
      %v2830 = vld [vmem:[#allocation3 + $0x20] sm:$0xff]
      %v2831 = vld [vmem:[#allocation3 + $0x28] sm:$0xff]
      %v2832 = vld [vmem:[#allocation3 + $0x30] sm:$0xff]
      %v2833 = vld [vmem:[#allocation3 + $0x38] sm:$0xff]
      %v2834 = vld [vmem:[#allocation3 + $0x40] sm:$0xff]
      %v2835 = vld [vmem:[#allocation3 + $0x48] sm:$0xff]
      %v2836 = vld [vmem:[#allocation3 + $0x50] sm:$0xff]
      %v2837 = vld [vmem:[#allocation3 + $0x58] sm:$0xff]
      %v2838 = vld [vmem:[#allocation3 + $0x60] sm:$0xff]
      %v2839 = vld [vmem:[#allocation3 + $0x68] sm:$0xff]
      %v2840 = vld [vmem:[#allocation3 + $0x70] sm:$0xff]
      %v2841 = vld [vmem:[#allocation3 + $0x78] sm:$0xff]
      %v2842 = vld [vmem:[#allocation3 + $0x80] sm:$0xff]
      %v2843 = vld [vmem:[#allocation3 + $0x88] sm:$0xff]
      %v2844 = vld [vmem:[#allocation3 + $0x90] sm:$0xff]
      %v2845 = vld [vmem:[#allocation3 + $0x98] sm:$0xff]
      %v2846 = vld [vmem:[#allocation3 + $0xa0] sm:$0xff]
      %v2847 = vld [vmem:[#allocation3 + $0xa8] sm:$0xff]
      %v2848 = vld [vmem:[#allocation3 + $0xb0] sm:$0xff]
      %v2849 = vld [vmem:[#allocation3 + $0xb8] sm:$0xff]
      %v2850 = vld [vmem:[#allocation3 + $0xc0] sm:$0xff]
      %v2851 = vld [vmem:[#allocation3 + $0xc8] sm:$0xff]
      %v2852 = vld [vmem:[#allocation3 + $0xd0] sm:$0xff]
      %v2853 = vld [vmem:[#allocation3 + $0xd8] sm:$0xff]
      %v2854 = vld [vmem:[#allocation3 + $0xe0] sm:$0xff]
      %v2855 = vld [vmem:[#allocation3 + $0xe8] sm:$0xff]
      %v2856 = vld [vmem:[#allocation3 + $0xf0] sm:$0xff]
      %v2857 = vld [vmem:[#allocation3 + $0xf8] sm:$0xff]
      %v2858 = vld [vmem:[#allocation3 + $0x100] sm:$0xff]
      %v2859 = vld [vmem:[#allocation3 + $0x108] sm:$0xff]
      %v2860 = vld [vmem:[#allocation3 + $0x110] sm:$0xff]
      %v2861 = vld [vmem:[#allocation3 + $0x118] sm:$0xff]
      %v2862 = vld [vmem:[#allocation3 + $0x120] sm:$0xff]
      %v2863 = vld [vmem:[#allocation3 + $0x128] sm:$0xff]
      %v2864 = vld [vmem:[#allocation3 + $0x130] sm:$0xff]
      %v2865 = vld [vmem:[#allocation3 + $0x138] sm:$0xff]
      %v2866 = vld [vmem:[#allocation3 + $0x140] sm:$0xff]
      %v2867 = vld [vmem:[#allocation3 + $0x148] sm:$0xff]
      %v2868 = vld [vmem:[#allocation3 + $0x150] sm:$0xff]
      %v2869 = vld [vmem:[#allocation3 + $0x158] sm:$0xff]
      %v2870 = vld [vmem:[#allocation3 + $0x160] sm:$0xff]
      %v2871 = vld [vmem:[#allocation3 + $0x168] sm:$0xff]
      %v2872 = vld [vmem:[#allocation3 + $0x170] sm:$0xff]
      %v2873 = vld [vmem:[#allocation3 + $0x178] sm:$0xff]
      %v2874 = vld [vmem:[#allocation3 + $0x180] sm:$0xff]
      %v2875 = vld [vmem:[#allocation3 + $0x188] sm:$0xff]
      %v2876 = vld [vmem:[#allocation3 + $0x190] sm:$0xff]
      %v2877 = vld [vmem:[#allocation3 + $0x198] sm:$0xff]
      %v2878 = vld [vmem:[#allocation3 + $0x1a0] sm:$0xff]
      %v2879 = vld [vmem:[#allocation3 + $0x1a8] sm:$0xff]
      %v2880 = vld [vmem:[#allocation3 + $0x1b0] sm:$0xff]
      %v2881 = vld [vmem:[#allocation3 + $0x1b8] sm:$0xff]
      %v2882 = vld [vmem:[#allocation3 + $0x1c0] sm:$0xff]
      %v2883 = vld [vmem:[#allocation3 + $0x1c8] sm:$0xff]
      %v2884 = vld [vmem:[#allocation3 + $0x1d0] sm:$0xff]
      %v2885 = vld [vmem:[#allocation3 + $0x1d8] sm:$0xff]
      %v2886 = vld [vmem:[#allocation3 + $0x1e0] sm:$0xff]
      %v2887 = vld [vmem:[#allocation3 + $0x1e8] sm:$0xff]
      %v2888 = vld [vmem:[#allocation3 + $0x1f0] sm:$0xff]
      %v2889 = vld [vmem:[#allocation3 + $0x1f8] sm:$0xff]
      %v2890 = vld [vmem:[#allocation3 + $0x200] sm:$0xff]
      %v2891 = vld [vmem:[#allocation3 + $0x208] sm:$0xff]
      %v2892 = vld [vmem:[#allocation3 + $0x210] sm:$0xff]
      %v2893 = vld [vmem:[#allocation3 + $0x218] sm:$0xff]
      %v2894 = vld [vmem:[#allocation3 + $0x220] sm:$0xff]
      %v2895 = vld [vmem:[#allocation3 + $0x228] sm:$0xff]
      %v2896 = vld [vmem:[#allocation3 + $0x230] sm:$0xff]
      %v2897 = vld [vmem:[#allocation3 + $0x238] sm:$0xff]
      %v2898 = vld [vmem:[#allocation3 + $0x240] sm:$0xff]
      %v2899 = vld [vmem:[#allocation3 + $0x248] sm:$0xff]
      %v2900 = vld [vmem:[#allocation3 + $0x250] sm:$0xff]
      %v2901 = vld [vmem:[#allocation3 + $0x258] sm:$0xff]
      %v2902 = vld [vmem:[#allocation3 + $0x260] sm:$0xff]
      %v2903 = vld [vmem:[#allocation3 + $0x268] sm:$0xff]
      %v2904 = vld [vmem:[#allocation3 + $0x270] sm:$0xff]
      %v2905 = vld [vmem:[#allocation3 + $0x278] sm:$0xff]
      %v2906 = vld [vmem:[#allocation3 + $0x280] sm:$0xff]
      %v2907 = vld [vmem:[#allocation3 + $0x288] sm:$0xff]
      %v2908 = vld [vmem:[#allocation3 + $0x290] sm:$0xff]
      %v2909 = vld [vmem:[#allocation3 + $0x298] sm:$0xff]
      %v2910 = vld [vmem:[#allocation3 + $0x2a0] sm:$0xff]
      %v2911 = vld [vmem:[#allocation3 + $0x2a8] sm:$0xff]
      %v2912 = vld [vmem:[#allocation3 + $0x2b0] sm:$0xff]
      %v2913 = vld [vmem:[#allocation3 + $0x2b8] sm:$0xff]
      %v2914 = vld [vmem:[#allocation3 + $0x2c0] sm:$0xff]
      %v2915 = vld [vmem:[#allocation3 + $0x2c8] sm:$0xff]
      %v2916 = vld [vmem:[#allocation3 + $0x2d0] sm:$0xff]
      %v2917 = vld [vmem:[#allocation3 + $0x2d8] sm:$0xff]
      %v2918 = vld [vmem:[#allocation3 + $0x2e0] sm:$0xff]
      %v2919 = vld [vmem:[#allocation3 + $0x2e8] sm:$0xff]
      %v2920 = vld [vmem:[#allocation3 + $0x2f0] sm:$0xff]
      %v2921 = vld [vmem:[#allocation3 + $0x2f8] sm:$0xff]
      %v2922 = vld [vmem:[#allocation3 + $0x300] sm:$0xff]
      %v2923 = vld [vmem:[#allocation3 + $0x308] sm:$0xff]
      %v2924 = vld [vmem:[#allocation3 + $0x310] sm:$0xff]
      %v2925 = vld [vmem:[#allocation3 + $0x318] sm:$0xff]
      %v2926 = vld [vmem:[#allocation3 + $0x320] sm:$0xff]
      %v2927 = vld [vmem:[#allocation3 + $0x328] sm:$0xff]
      %v2928 = vld [vmem:[#allocation3 + $0x330] sm:$0xff]
      %v2929 = vld [vmem:[#allocation3 + $0x338] sm:$0xff]
      %v2930 = vld [vmem:[#allocation3 + $0x340] sm:$0xff]
      %v2931 = vld [vmem:[#allocation3 + $0x348] sm:$0xff]
      %v2932 = vld [vmem:[#allocation3 + $0x350] sm:$0xff]
      %v2933 = vld [vmem:[#allocation3 + $0x358] sm:$0xff]
      %v2934 = vld [vmem:[#allocation3 + $0x360] sm:$0xff]
      %v2935 = vld [vmem:[#allocation3 + $0x368] sm:$0xff]
      %v2936 = vld [vmem:[#allocation3 + $0x370] sm:$0xff]
      %v2937 = vld [vmem:[#allocation3 + $0x378] sm:$0xff]
      %v2938 = vld [vmem:[#allocation3 + $0x380] sm:$0xff]
      %v2939 = vld [vmem:[#allocation3 + $0x388] sm:$0xff]
      %v2940 = vld [vmem:[#allocation3 + $0x390] sm:$0xff]
      %v2941 = vld [vmem:[#allocation3 + $0x398] sm:$0xff]
      %v2942 = vld [vmem:[#allocation3 + $0x3a0] sm:$0xff]
      %v2943 = vld [vmem:[#allocation3 + $0x3a8] sm:$0xff]
      %v2944 = vld [vmem:[#allocation3 + $0x3b0] sm:$0xff]
      %v2945 = vld [vmem:[#allocation3 + $0x3b8] sm:$0xff]
      %v2946 = vld [vmem:[#allocation3 + $0x3c0] sm:$0xff]
      %v2947 = vld [vmem:[#allocation3 + $0x3c8] sm:$0xff]
      %v2948 = vld [vmem:[#allocation3 + $0x3d0] sm:$0xff]
      %v2949 = vld [vmem:[#allocation3 + $0x3d8] sm:$0xff]
      %v2950 = vld [vmem:[#allocation3 + $0x3e0] sm:$0xff]
      %v2951 = vld [vmem:[#allocation3 + $0x3e8] sm:$0xff]
      %v2952 = vld [vmem:[#allocation3 + $0x3f0] sm:$0xff]
      %v2953 = vld [vmem:[#allocation3 + $0x3f8] sm:$0xff]
      %v2954 = vld [vmem:[#allocation3 + $0x400] sm:$0xff]
      %v2955 = vld [vmem:[#allocation3 + $0x408] sm:$0xff]
      %v2956 = vld [vmem:[#allocation3 + $0x410] sm:$0xff]
      %v2957 = vld [vmem:[#allocation3 + $0x418] sm:$0xff]
      %v2958 = vld [vmem:[#allocation3 + $0x420] sm:$0xff]
      %v2959 = vld [vmem:[#allocation3 + $0x428] sm:$0xff]
      %v2960 = vld [vmem:[#allocation3 + $0x430] sm:$0xff]
      %v2961 = vld [vmem:[#allocation3 + $0x438] sm:$0xff]
      %v2962 = vld [vmem:[#allocation3 + $0x440] sm:$0xff]
      %v2963 = vld [vmem:[#allocation3 + $0x448] sm:$0xff]
      %v2964 = vld [vmem:[#allocation3 + $0x450] sm:$0xff]
      %v2965 = vld [vmem:[#allocation3 + $0x458] sm:$0xff]
      %v2966 = vld [vmem:[#allocation3 + $0x460] sm:$0xff]
      %v2967 = vld [vmem:[#allocation3 + $0x468] sm:$0xff]
      %v2968 = vld [vmem:[#allocation3 + $0x470] sm:$0xff]
      %v2969 = vld [vmem:[#allocation3 + $0x478] sm:$0xff]
      %v2970 = vld [vmem:[%s5] sm:$0xf]
      %v2971 = vld [vmem:[%s5 + $0x4] sm:$0xf]
      %v2972 = vld [vmem:[%s5 + $0x8] sm:$0xf]
      %v2973 = vld [vmem:[%s5 + $0xc] sm:$0xf]
      %v2974 = vld [vmem:[%s5 + $0x10] sm:$0xf]
      %v2975 = vld [vmem:[%s5 + $0x14] sm:$0xf]
      %v2976 = vld [vmem:[%s5 + $0x18] sm:$0xf]
      %v2977 = vld [vmem:[%s5 + $0x1c] sm:$0xf]
      %v2978 = vld [vmem:[%s5 + $0x20] sm:$0xf]
      %v2979 = vld [vmem:[%s5 + $0x24] sm:$0xf]
      %v2980 = vld [vmem:[%s5 + $0x28] sm:$0xf]
      %v2981 = vld [vmem:[%s5 + $0x2c] sm:$0xf]
      %v2982 = vld [vmem:[%s5 + $0x30] sm:$0xf]
      %v2983 = vld [vmem:[%s5 + $0x34] sm:$0xf]
      %v2984 = vld [vmem:[%s5 + $0x38] sm:$0xf]
      %v2985 = vld [vmem:[%s5 + $0x3c] sm:$0xf]
      %v2986 = vld [vmem:[%s5 + $0x40] sm:$0xf]
      %v2987 = vld [vmem:[%s5 + $0x44] sm:$0xf]
      %v2988 = vld [vmem:[%s5 + $0x48] sm:$0xf]
      %v2989 = vld [vmem:[%s5 + $0x4c] sm:$0xf]
      %v2990 = vld [vmem:[%s5 + $0x50] sm:$0xf]
      %v2991 = vld [vmem:[%s5 + $0x54] sm:$0xf]
      %v2992 = vld [vmem:[%s5 + $0x58] sm:$0xf]
      %v2993 = vld [vmem:[%s5 + $0x5c] sm:$0xf]
      %v2994 = vld [vmem:[%s5 + $0x60] sm:$0xf]
      %v2995 = vld [vmem:[%s5 + $0x64] sm:$0xf]
      %v2996 = vld [vmem:[%s5 + $0x68] sm:$0xf]
      %v2997 = vld [vmem:[%s5 + $0x6c] sm:$0xf]
      %v2998 = vld [vmem:[%s5 + $0x70] sm:$0xf]
      %v2999 = vld [vmem:[%s5 + $0x74] sm:$0xf]
      %v3000 = vld [vmem:[%s5 + $0x78] sm:$0xf]
      %v3001 = vld [vmem:[%s5 + $0x7c] sm:$0xf]
      %v3002 = vld [vmem:[%s5 + $0x80] sm:$0xf]
      %v3003 = vld [vmem:[%s5 + $0x84] sm:$0xf]
      %v3004 = vld [vmem:[%s5 + $0x88] sm:$0xf]
      %v3005 = vld [vmem:[%s5 + $0x8c] sm:$0xf]
      %v3006 = vld [vmem:[%s5 + $0x90] sm:$0xf]
      %v3007 = vld [vmem:[%s5 + $0x94] sm:$0xf]
      %v3008 = vld [vmem:[%s5 + $0x98] sm:$0xf]
      %v3009 = vld [vmem:[%s5 + $0x9c] sm:$0xf]
      %v3010 = vld [vmem:[%s5 + $0xa0] sm:$0xf]
      %v3011 = vld [vmem:[%s5 + $0xa4] sm:$0xf]
      %v3012 = vld [vmem:[%s5 + $0xa8] sm:$0xf]
      %v3013 = vld [vmem:[%s5 + $0xac] sm:$0xf]
      %v3014 = vld [vmem:[%s5 + $0xb0] sm:$0xf]
      %v3015 = vld [vmem:[%s5 + $0xb4] sm:$0xf]
      %v3016 = vld [vmem:[%s5 + $0xb8] sm:$0xf]
      %v3017 = vld [vmem:[%s5 + $0xbc] sm:$0xf]
      %v3018 = vld [vmem:[%s5 + $0xc0] sm:$0xf]
      %v3019 = vld [vmem:[%s5 + $0xc4] sm:$0xf]
      %v3020 = vld [vmem:[%s5 + $0xc8] sm:$0xf]
      %v3021 = vld [vmem:[%s5 + $0xcc] sm:$0xf]
      %v3022 = vld [vmem:[%s5 + $0xd0] sm:$0xf]
      %v3023 = vld [vmem:[%s5 + $0xd4] sm:$0xf]
      %v3024 = vld [vmem:[%s5 + $0xd8] sm:$0xf]
      %v3025 = vld [vmem:[%s5 + $0xdc] sm:$0xf]
      %v3026 = vld [vmem:[%s5 + $0xe0] sm:$0xf]
      %v3027 = vld [vmem:[%s5 + $0xe4] sm:$0xf]
      %v3028 = vld [vmem:[%s5 + $0xe8] sm:$0xf]
      %v3029 = vld [vmem:[%s5 + $0xec] sm:$0xf]
      %v3030 = vld [vmem:[%s5 + $0xf0] sm:$0xf]
      %v3031 = vld [vmem:[%s5 + $0xf4] sm:$0xf]
      %v3032 = vld [vmem:[%s5 + $0xf8] sm:$0xf]
      %v3033 = vld [vmem:[%s5 + $0xfc] sm:$0xf]
      %v3034 = vld [vmem:[%s5 + $0x100] sm:$0xf]
      %v3035 = vld [vmem:[%s5 + $0x104] sm:$0xf]
      %v3036 = vld [vmem:[%s5 + $0x108] sm:$0xf]
      %v3037 = vld [vmem:[%s5 + $0x10c] sm:$0xf]
      %v3038 = vld [vmem:[%s5 + $0x110] sm:$0xf]
      %v3039 = vld [vmem:[%s5 + $0x114] sm:$0xf]
      %v3040 = vld [vmem:[%s5 + $0x118] sm:$0xf]
      %v3041 = vld [vmem:[%s5 + $0x11c] sm:$0xf]
      %v3042 = vld [vmem:[%s5 + $0x120] sm:$0xf]
      %v3043 = vld [vmem:[%s5 + $0x124] sm:$0xf]
      %v3044 = vld [vmem:[%s5 + $0x128] sm:$0xf]
      %v3045 = vld [vmem:[%s5 + $0x12c] sm:$0xf]
      %v3046 = vld [vmem:[%s5 + $0x130] sm:$0xf]
      %v3047 = vld [vmem:[%s5 + $0x134] sm:$0xf]
      %v3048 = vld [vmem:[%s5 + $0x138] sm:$0xf]
      %v3049 = vld [vmem:[%s5 + $0x13c] sm:$0xf]
      %v3050 = vld [vmem:[%s5 + $0x140] sm:$0xf]
      %v3051 = vld [vmem:[%s5 + $0x144] sm:$0xf]
      %v3052 = vld [vmem:[%s5 + $0x148] sm:$0xf]
      %v3053 = vld [vmem:[%s5 + $0x14c] sm:$0xf]
      %v3054 = vld [vmem:[%s5 + $0x150] sm:$0xf]
      %v3055 = vld [vmem:[%s5 + $0x154] sm:$0xf]
      %v3056 = vld [vmem:[%s5 + $0x158] sm:$0xf]
      %v3057 = vld [vmem:[%s5 + $0x15c] sm:$0xf]
      %v3058 = vld [vmem:[%s5 + $0x160] sm:$0xf]
      %v3059 = vld [vmem:[%s5 + $0x164] sm:$0xf]
      %v3060 = vld [vmem:[%s5 + $0x168] sm:$0xf]
      %v3061 = vld [vmem:[%s5 + $0x16c] sm:$0xf]
      %v3062 = vld [vmem:[%s5 + $0x170] sm:$0xf]
      %v3063 = vld [vmem:[%s5 + $0x174] sm:$0xf]
      %v3064 = vld [vmem:[%s5 + $0x178] sm:$0xf]
      %v3065 = vld [vmem:[%s5 + $0x17c] sm:$0xf]
      %v3066 = vld [vmem:[%s5 + $0x180] sm:$0xf]
      %v3067 = vld [vmem:[%s5 + $0x184] sm:$0xf]
      %v3068 = vld [vmem:[%s5 + $0x188] sm:$0xf]
      %v3069 = vld [vmem:[%s5 + $0x18c] sm:$0xf]
      %v3070 = vld [vmem:[%s5 + $0x190] sm:$0xf]
      %v3071 = vld [vmem:[%s5 + $0x194] sm:$0xf]
      %v3072 = vld [vmem:[%s5 + $0x198] sm:$0xf]
      %v3073 = vld [vmem:[%s5 + $0x19c] sm:$0xf]
      %v3074 = vld [vmem:[%s5 + $0x1a0] sm:$0xf]
      %v3075 = vld [vmem:[%s5 + $0x1a4] sm:$0xf]
      %v3076 = vld [vmem:[%s5 + $0x1a8] sm:$0xf]
      %v3077 = vld [vmem:[%s5 + $0x1ac] sm:$0xf]
      %v3078 = vld [vmem:[%s5 + $0x1b0] sm:$0xf]
      %v3079 = vld [vmem:[%s5 + $0x1b4] sm:$0xf]
      %v3080 = vld [vmem:[%s5 + $0x1b8] sm:$0xf]
      %v3081 = vld [vmem:[%s5 + $0x1bc] sm:$0xf]
      %v3082 = vld [vmem:[%s5 + $0x1c0] sm:$0xf]
      %v3083 = vld [vmem:[%s5 + $0x1c4] sm:$0xf]
      %v3084 = vld [vmem:[%s5 + $0x1c8] sm:$0xf]
      %v3085 = vld [vmem:[%s5 + $0x1cc] sm:$0xf]
      %v3086 = vld [vmem:[%s5 + $0x1d0] sm:$0xf]
      %v3087 = vld [vmem:[%s5 + $0x1d4] sm:$0xf]
      %v3088 = vld [vmem:[%s5 + $0x1d8] sm:$0xf]
      %v3089 = vld [vmem:[%s5 + $0x1dc] sm:$0xf]
      %v3090 = vld [vmem:[%s5 + $0x1e0] sm:$0xf]
      %v3091 = vld [vmem:[%s5 + $0x1e4] sm:$0xf]
      %v3092 = vld [vmem:[%s5 + $0x1e8] sm:$0xf]
      %v3093 = vld [vmem:[%s5 + $0x1ec] sm:$0xf]
      %v3094 = vld [vmem:[%s5 + $0x1f0] sm:$0xf]
      %v3095 = vld [vmem:[%s5 + $0x1f4] sm:$0xf]
      %v3096 = vld [vmem:[%s5 + $0x1f8] sm:$0xf]
      %v3097 = vld [vmem:[%s5 + $0x1fc] sm:$0xf]
      %v3098 = vld [vmem:[%s5 + $0x200] sm:$0xf]
      %v3099 = vld [vmem:[%s5 + $0x204] sm:$0xf]
      %v3100 = vld [vmem:[%s5 + $0x208] sm:$0xf]
      %v3101 = vld [vmem:[%s5 + $0x20c] sm:$0xf]
      %v3102 = vld [vmem:[%s5 + $0x210] sm:$0xf]
      %v3103 = vld [vmem:[%s5 + $0x214] sm:$0xf]
      %v3104 = vld [vmem:[%s5 + $0x218] sm:$0xf]
      %v3105 = vld [vmem:[%s5 + $0x21c] sm:$0xf]
      %v3106 = vld [vmem:[%s5 + $0x220] sm:$0xf]
      %v3107 = vld [vmem:[%s5 + $0x224] sm:$0xf]
      %v3108 = vld [vmem:[%s5 + $0x228] sm:$0xf]
      %v3109 = vld [vmem:[%s5 + $0x22c] sm:$0xf]
      %v3110 = vld [vmem:[%s5 + $0x230] sm:$0xf]
      %v3111 = vld [vmem:[%s5 + $0x234] sm:$0xf]
      %v3112 = vld [vmem:[%s5 + $0x238] sm:$0xf]
      %v3113 = vld [vmem:[%s5 + $0x23c] sm:$0xf]
      %v3114 = vld [vmem:[%s6] sm:$0x1]
      %v3116 = vlaneseq
      %v3117 = vshrl.u32 %v3116, 7
      %v3118 = vsub.s32 0, %v3117
      %v3119 = vrot.slane %v3114, %v3118
      %v3265 = vunpack.c.l.b16 %v2970
      %v3266 = vunpack.c.l.b16 %v2971
      %v3267 = vunpack.c.l.b16 %v2972
      %v3268 = vunpack.c.l.b16 %v2973
      %v3269 = vunpack.c.l.b16 %v2974
      %v3270 = vunpack.c.l.b16 %v2975
      %v3271 = vunpack.c.l.b16 %v2976
      %v3272 = vunpack.c.l.b16 %v2977
      %v3273 = vunpack.c.l.b16 %v2978
      %v3274 = vunpack.c.l.b16 %v2979
      %v3275 = vunpack.c.l.b16 %v2980
      %v3276 = vunpack.c.l.b16 %v2981
      %v3277 = vunpack.c.l.b16 %v2982
      %v3278 = vunpack.c.l.b16 %v2983
      %v3279 = vunpack.c.l.b16 %v2984
      %v3280 = vunpack.c.l.b16 %v2985
      %v3281 = vunpack.c.l.b16 %v2986
      %v3282 = vunpack.c.l.b16 %v2987
      %v3283 = vunpack.c.l.b16 %v2988
      %v3284 = vunpack.c.l.b16 %v2989
      %v3285 = vunpack.c.l.b16 %v2990
      %v3286 = vunpack.c.l.b16 %v2991
      %v3287 = vunpack.c.l.b16 %v2992
      %v3288 = vunpack.c.l.b16 %v2993
      %v3289 = vunpack.c.l.b16 %v2994
      %v3290 = vunpack.c.l.b16 %v2995
      %v3291 = vunpack.c.l.b16 %v2996
      %v3292 = vunpack.c.l.b16 %v2997
      %v3293 = vunpack.c.l.b16 %v2998
      %v3294 = vunpack.c.l.b16 %v2999
      %v3295 = vunpack.c.l.b16 %v3000
      %v3296 = vunpack.c.l.b16 %v3001
      %v3297 = vunpack.c.l.b16 %v3002
      %v3298 = vunpack.c.l.b16 %v3003
      %v3299 = vunpack.c.l.b16 %v3004
      %v3300 = vunpack.c.l.b16 %v3005
      %v3301 = vunpack.c.l.b16 %v3006
      %v3302 = vunpack.c.l.b16 %v3007
      %v3303 = vunpack.c.l.b16 %v3008
      %v3304 = vunpack.c.l.b16 %v3009
      %v3305 = vunpack.c.l.b16 %v3010
      %v3306 = vunpack.c.l.b16 %v3011
      %v3307 = vunpack.c.l.b16 %v3012
      %v3308 = vunpack.c.l.b16 %v3013
      %v3309 = vunpack.c.l.b16 %v3014
      %v3310 = vunpack.c.l.b16 %v3015
      %v3311 = vunpack.c.l.b16 %v3016
      %v3312 = vunpack.c.l.b16 %v3017
      %v3313 = vunpack.c.l.b16 %v3018
      %v3314 = vunpack.c.l.b16 %v3019
      %v3315 = vunpack.c.l.b16 %v3020
      %v3316 = vunpack.c.l.b16 %v3021
      %v3317 = vunpack.c.l.b16 %v3022
      %v3318 = vunpack.c.l.b16 %v3023
      %v3319 = vunpack.c.l.b16 %v3024
      %v3320 = vunpack.c.l.b16 %v3025
      %v3321 = vunpack.c.l.b16 %v3026
      %v3322 = vunpack.c.l.b16 %v3027
      %v3323 = vunpack.c.l.b16 %v3028
      %v3324 = vunpack.c.l.b16 %v3029
      %v3325 = vunpack.c.l.b16 %v3030
      %v3326 = vunpack.c.l.b16 %v3031
      %v3327 = vunpack.c.l.b16 %v3032
      %v3328 = vunpack.c.l.b16 %v3033
      %v3329 = vunpack.c.l.b16 %v3034
      %v3330 = vunpack.c.l.b16 %v3035
      %v3331 = vunpack.c.l.b16 %v3036
      %v3332 = vunpack.c.l.b16 %v3037
      %v3333 = vunpack.c.l.b16 %v3038
      %v3334 = vunpack.c.l.b16 %v3039
      %v3335 = vunpack.c.l.b16 %v3040
      %v3336 = vunpack.c.l.b16 %v3041
      %v3337 = vunpack.c.l.b16 %v3042
      %v3338 = vunpack.c.l.b16 %v3043
      %v3339 = vunpack.c.l.b16 %v3044
      %v3340 = vunpack.c.l.b16 %v3045
      %v3341 = vunpack.c.l.b16 %v3046
      %v3342 = vunpack.c.l.b16 %v3047
      %v3343 = vunpack.c.l.b16 %v3048
      %v3344 = vunpack.c.l.b16 %v3049
      %v3345 = vunpack.c.l.b16 %v3050
      %v3346 = vunpack.c.l.b16 %v3051
      %v3347 = vunpack.c.l.b16 %v3052
      %v3348 = vunpack.c.l.b16 %v3053
      %v3349 = vunpack.c.l.b16 %v3054
      %v3350 = vunpack.c.l.b16 %v3055
      %v3351 = vunpack.c.l.b16 %v3056
      %v3352 = vunpack.c.l.b16 %v3057
      %v3353 = vunpack.c.l.b16 %v3058
      %v3354 = vunpack.c.l.b16 %v3059
      %v3355 = vunpack.c.l.b16 %v3060
      %v3356 = vunpack.c.l.b16 %v3061
      %v3357 = vunpack.c.l.b16 %v3062
      %v3358 = vunpack.c.l.b16 %v3063
      %v3359 = vunpack.c.l.b16 %v3064
      %v3360 = vunpack.c.l.b16 %v3065
      %v3361 = vunpack.c.l.b16 %v3066
      %v3362 = vunpack.c.l.b16 %v3067
      %v3363 = vunpack.c.l.b16 %v3068
      %v3364 = vunpack.c.l.b16 %v3069
      %v3365 = vunpack.c.l.b16 %v3070
      %v3366 = vunpack.c.l.b16 %v3071
      %v3367 = vunpack.c.l.b16 %v3072
      %v3368 = vunpack.c.l.b16 %v3073
      %v3369 = vunpack.c.l.b16 %v3074
      %v3370 = vunpack.c.l.b16 %v3075
      %v3371 = vunpack.c.l.b16 %v3076
      %v3372 = vunpack.c.l.b16 %v3077
      %v3373 = vunpack.c.l.b16 %v3078
      %v3374 = vunpack.c.l.b16 %v3079
      %v3375 = vunpack.c.l.b16 %v3080
      %v3376 = vunpack.c.l.b16 %v3081
      %v3377 = vunpack.c.l.b16 %v3082
      %v3378 = vunpack.c.l.b16 %v3083
      %v3379 = vunpack.c.l.b16 %v3084
      %v3380 = vunpack.c.l.b16 %v3085
      %v3381 = vunpack.c.l.b16 %v3086
      %v3382 = vunpack.c.l.b16 %v3087
      %v3383 = vunpack.c.l.b16 %v3088
      %v3384 = vunpack.c.l.b16 %v3089
      %v3385 = vunpack.c.l.b16 %v3090
      %v3386 = vunpack.c.l.b16 %v3091
      %v3387 = vunpack.c.l.b16 %v3092
      %v3388 = vunpack.c.l.b16 %v3093
      %v3389 = vunpack.c.l.b16 %v3094
      %v3390 = vunpack.c.l.b16 %v3095
      %v3391 = vunpack.c.l.b16 %v3096
      %v3392 = vunpack.c.l.b16 %v3097
      %v3393 = vunpack.c.l.b16 %v3098
      %v3394 = vunpack.c.l.b16 %v3099
      %v3395 = vunpack.c.l.b16 %v3100
      %v3396 = vunpack.c.l.b16 %v3101
      %v3397 = vunpack.c.l.b16 %v3102
      %v3398 = vunpack.c.l.b16 %v3103
      %v3399 = vunpack.c.l.b16 %v3104
      %v3400 = vunpack.c.l.b16 %v3105
      %v3401 = vunpack.c.l.b16 %v3106
      %v3402 = vunpack.c.l.b16 %v3107
      %v3403 = vunpack.c.l.b16 %v3108
      %v3404 = vunpack.c.l.b16 %v3109
      %v3405 = vunpack.c.l.b16 %v3110
      %v3406 = vunpack.c.l.b16 %v3111
      %v3407 = vunpack.c.l.b16 %v3112
      %v3408 = vunpack.c.l.b16 %v3113
      %v3409 = vpack.c.b16 %v3266, %v3265
      %v3410 = vpack.c.b16 %v3268, %v3267
      %v3411 = vpack.c.b16 %v3270, %v3269
      %v3412 = vpack.c.b16 %v3272, %v3271
      %v3413 = vpack.c.b16 %v3274, %v3273
      %v3414 = vpack.c.b16 %v3276, %v3275
      %v3415 = vpack.c.b16 %v3278, %v3277
      %v3416 = vpack.c.b16 %v3280, %v3279
      %v3417 = vpack.c.b16 %v3282, %v3281
      %v3418 = vpack.c.b16 %v3284, %v3283
      %v3419 = vpack.c.b16 %v3286, %v3285
      %v3420 = vpack.c.b16 %v3288, %v3287
      %v3421 = vpack.c.b16 %v3290, %v3289
      %v3422 = vpack.c.b16 %v3292, %v3291
      %v3423 = vpack.c.b16 %v3294, %v3293
      %v3424 = vpack.c.b16 %v3296, %v3295
      %v3425 = vpack.c.b16 %v3298, %v3297
      %v3426 = vpack.c.b16 %v3300, %v3299
      %v3427 = vpack.c.b16 %v3302, %v3301
      %v3428 = vpack.c.b16 %v3304, %v3303
      %v3429 = vpack.c.b16 %v3306, %v3305
      %v3430 = vpack.c.b16 %v3308, %v3307
      %v3431 = vpack.c.b16 %v3310, %v3309
      %v3432 = vpack.c.b16 %v3312, %v3311
      %v3433 = vpack.c.b16 %v3314, %v3313
      %v3434 = vpack.c.b16 %v3316, %v3315
      %v3435 = vpack.c.b16 %v3318, %v3317
      %v3436 = vpack.c.b16 %v3320, %v3319
      %v3437 = vpack.c.b16 %v3322, %v3321
      %v3438 = vpack.c.b16 %v3324, %v3323
      %v3439 = vpack.c.b16 %v3326, %v3325
      %v3440 = vpack.c.b16 %v3328, %v3327
      %v3441 = vpack.c.b16 %v3330, %v3329
      %v3442 = vpack.c.b16 %v3332, %v3331
      %v3443 = vpack.c.b16 %v3334, %v3333
      %v3444 = vpack.c.b16 %v3336, %v3335
      %v3445 = vpack.c.b16 %v3338, %v3337
      %v3446 = vpack.c.b16 %v3340, %v3339
      %v3447 = vpack.c.b16 %v3342, %v3341
      %v3448 = vpack.c.b16 %v3344, %v3343
      %v3449 = vpack.c.b16 %v3346, %v3345
      %v3450 = vpack.c.b16 %v3348, %v3347
      %v3451 = vpack.c.b16 %v3350, %v3349
      %v3452 = vpack.c.b16 %v3352, %v3351
      %v3453 = vpack.c.b16 %v3354, %v3353
      %v3454 = vpack.c.b16 %v3356, %v3355
      %v3455 = vpack.c.b16 %v3358, %v3357
      %v3456 = vpack.c.b16 %v3360, %v3359
      %v3457 = vpack.c.b16 %v3362, %v3361
      %v3458 = vpack.c.b16 %v3364, %v3363
      %v3459 = vpack.c.b16 %v3366, %v3365
      %v3460 = vpack.c.b16 %v3368, %v3367
      %v3461 = vpack.c.b16 %v3370, %v3369
      %v3462 = vpack.c.b16 %v3372, %v3371
      %v3463 = vpack.c.b16 %v3374, %v3373
      %v3464 = vpack.c.b16 %v3376, %v3375
      %v3465 = vpack.c.b16 %v3378, %v3377
      %v3466 = vpack.c.b16 %v3380, %v3379
      %v3467 = vpack.c.b16 %v3382, %v3381
      %v3468 = vpack.c.b16 %v3384, %v3383
      %v3469 = vpack.c.b16 %v3386, %v3385
      %v3470 = vpack.c.b16 %v3388, %v3387
      %v3471 = vpack.c.b16 %v3390, %v3389
      %v3472 = vpack.c.b16 %v3392, %v3391
      %v3473 = vpack.c.b16 %v3394, %v3393
      %v3474 = vpack.c.b16 %v3396, %v3395
      %v3475 = vpack.c.b16 %v3398, %v3397
      %v3476 = vpack.c.b16 %v3400, %v3399
      %v3477 = vpack.c.b16 %v3402, %v3401
      %v3478 = vpack.c.b16 %v3404, %v3403
      %v3479 = vpack.c.b16 %v3406, %v3405
      %v3480 = vpack.c.b16 %v3408, %v3407
      %3553 = vmatprep.subr.bf16.mxu0 0
      %3554 = vmatpush1.bf16.msra.mxu0 %v3409
      %3555 = vmatprep.subr.bf16.mxu0 0
      %3556 = vmatpush1.bf16.msra.mxu0 %v3410
      %3557 = vmatprep.subr.bf16.mxu0 0
      %3558 = vmatpush1.bf16.msra.mxu0 %v3411
      %3559 = vmatprep.subr.bf16.mxu0 0
      %3560 = vmatpush1.bf16.msra.mxu0 %v3412
      %3561 = vmatprep.subr.bf16.mxu0 0
      %3562 = vmatpush1.bf16.msra.mxu0 %v3413
      %3563 = vmatprep.subr.bf16.mxu0 0
      %3564 = vmatpush1.bf16.msra.mxu0 %v3414
      %3565 = vmatprep.subr.bf16.mxu0 0
      %3566 = vmatpush1.bf16.msra.mxu0 %v3415
      %3567 = vmatprep.subr.bf16.mxu0 0
      %3568 = vmatpush1.bf16.msra.mxu0 %v3416
      %3569 = vmatprep.subr.bf16.mxu0 0
      %3570 = vmatpush1.bf16.msra.mxu0 %v3417
      %3571 = vmatprep.subr.bf16.mxu0 0
      %3572 = vmatpush1.bf16.msra.mxu0 %v3418
      %3573 = vmatprep.subr.bf16.mxu0 0
      %3574 = vmatpush1.bf16.msra.mxu0 %v3419
      %3575 = vmatprep.subr.bf16.mxu0 0
      %3576 = vmatpush1.bf16.msra.mxu0 %v3420
      %3577 = vmatprep.subr.bf16.mxu0 0
      %3578 = vmatpush1.bf16.msra.mxu0 %v3421
      %3579 = vmatprep.subr.bf16.mxu0 0
      %3580 = vmatpush1.bf16.msra.mxu0 %v3422
      %3581 = vmatprep.subr.bf16.mxu0 0
      %3582 = vmatpush1.bf16.msra.mxu0 %v3423
      %3583 = vmatprep.subr.bf16.mxu0 0
      %3584 = vmatpush1.bf16.msra.mxu0 %v3424
      %3585 = vmatprep.mubr.bf16.mxu0 %v2827
      %3586 = vmatmul.mubr.bf16.gmra.mrb[0].mxu0 %v2826
      %v3587 = vpop.f32.mrb[0].mxu0
      %v3588 = vadd.f32 %v3119, %v3587
      %v3589 = vpop.f32.mrb[0].mxu0
      %v3590 = vpop.f32.mrb[0].mxu0
      %v3591 = vadd.f32 %v3119, %v3590
      %v3592 = vpop.f32.mrb[0].mxu0
      %3593 = vmatprep.mubr.bf16.mxu0 %v2836
      %3594 = vmatmul.mubr.bf16.gmra.mrb[0].mxu0 %v2835
      %v3595 = vpop.f32.mrb[0].mxu0
      %v3596 = vadd.f32 %v3119, %v3595
      %v3597 = vpop.f32.mrb[0].mxu0
      %v3598 = vpop.f32.mrb[0].mxu0
      %v3599 = vadd.f32 %v3119, %v3598
      %v3600 = vpop.f32.mrb[0].mxu0
      %3601 = vmatprep.mubr.bf16.mxu0 %v2845
      %3602 = vmatmul.mubr.bf16.gmra.mrb[0].mxu0 %v2844
      %v3603 = vpop.f32.mrb[0].mxu0
      %v3604 = vadd.f32 %v3119, %v3603
      %v3605 = vpop.f32.mrb[0].mxu0
      %v3606 = vpop.f32.mrb[0].mxu0
      %v3607 = vadd.f32 %v3119, %v3606
      %v3608 = vpop.f32.mrb[0].mxu0
      %3609 = vmatprep.mubr.bf16.mxu0 %v2854
      %3610 = vmatmul.mubr.bf16.gmra.mrb[0].mxu0 %v2853
      %v3611 = vpop.f32.mrb[0].mxu0
      %v3612 = vadd.f32 %v3119, %v3611
      %v3613 = vpop.f32.mrb[0].mxu0
      %v3614 = vpop.f32.mrb[0].mxu0
      %v3615 = vadd.f32 %v3119, %v3614
      %v3616 = vpop.f32.mrb[0].mxu0
      %3617 = vmatprep.mubr.bf16.mxu0 %v2863
      %3618 = vmatmul.mubr.bf16.gmra.mrb[0].mxu0 %v2862
      %v3619 = vpop.f32.mrb[0].mxu0
      %v3620 = vadd.f32 %v3119, %v3619
      %v3621 = vpop.f32.mrb[0].mxu0
      %v3622 = vpop.f32.mrb[0].mxu0
      %v3623 = vadd.f32 %v3119, %v3622
      %v3624 = vpop.f32.mrb[0].mxu0
      %3625 = vmatprep.mubr.bf16.mxu0 %v2872
      %3626 = vmatmul.mubr.bf16.gmra.mrb[0].mxu0 %v2871
      %v3627 = vpop.f32.mrb[0].mxu0
      %v3628 = vadd.f32 %v3119, %v3627
      %v3629 = vpop.f32.mrb[0].mxu0
      %v3630 = vpop.f32.mrb[0].mxu0
      %v3631 = vadd.f32 %v3119, %v3630
      %v3632 = vpop.f32.mrb[0].mxu0
      %3633 = vmatprep.mubr.bf16.mxu0 %v2881
      %3634 = vmatmul.mubr.bf16.gmra.mrb[0].mxu0 %v2880
      %v3635 = vpop.f32.mrb[0].mxu0
      %v3636 = vadd.f32 %v3119, %v3635
      %v3637 = vpop.f32.mrb[0].mxu0
      %v3638 = vpop.f32.mrb[0].mxu0
      %v3639 = vadd.f32 %v3119, %v3638
      %v3640 = vpop.f32.mrb[0].mxu0
      %3641 = vmatprep.mubr.bf16.mxu0 %v2890
      %3642 = vmatmul.mubr.bf16.gmra.mrb[0].mxu0 %v2889
      %v3643 = vpop.f32.mrb[0].mxu0
      %v3644 = vadd.f32 %v3119, %v3643
      %v3645 = vpop.f32.mrb[0].mxu0
      %v3646 = vpop.f32.mrb[0].mxu0
      %v3647 = vadd.f32 %v3119, %v3646
      %v3648 = vpop.f32.mrb[0].mxu0
      %3649 = vmatprep.mubr.bf16.mxu0 %v2899
      %3650 = vmatmul.mubr.bf16.gmra.mrb[0].mxu0 %v2898
      %v3651 = vpop.f32.mrb[0].mxu0
      %v3652 = vadd.f32 %v3119, %v3651
      %v3653 = vpop.f32.mrb[0].mxu0
      %v3654 = vpop.f32.mrb[0].mxu0
      %v3655 = vadd.f32 %v3119, %v3654
      %v3656 = vpop.f32.mrb[0].mxu0
      %3657 = vmatprep.mubr.bf16.mxu0 %v2908
      %3658 = vmatmul.mubr.bf16.gmra.mrb[0].mxu0 %v2907
      %v3659 = vpop.f32.mrb[0].mxu0
      %v3660 = vadd.f32 %v3119, %v3659
      %v3661 = vpop.f32.mrb[0].mxu0
      %v3662 = vpop.f32.mrb[0].mxu0
      %v3663 = vadd.f32 %v3119, %v3662
      %v3664 = vpop.f32.mrb[0].mxu0
      %3665 = vmatprep.mubr.bf16.mxu0 %v2917
      %3666 = vmatmul.mubr.bf16.gmra.mrb[0].mxu0 %v2916
      %v3667 = vpop.f32.mrb[0].mxu0
      %v3668 = vadd.f32 %v3119, %v3667
      %v3669 = vpop.f32.mrb[0].mxu0
      %v3670 = vpop.f32.mrb[0].mxu0
      %v3671 = vadd.f32 %v3119, %v3670
      %v3672 = vpop.f32.mrb[0].mxu0
      %3673 = vmatprep.mubr.bf16.mxu0 %v2926
      %3674 = vmatmul.mubr.bf16.gmra.mrb[0].mxu0 %v2925
      %v3675 = vpop.f32.mrb[0].mxu0
      %v3676 = vadd.f32 %v3119, %v3675
      %v3677 = vpop.f32.mrb[0].mxu0
      %v3678 = vpop.f32.mrb[0].mxu0
      %v3679 = vadd.f32 %v3119, %v3678
      %v3680 = vpop.f32.mrb[0].mxu0
      %3681 = vmatprep.mubr.bf16.mxu0 %v2935
      %3682 = vmatmul.mubr.bf16.gmra.mrb[0].mxu0 %v2934
      %v3683 = vpop.f32.mrb[0].mxu0
      %v3684 = vadd.f32 %v3119, %v3683
      %v3685 = vpop.f32.mrb[0].mxu0
      %v3686 = vpop.f32.mrb[0].mxu0
      %v3687 = vadd.f32 %v3119, %v3686
      %v3688 = vpop.f32.mrb[0].mxu0
      %3689 = vmatprep.mubr.bf16.mxu0 %v2944
      %3690 = vmatmul.mubr.bf16.gmra.mrb[0].mxu0 %v2943
      %v3691 = vpop.f32.mrb[0].mxu0
      %v3692 = vadd.f32 %v3119, %v3691
      %v3693 = vpop.f32.mrb[0].mxu0
      %v3694 = vpop.f32.mrb[0].mxu0
      %v3695 = vadd.f32 %v3119, %v3694
      %v3696 = vpop.f32.mrb[0].mxu0
      %3697 = vmatprep.mubr.bf16.mxu0 %v2953
      %3698 = vmatmul.mubr.bf16.gmra.mrb[0].mxu0 %v2952
      %v3699 = vpop.f32.mrb[0].mxu0
      %v3700 = vadd.f32 %v3119, %v3699
      %v3701 = vpop.f32.mrb[0].mxu0
      %v3702 = vpop.f32.mrb[0].mxu0
      %v3703 = vadd.f32 %v3119, %v3702
      %v3704 = vpop.f32.mrb[0].mxu0
      %3705 = vmatprep.mubr.bf16.mxu0 %v2962
      %3706 = vmatmul.mubr.bf16.gmra.mrb[0].mxu0 %v2961
      %v3707 = vpop.f32.mrb[0].mxu0
      %v3708 = vadd.f32 %v3119, %v3707
      %v3709 = vpop.f32.mrb[0].mxu0
      %v3710 = vpop.f32.mrb[0].mxu0
      %v3711 = vadd.f32 %v3119, %v3710
      %v3712 = vpop.f32.mrb[0].mxu0
      %3713 = vdwg.mxu0
      %3714 = vmatprep.subr.bf16.mxu0 0
      %3715 = vmatpush1.bf16.msra.mxu0 %v3425
      %3716 = vmatprep.subr.bf16.mxu0 0
      %3717 = vmatpush1.bf16.msra.mxu0 %v3426
      %3718 = vmatprep.subr.bf16.mxu0 0
      %3719 = vmatpush1.bf16.msra.mxu0 %v3427
      %3720 = vmatprep.subr.bf16.mxu0 0
      %3721 = vmatpush1.bf16.msra.mxu0 %v3428
      %3722 = vmatprep.subr.bf16.mxu0 0
      %3723 = vmatpush1.bf16.msra.mxu0 %v3429
      %3724 = vmatprep.subr.bf16.mxu0 0
      %3725 = vmatpush1.bf16.msra.mxu0 %v3430
      %3726 = vmatprep.subr.bf16.mxu0 0
      %3727 = vmatpush1.bf16.msra.mxu0 %v3431
      %3728 = vmatprep.subr.bf16.mxu0 0
      %3729 = vmatpush1.bf16.msra.mxu0 %v3432
      %3730 = vmatprep.subr.bf16.mxu0 0
      %3731 = vmatpush1.bf16.msra.mxu0 %v3433
      %3732 = vmatprep.subr.bf16.mxu0 0
      %3733 = vmatpush1.bf16.msra.mxu0 %v3434
      %3734 = vmatprep.subr.bf16.mxu0 0
      %3735 = vmatpush1.bf16.msra.mxu0 %v3435
      %3736 = vmatprep.subr.bf16.mxu0 0
      %3737 = vmatpush1.bf16.msra.mxu0 %v3436
      %3738 = vmatprep.subr.bf16.mxu0 0
      %3739 = vmatpush1.bf16.msra.mxu0 %v3437
      %3740 = vmatprep.subr.bf16.mxu0 0
      %3741 = vmatpush1.bf16.msra.mxu0 %v3438
      %3742 = vmatprep.subr.bf16.mxu0 0
      %3743 = vmatpush1.bf16.msra.mxu0 %v3439
      %3744 = vmatprep.subr.bf16.mxu0 0
      %3745 = vmatpush1.bf16.msra.mxu0 %v3440
      %3746 = vmatprep.mubr.bf16.mxu0 %v2829
      %3747 = vmatmul.mubr.bf16.gmra.mrb[0].mxu0 %v2828
      %v3748 = vpop.f32.mrb[0].mxu0
      %v3749 = vadd.f32 %v3588, %v3748
      %v3750 = vpop.f32.mrb[0].mxu0
      %v3751 = vpop.f32.mrb[0].mxu0
      %v3752 = vadd.f32 %v3591, %v3751
      %v3753 = vpop.f32.mrb[0].mxu0
      %3754 = vmatprep.mubr.bf16.mxu0 %v2838
      %3755 = vmatmul.mubr.bf16.gmra.mrb[0].mxu0 %v2837
      %v3756 = vpop.f32.mrb[0].mxu0
      %v3757 = vadd.f32 %v3596, %v3756
      %v3758 = vpop.f32.mrb[0].mxu0
      %v3759 = vpop.f32.mrb[0].mxu0
      %v3760 = vadd.f32 %v3599, %v3759
      %v3761 = vpop.f32.mrb[0].mxu0
      %3762 = vmatprep.mubr.bf16.mxu0 %v2847
      %3763 = vmatmul.mubr.bf16.gmra.mrb[0].mxu0 %v2846
      %v3764 = vpop.f32.mrb[0].mxu0
      %v3765 = vadd.f32 %v3604, %v3764
      %v3766 = vpop.f32.mrb[0].mxu0
      %v3767 = vpop.f32.mrb[0].mxu0
      %v3768 = vadd.f32 %v3607, %v3767
      %v3769 = vpop.f32.mrb[0].mxu0
      %3770 = vmatprep.mubr.bf16.mxu0 %v2856
      %3771 = vmatmul.mubr.bf16.gmra.mrb[0].mxu0 %v2855
      %v3772 = vpop.f32.mrb[0].mxu0
      %v3773 = vadd.f32 %v3612, %v3772
      %v3774 = vpop.f32.mrb[0].mxu0
      %v3775 = vpop.f32.mrb[0].mxu0
      %v3776 = vadd.f32 %v3615, %v3775
      %v3777 = vpop.f32.mrb[0].mxu0
      %3778 = vmatprep.mubr.bf16.mxu0 %v2865
      %3779 = vmatmul.mubr.bf16.gmra.mrb[0].mxu0 %v2864
      %v3780 = vpop.f32.mrb[0].mxu0
      %v3781 = vadd.f32 %v3620, %v3780
      %v3782 = vpop.f32.mrb[0].mxu0
      %v3783 = vpop.f32.mrb[0].mxu0
      %v3784 = vadd.f32 %v3623, %v3783
      %v3785 = vpop.f32.mrb[0].mxu0
      %3786 = vmatprep.mubr.bf16.mxu0 %v2874
      %3787 = vmatmul.mubr.bf16.gmra.mrb[0].mxu0 %v2873
      %v3788 = vpop.f32.mrb[0].mxu0
      %v3789 = vadd.f32 %v3628, %v3788
      %v3790 = vpop.f32.mrb[0].mxu0
      %v3791 = vpop.f32.mrb[0].mxu0
      %v3792 = vadd.f32 %v3631, %v3791
      %v3793 = vpop.f32.mrb[0].mxu0
      %3794 = vmatprep.mubr.bf16.mxu0 %v2883
      %3795 = vmatmul.mubr.bf16.gmra.mrb[0].mxu0 %v2882
      %v3796 = vpop.f32.mrb[0].mxu0
      %v3797 = vadd.f32 %v3636, %v3796
      %v3798 = vpop.f32.mrb[0].mxu0
      %v3799 = vpop.f32.mrb[0].mxu0
      %v3800 = vadd.f32 %v3639, %v3799
      %v3801 = vpop.f32.mrb[0].mxu0
      %3802 = vmatprep.mubr.bf16.mxu0 %v2892
      %3803 = vmatmul.mubr.bf16.gmra.mrb[0].mxu0 %v2891
      %v3804 = vpop.f32.mrb[0].mxu0
      %v3805 = vadd.f32 %v3644, %v3804
      %v3806 = vpop.f32.mrb[0].mxu0
      %v3807 = vpop.f32.mrb[0].mxu0
      %v3808 = vadd.f32 %v3647, %v3807
      %v3809 = vpop.f32.mrb[0].mxu0
      %3810 = vmatprep.mubr.bf16.mxu0 %v2901
      %3811 = vmatmul.mubr.bf16.gmra.mrb[0].mxu0 %v2900
      %v3812 = vpop.f32.mrb[0].mxu0
      %v3813 = vadd.f32 %v3652, %v3812
      %v3814 = vpop.f32.mrb[0].mxu0
      %v3815 = vpop.f32.mrb[0].mxu0
      %v3816 = vadd.f32 %v3655, %v3815
      %v3817 = vpop.f32.mrb[0].mxu0
      %3818 = vmatprep.mubr.bf16.mxu0 %v2910
      %3819 = vmatmul.mubr.bf16.gmra.mrb[0].mxu0 %v2909
      %v3820 = vpop.f32.mrb[0].mxu0
      %v3821 = vadd.f32 %v3660, %v3820
      %v3822 = vpop.f32.mrb[0].mxu0
      %v3823 = vpop.f32.mrb[0].mxu0
      %v3824 = vadd.f32 %v3663, %v3823
      %v3825 = vpop.f32.mrb[0].mxu0
      %3826 = vmatprep.mubr.bf16.mxu0 %v2919
      %3827 = vmatmul.mubr.bf16.gmra.mrb[0].mxu0 %v2918
      %v3828 = vpop.f32.mrb[0].mxu0
      %v3829 = vadd.f32 %v3668, %v3828
      %v3830 = vpop.f32.mrb[0].mxu0
      %v3831 = vpop.f32.mrb[0].mxu0
      %v3832 = vadd.f32 %v3671, %v3831
      %v3833 = vpop.f32.mrb[0].mxu0
      %3834 = vmatprep.mubr.bf16.mxu0 %v2928
      %3835 = vmatmul.mubr.bf16.gmra.mrb[0].mxu0 %v2927
      %v3836 = vpop.f32.mrb[0].mxu0
      %v3837 = vadd.f32 %v3676, %v3836
      %v3838 = vpop.f32.mrb[0].mxu0
      %v3839 = vpop.f32.mrb[0].mxu0
      %v3840 = vadd.f32 %v3679, %v3839
      %v3841 = vpop.f32.mrb[0].mxu0
      %3842 = vmatprep.mubr.bf16.mxu0 %v2937
      %3843 = vmatmul.mubr.bf16.gmra.mrb[0].mxu0 %v2936
      %v3844 = vpop.f32.mrb[0].mxu0
      %v3845 = vadd.f32 %v3684, %v3844
      %v3846 = vpop.f32.mrb[0].mxu0
      %v3847 = vpop.f32.mrb[0].mxu0
      %v3848 = vadd.f32 %v3687, %v3847
      %v3849 = vpop.f32.mrb[0].mxu0
      %3850 = vmatprep.mubr.bf16.mxu0 %v2946
      %3851 = vmatmul.mubr.bf16.gmra.mrb[0].mxu0 %v2945
      %v3852 = vpop.f32.mrb[0].mxu0
      %v3853 = vadd.f32 %v3692, %v3852
      %v3854 = vpop.f32.mrb[0].mxu0
      %v3855 = vpop.f32.mrb[0].mxu0
      %v3856 = vadd.f32 %v3695, %v3855
      %v3857 = vpop.f32.mrb[0].mxu0
      %3858 = vmatprep.mubr.bf16.mxu0 %v2955
      %3859 = vmatmul.mubr.bf16.gmra.mrb[0].mxu0 %v2954
      %v3860 = vpop.f32.mrb[0].mxu0
      %v3861 = vadd.f32 %v3700, %v3860
      %v3862 = vpop.f32.mrb[0].mxu0
      %v3863 = vpop.f32.mrb[0].mxu0
      %v3864 = vadd.f32 %v3703, %v3863
      %v3865 = vpop.f32.mrb[0].mxu0
      %3866 = vmatprep.mubr.bf16.mxu0 %v2964
      %3867 = vmatmul.mubr.bf16.gmra.mrb[0].mxu0 %v2963
      %v3868 = vpop.f32.mrb[0].mxu0
      %v3869 = vadd.f32 %v3708, %v3868
      %v3870 = vpop.f32.mrb[0].mxu0
      %v3871 = vpop.f32.mrb[0].mxu0
      %v3872 = vadd.f32 %v3711, %v3871
      %v3873 = vpop.f32.mrb[0].mxu0
      %3874 = vdwg.mxu0
      %3875 = vmatprep.subr.bf16.mxu0 0
      %3876 = vmatpush1.bf16.msra.mxu0 %v3441
      %3877 = vmatprep.subr.bf16.mxu0 0
      %3878 = vmatpush1.bf16.msra.mxu0 %v3442
      %3879 = vmatprep.subr.bf16.mxu0 0
      %3880 = vmatpush1.bf16.msra.mxu0 %v3443
      %3881 = vmatprep.subr.bf16.mxu0 0
      %3882 = vmatpush1.bf16.msra.mxu0 %v3444
      %3883 = vmatprep.subr.bf16.mxu0 0
      %3884 = vmatpush1.bf16.msra.mxu0 %v3445
      %3885 = vmatprep.subr.bf16.mxu0 0
      %3886 = vmatpush1.bf16.msra.mxu0 %v3446
      %3887 = vmatprep.subr.bf16.mxu0 0
      %3888 = vmatpush1.bf16.msra.mxu0 %v3447
      %3889 = vmatprep.subr.bf16.mxu0 0
      %3890 = vmatpush1.bf16.msra.mxu0 %v3448
      %3891 = vmatprep.subr.bf16.mxu0 0
      %3892 = vmatpush1.bf16.msra.mxu0 %v3449
      %3893 = vmatprep.subr.bf16.mxu0 0
      %3894 = vmatpush1.bf16.msra.mxu0 %v3450
      %3895 = vmatprep.subr.bf16.mxu0 0
      %3896 = vmatpush1.bf16.msra.mxu0 %v3451
      %3897 = vmatprep.subr.bf16.mxu0 0
      %3898 = vmatpush1.bf16.msra.mxu0 %v3452
      %3899 = vmatprep.subr.bf16.mxu0 0
      %3900 = vmatpush1.bf16.msra.mxu0 %v3453
      %3901 = vmatprep.subr.bf16.mxu0 0
      %3902 = vmatpush1.bf16.msra.mxu0 %v3454
      %3903 = vmatprep.subr.bf16.mxu0 0
      %3904 = vmatpush1.bf16.msra.mxu0 %v3455
      %3905 = vmatprep.subr.bf16.mxu0 0
      %3906 = vmatpush1.bf16.msra.mxu0 %v3456
      %3907 = vmatprep.mubr.bf16.mxu0 %v2831
      %3908 = vmatmul.mubr.bf16.gmra.mrb[0].mxu0 %v2830
      %v3909 = vpop.f32.mrb[0].mxu0
      %v3910 = vadd.f32 %v3749, %v3909
      %v3911 = vpop.f32.mrb[0].mxu0
      %v3912 = vpop.f32.mrb[0].mxu0
      %v3913 = vadd.f32 %v3752, %v3912
      %v3914 = vpop.f32.mrb[0].mxu0
      %3915 = vmatprep.mubr.bf16.mxu0 %v2840
      %3916 = vmatmul.mubr.bf16.gmra.mrb[0].mxu0 %v2839
      %v3917 = vpop.f32.mrb[0].mxu0
      %v3918 = vadd.f32 %v3757, %v3917
      %v3919 = vpop.f32.mrb[0].mxu0
      %v3920 = vpop.f32.mrb[0].mxu0
      %v3921 = vadd.f32 %v3760, %v3920
      %v3922 = vpop.f32.mrb[0].mxu0
      %3923 = vmatprep.mubr.bf16.mxu0 %v2849
      %3924 = vmatmul.mubr.bf16.gmra.mrb[0].mxu0 %v2848
      %v3925 = vpop.f32.mrb[0].mxu0
      %v3926 = vadd.f32 %v3765, %v3925
      %v3927 = vpop.f32.mrb[0].mxu0
      %v3928 = vpop.f32.mrb[0].mxu0
      %v3929 = vadd.f32 %v3768, %v3928
      %v3930 = vpop.f32.mrb[0].mxu0
      %3931 = vmatprep.mubr.bf16.mxu0 %v2858
      %3932 = vmatmul.mubr.bf16.gmra.mrb[0].mxu0 %v2857
      %v3933 = vpop.f32.mrb[0].mxu0
      %v3934 = vadd.f32 %v3773, %v3933
      %v3935 = vpop.f32.mrb[0].mxu0
      %v3936 = vpop.f32.mrb[0].mxu0
      %v3937 = vadd.f32 %v3776, %v3936
      %v3938 = vpop.f32.mrb[0].mxu0
      %3939 = vmatprep.mubr.bf16.mxu0 %v2867
      %3940 = vmatmul.mubr.bf16.gmra.mrb[0].mxu0 %v2866
      %v3941 = vpop.f32.mrb[0].mxu0
      %v3942 = vadd.f32 %v3781, %v3941
      %v3943 = vpop.f32.mrb[0].mxu0
      %v3944 = vpop.f32.mrb[0].mxu0
      %v3945 = vadd.f32 %v3784, %v3944
      %v3946 = vpop.f32.mrb[0].mxu0
      %3947 = vmatprep.mubr.bf16.mxu0 %v2876
      %3948 = vmatmul.mubr.bf16.gmra.mrb[0].mxu0 %v2875
      %v3949 = vpop.f32.mrb[0].mxu0
      %v3950 = vadd.f32 %v3789, %v3949
      %v3951 = vpop.f32.mrb[0].mxu0
      %v3952 = vpop.f32.mrb[0].mxu0
      %v3953 = vadd.f32 %v3792, %v3952
      %v3954 = vpop.f32.mrb[0].mxu0
      %3955 = vmatprep.mubr.bf16.mxu0 %v2885
      %3956 = vmatmul.mubr.bf16.gmra.mrb[0].mxu0 %v2884
      %v3957 = vpop.f32.mrb[0].mxu0
      %v3958 = vadd.f32 %v3797, %v3957
      %v3959 = vpop.f32.mrb[0].mxu0
      %v3960 = vpop.f32.mrb[0].mxu0
      %v3961 = vadd.f32 %v3800, %v3960
      %v3962 = vpop.f32.mrb[0].mxu0
      %3963 = vmatprep.mubr.bf16.mxu0 %v2894
      %3964 = vmatmul.mubr.bf16.gmra.mrb[0].mxu0 %v2893
      %v3965 = vpop.f32.mrb[0].mxu0
      %v3966 = vadd.f32 %v3805, %v3965
      %v3967 = vpop.f32.mrb[0].mxu0
      %v3968 = vpop.f32.mrb[0].mxu0
      %v3969 = vadd.f32 %v3808, %v3968
      %v3970 = vpop.f32.mrb[0].mxu0
      %3971 = vmatprep.mubr.bf16.mxu0 %v2903
      %3972 = vmatmul.mubr.bf16.gmra.mrb[0].mxu0 %v2902
      %v3973 = vpop.f32.mrb[0].mxu0
      %v3974 = vadd.f32 %v3813, %v3973
      %v3975 = vpop.f32.mrb[0].mxu0
      %v3976 = vpop.f32.mrb[0].mxu0
      %v3977 = vadd.f32 %v3816, %v3976
      %v3978 = vpop.f32.mrb[0].mxu0
      %3979 = vmatprep.mubr.bf16.mxu0 %v2912
      %3980 = vmatmul.mubr.bf16.gmra.mrb[0].mxu0 %v2911
      %v3981 = vpop.f32.mrb[0].mxu0
      %v3982 = vadd.f32 %v3821, %v3981
      %v3983 = vpop.f32.mrb[0].mxu0
      %v3984 = vpop.f32.mrb[0].mxu0
      %v3985 = vadd.f32 %v3824, %v3984
      %v3986 = vpop.f32.mrb[0].mxu0
      %3987 = vmatprep.mubr.bf16.mxu0 %v2921
      %3988 = vmatmul.mubr.bf16.gmra.mrb[0].mxu0 %v2920
      %v3989 = vpop.f32.mrb[0].mxu0
      %v3990 = vadd.f32 %v3829, %v3989
      %v3991 = vpop.f32.mrb[0].mxu0
      %v3992 = vpop.f32.mrb[0].mxu0
      %v3993 = vadd.f32 %v3832, %v3992
      %v3994 = vpop.f32.mrb[0].mxu0
      %3995 = vmatprep.mubr.bf16.mxu0 %v2930
      %3996 = vmatmul.mubr.bf16.gmra.mrb[0].mxu0 %v2929
      %v3997 = vpop.f32.mrb[0].mxu0
      %v3998 = vadd.f32 %v3837, %v3997
      %v3999 = vpop.f32.mrb[0].mxu0
      %v4000 = vpop.f32.mrb[0].mxu0
      %v4001 = vadd.f32 %v3840, %v4000
      %v4002 = vpop.f32.mrb[0].mxu0
      %4003 = vmatprep.mubr.bf16.mxu0 %v2939
      %4004 = vmatmul.mubr.bf16.gmra.mrb[0].mxu0 %v2938
      %v4005 = vpop.f32.mrb[0].mxu0
      %v4006 = vadd.f32 %v3845, %v4005
      %v4007 = vpop.f32.mrb[0].mxu0
      %v4008 = vpop.f32.mrb[0].mxu0
      %v4009 = vadd.f32 %v3848, %v4008
      %v4010 = vpop.f32.mrb[0].mxu0
      %4011 = vmatprep.mubr.bf16.mxu0 %v2948
      %4012 = vmatmul.mubr.bf16.gmra.mrb[0].mxu0 %v2947
      %v4013 = vpop.f32.mrb[0].mxu0
      %v4014 = vadd.f32 %v3853, %v4013
      %v4015 = vpop.f32.mrb[0].mxu0
      %v4016 = vpop.f32.mrb[0].mxu0
      %v4017 = vadd.f32 %v3856, %v4016
      %v4018 = vpop.f32.mrb[0].mxu0
      %4019 = vmatprep.mubr.bf16.mxu0 %v2957
      %4020 = vmatmul.mubr.bf16.gmra.mrb[0].mxu0 %v2956
      %v4021 = vpop.f32.mrb[0].mxu0
      %v4022 = vadd.f32 %v3861, %v4021
      %v4023 = vpop.f32.mrb[0].mxu0
      %v4024 = vpop.f32.mrb[0].mxu0
      %v4025 = vadd.f32 %v3864, %v4024
      %v4026 = vpop.f32.mrb[0].mxu0
      %4027 = vmatprep.mubr.bf16.mxu0 %v2966
      %4028 = vmatmul.mubr.bf16.gmra.mrb[0].mxu0 %v2965
      %v4029 = vpop.f32.mrb[0].mxu0
      %v4030 = vadd.f32 %v3869, %v4029
      %v4031 = vpop.f32.mrb[0].mxu0
      %v4032 = vpop.f32.mrb[0].mxu0
      %v4033 = vadd.f32 %v3872, %v4032
      %v4034 = vpop.f32.mrb[0].mxu0
      %4035 = vdwg.mxu0
      %4036 = vmatprep.subr.bf16.mxu0 0
      %4037 = vmatpush1.bf16.msra.mxu0 %v3457
      %4038 = vmatprep.subr.bf16.mxu0 0
      %4039 = vmatpush1.bf16.msra.mxu0 %v3458
      %4040 = vmatprep.subr.bf16.mxu0 0
      %4041 = vmatpush1.bf16.msra.mxu0 %v3459
      %4042 = vmatprep.subr.bf16.mxu0 0
      %4043 = vmatpush1.bf16.msra.mxu0 %v3460
      %4044 = vmatprep.subr.bf16.mxu0 0
      %4045 = vmatpush1.bf16.msra.mxu0 %v3461
      %4046 = vmatprep.subr.bf16.mxu0 0
      %4047 = vmatpush1.bf16.msra.mxu0 %v3462
      %4048 = vmatprep.subr.bf16.mxu0 0
      %4049 = vmatpush1.bf16.msra.mxu0 %v3463
      %4050 = vmatprep.subr.bf16.mxu0 0
      %4051 = vmatpush1.bf16.msra.mxu0 %v3464
      %4052 = vmatprep.subr.bf16.mxu0 0
      %4053 = vmatpush1.bf16.msra.mxu0 %v3465
      %4054 = vmatprep.subr.bf16.mxu0 0
      %4055 = vmatpush1.bf16.msra.mxu0 %v3466
      %4056 = vmatprep.subr.bf16.mxu0 0
      %4057 = vmatpush1.bf16.msra.mxu0 %v3467
      %4058 = vmatprep.subr.bf16.mxu0 0
      %4059 = vmatpush1.bf16.msra.mxu0 %v3468
      %4060 = vmatprep.subr.bf16.mxu0 0
      %4061 = vmatpush1.bf16.msra.mxu0 %v3469
      %4062 = vmatprep.subr.bf16.mxu0 0
      %4063 = vmatpush1.bf16.msra.mxu0 %v3470
      %4064 = vmatprep.subr.bf16.mxu0 0
      %4065 = vmatpush1.bf16.msra.mxu0 %v3471
      %4066 = vmatprep.subr.bf16.mxu0 0
      %4067 = vmatpush1.bf16.msra.mxu0 %v3472
      %4068 = vmatprep.mubr.bf16.mxu0 %v2833
      %4069 = vmatmul.mubr.bf16.gmra.mrb[0].mxu0 %v2832
      %v4070 = vpop.f32.mrb[0].mxu0
      %v4071 = vadd.f32 %v3910, %v4070
      %v4072 = vpop.f32.mrb[0].mxu0
      %v4073 = vpop.f32.mrb[0].mxu0
      %v4074 = vadd.f32 %v3913, %v4073
      %v4075 = vpop.f32.mrb[0].mxu0
      %4076 = vmatprep.mubr.bf16.mxu0 %v2842
      %4077 = vmatmul.mubr.bf16.gmra.mrb[0].mxu0 %v2841
      %v4078 = vpop.f32.mrb[0].mxu0
      %v4079 = vadd.f32 %v3918, %v4078
      %v4080 = vpop.f32.mrb[0].mxu0
      %v4081 = vpop.f32.mrb[0].mxu0
      %v4082 = vadd.f32 %v3921, %v4081
      %v4083 = vpop.f32.mrb[0].mxu0
      %4084 = vmatprep.mubr.bf16.mxu0 %v2851
      %4085 = vmatmul.mubr.bf16.gmra.mrb[0].mxu0 %v2850
      %v4086 = vpop.f32.mrb[0].mxu0
      %v4087 = vadd.f32 %v3926, %v4086
      %v4088 = vpop.f32.mrb[0].mxu0
      %v4089 = vpop.f32.mrb[0].mxu0
      %v4090 = vadd.f32 %v3929, %v4089
      %v4091 = vpop.f32.mrb[0].mxu0
      %4092 = vmatprep.mubr.bf16.mxu0 %v2860
      %4093 = vmatmul.mubr.bf16.gmra.mrb[0].mxu0 %v2859
      %v4094 = vpop.f32.mrb[0].mxu0
      %v4095 = vadd.f32 %v3934, %v4094
      %v4096 = vpop.f32.mrb[0].mxu0
      %v4097 = vpop.f32.mrb[0].mxu0
      %v4098 = vadd.f32 %v3937, %v4097
      %v4099 = vpop.f32.mrb[0].mxu0
      %4100 = vmatprep.mubr.bf16.mxu0 %v2869
      %4101 = vmatmul.mubr.bf16.gmra.mrb[0].mxu0 %v2868
      %v4102 = vpop.f32.mrb[0].mxu0
      %v4103 = vadd.f32 %v3942, %v4102
      %v4104 = vpop.f32.mrb[0].mxu0
      %v4105 = vpop.f32.mrb[0].mxu0
      %v4106 = vadd.f32 %v3945, %v4105
      %v4107 = vpop.f32.mrb[0].mxu0
      %4108 = vmatprep.mubr.bf16.mxu0 %v2878
      %4109 = vmatmul.mubr.bf16.gmra.mrb[0].mxu0 %v2877
      %v4110 = vpop.f32.mrb[0].mxu0
      %v4111 = vadd.f32 %v3950, %v4110
      %v4112 = vpop.f32.mrb[0].mxu0
      %v4113 = vpop.f32.mrb[0].mxu0
      %v4114 = vadd.f32 %v3953, %v4113
      %v4115 = vpop.f32.mrb[0].mxu0
      %4116 = vmatprep.mubr.bf16.mxu0 %v2887
      %4117 = vmatmul.mubr.bf16.gmra.mrb[0].mxu0 %v2886
      %v4118 = vpop.f32.mrb[0].mxu0
      %v4119 = vadd.f32 %v3958, %v4118
      %v4120 = vpop.f32.mrb[0].mxu0
      %v4121 = vpop.f32.mrb[0].mxu0
      %v4122 = vadd.f32 %v3961, %v4121
      %v4123 = vpop.f32.mrb[0].mxu0
      %4124 = vmatprep.mubr.bf16.mxu0 %v2896
      %4125 = vmatmul.mubr.bf16.gmra.mrb[0].mxu0 %v2895
      %v4126 = vpop.f32.mrb[0].mxu0
      %v4127 = vadd.f32 %v3966, %v4126
      %v4128 = vpop.f32.mrb[0].mxu0
      %v4129 = vpop.f32.mrb[0].mxu0
      %v4130 = vadd.f32 %v3969, %v4129
      %v4131 = vpop.f32.mrb[0].mxu0
      %4132 = vmatprep.mubr.bf16.mxu0 %v2905
      %4133 = vmatmul.mubr.bf16.gmra.mrb[0].mxu0 %v2904
      %v4134 = vpop.f32.mrb[0].mxu0
      %v4135 = vadd.f32 %v3974, %v4134
      %v4136 = vpop.f32.mrb[0].mxu0
      %v4137 = vpop.f32.mrb[0].mxu0
      %v4138 = vadd.f32 %v3977, %v4137
      %v4139 = vpop.f32.mrb[0].mxu0
      %4140 = vmatprep.mubr.bf16.mxu0 %v2914
      %4141 = vmatmul.mubr.bf16.gmra.mrb[0].mxu0 %v2913
      %v4142 = vpop.f32.mrb[0].mxu0
      %v4143 = vadd.f32 %v3982, %v4142
      %v4144 = vpop.f32.mrb[0].mxu0
      %v4145 = vpop.f32.mrb[0].mxu0
      %v4146 = vadd.f32 %v3985, %v4145
      %v4147 = vpop.f32.mrb[0].mxu0
      %4148 = vmatprep.mubr.bf16.mxu0 %v2923
      %4149 = vmatmul.mubr.bf16.gmra.mrb[0].mxu0 %v2922
      %v4150 = vpop.f32.mrb[0].mxu0
      %v4151 = vadd.f32 %v3990, %v4150
      %v4152 = vpop.f32.mrb[0].mxu0
      %v4153 = vpop.f32.mrb[0].mxu0
      %v4154 = vadd.f32 %v3993, %v4153
      %v4155 = vpop.f32.mrb[0].mxu0
      %4156 = vmatprep.mubr.bf16.mxu0 %v2932
      %4157 = vmatmul.mubr.bf16.gmra.mrb[0].mxu0 %v2931
      %v4158 = vpop.f32.mrb[0].mxu0
      %v4159 = vadd.f32 %v3998, %v4158
      %v4160 = vpop.f32.mrb[0].mxu0
      %v4161 = vpop.f32.mrb[0].mxu0
      %v4162 = vadd.f32 %v4001, %v4161
      %v4163 = vpop.f32.mrb[0].mxu0
      %4164 = vmatprep.mubr.bf16.mxu0 %v2941
      %4165 = vmatmul.mubr.bf16.gmra.mrb[0].mxu0 %v2940
      %v4166 = vpop.f32.mrb[0].mxu0
      %v4167 = vadd.f32 %v4006, %v4166
      %v4168 = vpop.f32.mrb[0].mxu0
      %v4169 = vpop.f32.mrb[0].mxu0
      %v4170 = vadd.f32 %v4009, %v4169
      %v4171 = vpop.f32.mrb[0].mxu0
      %4172 = vmatprep.mubr.bf16.mxu0 %v2950
      %4173 = vmatmul.mubr.bf16.gmra.mrb[0].mxu0 %v2949
      %v4174 = vpop.f32.mrb[0].mxu0
      %v4175 = vadd.f32 %v4014, %v4174
      %v4176 = vpop.f32.mrb[0].mxu0
      %v4177 = vpop.f32.mrb[0].mxu0
      %v4178 = vadd.f32 %v4017, %v4177
      %v4179 = vpop.f32.mrb[0].mxu0
      %4180 = vmatprep.mubr.bf16.mxu0 %v2959
      %4181 = vmatmul.mubr.bf16.gmra.mrb[0].mxu0 %v2958
      %v4182 = vpop.f32.mrb[0].mxu0
      %v4183 = vadd.f32 %v4022, %v4182
      %v4184 = vpop.f32.mrb[0].mxu0
      %v4185 = vpop.f32.mrb[0].mxu0
      %v4186 = vadd.f32 %v4025, %v4185
      %v4187 = vpop.f32.mrb[0].mxu0
      %4188 = vmatprep.mubr.bf16.mxu0 %v2968
      %4189 = vmatmul.mubr.bf16.gmra.mrb[0].mxu0 %v2967
      %v4190 = vpop.f32.mrb[0].mxu0
      %v4191 = vadd.f32 %v4030, %v4190
      %v4192 = vpop.f32.mrb[0].mxu0
      %v4193 = vpop.f32.mrb[0].mxu0
      %v4194 = vadd.f32 %v4033, %v4193
      %v4195 = vpop.f32.mrb[0].mxu0
      %4196 = vdwg.mxu0
      %4197 = vmatprep.subr.bf16.mxu0 0
      %4198 = vmatpush1.bf16.msra.mxu0 %v3473
      %4199 = vmatprep.subr.bf16.mxu0 0
      %4200 = vmatpush1.bf16.msra.mxu0 %v3474
      %4201 = vmatprep.subr.bf16.mxu0 0
      %4202 = vmatpush1.bf16.msra.mxu0 %v3475
      %4203 = vmatprep.subr.bf16.mxu0 0
      %4204 = vmatpush1.bf16.msra.mxu0 %v3476
      %4205 = vmatprep.subr.bf16.mxu0 0
      %4206 = vmatpush1.bf16.msra.mxu0 %v3477
      %4207 = vmatprep.subr.bf16.mxu0 0
      %4208 = vmatpush1.bf16.msra.mxu0 %v3478
      %4209 = vmatprep.subr.bf16.mxu0 0
      %4210 = vmatpush1.bf16.msra.mxu0 %v3479
      %4211 = vmatprep.subr.bf16.mxu0 0
      %4212 = vmatpush1.bf16.msra.mxu0 %v3480
      %4213 = vmatprep.subr.bf16.mxu0 0
      %4214 = vmatpush1.bf16.msra.mxu0 0
      %4215 = vmatprep.subr.bf16.mxu0 0
      %4216 = vmatpush1.bf16.msra.mxu0 0
      %4217 = vmatprep.subr.bf16.mxu0 0
      %4218 = vmatpush1.bf16.msra.mxu0 0
      %4219 = vmatprep.subr.bf16.mxu0 0
      %4220 = vmatpush1.bf16.msra.mxu0 0
      %4221 = vmatprep.subr.bf16.mxu0 0
      %4222 = vmatpush1.bf16.msra.mxu0 0
      %4223 = vmatprep.subr.bf16.mxu0 0
      %4224 = vmatpush1.bf16.msra.mxu0 0
      %4225 = vmatprep.subr.bf16.mxu0 0
      %4226 = vmatpush1.bf16.msra.mxu0 0
      %4227 = vmatprep.subr.bf16.mxu0 0
      %4228 = vmatpush1.bf16.msra.mxu0 0
      %4229 = vmatprep.mubr.bf16.mxu0 0
      %4230 = vmatmul.mubr.bf16.gmra.mrb[0].mxu0 %v2834
      %v4231 = vpop.f32.mrb[0].mxu0
      %v4232 = vadd.f32 %v4071, %v4231
      %v4233 = vpop.f32.mrb[0].mxu0
      %v4234 = vpop.f32.mrb[0].mxu0
      %v4235 = vadd.f32 %v4074, %v4234
      %v4236 = vpop.f32.mrb[0].mxu0
      %4237 = vmatprep.mubr.bf16.mxu0 0
      %4238 = vmatmul.mubr.bf16.gmra.mrb[0].mxu0 %v2843
      %v4239 = vpop.f32.mrb[0].mxu0
      %v4240 = vadd.f32 %v4079, %v4239
      %v4241 = vpop.f32.mrb[0].mxu0
      %v4242 = vpop.f32.mrb[0].mxu0
      %v4243 = vadd.f32 %v4082, %v4242
      %v4244 = vpop.f32.mrb[0].mxu0
      %4245 = vmatprep.mubr.bf16.mxu0 0
      %4246 = vmatmul.mubr.bf16.gmra.mrb[0].mxu0 %v2852
      %v4247 = vpop.f32.mrb[0].mxu0
      %v4248 = vadd.f32 %v4087, %v4247
      %v4249 = vpop.f32.mrb[0].mxu0
      %v4250 = vpop.f32.mrb[0].mxu0
      %v4251 = vadd.f32 %v4090, %v4250
      %v4252 = vpop.f32.mrb[0].mxu0
      %4253 = vmatprep.mubr.bf16.mxu0 0
      %4254 = vmatmul.mubr.bf16.gmra.mrb[0].mxu0 %v2861
      %v4255 = vpop.f32.mrb[0].mxu0
      %v4256 = vadd.f32 %v4095, %v4255
      %v4257 = vpop.f32.mrb[0].mxu0
      %v4258 = vpop.f32.mrb[0].mxu0
      %v4259 = vadd.f32 %v4098, %v4258
      %v4260 = vpop.f32.mrb[0].mxu0
      %4261 = vmatprep.mubr.bf16.mxu0 0
      %4262 = vmatmul.mubr.bf16.gmra.mrb[0].mxu0 %v2870
      %v4263 = vpop.f32.mrb[0].mxu0
      %v4264 = vadd.f32 %v4103, %v4263
      %v4265 = vpop.f32.mrb[0].mxu0
      %v4266 = vpop.f32.mrb[0].mxu0
      %v4267 = vadd.f32 %v4106, %v4266
      %v4268 = vpop.f32.mrb[0].mxu0
      %4269 = vmatprep.mubr.bf16.mxu0 0
      %4270 = vmatmul.mubr.bf16.gmra.mrb[0].mxu0 %v2879
      %v4271 = vpop.f32.mrb[0].mxu0
      %v4272 = vadd.f32 %v4111, %v4271
      %v4273 = vpop.f32.mrb[0].mxu0
      %v4274 = vpop.f32.mrb[0].mxu0
      %v4275 = vadd.f32 %v4114, %v4274
      %v4276 = vpop.f32.mrb[0].mxu0
      %4277 = vmatprep.mubr.bf16.mxu0 0
      %4278 = vmatmul.mubr.bf16.gmra.mrb[0].mxu0 %v2888
      %v4279 = vpop.f32.mrb[0].mxu0
      %v4280 = vadd.f32 %v4119, %v4279
      %v4281 = vpop.f32.mrb[0].mxu0
      %v4282 = vpop.f32.mrb[0].mxu0
      %v4283 = vadd.f32 %v4122, %v4282
      %v4284 = vpop.f32.mrb[0].mxu0
      %4285 = vmatprep.mubr.bf16.mxu0 0
      %4286 = vmatmul.mubr.bf16.gmra.mrb[0].mxu0 %v2897
      %v4287 = vpop.f32.mrb[0].mxu0
      %v4288 = vadd.f32 %v4127, %v4287
      %v4289 = vpop.f32.mrb[0].mxu0
      %v4290 = vpop.f32.mrb[0].mxu0
      %v4291 = vadd.f32 %v4130, %v4290
      %v4292 = vpop.f32.mrb[0].mxu0
      %4293 = vmatprep.mubr.bf16.mxu0 0
      %4294 = vmatmul.mubr.bf16.gmra.mrb[0].mxu0 %v2906
      %v4295 = vpop.f32.mrb[0].mxu0
      %v4296 = vadd.f32 %v4135, %v4295
      %v4297 = vpop.f32.mrb[0].mxu0
      %v4298 = vpop.f32.mrb[0].mxu0
      %v4299 = vadd.f32 %v4138, %v4298
      %v4300 = vpop.f32.mrb[0].mxu0
      %4301 = vmatprep.mubr.bf16.mxu0 0
      %4302 = vmatmul.mubr.bf16.gmra.mrb[0].mxu0 %v2915
      %v4303 = vpop.f32.mrb[0].mxu0
      %v4304 = vadd.f32 %v4143, %v4303
      %v4305 = vpop.f32.mrb[0].mxu0
      %v4306 = vpop.f32.mrb[0].mxu0
      %v4307 = vadd.f32 %v4146, %v4306
      %v4308 = vpop.f32.mrb[0].mxu0
      %4309 = vmatprep.mubr.bf16.mxu0 0
      %4310 = vmatmul.mubr.bf16.gmra.mrb[0].mxu0 %v2924
      %v4311 = vpop.f32.mrb[0].mxu0
      %v4312 = vadd.f32 %v4151, %v4311
      %v4313 = vpop.f32.mrb[0].mxu0
      %v4314 = vpop.f32.mrb[0].mxu0
      %v4315 = vadd.f32 %v4154, %v4314
      %v4316 = vpop.f32.mrb[0].mxu0
      %4317 = vmatprep.mubr.bf16.mxu0 0
      %4318 = vmatmul.mubr.bf16.gmra.mrb[0].mxu0 %v2933
      %v4319 = vpop.f32.mrb[0].mxu0
      %v4320 = vadd.f32 %v4159, %v4319
      %v4321 = vpop.f32.mrb[0].mxu0
      %v4322 = vpop.f32.mrb[0].mxu0
      %v4323 = vadd.f32 %v4162, %v4322
      %v4324 = vpop.f32.mrb[0].mxu0
      %4325 = vmatprep.mubr.bf16.mxu0 0
      %4326 = vmatmul.mubr.bf16.gmra.mrb[0].mxu0 %v2942
      %v4327 = vpop.f32.mrb[0].mxu0
      %v4328 = vadd.f32 %v4167, %v4327
      %v4329 = vpop.f32.mrb[0].mxu0
      %v4330 = vpop.f32.mrb[0].mxu0
      %v4331 = vadd.f32 %v4170, %v4330
      %v4332 = vpop.f32.mrb[0].mxu0
      %4333 = vmatprep.mubr.bf16.mxu0 0
      %4334 = vmatmul.mubr.bf16.gmra.mrb[0].mxu0 %v2951
      %v4335 = vpop.f32.mrb[0].mxu0
      %v4336 = vadd.f32 %v4175, %v4335
      %v4337 = vpop.f32.mrb[0].mxu0
      %v4338 = vpop.f32.mrb[0].mxu0
      %v4339 = vadd.f32 %v4178, %v4338
      %v4340 = vpop.f32.mrb[0].mxu0
      %4341 = vmatprep.mubr.bf16.mxu0 0
      %4342 = vmatmul.mubr.bf16.gmra.mrb[0].mxu0 %v2960
      %v4343 = vpop.f32.mrb[0].mxu0
      %v4344 = vadd.f32 %v4183, %v4343
      %v4345 = vpop.f32.mrb[0].mxu0
      %v4346 = vpop.f32.mrb[0].mxu0
      %v4347 = vadd.f32 %v4186, %v4346
      %v4348 = vpop.f32.mrb[0].mxu0
      %4349 = vmatprep.mubr.bf16.mxu0 0
      %4350 = vmatmul.mubr.bf16.gmra.mrb[0].mxu0 %v2969
      %v4351 = vpop.f32.mrb[0].mxu0
      %v4352 = vadd.f32 %v4191, %v4351
      %v4353 = vpop.f32.mrb[0].mxu0
      %v4354 = vpop.f32.mrb[0].mxu0
      %v4355 = vadd.f32 %v4194, %v4354
      %v4356 = vpop.f32.mrb[0].mxu0
      %4357 = vdwg.mxu0
      %v4358 = vmul.f32 %v4232, 0.5
      %v4359 = vmul.f32 %v4235, 0.5
      %v4360 = vmul.f32 %v4240, 0.5
      %v4361 = vmul.f32 %v4243, 0.5
      %v4362 = vmul.f32 %v4248, 0.5
      %v4363 = vmul.f32 %v4251, 0.5
      %v4364 = vmul.f32 %v4256, 0.5
      %v4365 = vmul.f32 %v4259, 0.5
      %v4366 = vmul.f32 %v4264, 0.5
      %v4367 = vmul.f32 %v4267, 0.5
      %v4368 = vmul.f32 %v4272, 0.5
      %v4369 = vmul.f32 %v4275, 0.5
      %v4370 = vmul.f32 %v4280, 0.5
      %v4371 = vmul.f32 %v4283, 0.5
      %v4372 = vmul.f32 %v4288, 0.5
      %v4373 = vmul.f32 %v4291, 0.5
      %v4374 = vmul.f32 %v4296, 0.5
      %v4375 = vmul.f32 %v4299, 0.5
      %v4376 = vmul.f32 %v4304, 0.5
      %v4377 = vmul.f32 %v4307, 0.5
      %v4378 = vmul.f32 %v4312, 0.5
      %v4379 = vmul.f32 %v4315, 0.5
      %v4380 = vmul.f32 %v4320, 0.5
      %v4381 = vmul.f32 %v4323, 0.5
      %v4382 = vmul.f32 %v4328, 0.5
      %v4383 = vmul.f32 %v4331, 0.5
      %v4384 = vmul.f32 %v4336, 0.5
      %v4385 = vmul.f32 %v4339, 0.5
      %v4386 = vmul.f32 %v4344, 0.5
      %v4387 = vmul.f32 %v4347, 0.5
      %v4388 = vmul.f32 %v4352, 0.5
      %v4389 = vmul.f32 %v4355, 0.5
      %v4390 = vtanh.pop %v4358
      %v4391 = vtanh.pop %v4359
      %v4392 = vtanh.pop %v4360
      %v4393 = vtanh.pop %v4361
      %v4394 = vtanh.pop %v4362
      %v4395 = vtanh.pop %v4363
      %v4396 = vtanh.pop %v4364
      %v4397 = vtanh.pop %v4365
      %v4398 = vtanh.pop %v4366
      %v4399 = vtanh.pop %v4367
      %v4400 = vtanh.pop %v4368
      %v4401 = vtanh.pop %v4369
      %v4402 = vtanh.pop %v4370
      %v4403 = vtanh.pop %v4371
      %v4404 = vtanh.pop %v4372
      %v4405 = vtanh.pop %v4373
      %v4406 = vtanh.pop %v4374
      %v4407 = vtanh.pop %v4375
      %v4408 = vtanh.pop %v4376
      %v4409 = vtanh.pop %v4377
      %v4410 = vtanh.pop %v4378
      %v4411 = vtanh.pop %v4379
      %v4412 = vtanh.pop %v4380
      %v4413 = vtanh.pop %v4381
      %v4414 = vtanh.pop %v4382
      %v4415 = vtanh.pop %v4383
      %v4416 = vtanh.pop %v4384
      %v4417 = vtanh.pop %v4385
      %v4418 = vtanh.pop %v4386
      %v4419 = vtanh.pop %v4387
      %v4420 = vtanh.pop %v4388
      %v4421 = vtanh.pop %v4389
      %v4422 = vadd.f32 %v4390, 1.0
      %v4423 = vadd.f32 %v4391, 1.0
      %v4424 = vadd.f32 %v4392, 1.0
      %v4425 = vadd.f32 %v4393, 1.0
      %v4426 = vadd.f32 %v4394, 1.0
      %v4427 = vadd.f32 %v4395, 1.0
      %v4428 = vadd.f32 %v4396, 1.0
      %v4429 = vadd.f32 %v4397, 1.0
      %v4430 = vadd.f32 %v4398, 1.0
      %v4431 = vadd.f32 %v4399, 1.0
      %v4432 = vadd.f32 %v4400, 1.0
      %v4433 = vadd.f32 %v4401, 1.0
      %v4434 = vadd.f32 %v4402, 1.0
      %v4435 = vadd.f32 %v4403, 1.0
      %v4436 = vadd.f32 %v4404, 1.0
      %v4437 = vadd.f32 %v4405, 1.0
      %v4438 = vadd.f32 %v4406, 1.0
      %v4439 = vadd.f32 %v4407, 1.0
      %v4440 = vadd.f32 %v4408, 1.0
      %v4441 = vadd.f32 %v4409, 1.0
      %v4442 = vadd.f32 %v4410, 1.0
      %v4443 = vadd.f32 %v4411, 1.0
      %v4444 = vadd.f32 %v4412, 1.0
      %v4445 = vadd.f32 %v4413, 1.0
      %v4446 = vadd.f32 %v4414, 1.0
      %v4447 = vadd.f32 %v4415, 1.0
      %v4448 = vadd.f32 %v4416, 1.0
      %v4449 = vadd.f32 %v4417, 1.0
      %v4450 = vadd.f32 %v4418, 1.0
      %v4451 = vadd.f32 %v4419, 1.0
      %v4452 = vadd.f32 %v4420, 1.0
      %v4453 = vadd.f32 %v4421, 1.0
      %v4454 = vmul.f32 %v4358, %v4422
      %v4455 = vmul.f32 %v4359, %v4423
      %v4456 = vmul.f32 %v4360, %v4424
      %v4457 = vmul.f32 %v4361, %v4425
      %v4458 = vmul.f32 %v4362, %v4426
      %v4459 = vmul.f32 %v4363, %v4427
      %v4460 = vmul.f32 %v4364, %v4428
      %v4461 = vmul.f32 %v4365, %v4429
      %v4462 = vmul.f32 %v4366, %v4430
      %v4463 = vmul.f32 %v4367, %v4431
      %v4464 = vmul.f32 %v4368, %v4432
      %v4465 = vmul.f32 %v4369, %v4433
      %v4466 = vmul.f32 %v4370, %v4434
      %v4467 = vmul.f32 %v4371, %v4435
      %v4468 = vmul.f32 %v4372, %v4436
      %v4469 = vmul.f32 %v4373, %v4437
      %v4470 = vmul.f32 %v4374, %v4438
      %v4471 = vmul.f32 %v4375, %v4439
      %v4472 = vmul.f32 %v4376, %v4440
      %v4473 = vmul.f32 %v4377, %v4441
      %v4474 = vmul.f32 %v4378, %v4442
      %v4475 = vmul.f32 %v4379, %v4443
      %v4476 = vmul.f32 %v4380, %v4444
      %v4477 = vmul.f32 %v4381, %v4445
      %v4478 = vmul.f32 %v4382, %v4446
      %v4479 = vmul.f32 %v4383, %v4447
      %v4480 = vmul.f32 %v4384, %v4448
      %v4481 = vmul.f32 %v4385, %v4449
      %v4482 = vmul.f32 %v4386, %v4450
      %v4483 = vmul.f32 %v4387, %v4451
      %v4484 = vmul.f32 %v4388, %v4452
      %v4485 = vmul.f32 %v4389, %v4453
      %v4486 = vadd.f32 %v956, %v4454
      %v4487 = vadd.f32 %v958, %v4455
      %v4488 = vadd.f32 %v960, %v4456
      %v4489 = vadd.f32 %v962, %v4457
      %v4490 = vadd.f32 %v964, %v4458
      %v4491 = vadd.f32 %v966, %v4459
      %v4492 = vadd.f32 %v968, %v4460
      %v4493 = vadd.f32 %v970, %v4461
      %v4494 = vadd.f32 %v972, %v4462
      %v4495 = vadd.f32 %v974, %v4463
      %v4496 = vadd.f32 %v976, %v4464
      %v4497 = vadd.f32 %v978, %v4465
      %v4498 = vadd.f32 %v980, %v4466
      %v4499 = vadd.f32 %v982, %v4467
      %v4500 = vadd.f32 %v984, %v4468
      %v4501 = vadd.f32 %v986, %v4469
      %v4502 = vadd.f32 %v988, %v4470
      %v4503 = vadd.f32 %v990, %v4471
      %v4504 = vadd.f32 %v992, %v4472
      %v4505 = vadd.f32 %v994, %v4473
      %v4506 = vadd.f32 %v996, %v4474
      %v4507 = vadd.f32 %v998, %v4475
      %v4508 = vadd.f32 %v1000, %v4476
      %v4509 = vadd.f32 %v1002, %v4477
      %v4510 = vadd.f32 %v1004, %v4478
      %v4511 = vadd.f32 %v1006, %v4479
      %v4512 = vadd.f32 %v1008, %v4480
      %v4513 = vadd.f32 %v1010, %v4481
      %v4514 = vadd.f32 %v1012, %v4482
      %v4515 = vadd.f32 %v1014, %v4483
      %v4516 = vadd.f32 %v1016, %v4484
      %v4517 = vadd.f32 %v1018, %v4485
      %v4518 = vpack.c.bf16 %v4487, %v4486
      %v4519 = vpack.c.bf16 %v4489, %v4488
      %v4520 = vpack.c.bf16 %v4491, %v4490
      %v4521 = vpack.c.bf16 %v4493, %v4492
      %v4522 = vpack.c.bf16 %v4495, %v4494
      %v4523 = vpack.c.bf16 %v4497, %v4496
      %v4524 = vpack.c.bf16 %v4499, %v4498
      %v4525 = vpack.c.bf16 %v4501, %v4500
      %v4526 = vpack.c.bf16 %v4503, %v4502
      %v4527 = vpack.c.bf16 %v4505, %v4504
      %v4528 = vpack.c.bf16 %v4507, %v4506
      %v4529 = vpack.c.bf16 %v4509, %v4508
      %v4530 = vpack.c.bf16 %v4511, %v4510
      %v4531 = vpack.c.bf16 %v4513, %v4512
      %v4532 = vpack.c.bf16 %v4515, %v4514
      %v4533 = vpack.c.bf16 %v4517, %v4516
      %s4534 = scalar_lea.vmem %s3, 64
      %v4535 = vld [vmem:[%s4534] sm:$0xf]
      %v4536 = vld [vmem:[%s4534 + $0x4] sm:$0xf]
      %v4537 = vld [vmem:[%s4534 + $0x8] sm:$0xf]
      %v4538 = vld [vmem:[%s4534 + $0xc] sm:$0xf]
      %v4539 = vld [vmem:[%s4534 + $0x10] sm:$0xf]
      %v4540 = vld [vmem:[%s4534 + $0x14] sm:$0xf]
      %v4541 = vld [vmem:[%s4534 + $0x18] sm:$0xf]
      %v4542 = vld [vmem:[%s4534 + $0x1c] sm:$0xf]
      %v4543 = vld [vmem:[%s4534 + $0x20] sm:$0xf]
      %v4544 = vld [vmem:[%s4534 + $0x24] sm:$0xf]
      %v4545 = vld [vmem:[%s4534 + $0x28] sm:$0xf]
      %v4546 = vld [vmem:[%s4534 + $0x2c] sm:$0xf]
      %v4547 = vld [vmem:[%s4534 + $0x30] sm:$0xf]
      %v4548 = vld [vmem:[%s4534 + $0x34] sm:$0xf]
      %v4549 = vld [vmem:[%s4534 + $0x38] sm:$0xf]
      %v4550 = vld [vmem:[%s4534 + $0x3c] sm:$0xf]
      %s4551 = scalar_lea.vmem %s4, 1
      %v4552 = vld [vmem:[%s4551] sm:$0x1]
      %v4554 = vlaneseq
      %v4555 = vshrl.u32 %v4554, 7
      %v4556 = vsub.s32 0, %v4555
      %v4557 = vrot.slane %v4552, %v4556
      %v4575 = vunpack.c.l.b16 %v4535
      %v4576 = vunpack.c.l.b16 %v4536
      %v4577 = vunpack.c.l.b16 %v4537
      %v4578 = vunpack.c.l.b16 %v4538
      %v4579 = vunpack.c.l.b16 %v4539
      %v4580 = vunpack.c.l.b16 %v4540
      %v4581 = vunpack.c.l.b16 %v4541
      %v4582 = vunpack.c.l.b16 %v4542
      %v4583 = vunpack.c.l.b16 %v4543
      %v4584 = vunpack.c.l.b16 %v4544
      %v4585 = vunpack.c.l.b16 %v4545
      %v4586 = vunpack.c.l.b16 %v4546
      %v4587 = vunpack.c.l.b16 %v4547
      %v4588 = vunpack.c.l.b16 %v4548
      %v4589 = vunpack.c.l.b16 %v4549
      %v4590 = vunpack.c.l.b16 %v4550
      %v4591 = vpack.c.b16 %v4576, %v4575
      %v4592 = vpack.c.b16 %v4578, %v4577
      %v4593 = vpack.c.b16 %v4580, %v4579
      %v4594 = vpack.c.b16 %v4582, %v4581
      %v4595 = vpack.c.b16 %v4584, %v4583
      %v4596 = vpack.c.b16 %v4586, %v4585
      %v4597 = vpack.c.b16 %v4588, %v4587
      %v4598 = vpack.c.b16 %v4590, %v4589
      %4607 = vmatprep.subr.bf16.mxu0 0
      %4608 = vmatpush1.bf16.msra.mxu0 %v4591
      %4609 = vmatprep.subr.bf16.mxu0 0
      %4610 = vmatpush1.bf16.msra.mxu0 %v4592
      %4611 = vmatprep.subr.bf16.mxu0 0
      %4612 = vmatpush1.bf16.msra.mxu0 %v4593
      %4613 = vmatprep.subr.bf16.mxu0 0
      %4614 = vmatpush1.bf16.msra.mxu0 %v4594
      %4615 = vmatprep.subr.bf16.mxu0 0
      %4616 = vmatpush1.bf16.msra.mxu0 %v4595
      %4617 = vmatprep.subr.bf16.mxu0 0
      %4618 = vmatpush1.bf16.msra.mxu0 %v4596
      %4619 = vmatprep.subr.bf16.mxu0 0
      %4620 = vmatpush1.bf16.msra.mxu0 %v4597
      %4621 = vmatprep.subr.bf16.mxu0 0
      %4622 = vmatpush1.bf16.msra.mxu0 %v4598
      %4623 = vmatprep.subr.bf16.mxu0 0
      %4624 = vmatpush1.bf16.msra.mxu0 0
      %4625 = vmatprep.subr.bf16.mxu0 0
      %4626 = vmatpush1.bf16.msra.mxu0 0
      %4627 = vmatprep.subr.bf16.mxu0 0
      %4628 = vmatpush1.bf16.msra.mxu0 0
      %4629 = vmatprep.subr.bf16.mxu0 0
      %4630 = vmatpush1.bf16.msra.mxu0 0
      %4631 = vmatprep.subr.bf16.mxu0 0
      %4632 = vmatpush1.bf16.msra.mxu0 0
      %4633 = vmatprep.subr.bf16.mxu0 0
      %4634 = vmatpush1.bf16.msra.mxu0 0
      %4635 = vmatprep.subr.bf16.mxu0 0
      %4636 = vmatpush1.bf16.msra.mxu0 0
      %4637 = vmatprep.subr.bf16.mxu0 0
      %4638 = vmatpush1.bf16.msra.mxu0 0
      %4639 = vmatprep.mubr.bf16.mxu0 0
      %4640 = vmatmul.mubr.bf16.gmra.mrb[0].mxu0 %v4518
      %v4641 = vpop.f32.mrb[0].mxu0
      %v4642 = vadd.f32 %v4557, %v4641
      %v4643 = vpop.f32.mrb[0].mxu0
      %v4644 = vpop.f32.mrb[0].mxu0
      %v4645 = vadd.f32 %v4557, %v4644
      %v4646 = vpop.f32.mrb[0].mxu0
      %4647 = vmatprep.mubr.bf16.mxu0 0
      %4648 = vmatmul.mubr.bf16.gmra.mrb[0].mxu0 %v4519
      %v4649 = vpop.f32.mrb[0].mxu0
      %v4650 = vadd.f32 %v4557, %v4649
      %v4651 = vpop.f32.mrb[0].mxu0
      %v4652 = vpop.f32.mrb[0].mxu0
      %v4653 = vadd.f32 %v4557, %v4652
      %v4654 = vpop.f32.mrb[0].mxu0
      %4655 = vmatprep.mubr.bf16.mxu0 0
      %4656 = vmatmul.mubr.bf16.gmra.mrb[0].mxu0 %v4520
      %v4657 = vpop.f32.mrb[0].mxu0
      %v4658 = vadd.f32 %v4557, %v4657
      %v4659 = vpop.f32.mrb[0].mxu0
      %v4660 = vpop.f32.mrb[0].mxu0
      %v4661 = vadd.f32 %v4557, %v4660
      %v4662 = vpop.f32.mrb[0].mxu0
      %4663 = vmatprep.mubr.bf16.mxu0 0
      %4664 = vmatmul.mubr.bf16.gmra.mrb[0].mxu0 %v4521
      %v4665 = vpop.f32.mrb[0].mxu0
      %v4666 = vadd.f32 %v4557, %v4665
      %v4667 = vpop.f32.mrb[0].mxu0
      %v4668 = vpop.f32.mrb[0].mxu0
      %v4669 = vadd.f32 %v4557, %v4668
      %v4670 = vpop.f32.mrb[0].mxu0
      %4671 = vmatprep.mubr.bf16.mxu0 0
      %4672 = vmatmul.mubr.bf16.gmra.mrb[0].mxu0 %v4522
      %v4673 = vpop.f32.mrb[0].mxu0
      %v4674 = vadd.f32 %v4557, %v4673
      %v4675 = vpop.f32.mrb[0].mxu0
      %v4676 = vpop.f32.mrb[0].mxu0
      %v4677 = vadd.f32 %v4557, %v4676
      %v4678 = vpop.f32.mrb[0].mxu0
      %4679 = vmatprep.mubr.bf16.mxu0 0
      %4680 = vmatmul.mubr.bf16.gmra.mrb[0].mxu0 %v4523
      %v4681 = vpop.f32.mrb[0].mxu0
      %v4682 = vadd.f32 %v4557, %v4681
      %v4683 = vpop.f32.mrb[0].mxu0
      %v4684 = vpop.f32.mrb[0].mxu0
      %v4685 = vadd.f32 %v4557, %v4684
      %v4686 = vpop.f32.mrb[0].mxu0
      %4687 = vmatprep.mubr.bf16.mxu0 0
      %4688 = vmatmul.mubr.bf16.gmra.mrb[0].mxu0 %v4524
      %v4689 = vpop.f32.mrb[0].mxu0
      %v4690 = vadd.f32 %v4557, %v4689
      %v4691 = vpop.f32.mrb[0].mxu0
      %v4692 = vpop.f32.mrb[0].mxu0
      %v4693 = vadd.f32 %v4557, %v4692
      %v4694 = vpop.f32.mrb[0].mxu0
      %4695 = vmatprep.mubr.bf16.mxu0 0
      %4696 = vmatmul.mubr.bf16.gmra.mrb[0].mxu0 %v4525
      %v4697 = vpop.f32.mrb[0].mxu0
      %v4698 = vadd.f32 %v4557, %v4697
      %v4699 = vpop.f32.mrb[0].mxu0
      %v4700 = vpop.f32.mrb[0].mxu0
      %v4701 = vadd.f32 %v4557, %v4700
      %v4702 = vpop.f32.mrb[0].mxu0
      %4703 = vmatprep.mubr.bf16.mxu0 0
      %4704 = vmatmul.mubr.bf16.gmra.mrb[0].mxu0 %v4526
      %v4705 = vpop.f32.mrb[0].mxu0
      %v4706 = vadd.f32 %v4557, %v4705
      %v4707 = vpop.f32.mrb[0].mxu0
      %v4708 = vpop.f32.mrb[0].mxu0
      %v4709 = vadd.f32 %v4557, %v4708
      %v4710 = vpop.f32.mrb[0].mxu0
      %4711 = vmatprep.mubr.bf16.mxu0 0
      %4712 = vmatmul.mubr.bf16.gmra.mrb[0].mxu0 %v4527
      %v4713 = vpop.f32.mrb[0].mxu0
      %v4714 = vadd.f32 %v4557, %v4713
      %v4715 = vpop.f32.mrb[0].mxu0
      %v4716 = vpop.f32.mrb[0].mxu0
      %v4717 = vadd.f32 %v4557, %v4716
      %v4718 = vpop.f32.mrb[0].mxu0
      %4719 = vmatprep.mubr.bf16.mxu0 0
      %4720 = vmatmul.mubr.bf16.gmra.mrb[0].mxu0 %v4528
      %v4721 = vpop.f32.mrb[0].mxu0
      %v4722 = vadd.f32 %v4557, %v4721
      %v4723 = vpop.f32.mrb[0].mxu0
      %v4724 = vpop.f32.mrb[0].mxu0
      %v4725 = vadd.f32 %v4557, %v4724
      %v4726 = vpop.f32.mrb[0].mxu0
      %4727 = vmatprep.mubr.bf16.mxu0 0
      %4728 = vmatmul.mubr.bf16.gmra.mrb[0].mxu0 %v4529
      %v4729 = vpop.f32.mrb[0].mxu0
      %v4730 = vadd.f32 %v4557, %v4729
      %v4731 = vpop.f32.mrb[0].mxu0
      %v4732 = vpop.f32.mrb[0].mxu0
      %v4733 = vadd.f32 %v4557, %v4732
      %v4734 = vpop.f32.mrb[0].mxu0
      %4735 = vmatprep.mubr.bf16.mxu0 0
      %4736 = vmatmul.mubr.bf16.gmra.mrb[0].mxu0 %v4530
      %v4737 = vpop.f32.mrb[0].mxu0
      %v4738 = vadd.f32 %v4557, %v4737
      %v4739 = vpop.f32.mrb[0].mxu0
      %v4740 = vpop.f32.mrb[0].mxu0
      %v4741 = vadd.f32 %v4557, %v4740
      %v4742 = vpop.f32.mrb[0].mxu0
      %4743 = vmatprep.mubr.bf16.mxu0 0
      %4744 = vmatmul.mubr.bf16.gmra.mrb[0].mxu0 %v4531
      %v4745 = vpop.f32.mrb[0].mxu0
      %v4746 = vadd.f32 %v4557, %v4745
      %v4747 = vpop.f32.mrb[0].mxu0
      %v4748 = vpop.f32.mrb[0].mxu0
      %v4749 = vadd.f32 %v4557, %v4748
      %v4750 = vpop.f32.mrb[0].mxu0
      %4751 = vmatprep.mubr.bf16.mxu0 0
      %4752 = vmatmul.mubr.bf16.gmra.mrb[0].mxu0 %v4532
      %v4753 = vpop.f32.mrb[0].mxu0
      %v4754 = vadd.f32 %v4557, %v4753
      %v4755 = vpop.f32.mrb[0].mxu0
      %v4756 = vpop.f32.mrb[0].mxu0
      %v4757 = vadd.f32 %v4557, %v4756
      %v4758 = vpop.f32.mrb[0].mxu0
      %4759 = vmatprep.mubr.bf16.mxu0 0
      %4760 = vmatmul.mubr.bf16.gmra.mrb[0].mxu0 %v4533
      %v4761 = vpop.f32.mrb[0].mxu0
      %v4762 = vadd.f32 %v4557, %v4761
      %v4763 = vpop.f32.mrb[0].mxu0
      %v4764 = vpop.f32.mrb[0].mxu0
      %v4765 = vadd.f32 %v4557, %v4764
      %v4766 = vpop.f32.mrb[0].mxu0
      %4767 = vdwg.mxu0
      %v4768 = vmul.f32 %v4642, 0.5
      %v4769 = vmul.f32 %v4645, 0.5
      %v4770 = vmul.f32 %v4650, 0.5
      %v4771 = vmul.f32 %v4653, 0.5
      %v4772 = vmul.f32 %v4658, 0.5
      %v4773 = vmul.f32 %v4661, 0.5
      %v4774 = vmul.f32 %v4666, 0.5
      %v4775 = vmul.f32 %v4669, 0.5
      %v4776 = vmul.f32 %v4674, 0.5
      %v4777 = vmul.f32 %v4677, 0.5
      %v4778 = vmul.f32 %v4682, 0.5
      %v4779 = vmul.f32 %v4685, 0.5
      %v4780 = vmul.f32 %v4690, 0.5
      %v4781 = vmul.f32 %v4693, 0.5
      %v4782 = vmul.f32 %v4698, 0.5
      %v4783 = vmul.f32 %v4701, 0.5
      %v4784 = vmul.f32 %v4706, 0.5
      %v4785 = vmul.f32 %v4709, 0.5
      %v4786 = vmul.f32 %v4714, 0.5
      %v4787 = vmul.f32 %v4717, 0.5
      %v4788 = vmul.f32 %v4722, 0.5
      %v4789 = vmul.f32 %v4725, 0.5
      %v4790 = vmul.f32 %v4730, 0.5
      %v4791 = vmul.f32 %v4733, 0.5
      %v4792 = vmul.f32 %v4738, 0.5
      %v4793 = vmul.f32 %v4741, 0.5
      %v4794 = vmul.f32 %v4746, 0.5
      %v4795 = vmul.f32 %v4749, 0.5
      %v4796 = vmul.f32 %v4754, 0.5
      %v4797 = vmul.f32 %v4757, 0.5
      %v4798 = vmul.f32 %v4762, 0.5
      %v4799 = vmul.f32 %v4765, 0.5
      %v4800 = vtanh.pop %v4768
      %v4801 = vtanh.pop %v4769
      %v4802 = vtanh.pop %v4770
      %v4803 = vtanh.pop %v4771
      %v4804 = vtanh.pop %v4772
      %v4805 = vtanh.pop %v4773
      %v4806 = vtanh.pop %v4774
      %v4807 = vtanh.pop %v4775
      %v4808 = vtanh.pop %v4776
      %v4809 = vtanh.pop %v4777
      %v4810 = vtanh.pop %v4778
      %v4811 = vtanh.pop %v4779
      %v4812 = vtanh.pop %v4780
      %v4813 = vtanh.pop %v4781
      %v4814 = vtanh.pop %v4782
      %v4815 = vtanh.pop %v4783
      %v4816 = vtanh.pop %v4784
      %v4817 = vtanh.pop %v4785
      %v4818 = vtanh.pop %v4786
      %v4819 = vtanh.pop %v4787
      %v4820 = vtanh.pop %v4788
      %v4821 = vtanh.pop %v4789
      %v4822 = vtanh.pop %v4790
      %v4823 = vtanh.pop %v4791
      %v4824 = vtanh.pop %v4792
      %v4825 = vtanh.pop %v4793
      %v4826 = vtanh.pop %v4794
      %v4827 = vtanh.pop %v4795
      %v4828 = vtanh.pop %v4796
      %v4829 = vtanh.pop %v4797
      %v4830 = vtanh.pop %v4798
      %v4831 = vtanh.pop %v4799
      %v4832 = vadd.f32 %v4800, 1.0
      %v4833 = vadd.f32 %v4801, 1.0
      %v4834 = vadd.f32 %v4802, 1.0
      %v4835 = vadd.f32 %v4803, 1.0
      %v4836 = vadd.f32 %v4804, 1.0
      %v4837 = vadd.f32 %v4805, 1.0
      %v4838 = vadd.f32 %v4806, 1.0
      %v4839 = vadd.f32 %v4807, 1.0
      %v4840 = vadd.f32 %v4808, 1.0
      %v4841 = vadd.f32 %v4809, 1.0
      %v4842 = vadd.f32 %v4810, 1.0
      %v4843 = vadd.f32 %v4811, 1.0
      %v4844 = vadd.f32 %v4812, 1.0
      %v4845 = vadd.f32 %v4813, 1.0
      %v4846 = vadd.f32 %v4814, 1.0
      %v4847 = vadd.f32 %v4815, 1.0
      %v4848 = vadd.f32 %v4816, 1.0
      %v4849 = vadd.f32 %v4817, 1.0
      %v4850 = vadd.f32 %v4818, 1.0
      %v4851 = vadd.f32 %v4819, 1.0
      %v4852 = vadd.f32 %v4820, 1.0
      %v4853 = vadd.f32 %v4821, 1.0
      %v4854 = vadd.f32 %v4822, 1.0
      %v4855 = vadd.f32 %v4823, 1.0
      %v4856 = vadd.f32 %v4824, 1.0
      %v4857 = vadd.f32 %v4825, 1.0
      %v4858 = vadd.f32 %v4826, 1.0
      %v4859 = vadd.f32 %v4827, 1.0
      %v4860 = vadd.f32 %v4828, 1.0
      %v4861 = vadd.f32 %v4829, 1.0
      %v4862 = vadd.f32 %v4830, 1.0
      %v4863 = vadd.f32 %v4831, 1.0
      %v4864 = vmul.f32 %v4768, %v4832
      %v4865 = vmul.f32 %v4769, %v4833
      %v4866 = vmul.f32 %v4770, %v4834
      %v4867 = vmul.f32 %v4771, %v4835
      %v4868 = vmul.f32 %v4772, %v4836
      %v4869 = vmul.f32 %v4773, %v4837
      %v4870 = vmul.f32 %v4774, %v4838
      %v4871 = vmul.f32 %v4775, %v4839
      %v4872 = vmul.f32 %v4776, %v4840
      %v4873 = vmul.f32 %v4777, %v4841
      %v4874 = vmul.f32 %v4778, %v4842
      %v4875 = vmul.f32 %v4779, %v4843
      %v4876 = vmul.f32 %v4780, %v4844
      %v4877 = vmul.f32 %v4781, %v4845
      %v4878 = vmul.f32 %v4782, %v4846
      %v4879 = vmul.f32 %v4783, %v4847
      %v4880 = vmul.f32 %v4784, %v4848
      %v4881 = vmul.f32 %v4785, %v4849
      %v4882 = vmul.f32 %v4786, %v4850
      %v4883 = vmul.f32 %v4787, %v4851
      %v4884 = vmul.f32 %v4788, %v4852
      %v4885 = vmul.f32 %v4789, %v4853
      %v4886 = vmul.f32 %v4790, %v4854
      %v4887 = vmul.f32 %v4791, %v4855
      %v4888 = vmul.f32 %v4792, %v4856
      %v4889 = vmul.f32 %v4793, %v4857
      %v4890 = vmul.f32 %v4794, %v4858
      %v4891 = vmul.f32 %v4795, %v4859
      %v4892 = vmul.f32 %v4796, %v4860
      %v4893 = vmul.f32 %v4797, %v4861
      %v4894 = vmul.f32 %v4798, %v4862
      %v4895 = vmul.f32 %v4799, %v4863
      %4896 = vst [vmem:[#allocation2 + $0x18] sm:$0xff] %v4864
      %4897 = vst [vmem:[#allocation2 + $0x20] sm:$0xff] %v4865
      %4898 = vst [vmem:[#allocation2 + $0x28] sm:$0xff] %v4866
      %4899 = vst [vmem:[#allocation2 + $0x30] sm:$0xff] %v4867
      %4900 = vst [vmem:[#allocation2 + $0x38] sm:$0xff] %v4868
      %4901 = vst [vmem:[#allocation2 + $0x40] sm:$0xff] %v4869
      %4902 = vst [vmem:[#allocation2 + $0x48] sm:$0xff] %v4870
      %4903 = vst [vmem:[#allocation2 + $0x50] sm:$0xff] %v4871
      %4904 = vst [vmem:[#allocation2 + $0x58] sm:$0xff] %v4872
      %4905 = vst [vmem:[#allocation2 + $0x60] sm:$0xff] %v4873
      %4906 = vst [vmem:[#allocation2 + $0x68] sm:$0xff] %v4874
      %4907 = vst [vmem:[#allocation2 + $0x70] sm:$0xff] %v4875
      %4908 = vst [vmem:[#allocation2 + $0x78] sm:$0xff] %v4876
      %4909 = vst [vmem:[#allocation2 + $0x80] sm:$0xff] %v4877
      %4910 = vst [vmem:[#allocation2 + $0x88] sm:$0xff] %v4878
      %4911 = vst [vmem:[#allocation2 + $0x90] sm:$0xff] %v4879
      %4912 = vst [vmem:[#allocation2 + $0x98] sm:$0xff] %v4880
      %4913 = vst [vmem:[#allocation2 + $0xa0] sm:$0xff] %v4881
      %4914 = vst [vmem:[#allocation2 + $0xa8] sm:$0xff] %v4882
      %4915 = vst [vmem:[#allocation2 + $0xb0] sm:$0xff] %v4883
      %4916 = vst [vmem:[#allocation2 + $0xb8] sm:$0xff] %v4884
      %4917 = vst [vmem:[#allocation2 + $0xc0] sm:$0xff] %v4885
      %4918 = vst [vmem:[#allocation2 + $0xc8] sm:$0xff] %v4886
      %4919 = vst [vmem:[#allocation2 + $0xd0] sm:$0xff] %v4887
      %4920 = vst [vmem:[#allocation2 + $0xd8] sm:$0xff] %v4888
      %4921 = vst [vmem:[#allocation2 + $0xe0] sm:$0xff] %v4889
      %4922 = vst [vmem:[#allocation2 + $0xe8] sm:$0xff] %v4890
      %4923 = vst [vmem:[#allocation2 + $0xf0] sm:$0xff] %v4891
      %4924 = vst [vmem:[#allocation2 + $0xf8] sm:$0xff] %v4892
      %4925 = vst [vmem:[#allocation2 + $0x100] sm:$0xff] %v4893
      %4926 = vst [vmem:[#allocation2 + $0x108] sm:$0xff] %v4894
      %4927 = vst [vmem:[#allocation2 + $0x110] sm:$0xff] %v4895
      %v4928 = vld [vmem:[#allocation2 + $0x7] sm:$0xff]
      %v4929 = vld [vmem:[#allocation2 + $0xf] sm:$0xff]
      %v4930 = vld [vmem:[#allocation2 + $0x17] sm:$0xff]
      %v4931 = vld [vmem:[#allocation2 + $0x1f] sm:$0xff]
      %v4932 = vld [vmem:[#allocation2 + $0x27] sm:$0xff]
      %v4933 = vld [vmem:[#allocation2 + $0x2f] sm:$0xff]
      %v4934 = vld [vmem:[#allocation2 + $0x37] sm:$0xff]
      %v4935 = vld [vmem:[#allocation2 + $0x3f] sm:$0xff]
      %v4936 = vld [vmem:[#allocation2 + $0x47] sm:$0xff]
      %v4937 = vld [vmem:[#allocation2 + $0x4f] sm:$0xff]
      %v4938 = vld [vmem:[#allocation2 + $0x57] sm:$0xff]
      %v4939 = vld [vmem:[#allocation2 + $0x5f] sm:$0xff]
      %v4940 = vld [vmem:[#allocation2 + $0x67] sm:$0xff]
      %v4941 = vld [vmem:[#allocation2 + $0x6f] sm:$0xff]
      %v4942 = vld [vmem:[#allocation2 + $0x77] sm:$0xff]
      %v4943 = vld [vmem:[#allocation2 + $0x7f] sm:$0xff]
      %v4944 = vld [vmem:[#allocation2 + $0x87] sm:$0xff]
      %v4945 = vld [vmem:[#allocation2 + $0x8f] sm:$0xff]
      %v4946 = vld [vmem:[#allocation2 + $0x97] sm:$0xff]
      %v4947 = vld [vmem:[#allocation2 + $0x9f] sm:$0xff]
      %v4948 = vld [vmem:[#allocation2 + $0xa7] sm:$0xff]
      %v4949 = vld [vmem:[#allocation2 + $0xaf] sm:$0xff]
      %v4950 = vld [vmem:[#allocation2 + $0xb7] sm:$0xff]
      %v4951 = vld [vmem:[#allocation2 + $0xbf] sm:$0xff]
      %v4952 = vld [vmem:[#allocation2 + $0xc7] sm:$0xff]
      %v4953 = vld [vmem:[#allocation2 + $0xcf] sm:$0xff]
      %v4954 = vld [vmem:[#allocation2 + $0xd7] sm:$0xff]
      %v4955 = vld [vmem:[#allocation2 + $0xdf] sm:$0xff]
      %v4956 = vld [vmem:[#allocation2 + $0xe7] sm:$0xff]
      %v4957 = vld [vmem:[#allocation2 + $0xef] sm:$0xff]
      %v4958 = vld [vmem:[#allocation2 + $0xf7] sm:$0xff]
      %v4959 = vld [vmem:[#allocation2 + $0xff] sm:$0xff]
      %v4960 = vsel %vm1994, %v4928, 0.0
      %v4961 = vsel %vm1995, %v4929, 0.0
      %v4962 = vsel %vm1996, %v4930, 0.0
      %v4963 = vsel %vm1997, %v4931, 0.0
      %v4964 = vsel %vm1998, %v4932, 0.0
      %v4965 = vsel %vm1999, %v4933, 0.0
      %v4966 = vsel %vm2000, %v4934, 0.0
      %v4967 = vsel %vm2001, %v4935, 0.0
      %v4968 = vsel %vm2002, %v4936, 0.0
      %v4969 = vsel %vm2003, %v4937, 0.0
      %v4970 = vsel %vm2004, %v4938, 0.0
      %v4971 = vsel %vm2005, %v4939, 0.0
      %v4972 = vsel %vm2006, %v4940, 0.0
      %v4973 = vsel %vm2007, %v4941, 0.0
      %v4974 = vsel %vm2008, %v4942, 0.0
      %v4975 = vsel %vm2009, %v4943, 0.0
      %v4976 = vsel %vm2010, %v4944, 0.0
      %v4977 = vsel %vm2011, %v4945, 0.0
      %v4978 = vsel %vm2012, %v4946, 0.0
      %v4979 = vsel %vm2013, %v4947, 0.0
      %v4980 = vsel %vm2014, %v4948, 0.0
      %v4981 = vsel %vm2015, %v4949, 0.0
      %v4982 = vsel %vm2016, %v4950, 0.0
      %v4983 = vsel %vm2017, %v4951, 0.0
      %v4984 = vsel %vm2018, %v4952, 0.0
      %v4985 = vsel %vm2019, %v4953, 0.0
      %v4986 = vsel %vm2020, %v4954, 0.0
      %v4987 = vsel %vm2021, %v4955, 0.0
      %v4988 = vsel %vm2022, %v4956, 0.0
      %v4989 = vsel %vm2023, %v4957, 0.0
      %v4990 = vsel %vm2024, %v4958, 0.0
      %v4991 = vsel %vm2025, %v4959, 0.0
      %v4992 = vpack.c.bf16 %v4961, %v4960
      %v4993 = vpack.c.bf16 %v4963, %v4962
      %v4994 = vpack.c.bf16 %v4965, %v4964
      %v4995 = vpack.c.bf16 %v4967, %v4966
      %v4996 = vpack.c.bf16 %v4969, %v4968
      %v4997 = vpack.c.bf16 %v4971, %v4970
      %v4998 = vpack.c.bf16 %v4973, %v4972
      %v4999 = vpack.c.bf16 %v4975, %v4974
      %v5000 = vpack.c.bf16 %v4977, %v4976
      %v5001 = vpack.c.bf16 %v4979, %v4978
      %v5002 = vpack.c.bf16 %v4981, %v4980
      %v5003 = vpack.c.bf16 %v4983, %v4982
      %v5004 = vpack.c.bf16 %v4985, %v4984
      %v5005 = vpack.c.bf16 %v4987, %v4986
      %v5006 = vpack.c.bf16 %v4989, %v4988
      %v5007 = vpack.c.bf16 %v4991, %v4990
      %5008 = vst [vmem:[#allocation3] sm:$0xff] %v4992
      %5009 = vst [vmem:[#allocation3 + $0x48] sm:$0xff] %v4993
      %5010 = vst [vmem:[#allocation3 + $0x90] sm:$0xff] %v4994
      %5011 = vst [vmem:[#allocation3 + $0xd8] sm:$0xff] %v4995
      %5012 = vst [vmem:[#allocation3 + $0x120] sm:$0xff] %v4996
      %5013 = vst [vmem:[#allocation3 + $0x168] sm:$0xff] %v4997
      %5014 = vst [vmem:[#allocation3 + $0x1b0] sm:$0xff] %v4998
      %5015 = vst [vmem:[#allocation3 + $0x1f8] sm:$0xff] %v4999
      %5016 = vst [vmem:[#allocation3 + $0x240] sm:$0xff] %v5000
      %5017 = vst [vmem:[#allocation3 + $0x288] sm:$0xff] %v5001
      %5018 = vst [vmem:[#allocation3 + $0x2d0] sm:$0xff] %v5002
      %5019 = vst [vmem:[#allocation3 + $0x318] sm:$0xff] %v5003
      %5020 = vst [vmem:[#allocation3 + $0x360] sm:$0xff] %v5004
      %5021 = vst [vmem:[#allocation3 + $0x3a8] sm:$0xff] %v5005
      %5022 = vst [vmem:[#allocation3 + $0x3f0] sm:$0xff] %v5006
      %5023 = vst [vmem:[#allocation3 + $0x438] sm:$0xff] %v5007
      %v5024 = vld [vmem:[#allocation2 + $0x8] sm:$0xff]
      %v5025 = vld [vmem:[#allocation2 + $0x10] sm:$0xff]
      %v5026 = vld [vmem:[#allocation2 + $0x18] sm:$0xff]
      %v5027 = vld [vmem:[#allocation2 + $0x20] sm:$0xff]
      %v5028 = vld [vmem:[#allocation2 + $0x28] sm:$0xff]
      %v5029 = vld [vmem:[#allocation2 + $0x30] sm:$0xff]
      %v5030 = vld [vmem:[#allocation2 + $0x38] sm:$0xff]
      %v5031 = vld [vmem:[#allocation2 + $0x40] sm:$0xff]
      %v5032 = vld [vmem:[#allocation2 + $0x48] sm:$0xff]
      %v5033 = vld [vmem:[#allocation2 + $0x50] sm:$0xff]
      %v5034 = vld [vmem:[#allocation2 + $0x58] sm:$0xff]
      %v5035 = vld [vmem:[#allocation2 + $0x60] sm:$0xff]
      %v5036 = vld [vmem:[#allocation2 + $0x68] sm:$0xff]
      %v5037 = vld [vmem:[#allocation2 + $0x70] sm:$0xff]
      %v5038 = vld [vmem:[#allocation2 + $0x78] sm:$0xff]
      %v5039 = vld [vmem:[#allocation2 + $0x80] sm:$0xff]
      %v5040 = vld [vmem:[#allocation2 + $0x88] sm:$0xff]
      %v5041 = vld [vmem:[#allocation2 + $0x90] sm:$0xff]
      %v5042 = vld [vmem:[#allocation2 + $0x98] sm:$0xff]
      %v5043 = vld [vmem:[#allocation2 + $0xa0] sm:$0xff]
      %v5044 = vld [vmem:[#allocation2 + $0xa8] sm:$0xff]
      %v5045 = vld [vmem:[#allocation2 + $0xb0] sm:$0xff]
      %v5046 = vld [vmem:[#allocation2 + $0xb8] sm:$0xff]
      %v5047 = vld [vmem:[#allocation2 + $0xc0] sm:$0xff]
      %v5048 = vld [vmem:[#allocation2 + $0xc8] sm:$0xff]
      %v5049 = vld [vmem:[#allocation2 + $0xd0] sm:$0xff]
      %v5050 = vld [vmem:[#allocation2 + $0xd8] sm:$0xff]
      %v5051 = vld [vmem:[#allocation2 + $0xe0] sm:$0xff]
      %v5052 = vld [vmem:[#allocation2 + $0xe8] sm:$0xff]
      %v5053 = vld [vmem:[#allocation2 + $0xf0] sm:$0xff]
      %v5054 = vld [vmem:[#allocation2 + $0xf8] sm:$0xff]
      %v5055 = vld [vmem:[#allocation2 + $0x100] sm:$0xff]
      %v5056 = vpack.c.bf16 %v5025, %v5024
      %v5057 = vpack.c.bf16 %v5027, %v5026
      %v5058 = vpack.c.bf16 %v5029, %v5028
      %v5059 = vpack.c.bf16 %v5031, %v5030
      %v5060 = vpack.c.bf16 %v5033, %v5032
      %v5061 = vpack.c.bf16 %v5035, %v5034
      %v5062 = vpack.c.bf16 %v5037, %v5036
      %v5063 = vpack.c.bf16 %v5039, %v5038
      %v5064 = vpack.c.bf16 %v5041, %v5040
      %v5065 = vpack.c.bf16 %v5043, %v5042
      %v5066 = vpack.c.bf16 %v5045, %v5044
      %v5067 = vpack.c.bf16 %v5047, %v5046
      %v5068 = vpack.c.bf16 %v5049, %v5048
      %v5069 = vpack.c.bf16 %v5051, %v5050
      %v5070 = vpack.c.bf16 %v5053, %v5052
      %v5071 = vpack.c.bf16 %v5055, %v5054
      %5072 = vst [vmem:[#allocation3 + $0x8] sm:$0xff] %v5056
      %5073 = vst [vmem:[#allocation3 + $0x50] sm:$0xff] %v5057
      %5074 = vst [vmem:[#allocation3 + $0x98] sm:$0xff] %v5058
      %5075 = vst [vmem:[#allocation3 + $0xe0] sm:$0xff] %v5059
      %5076 = vst [vmem:[#allocation3 + $0x128] sm:$0xff] %v5060
      %5077 = vst [vmem:[#allocation3 + $0x170] sm:$0xff] %v5061
      %5078 = vst [vmem:[#allocation3 + $0x1b8] sm:$0xff] %v5062
      %5079 = vst [vmem:[#allocation3 + $0x200] sm:$0xff] %v5063
      %5080 = vst [vmem:[#allocation3 + $0x248] sm:$0xff] %v5064
      %5081 = vst [vmem:[#allocation3 + $0x290] sm:$0xff] %v5065
      %5082 = vst [vmem:[#allocation3 + $0x2d8] sm:$0xff] %v5066
      %5083 = vst [vmem:[#allocation3 + $0x320] sm:$0xff] %v5067
      %5084 = vst [vmem:[#allocation3 + $0x368] sm:$0xff] %v5068
      %5085 = vst [vmem:[#allocation3 + $0x3b0] sm:$0xff] %v5069
      %5086 = vst [vmem:[#allocation3 + $0x3f8] sm:$0xff] %v5070
      %5087 = vst [vmem:[#allocation3 + $0x440] sm:$0xff] %v5071
      %v5088 = vld [vmem:[#allocation2 + $0x9] sm:$0xff]
      %v5089 = vld [vmem:[#allocation2 + $0x11] sm:$0xff]
      %v5090 = vld [vmem:[#allocation2 + $0x19] sm:$0xff]
      %v5091 = vld [vmem:[#allocation2 + $0x21] sm:$0xff]
      %v5092 = vld [vmem:[#allocation2 + $0x29] sm:$0xff]
      %v5093 = vld [vmem:[#allocation2 + $0x31] sm:$0xff]
      %v5094 = vld [vmem:[#allocation2 + $0x39] sm:$0xff]
      %v5095 = vld [vmem:[#allocation2 + $0x41] sm:$0xff]
      %v5096 = vld [vmem:[#allocation2 + $0x49] sm:$0xff]
      %v5097 = vld [vmem:[#allocation2 + $0x51] sm:$0xff]
      %v5098 = vld [vmem:[#allocation2 + $0x59] sm:$0xff]
      %v5099 = vld [vmem:[#allocation2 + $0x61] sm:$0xff]
      %v5100 = vld [vmem:[#allocation2 + $0x69] sm:$0xff]
      %v5101 = vld [vmem:[#allocation2 + $0x71] sm:$0xff]
      %v5102 = vld [vmem:[#allocation2 + $0x79] sm:$0xff]
      %v5103 = vld [vmem:[#allocation2 + $0x81] sm:$0xff]
      %v5104 = vld [vmem:[#allocation2 + $0x89] sm:$0xff]
      %v5105 = vld [vmem:[#allocation2 + $0x91] sm:$0xff]
      %v5106 = vld [vmem:[#allocation2 + $0x99] sm:$0xff]
      %v5107 = vld [vmem:[#allocation2 + $0xa1] sm:$0xff]
      %v5108 = vld [vmem:[#allocation2 + $0xa9] sm:$0xff]
      %v5109 = vld [vmem:[#allocation2 + $0xb1] sm:$0xff]
      %v5110 = vld [vmem:[#allocation2 + $0xb9] sm:$0xff]
      %v5111 = vld [vmem:[#allocation2 + $0xc1] sm:$0xff]
      %v5112 = vld [vmem:[#allocation2 + $0xc9] sm:$0xff]
      %v5113 = vld [vmem:[#allocation2 + $0xd1] sm:$0xff]
      %v5114 = vld [vmem:[#allocation2 + $0xd9] sm:$0xff]
      %v5115 = vld [vmem:[#allocation2 + $0xe1] sm:$0xff]
      %v5116 = vld [vmem:[#allocation2 + $0xe9] sm:$0xff]
      %v5117 = vld [vmem:[#allocation2 + $0xf1] sm:$0xff]
      %v5118 = vld [vmem:[#allocation2 + $0xf9] sm:$0xff]
      %v5119 = vld [vmem:[#allocation2 + $0x101] sm:$0xff]
      %v5120 = vsel %vm2218, %v5088, 0.0
      %v5121 = vsel %vm2219, %v5089, 0.0
      %v5122 = vsel %vm2220, %v5090, 0.0
      %v5123 = vsel %vm2221, %v5091, 0.0
      %v5124 = vsel %vm2222, %v5092, 0.0
      %v5125 = vsel %vm2223, %v5093, 0.0
      %v5126 = vsel %vm2224, %v5094, 0.0
      %v5127 = vsel %vm2225, %v5095, 0.0
      %v5128 = vsel %vm2226, %v5096, 0.0
      %v5129 = vsel %vm2227, %v5097, 0.0
      %v5130 = vsel %vm2228, %v5098, 0.0
      %v5131 = vsel %vm2229, %v5099, 0.0
      %v5132 = vsel %vm2230, %v5100, 0.0
      %v5133 = vsel %vm2231, %v5101, 0.0
      %v5134 = vsel %vm2232, %v5102, 0.0
      %v5135 = vsel %vm2233, %v5103, 0.0
      %v5136 = vsel %vm2234, %v5104, 0.0
      %v5137 = vsel %vm2235, %v5105, 0.0
      %v5138 = vsel %vm2236, %v5106, 0.0
      %v5139 = vsel %vm2237, %v5107, 0.0
      %v5140 = vsel %vm2238, %v5108, 0.0
      %v5141 = vsel %vm2239, %v5109, 0.0
      %v5142 = vsel %vm2240, %v5110, 0.0
      %v5143 = vsel %vm2241, %v5111, 0.0
      %v5144 = vsel %vm2242, %v5112, 0.0
      %v5145 = vsel %vm2243, %v5113, 0.0
      %v5146 = vsel %vm2244, %v5114, 0.0
      %v5147 = vsel %vm2245, %v5115, 0.0
      %v5148 = vsel %vm2246, %v5116, 0.0
      %v5149 = vsel %vm2247, %v5117, 0.0
      %v5150 = vsel %vm2248, %v5118, 0.0
      %v5151 = vsel %vm2249, %v5119, 0.0
      %v5152 = vpack.c.bf16 %v5121, %v5120
      %v5153 = vpack.c.bf16 %v5123, %v5122
      %v5154 = vpack.c.bf16 %v5125, %v5124
      %v5155 = vpack.c.bf16 %v5127, %v5126
      %v5156 = vpack.c.bf16 %v5129, %v5128
      %v5157 = vpack.c.bf16 %v5131, %v5130
      %v5158 = vpack.c.bf16 %v5133, %v5132
      %v5159 = vpack.c.bf16 %v5135, %v5134
      %v5160 = vpack.c.bf16 %v5137, %v5136
      %v5161 = vpack.c.bf16 %v5139, %v5138
      %v5162 = vpack.c.bf16 %v5141, %v5140
      %v5163 = vpack.c.bf16 %v5143, %v5142
      %v5164 = vpack.c.bf16 %v5145, %v5144
      %v5165 = vpack.c.bf16 %v5147, %v5146
      %v5166 = vpack.c.bf16 %v5149, %v5148
      %v5167 = vpack.c.bf16 %v5151, %v5150
      %5168 = vst [vmem:[#allocation3 + $0x10] sm:$0xff] %v5152
      %5169 = vst [vmem:[#allocation3 + $0x58] sm:$0xff] %v5153
      %5170 = vst [vmem:[#allocation3 + $0xa0] sm:$0xff] %v5154
      %5171 = vst [vmem:[#allocation3 + $0xe8] sm:$0xff] %v5155
      %5172 = vst [vmem:[#allocation3 + $0x130] sm:$0xff] %v5156
      %5173 = vst [vmem:[#allocation3 + $0x178] sm:$0xff] %v5157
      %5174 = vst [vmem:[#allocation3 + $0x1c0] sm:$0xff] %v5158
      %5175 = vst [vmem:[#allocation3 + $0x208] sm:$0xff] %v5159
      %5176 = vst [vmem:[#allocation3 + $0x250] sm:$0xff] %v5160
      %5177 = vst [vmem:[#allocation3 + $0x298] sm:$0xff] %v5161
      %5178 = vst [vmem:[#allocation3 + $0x2e0] sm:$0xff] %v5162
      %5179 = vst [vmem:[#allocation3 + $0x328] sm:$0xff] %v5163
      %5180 = vst [vmem:[#allocation3 + $0x370] sm:$0xff] %v5164
      %5181 = vst [vmem:[#allocation3 + $0x3b8] sm:$0xff] %v5165
      %5182 = vst [vmem:[#allocation3 + $0x400] sm:$0xff] %v5166
      %5183 = vst [vmem:[#allocation3 + $0x448] sm:$0xff] %v5167
      %v5184 = vld [vmem:[#allocation2 + $0x17] sm:$0xff]
      %v5185 = vld [vmem:[#allocation2 + $0x1f] sm:$0xff]
      %v5186 = vld [vmem:[#allocation2 + $0x27] sm:$0xff]
      %v5187 = vld [vmem:[#allocation2 + $0x2f] sm:$0xff]
      %v5188 = vld [vmem:[#allocation2 + $0x37] sm:$0xff]
      %v5189 = vld [vmem:[#allocation2 + $0x3f] sm:$0xff]
      %v5190 = vld [vmem:[#allocation2 + $0x47] sm:$0xff]
      %v5191 = vld [vmem:[#allocation2 + $0x4f] sm:$0xff]
      %v5192 = vld [vmem:[#allocation2 + $0x57] sm:$0xff]
      %v5193 = vld [vmem:[#allocation2 + $0x5f] sm:$0xff]
      %v5194 = vld [vmem:[#allocation2 + $0x67] sm:$0xff]
      %v5195 = vld [vmem:[#allocation2 + $0x6f] sm:$0xff]
      %v5196 = vld [vmem:[#allocation2 + $0x77] sm:$0xff]
      %v5197 = vld [vmem:[#allocation2 + $0x7f] sm:$0xff]
      %v5198 = vld [vmem:[#allocation2 + $0x87] sm:$0xff]
      %v5199 = vld [vmem:[#allocation2 + $0x8f] sm:$0xff]
      %v5200 = vld [vmem:[#allocation2 + $0x97] sm:$0xff]
      %v5201 = vld [vmem:[#allocation2 + $0x9f] sm:$0xff]
      %v5202 = vld [vmem:[#allocation2 + $0xa7] sm:$0xff]
      %v5203 = vld [vmem:[#allocation2 + $0xaf] sm:$0xff]
      %v5204 = vld [vmem:[#allocation2 + $0xb7] sm:$0xff]
      %v5205 = vld [vmem:[#allocation2 + $0xbf] sm:$0xff]
      %v5206 = vld [vmem:[#allocation2 + $0xc7] sm:$0xff]
      %v5207 = vld [vmem:[#allocation2 + $0xcf] sm:$0xff]
      %v5208 = vld [vmem:[#allocation2 + $0xd7] sm:$0xff]
      %v5209 = vld [vmem:[#allocation2 + $0xdf] sm:$0xff]
      %v5210 = vld [vmem:[#allocation2 + $0xe7] sm:$0xff]
      %v5211 = vld [vmem:[#allocation2 + $0xef] sm:$0xff]
      %v5212 = vld [vmem:[#allocation2 + $0xf7] sm:$0xff]
      %v5213 = vld [vmem:[#allocation2 + $0xff] sm:$0xff]
      %v5214 = vld [vmem:[#allocation2 + $0x107] sm:$0xff]
      %v5215 = vld [vmem:[#allocation2 + $0x10f] sm:$0xff]
      %v5216 = vsel %vm1994, %v5184, 0.0
      %v5217 = vsel %vm1995, %v5185, 0.0
      %v5218 = vsel %vm1996, %v5186, 0.0
      %v5219 = vsel %vm1997, %v5187, 0.0
      %v5220 = vsel %vm1998, %v5188, 0.0
      %v5221 = vsel %vm1999, %v5189, 0.0
      %v5222 = vsel %vm2000, %v5190, 0.0
      %v5223 = vsel %vm2001, %v5191, 0.0
      %v5224 = vsel %vm2002, %v5192, 0.0
      %v5225 = vsel %vm2003, %v5193, 0.0
      %v5226 = vsel %vm2004, %v5194, 0.0
      %v5227 = vsel %vm2005, %v5195, 0.0
      %v5228 = vsel %vm2006, %v5196, 0.0
      %v5229 = vsel %vm2007, %v5197, 0.0
      %v5230 = vsel %vm2008, %v5198, 0.0
      %v5231 = vsel %vm2009, %v5199, 0.0
      %v5232 = vsel %vm2010, %v5200, 0.0
      %v5233 = vsel %vm2011, %v5201, 0.0
      %v5234 = vsel %vm2012, %v5202, 0.0
      %v5235 = vsel %vm2013, %v5203, 0.0
      %v5236 = vsel %vm2014, %v5204, 0.0
      %v5237 = vsel %vm2015, %v5205, 0.0
      %v5238 = vsel %vm2016, %v5206, 0.0
      %v5239 = vsel %vm2017, %v5207, 0.0
      %v5240 = vsel %vm2018, %v5208, 0.0
      %v5241 = vsel %vm2019, %v5209, 0.0
      %v5242 = vsel %vm2020, %v5210, 0.0
      %v5243 = vsel %vm2021, %v5211, 0.0
      %v5244 = vsel %vm2022, %v5212, 0.0
      %v5245 = vsel %vm2023, %v5213, 0.0
      %v5246 = vsel %vm2024, %v5214, 0.0
      %v5247 = vsel %vm2025, %v5215, 0.0
      %v5248 = vpack.c.bf16 %v5217, %v5216
      %v5249 = vpack.c.bf16 %v5219, %v5218
      %v5250 = vpack.c.bf16 %v5221, %v5220
      %v5251 = vpack.c.bf16 %v5223, %v5222
      %v5252 = vpack.c.bf16 %v5225, %v5224
      %v5253 = vpack.c.bf16 %v5227, %v5226
      %v5254 = vpack.c.bf16 %v5229, %v5228
      %v5255 = vpack.c.bf16 %v5231, %v5230
      %v5256 = vpack.c.bf16 %v5233, %v5232
      %v5257 = vpack.c.bf16 %v5235, %v5234
      %v5258 = vpack.c.bf16 %v5237, %v5236
      %v5259 = vpack.c.bf16 %v5239, %v5238
      %v5260 = vpack.c.bf16 %v5241, %v5240
      %v5261 = vpack.c.bf16 %v5243, %v5242
      %v5262 = vpack.c.bf16 %v5245, %v5244
      %v5263 = vpack.c.bf16 %v5247, %v5246
      %5264 = vst [vmem:[#allocation3 + $0x18] sm:$0xff] %v5248
      %5265 = vst [vmem:[#allocation3 + $0x60] sm:$0xff] %v5249
      %5266 = vst [vmem:[#allocation3 + $0xa8] sm:$0xff] %v5250
      %5267 = vst [vmem:[#allocation3 + $0xf0] sm:$0xff] %v5251
      %5268 = vst [vmem:[#allocation3 + $0x138] sm:$0xff] %v5252
      %5269 = vst [vmem:[#allocation3 + $0x180] sm:$0xff] %v5253
      %5270 = vst [vmem:[#allocation3 + $0x1c8] sm:$0xff] %v5254
      %5271 = vst [vmem:[#allocation3 + $0x210] sm:$0xff] %v5255
      %5272 = vst [vmem:[#allocation3 + $0x258] sm:$0xff] %v5256
      %5273 = vst [vmem:[#allocation3 + $0x2a0] sm:$0xff] %v5257
      %5274 = vst [vmem:[#allocation3 + $0x2e8] sm:$0xff] %v5258
      %5275 = vst [vmem:[#allocation3 + $0x330] sm:$0xff] %v5259
      %5276 = vst [vmem:[#allocation3 + $0x378] sm:$0xff] %v5260
      %5277 = vst [vmem:[#allocation3 + $0x3c0] sm:$0xff] %v5261
      %5278 = vst [vmem:[#allocation3 + $0x408] sm:$0xff] %v5262
      %5279 = vst [vmem:[#allocation3 + $0x450] sm:$0xff] %v5263
      %v5280 = vld [vmem:[#allocation2 + $0x18] sm:$0xff]
      %v5281 = vld [vmem:[#allocation2 + $0x20] sm:$0xff]
      %v5282 = vld [vmem:[#allocation2 + $0x28] sm:$0xff]
      %v5283 = vld [vmem:[#allocation2 + $0x30] sm:$0xff]
      %v5284 = vld [vmem:[#allocation2 + $0x38] sm:$0xff]
      %v5285 = vld [vmem:[#allocation2 + $0x40] sm:$0xff]
      %v5286 = vld [vmem:[#allocation2 + $0x48] sm:$0xff]
      %v5287 = vld [vmem:[#allocation2 + $0x50] sm:$0xff]
      %v5288 = vld [vmem:[#allocation2 + $0x58] sm:$0xff]
      %v5289 = vld [vmem:[#allocation2 + $0x60] sm:$0xff]
      %v5290 = vld [vmem:[#allocation2 + $0x68] sm:$0xff]
      %v5291 = vld [vmem:[#allocation2 + $0x70] sm:$0xff]
      %v5292 = vld [vmem:[#allocation2 + $0x78] sm:$0xff]
      %v5293 = vld [vmem:[#allocation2 + $0x80] sm:$0xff]
      %v5294 = vld [vmem:[#allocation2 + $0x88] sm:$0xff]
      %v5295 = vld [vmem:[#allocation2 + $0x90] sm:$0xff]
      %v5296 = vld [vmem:[#allocation2 + $0x98] sm:$0xff]
      %v5297 = vld [vmem:[#allocation2 + $0xa0] sm:$0xff]
      %v5298 = vld [vmem:[#allocation2 + $0xa8] sm:$0xff]
      %v5299 = vld [vmem:[#allocation2 + $0xb0] sm:$0xff]
      %v5300 = vld [vmem:[#allocation2 + $0xb8] sm:$0xff]
      %v5301 = vld [vmem:[#allocation2 + $0xc0] sm:$0xff]
      %v5302 = vld [vmem:[#allocation2 + $0xc8] sm:$0xff]
      %v5303 = vld [vmem:[#allocation2 + $0xd0] sm:$0xff]
      %v5304 = vld [vmem:[#allocation2 + $0xd8] sm:$0xff]
      %v5305 = vld [vmem:[#allocation2 + $0xe0] sm:$0xff]
      %v5306 = vld [vmem:[#allocation2 + $0xe8] sm:$0xff]
      %v5307 = vld [vmem:[#allocation2 + $0xf0] sm:$0xff]
      %v5308 = vld [vmem:[#allocation2 + $0xf8] sm:$0xff]
      %v5309 = vld [vmem:[#allocation2 + $0x100] sm:$0xff]
      %v5310 = vld [vmem:[#allocation2 + $0x108] sm:$0xff]
      %v5311 = vld [vmem:[#allocation2 + $0x110] sm:$0xff]
      %v5312 = vpack.c.bf16 %v5281, %v5280
      %v5313 = vpack.c.bf16 %v5283, %v5282
      %v5314 = vpack.c.bf16 %v5285, %v5284
      %v5315 = vpack.c.bf16 %v5287, %v5286
      %v5316 = vpack.c.bf16 %v5289, %v5288
      %v5317 = vpack.c.bf16 %v5291, %v5290
      %v5318 = vpack.c.bf16 %v5293, %v5292
      %v5319 = vpack.c.bf16 %v5295, %v5294
      %v5320 = vpack.c.bf16 %v5297, %v5296
      %v5321 = vpack.c.bf16 %v5299, %v5298
      %v5322 = vpack.c.bf16 %v5301, %v5300
      %v5323 = vpack.c.bf16 %v5303, %v5302
      %v5324 = vpack.c.bf16 %v5305, %v5304
      %v5325 = vpack.c.bf16 %v5307, %v5306
      %v5326 = vpack.c.bf16 %v5309, %v5308
      %v5327 = vpack.c.bf16 %v5311, %v5310
      %5328 = vst [vmem:[#allocation3 + $0x20] sm:$0xff] %v5312
      %5329 = vst [vmem:[#allocation3 + $0x68] sm:$0xff] %v5313
      %5330 = vst [vmem:[#allocation3 + $0xb0] sm:$0xff] %v5314
      %5331 = vst [vmem:[#allocation3 + $0xf8] sm:$0xff] %v5315
      %5332 = vst [vmem:[#allocation3 + $0x140] sm:$0xff] %v5316
      %5333 = vst [vmem:[#allocation3 + $0x188] sm:$0xff] %v5317
      %5334 = vst [vmem:[#allocation3 + $0x1d0] sm:$0xff] %v5318
      %5335 = vst [vmem:[#allocation3 + $0x218] sm:$0xff] %v5319
      %5336 = vst [vmem:[#allocation3 + $0x260] sm:$0xff] %v5320
      %5337 = vst [vmem:[#allocation3 + $0x2a8] sm:$0xff] %v5321
      %5338 = vst [vmem:[#allocation3 + $0x2f0] sm:$0xff] %v5322
      %5339 = vst [vmem:[#allocation3 + $0x338] sm:$0xff] %v5323
      %5340 = vst [vmem:[#allocation3 + $0x380] sm:$0xff] %v5324
      %5341 = vst [vmem:[#allocation3 + $0x3c8] sm:$0xff] %v5325
      %5342 = vst [vmem:[#allocation3 + $0x410] sm:$0xff] %v5326
      %5343 = vst [vmem:[#allocation3 + $0x458] sm:$0xff] %v5327
      %v5344 = vld [vmem:[#allocation2 + $0x19] sm:$0xff]
      %v5345 = vld [vmem:[#allocation2 + $0x21] sm:$0xff]
      %v5346 = vld [vmem:[#allocation2 + $0x29] sm:$0xff]
      %v5347 = vld [vmem:[#allocation2 + $0x31] sm:$0xff]
      %v5348 = vld [vmem:[#allocation2 + $0x39] sm:$0xff]
      %v5349 = vld [vmem:[#allocation2 + $0x41] sm:$0xff]
      %v5350 = vld [vmem:[#allocation2 + $0x49] sm:$0xff]
      %v5351 = vld [vmem:[#allocation2 + $0x51] sm:$0xff]
      %v5352 = vld [vmem:[#allocation2 + $0x59] sm:$0xff]
      %v5353 = vld [vmem:[#allocation2 + $0x61] sm:$0xff]
      %v5354 = vld [vmem:[#allocation2 + $0x69] sm:$0xff]
      %v5355 = vld [vmem:[#allocation2 + $0x71] sm:$0xff]
      %v5356 = vld [vmem:[#allocation2 + $0x79] sm:$0xff]
      %v5357 = vld [vmem:[#allocation2 + $0x81] sm:$0xff]
      %v5358 = vld [vmem:[#allocation2 + $0x89] sm:$0xff]
      %v5359 = vld [vmem:[#allocation2 + $0x91] sm:$0xff]
      %v5360 = vld [vmem:[#allocation2 + $0x99] sm:$0xff]
      %v5361 = vld [vmem:[#allocation2 + $0xa1] sm:$0xff]
      %v5362 = vld [vmem:[#allocation2 + $0xa9] sm:$0xff]
      %v5363 = vld [vmem:[#allocation2 + $0xb1] sm:$0xff]
      %v5364 = vld [vmem:[#allocation2 + $0xb9] sm:$0xff]
      %v5365 = vld [vmem:[#allocation2 + $0xc1] sm:$0xff]
      %v5366 = vld [vmem:[#allocation2 + $0xc9] sm:$0xff]
      %v5367 = vld [vmem:[#allocation2 + $0xd1] sm:$0xff]
      %v5368 = vld [vmem:[#allocation2 + $0xd9] sm:$0xff]
      %v5369 = vld [vmem:[#allocation2 + $0xe1] sm:$0xff]
      %v5370 = vld [vmem:[#allocation2 + $0xe9] sm:$0xff]
      %v5371 = vld [vmem:[#allocation2 + $0xf1] sm:$0xff]
      %v5372 = vld [vmem:[#allocation2 + $0xf9] sm:$0xff]
      %v5373 = vld [vmem:[#allocation2 + $0x101] sm:$0xff]
      %v5374 = vld [vmem:[#allocation2 + $0x109] sm:$0xff]
      %v5375 = vld [vmem:[#allocation2 + $0x111] sm:$0xff]
      %v5376 = vsel %vm2218, %v5344, 0.0
      %v5377 = vsel %vm2219, %v5345, 0.0
      %v5378 = vsel %vm2220, %v5346, 0.0
      %v5379 = vsel %vm2221, %v5347, 0.0
      %v5380 = vsel %vm2222, %v5348, 0.0
      %v5381 = vsel %vm2223, %v5349, 0.0
      %v5382 = vsel %vm2224, %v5350, 0.0
      %v5383 = vsel %vm2225, %v5351, 0.0
      %v5384 = vsel %vm2226, %v5352, 0.0
      %v5385 = vsel %vm2227, %v5353, 0.0
      %v5386 = vsel %vm2228, %v5354, 0.0
      %v5387 = vsel %vm2229, %v5355, 0.0
      %v5388 = vsel %vm2230, %v5356, 0.0
      %v5389 = vsel %vm2231, %v5357, 0.0
      %v5390 = vsel %vm2232, %v5358, 0.0
      %v5391 = vsel %vm2233, %v5359, 0.0
      %v5392 = vsel %vm2234, %v5360, 0.0
      %v5393 = vsel %vm2235, %v5361, 0.0
      %v5394 = vsel %vm2236, %v5362, 0.0
      %v5395 = vsel %vm2237, %v5363, 0.0
      %v5396 = vsel %vm2238, %v5364, 0.0
      %v5397 = vsel %vm2239, %v5365, 0.0
      %v5398 = vsel %vm2240, %v5366, 0.0
      %v5399 = vsel %vm2241, %v5367, 0.0
      %v5400 = vsel %vm2242, %v5368, 0.0
      %v5401 = vsel %vm2243, %v5369, 0.0
      %v5402 = vsel %vm2244, %v5370, 0.0
      %v5403 = vsel %vm2245, %v5371, 0.0
      %v5404 = vsel %vm2246, %v5372, 0.0
      %v5405 = vsel %vm2247, %v5373, 0.0
      %v5406 = vsel %vm2248, %v5374, 0.0
      %v5407 = vsel %vm2249, %v5375, 0.0
      %v5408 = vpack.c.bf16 %v5377, %v5376
      %v5409 = vpack.c.bf16 %v5379, %v5378
      %v5410 = vpack.c.bf16 %v5381, %v5380
      %v5411 = vpack.c.bf16 %v5383, %v5382
      %v5412 = vpack.c.bf16 %v5385, %v5384
      %v5413 = vpack.c.bf16 %v5387, %v5386
      %v5414 = vpack.c.bf16 %v5389, %v5388
      %v5415 = vpack.c.bf16 %v5391, %v5390
      %v5416 = vpack.c.bf16 %v5393, %v5392
      %v5417 = vpack.c.bf16 %v5395, %v5394
      %v5418 = vpack.c.bf16 %v5397, %v5396
      %v5419 = vpack.c.bf16 %v5399, %v5398
      %v5420 = vpack.c.bf16 %v5401, %v5400
      %v5421 = vpack.c.bf16 %v5403, %v5402
      %v5422 = vpack.c.bf16 %v5405, %v5404
      %v5423 = vpack.c.bf16 %v5407, %v5406
      %5424 = vst [vmem:[#allocation3 + $0x28] sm:$0xff] %v5408
      %5425 = vst [vmem:[#allocation3 + $0x70] sm:$0xff] %v5409
      %5426 = vst [vmem:[#allocation3 + $0xb8] sm:$0xff] %v5410
      %5427 = vst [vmem:[#allocation3 + $0x100] sm:$0xff] %v5411
      %5428 = vst [vmem:[#allocation3 + $0x148] sm:$0xff] %v5412
      %5429 = vst [vmem:[#allocation3 + $0x190] sm:$0xff] %v5413
      %5430 = vst [vmem:[#allocation3 + $0x1d8] sm:$0xff] %v5414
      %5431 = vst [vmem:[#allocation3 + $0x220] sm:$0xff] %v5415
      %5432 = vst [vmem:[#allocation3 + $0x268] sm:$0xff] %v5416
      %5433 = vst [vmem:[#allocation3 + $0x2b0] sm:$0xff] %v5417
      %5434 = vst [vmem:[#allocation3 + $0x2f8] sm:$0xff] %v5418
      %5435 = vst [vmem:[#allocation3 + $0x340] sm:$0xff] %v5419
      %5436 = vst [vmem:[#allocation3 + $0x388] sm:$0xff] %v5420
      %5437 = vst [vmem:[#allocation3 + $0x3d0] sm:$0xff] %v5421
      %5438 = vst [vmem:[#allocation3 + $0x418] sm:$0xff] %v5422
      %5439 = vst [vmem:[#allocation3 + $0x460] sm:$0xff] %v5423
      %v5440 = vld [vmem:[#allocation2 + $0x27] sm:$0xff]
      %v5441 = vld [vmem:[#allocation2 + $0x2f] sm:$0xff]
      %v5442 = vld [vmem:[#allocation2 + $0x37] sm:$0xff]
      %v5443 = vld [vmem:[#allocation2 + $0x3f] sm:$0xff]
      %v5444 = vld [vmem:[#allocation2 + $0x47] sm:$0xff]
      %v5445 = vld [vmem:[#allocation2 + $0x4f] sm:$0xff]
      %v5446 = vld [vmem:[#allocation2 + $0x57] sm:$0xff]
      %v5447 = vld [vmem:[#allocation2 + $0x5f] sm:$0xff]
      %v5448 = vld [vmem:[#allocation2 + $0x67] sm:$0xff]
      %v5449 = vld [vmem:[#allocation2 + $0x6f] sm:$0xff]
      %v5450 = vld [vmem:[#allocation2 + $0x77] sm:$0xff]
      %v5451 = vld [vmem:[#allocation2 + $0x7f] sm:$0xff]
      %v5452 = vld [vmem:[#allocation2 + $0x87] sm:$0xff]
      %v5453 = vld [vmem:[#allocation2 + $0x8f] sm:$0xff]
      %v5454 = vld [vmem:[#allocation2 + $0x97] sm:$0xff]
      %v5455 = vld [vmem:[#allocation2 + $0x9f] sm:$0xff]
      %v5456 = vld [vmem:[#allocation2 + $0xa7] sm:$0xff]
      %v5457 = vld [vmem:[#allocation2 + $0xaf] sm:$0xff]
      %v5458 = vld [vmem:[#allocation2 + $0xb7] sm:$0xff]
      %v5459 = vld [vmem:[#allocation2 + $0xbf] sm:$0xff]
      %v5460 = vld [vmem:[#allocation2 + $0xc7] sm:$0xff]
      %v5461 = vld [vmem:[#allocation2 + $0xcf] sm:$0xff]
      %v5462 = vld [vmem:[#allocation2 + $0xd7] sm:$0xff]
      %v5463 = vld [vmem:[#allocation2 + $0xdf] sm:$0xff]
      %v5464 = vld [vmem:[#allocation2 + $0xe7] sm:$0xff]
      %v5465 = vld [vmem:[#allocation2 + $0xef] sm:$0xff]
      %v5466 = vld [vmem:[#allocation2 + $0xf7] sm:$0xff]
      %v5467 = vld [vmem:[#allocation2 + $0xff] sm:$0xff]
      %v5468 = vld [vmem:[#allocation2 + $0x107] sm:$0xff]
      %v5469 = vld [vmem:[#allocation2 + $0x10f] sm:$0xff]
      %v5470 = vld [vmem:[#allocation2 + $0x117] sm:$0xff]
      %v5471 = vld [vmem:[#allocation2 + $0x11f] sm:$0xff]
      %v5472 = vsel %vm1994, %v5440, 0.0
      %v5473 = vsel %vm1995, %v5441, 0.0
      %v5474 = vsel %vm1996, %v5442, 0.0
      %v5475 = vsel %vm1997, %v5443, 0.0
      %v5476 = vsel %vm1998, %v5444, 0.0
      %v5477 = vsel %vm1999, %v5445, 0.0
      %v5478 = vsel %vm2000, %v5446, 0.0
      %v5479 = vsel %vm2001, %v5447, 0.0
      %v5480 = vsel %vm2002, %v5448, 0.0
      %v5481 = vsel %vm2003, %v5449, 0.0
      %v5482 = vsel %vm2004, %v5450, 0.0
      %v5483 = vsel %vm2005, %v5451, 0.0
      %v5484 = vsel %vm2006, %v5452, 0.0
      %v5485 = vsel %vm2007, %v5453, 0.0
      %v5486 = vsel %vm2008, %v5454, 0.0
      %v5487 = vsel %vm2009, %v5455, 0.0
      %v5488 = vsel %vm2010, %v5456, 0.0
      %v5489 = vsel %vm2011, %v5457, 0.0
      %v5490 = vsel %vm2012, %v5458, 0.0
      %v5491 = vsel %vm2013, %v5459, 0.0
      %v5492 = vsel %vm2014, %v5460, 0.0
      %v5493 = vsel %vm2015, %v5461, 0.0
      %v5494 = vsel %vm2016, %v5462, 0.0
      %v5495 = vsel %vm2017, %v5463, 0.0
      %v5496 = vsel %vm2018, %v5464, 0.0
      %v5497 = vsel %vm2019, %v5465, 0.0
      %v5498 = vsel %vm2020, %v5466, 0.0
      %v5499 = vsel %vm2021, %v5467, 0.0
      %v5500 = vsel %vm2022, %v5468, 0.0
      %v5501 = vsel %vm2023, %v5469, 0.0
      %v5502 = vsel %vm2024, %v5470, 0.0
      %v5503 = vsel %vm2025, %v5471, 0.0
      %v5504 = vpack.c.bf16 %v5473, %v5472
      %v5505 = vpack.c.bf16 %v5475, %v5474
      %v5506 = vpack.c.bf16 %v5477, %v5476
      %v5507 = vpack.c.bf16 %v5479, %v5478
      %v5508 = vpack.c.bf16 %v5481, %v5480
      %v5509 = vpack.c.bf16 %v5483, %v5482
      %v5510 = vpack.c.bf16 %v5485, %v5484
      %v5511 = vpack.c.bf16 %v5487, %v5486
      %v5512 = vpack.c.bf16 %v5489, %v5488
      %v5513 = vpack.c.bf16 %v5491, %v5490
      %v5514 = vpack.c.bf16 %v5493, %v5492
      %v5515 = vpack.c.bf16 %v5495, %v5494
      %v5516 = vpack.c.bf16 %v5497, %v5496
      %v5517 = vpack.c.bf16 %v5499, %v5498
      %v5518 = vpack.c.bf16 %v5501, %v5500
      %v5519 = vpack.c.bf16 %v5503, %v5502
      %5520 = vst [vmem:[#allocation3 + $0x30] sm:$0xff] %v5504
      %5521 = vst [vmem:[#allocation3 + $0x78] sm:$0xff] %v5505
      %5522 = vst [vmem:[#allocation3 + $0xc0] sm:$0xff] %v5506
      %5523 = vst [vmem:[#allocation3 + $0x108] sm:$0xff] %v5507
      %5524 = vst [vmem:[#allocation3 + $0x150] sm:$0xff] %v5508
      %5525 = vst [vmem:[#allocation3 + $0x198] sm:$0xff] %v5509
      %5526 = vst [vmem:[#allocation3 + $0x1e0] sm:$0xff] %v5510
      %5527 = vst [vmem:[#allocation3 + $0x228] sm:$0xff] %v5511
      %5528 = vst [vmem:[#allocation3 + $0x270] sm:$0xff] %v5512
      %5529 = vst [vmem:[#allocation3 + $0x2b8] sm:$0xff] %v5513
      %5530 = vst [vmem:[#allocation3 + $0x300] sm:$0xff] %v5514
      %5531 = vst [vmem:[#allocation3 + $0x348] sm:$0xff] %v5515
      %5532 = vst [vmem:[#allocation3 + $0x390] sm:$0xff] %v5516
      %5533 = vst [vmem:[#allocation3 + $0x3d8] sm:$0xff] %v5517
      %5534 = vst [vmem:[#allocation3 + $0x420] sm:$0xff] %v5518
      %5535 = vst [vmem:[#allocation3 + $0x468] sm:$0xff] %v5519
      %v5536 = vld [vmem:[#allocation2 + $0x28] sm:$0xff]
      %v5537 = vld [vmem:[#allocation2 + $0x30] sm:$0xff]
      %v5538 = vld [vmem:[#allocation2 + $0x38] sm:$0xff]
      %v5539 = vld [vmem:[#allocation2 + $0x40] sm:$0xff]
      %v5540 = vld [vmem:[#allocation2 + $0x48] sm:$0xff]
      %v5541 = vld [vmem:[#allocation2 + $0x50] sm:$0xff]
      %v5542 = vld [vmem:[#allocation2 + $0x58] sm:$0xff]
      %v5543 = vld [vmem:[#allocation2 + $0x60] sm:$0xff]
      %v5544 = vld [vmem:[#allocation2 + $0x68] sm:$0xff]
      %v5545 = vld [vmem:[#allocation2 + $0x70] sm:$0xff]
      %v5546 = vld [vmem:[#allocation2 + $0x78] sm:$0xff]
      %v5547 = vld [vmem:[#allocation2 + $0x80] sm:$0xff]
      %v5548 = vld [vmem:[#allocation2 + $0x88] sm:$0xff]
      %v5549 = vld [vmem:[#allocation2 + $0x90] sm:$0xff]
      %v5550 = vld [vmem:[#allocation2 + $0x98] sm:$0xff]
      %v5551 = vld [vmem:[#allocation2 + $0xa0] sm:$0xff]
      %v5552 = vld [vmem:[#allocation2 + $0xa8] sm:$0xff]
      %v5553 = vld [vmem:[#allocation2 + $0xb0] sm:$0xff]
      %v5554 = vld [vmem:[#allocation2 + $0xb8] sm:$0xff]
      %v5555 = vld [vmem:[#allocation2 + $0xc0] sm:$0xff]
      %v5556 = vld [vmem:[#allocation2 + $0xc8] sm:$0xff]
      %v5557 = vld [vmem:[#allocation2 + $0xd0] sm:$0xff]
      %v5558 = vld [vmem:[#allocation2 + $0xd8] sm:$0xff]
      %v5559 = vld [vmem:[#allocation2 + $0xe0] sm:$0xff]
      %v5560 = vld [vmem:[#allocation2 + $0xe8] sm:$0xff]
      %v5561 = vld [vmem:[#allocation2 + $0xf0] sm:$0xff]
      %v5562 = vld [vmem:[#allocation2 + $0xf8] sm:$0xff]
      %v5563 = vld [vmem:[#allocation2 + $0x100] sm:$0xff]
      %v5564 = vld [vmem:[#allocation2 + $0x108] sm:$0xff]
      %v5565 = vld [vmem:[#allocation2 + $0x110] sm:$0xff]
      %v5566 = vld [vmem:[#allocation2 + $0x118] sm:$0xff]
      %v5567 = vld [vmem:[#allocation2 + $0x120] sm:$0xff]
      %v5568 = vpack.c.bf16 %v5537, %v5536
      %v5569 = vpack.c.bf16 %v5539, %v5538
      %v5570 = vpack.c.bf16 %v5541, %v5540
      %v5571 = vpack.c.bf16 %v5543, %v5542
      %v5572 = vpack.c.bf16 %v5545, %v5544
      %v5573 = vpack.c.bf16 %v5547, %v5546
      %v5574 = vpack.c.bf16 %v5549, %v5548
      %v5575 = vpack.c.bf16 %v5551, %v5550
      %v5576 = vpack.c.bf16 %v5553, %v5552
      %v5577 = vpack.c.bf16 %v5555, %v5554
      %v5578 = vpack.c.bf16 %v5557, %v5556
      %v5579 = vpack.c.bf16 %v5559, %v5558
      %v5580 = vpack.c.bf16 %v5561, %v5560
      %v5581 = vpack.c.bf16 %v5563, %v5562
      %v5582 = vpack.c.bf16 %v5565, %v5564
      %v5583 = vpack.c.bf16 %v5567, %v5566
      %5584 = vst [vmem:[#allocation3 + $0x38] sm:$0xff] %v5568
      %5585 = vst [vmem:[#allocation3 + $0x80] sm:$0xff] %v5569
      %5586 = vst [vmem:[#allocation3 + $0xc8] sm:$0xff] %v5570
      %5587 = vst [vmem:[#allocation3 + $0x110] sm:$0xff] %v5571
      %5588 = vst [vmem:[#allocation3 + $0x158] sm:$0xff] %v5572
      %5589 = vst [vmem:[#allocation3 + $0x1a0] sm:$0xff] %v5573
      %5590 = vst [vmem:[#allocation3 + $0x1e8] sm:$0xff] %v5574
      %5591 = vst [vmem:[#allocation3 + $0x230] sm:$0xff] %v5575
      %5592 = vst [vmem:[#allocation3 + $0x278] sm:$0xff] %v5576
      %5593 = vst [vmem:[#allocation3 + $0x2c0] sm:$0xff] %v5577
      %5594 = vst [vmem:[#allocation3 + $0x308] sm:$0xff] %v5578
      %5595 = vst [vmem:[#allocation3 + $0x350] sm:$0xff] %v5579
      %5596 = vst [vmem:[#allocation3 + $0x398] sm:$0xff] %v5580
      %5597 = vst [vmem:[#allocation3 + $0x3e0] sm:$0xff] %v5581
      %5598 = vst [vmem:[#allocation3 + $0x428] sm:$0xff] %v5582
      %5599 = vst [vmem:[#allocation3 + $0x470] sm:$0xff] %v5583
      %v5600 = vld [vmem:[#allocation2 + $0x29] sm:$0xff]
      %v5601 = vld [vmem:[#allocation2 + $0x31] sm:$0xff]
      %v5602 = vld [vmem:[#allocation2 + $0x39] sm:$0xff]
      %v5603 = vld [vmem:[#allocation2 + $0x41] sm:$0xff]
      %v5604 = vld [vmem:[#allocation2 + $0x49] sm:$0xff]
      %v5605 = vld [vmem:[#allocation2 + $0x51] sm:$0xff]
      %v5606 = vld [vmem:[#allocation2 + $0x59] sm:$0xff]
      %v5607 = vld [vmem:[#allocation2 + $0x61] sm:$0xff]
      %v5608 = vld [vmem:[#allocation2 + $0x69] sm:$0xff]
      %v5609 = vld [vmem:[#allocation2 + $0x71] sm:$0xff]
      %v5610 = vld [vmem:[#allocation2 + $0x79] sm:$0xff]
      %v5611 = vld [vmem:[#allocation2 + $0x81] sm:$0xff]
      %v5612 = vld [vmem:[#allocation2 + $0x89] sm:$0xff]
      %v5613 = vld [vmem:[#allocation2 + $0x91] sm:$0xff]
      %v5614 = vld [vmem:[#allocation2 + $0x99] sm:$0xff]
      %v5615 = vld [vmem:[#allocation2 + $0xa1] sm:$0xff]
      %v5616 = vld [vmem:[#allocation2 + $0xa9] sm:$0xff]
      %v5617 = vld [vmem:[#allocation2 + $0xb1] sm:$0xff]
      %v5618 = vld [vmem:[#allocation2 + $0xb9] sm:$0xff]
      %v5619 = vld [vmem:[#allocation2 + $0xc1] sm:$0xff]
      %v5620 = vld [vmem:[#allocation2 + $0xc9] sm:$0xff]
      %v5621 = vld [vmem:[#allocation2 + $0xd1] sm:$0xff]
      %v5622 = vld [vmem:[#allocation2 + $0xd9] sm:$0xff]
      %v5623 = vld [vmem:[#allocation2 + $0xe1] sm:$0xff]
      %v5624 = vld [vmem:[#allocation2 + $0xe9] sm:$0xff]
      %v5625 = vld [vmem:[#allocation2 + $0xf1] sm:$0xff]
      %v5626 = vld [vmem:[#allocation2 + $0xf9] sm:$0xff]
      %v5627 = vld [vmem:[#allocation2 + $0x101] sm:$0xff]
      %v5628 = vld [vmem:[#allocation2 + $0x109] sm:$0xff]
      %v5629 = vld [vmem:[#allocation2 + $0x111] sm:$0xff]
      %v5630 = vld [vmem:[#allocation2 + $0x119] sm:$0xff]
      %v5631 = vld [vmem:[#allocation2 + $0x121] sm:$0xff]
      %v5632 = vsel %vm2218, %v5600, 0.0
      %v5633 = vsel %vm2219, %v5601, 0.0
      %v5634 = vsel %vm2220, %v5602, 0.0
      %v5635 = vsel %vm2221, %v5603, 0.0
      %v5636 = vsel %vm2222, %v5604, 0.0
      %v5637 = vsel %vm2223, %v5605, 0.0
      %v5638 = vsel %vm2224, %v5606, 0.0
      %v5639 = vsel %vm2225, %v5607, 0.0
      %v5640 = vsel %vm2226, %v5608, 0.0
      %v5641 = vsel %vm2227, %v5609, 0.0
      %v5642 = vsel %vm2228, %v5610, 0.0
      %v5643 = vsel %vm2229, %v5611, 0.0
      %v5644 = vsel %vm2230, %v5612, 0.0
      %v5645 = vsel %vm2231, %v5613, 0.0
      %v5646 = vsel %vm2232, %v5614, 0.0
      %v5647 = vsel %vm2233, %v5615, 0.0
      %v5648 = vsel %vm2234, %v5616, 0.0
      %v5649 = vsel %vm2235, %v5617, 0.0
      %v5650 = vsel %vm2236, %v5618, 0.0
      %v5651 = vsel %vm2237, %v5619, 0.0
      %v5652 = vsel %vm2238, %v5620, 0.0
      %v5653 = vsel %vm2239, %v5621, 0.0
      %v5654 = vsel %vm2240, %v5622, 0.0
      %v5655 = vsel %vm2241, %v5623, 0.0
      %v5656 = vsel %vm2242, %v5624, 0.0
      %v5657 = vsel %vm2243, %v5625, 0.0
      %v5658 = vsel %vm2244, %v5626, 0.0
      %v5659 = vsel %vm2245, %v5627, 0.0
      %v5660 = vsel %vm2246, %v5628, 0.0
      %v5661 = vsel %vm2247, %v5629, 0.0
      %v5662 = vsel %vm2248, %v5630, 0.0
      %v5663 = vsel %vm2249, %v5631, 0.0
      %v5664 = vpack.c.bf16 %v5633, %v5632
      %v5665 = vpack.c.bf16 %v5635, %v5634
      %v5666 = vpack.c.bf16 %v5637, %v5636
      %v5667 = vpack.c.bf16 %v5639, %v5638
      %v5668 = vpack.c.bf16 %v5641, %v5640
      %v5669 = vpack.c.bf16 %v5643, %v5642
      %v5670 = vpack.c.bf16 %v5645, %v5644
      %v5671 = vpack.c.bf16 %v5647, %v5646
      %v5672 = vpack.c.bf16 %v5649, %v5648
      %v5673 = vpack.c.bf16 %v5651, %v5650
      %v5674 = vpack.c.bf16 %v5653, %v5652
      %v5675 = vpack.c.bf16 %v5655, %v5654
      %v5676 = vpack.c.bf16 %v5657, %v5656
      %v5677 = vpack.c.bf16 %v5659, %v5658
      %v5678 = vpack.c.bf16 %v5661, %v5660
      %v5679 = vpack.c.bf16 %v5663, %v5662
      %5680 = vst [vmem:[#allocation3 + $0x40] sm:$0xff] %v5664
      %5681 = vst [vmem:[#allocation3 + $0x88] sm:$0xff] %v5665
      %5682 = vst [vmem:[#allocation3 + $0xd0] sm:$0xff] %v5666
      %5683 = vst [vmem:[#allocation3 + $0x118] sm:$0xff] %v5667
      %5684 = vst [vmem:[#allocation3 + $0x160] sm:$0xff] %v5668
      %5685 = vst [vmem:[#allocation3 + $0x1a8] sm:$0xff] %v5669
      %5686 = vst [vmem:[#allocation3 + $0x1f0] sm:$0xff] %v5670
      %5687 = vst [vmem:[#allocation3 + $0x238] sm:$0xff] %v5671
      %5688 = vst [vmem:[#allocation3 + $0x280] sm:$0xff] %v5672
      %5689 = vst [vmem:[#allocation3 + $0x2c8] sm:$0xff] %v5673
      %5690 = vst [vmem:[#allocation3 + $0x310] sm:$0xff] %v5674
      %5691 = vst [vmem:[#allocation3 + $0x358] sm:$0xff] %v5675
      %5692 = vst [vmem:[#allocation3 + $0x3a0] sm:$0xff] %v5676
      %5693 = vst [vmem:[#allocation3 + $0x3e8] sm:$0xff] %v5677
      %5694 = vst [vmem:[#allocation3 + $0x430] sm:$0xff] %v5678
      %5695 = vst [vmem:[#allocation3 + $0x478] sm:$0xff] %v5679
      %v5696 = vld [vmem:[#allocation3] sm:$0xff]
      %v5697 = vld [vmem:[#allocation3 + $0x8] sm:$0xff]
      %v5698 = vld [vmem:[#allocation3 + $0x10] sm:$0xff]
      %v5699 = vld [vmem:[#allocation3 + $0x18] sm:$0xff]
      %v5700 = vld [vmem:[#allocation3 + $0x20] sm:$0xff]
      %v5701 = vld [vmem:[#allocation3 + $0x28] sm:$0xff]
      %v5702 = vld [vmem:[#allocation3 + $0x30] sm:$0xff]
      %v5703 = vld [vmem:[#allocation3 + $0x38] sm:$0xff]
      %v5704 = vld [vmem:[#allocation3 + $0x40] sm:$0xff]
      %v5705 = vld [vmem:[#allocation3 + $0x48] sm:$0xff]
      %v5706 = vld [vmem:[#allocation3 + $0x50] sm:$0xff]
      %v5707 = vld [vmem:[#allocation3 + $0x58] sm:$0xff]
      %v5708 = vld [vmem:[#allocation3 + $0x60] sm:$0xff]
      %v5709 = vld [vmem:[#allocation3 + $0x68] sm:$0xff]
      %v5710 = vld [vmem:[#allocation3 + $0x70] sm:$0xff]
      %v5711 = vld [vmem:[#allocation3 + $0x78] sm:$0xff]
      %v5712 = vld [vmem:[#allocation3 + $0x80] sm:$0xff]
      %v5713 = vld [vmem:[#allocation3 + $0x88] sm:$0xff]
      %v5714 = vld [vmem:[#allocation3 + $0x90] sm:$0xff]
      %v5715 = vld [vmem:[#allocation3 + $0x98] sm:$0xff]
      %v5716 = vld [vmem:[#allocation3 + $0xa0] sm:$0xff]
      %v5717 = vld [vmem:[#allocation3 + $0xa8] sm:$0xff]
      %v5718 = vld [vmem:[#allocation3 + $0xb0] sm:$0xff]
      %v5719 = vld [vmem:[#allocation3 + $0xb8] sm:$0xff]
      %v5720 = vld [vmem:[#allocation3 + $0xc0] sm:$0xff]
      %v5721 = vld [vmem:[#allocation3 + $0xc8] sm:$0xff]
      %v5722 = vld [vmem:[#allocation3 + $0xd0] sm:$0xff]
      %v5723 = vld [vmem:[#allocation3 + $0xd8] sm:$0xff]
      %v5724 = vld [vmem:[#allocation3 + $0xe0] sm:$0xff]
      %v5725 = vld [vmem:[#allocation3 + $0xe8] sm:$0xff]
      %v5726 = vld [vmem:[#allocation3 + $0xf0] sm:$0xff]
      %v5727 = vld [vmem:[#allocation3 + $0xf8] sm:$0xff]
      %v5728 = vld [vmem:[#allocation3 + $0x100] sm:$0xff]
      %v5729 = vld [vmem:[#allocation3 + $0x108] sm:$0xff]
      %v5730 = vld [vmem:[#allocation3 + $0x110] sm:$0xff]
      %v5731 = vld [vmem:[#allocation3 + $0x118] sm:$0xff]
      %v5732 = vld [vmem:[#allocation3 + $0x120] sm:$0xff]
      %v5733 = vld [vmem:[#allocation3 + $0x128] sm:$0xff]
      %v5734 = vld [vmem:[#allocation3 + $0x130] sm:$0xff]
      %v5735 = vld [vmem:[#allocation3 + $0x138] sm:$0xff]
      %v5736 = vld [vmem:[#allocation3 + $0x140] sm:$0xff]
      %v5737 = vld [vmem:[#allocation3 + $0x148] sm:$0xff]
      %v5738 = vld [vmem:[#allocation3 + $0x150] sm:$0xff]
      %v5739 = vld [vmem:[#allocation3 + $0x158] sm:$0xff]
      %v5740 = vld [vmem:[#allocation3 + $0x160] sm:$0xff]
      %v5741 = vld [vmem:[#allocation3 + $0x168] sm:$0xff]
      %v5742 = vld [vmem:[#allocation3 + $0x170] sm:$0xff]
      %v5743 = vld [vmem:[#allocation3 + $0x178] sm:$0xff]
      %v5744 = vld [vmem:[#allocation3 + $0x180] sm:$0xff]
      %v5745 = vld [vmem:[#allocation3 + $0x188] sm:$0xff]
      %v5746 = vld [vmem:[#allocation3 + $0x190] sm:$0xff]
      %v5747 = vld [vmem:[#allocation3 + $0x198] sm:$0xff]
      %v5748 = vld [vmem:[#allocation3 + $0x1a0] sm:$0xff]
      %v5749 = vld [vmem:[#allocation3 + $0x1a8] sm:$0xff]
      %v5750 = vld [vmem:[#allocation3 + $0x1b0] sm:$0xff]
      %v5751 = vld [vmem:[#allocation3 + $0x1b8] sm:$0xff]
      %v5752 = vld [vmem:[#allocation3 + $0x1c0] sm:$0xff]
      %v5753 = vld [vmem:[#allocation3 + $0x1c8] sm:$0xff]
      %v5754 = vld [vmem:[#allocation3 + $0x1d0] sm:$0xff]
      %v5755 = vld [vmem:[#allocation3 + $0x1d8] sm:$0xff]
      %v5756 = vld [vmem:[#allocation3 + $0x1e0] sm:$0xff]
      %v5757 = vld [vmem:[#allocation3 + $0x1e8] sm:$0xff]
      %v5758 = vld [vmem:[#allocation3 + $0x1f0] sm:$0xff]
      %v5759 = vld [vmem:[#allocation3 + $0x1f8] sm:$0xff]
      %v5760 = vld [vmem:[#allocation3 + $0x200] sm:$0xff]
      %v5761 = vld [vmem:[#allocation3 + $0x208] sm:$0xff]
      %v5762 = vld [vmem:[#allocation3 + $0x210] sm:$0xff]
      %v5763 = vld [vmem:[#allocation3 + $0x218] sm:$0xff]
      %v5764 = vld [vmem:[#allocation3 + $0x220] sm:$0xff]
      %v5765 = vld [vmem:[#allocation3 + $0x228] sm:$0xff]
      %v5766 = vld [vmem:[#allocation3 + $0x230] sm:$0xff]
      %v5767 = vld [vmem:[#allocation3 + $0x238] sm:$0xff]
      %v5768 = vld [vmem:[#allocation3 + $0x240] sm:$0xff]
      %v5769 = vld [vmem:[#allocation3 + $0x248] sm:$0xff]
      %v5770 = vld [vmem:[#allocation3 + $0x250] sm:$0xff]
      %v5771 = vld [vmem:[#allocation3 + $0x258] sm:$0xff]
      %v5772 = vld [vmem:[#allocation3 + $0x260] sm:$0xff]
      %v5773 = vld [vmem:[#allocation3 + $0x268] sm:$0xff]
      %v5774 = vld [vmem:[#allocation3 + $0x270] sm:$0xff]
      %v5775 = vld [vmem:[#allocation3 + $0x278] sm:$0xff]
      %v5776 = vld [vmem:[#allocation3 + $0x280] sm:$0xff]
      %v5777 = vld [vmem:[#allocation3 + $0x288] sm:$0xff]
      %v5778 = vld [vmem:[#allocation3 + $0x290] sm:$0xff]
      %v5779 = vld [vmem:[#allocation3 + $0x298] sm:$0xff]
      %v5780 = vld [vmem:[#allocation3 + $0x2a0] sm:$0xff]
      %v5781 = vld [vmem:[#allocation3 + $0x2a8] sm:$0xff]
      %v5782 = vld [vmem:[#allocation3 + $0x2b0] sm:$0xff]
      %v5783 = vld [vmem:[#allocation3 + $0x2b8] sm:$0xff]
      %v5784 = vld [vmem:[#allocation3 + $0x2c0] sm:$0xff]
      %v5785 = vld [vmem:[#allocation3 + $0x2c8] sm:$0xff]
      %v5786 = vld [vmem:[#allocation3 + $0x2d0] sm:$0xff]
      %v5787 = vld [vmem:[#allocation3 + $0x2d8] sm:$0xff]
      %v5788 = vld [vmem:[#allocation3 + $0x2e0] sm:$0xff]
      %v5789 = vld [vmem:[#allocation3 + $0x2e8] sm:$0xff]
      %v5790 = vld [vmem:[#allocation3 + $0x2f0] sm:$0xff]
      %v5791 = vld [vmem:[#allocation3 + $0x2f8] sm:$0xff]
      %v5792 = vld [vmem:[#allocation3 + $0x300] sm:$0xff]
      %v5793 = vld [vmem:[#allocation3 + $0x308] sm:$0xff]
      %v5794 = vld [vmem:[#allocation3 + $0x310] sm:$0xff]
      %v5795 = vld [vmem:[#allocation3 + $0x318] sm:$0xff]
      %v5796 = vld [vmem:[#allocation3 + $0x320] sm:$0xff]
      %v5797 = vld [vmem:[#allocation3 + $0x328] sm:$0xff]
      %v5798 = vld [vmem:[#allocation3 + $0x330] sm:$0xff]
      %v5799 = vld [vmem:[#allocation3 + $0x338] sm:$0xff]
      %v5800 = vld [vmem:[#allocation3 + $0x340] sm:$0xff]
      %v5801 = vld [vmem:[#allocation3 + $0x348] sm:$0xff]
      %v5802 = vld [vmem:[#allocation3 + $0x350] sm:$0xff]
      %v5803 = vld [vmem:[#allocation3 + $0x358] sm:$0xff]
      %v5804 = vld [vmem:[#allocation3 + $0x360] sm:$0xff]
      %v5805 = vld [vmem:[#allocation3 + $0x368] sm:$0xff]
      %v5806 = vld [vmem:[#allocation3 + $0x370] sm:$0xff]
      %v5807 = vld [vmem:[#allocation3 + $0x378] sm:$0xff]
      %v5808 = vld [vmem:[#allocation3 + $0x380] sm:$0xff]
      %v5809 = vld [vmem:[#allocation3 + $0x388] sm:$0xff]
      %v5810 = vld [vmem:[#allocation3 + $0x390] sm:$0xff]
      %v5811 = vld [vmem:[#allocation3 + $0x398] sm:$0xff]
      %v5812 = vld [vmem:[#allocation3 + $0x3a0] sm:$0xff]
      %v5813 = vld [vmem:[#allocation3 + $0x3a8] sm:$0xff]
      %v5814 = vld [vmem:[#allocation3 + $0x3b0] sm:$0xff]
      %v5815 = vld [vmem:[#allocation3 + $0x3b8] sm:$0xff]
      %v5816 = vld [vmem:[#allocation3 + $0x3c0] sm:$0xff]
      %v5817 = vld [vmem:[#allocation3 + $0x3c8] sm:$0xff]
      %v5818 = vld [vmem:[#allocation3 + $0x3d0] sm:$0xff]
      %v5819 = vld [vmem:[#allocation3 + $0x3d8] sm:$0xff]
      %v5820 = vld [vmem:[#allocation3 + $0x3e0] sm:$0xff]
      %v5821 = vld [vmem:[#allocation3 + $0x3e8] sm:$0xff]
      %v5822 = vld [vmem:[#allocation3 + $0x3f0] sm:$0xff]
      %v5823 = vld [vmem:[#allocation3 + $0x3f8] sm:$0xff]
      %v5824 = vld [vmem:[#allocation3 + $0x400] sm:$0xff]
      %v5825 = vld [vmem:[#allocation3 + $0x408] sm:$0xff]
      %v5826 = vld [vmem:[#allocation3 + $0x410] sm:$0xff]
      %v5827 = vld [vmem:[#allocation3 + $0x418] sm:$0xff]
      %v5828 = vld [vmem:[#allocation3 + $0x420] sm:$0xff]
      %v5829 = vld [vmem:[#allocation3 + $0x428] sm:$0xff]
      %v5830 = vld [vmem:[#allocation3 + $0x430] sm:$0xff]
      %v5831 = vld [vmem:[#allocation3 + $0x438] sm:$0xff]
      %v5832 = vld [vmem:[#allocation3 + $0x440] sm:$0xff]
      %v5833 = vld [vmem:[#allocation3 + $0x448] sm:$0xff]
      %v5834 = vld [vmem:[#allocation3 + $0x450] sm:$0xff]
      %v5835 = vld [vmem:[#allocation3 + $0x458] sm:$0xff]
      %v5836 = vld [vmem:[#allocation3 + $0x460] sm:$0xff]
      %v5837 = vld [vmem:[#allocation3 + $0x468] sm:$0xff]
      %v5838 = vld [vmem:[#allocation3 + $0x470] sm:$0xff]
      %v5839 = vld [vmem:[#allocation3 + $0x478] sm:$0xff]
      %s5840 = scalar_lea.vmem %s5, 576
      %v5841 = vld [vmem:[%s5840] sm:$0xf]
      %v5842 = vld [vmem:[%s5840 + $0x4] sm:$0xf]
      %v5843 = vld [vmem:[%s5840 + $0x8] sm:$0xf]
      %v5844 = vld [vmem:[%s5840 + $0xc] sm:$0xf]
      %v5845 = vld [vmem:[%s5840 + $0x10] sm:$0xf]
      %v5846 = vld [vmem:[%s5840 + $0x14] sm:$0xf]
      %v5847 = vld [vmem:[%s5840 + $0x18] sm:$0xf]
      %v5848 = vld [vmem:[%s5840 + $0x1c] sm:$0xf]
      %v5849 = vld [vmem:[%s5840 + $0x20] sm:$0xf]
      %v5850 = vld [vmem:[%s5840 + $0x24] sm:$0xf]
      %v5851 = vld [vmem:[%s5840 + $0x28] sm:$0xf]
      %v5852 = vld [vmem:[%s5840 + $0x2c] sm:$0xf]
      %v5853 = vld [vmem:[%s5840 + $0x30] sm:$0xf]
      %v5854 = vld [vmem:[%s5840 + $0x34] sm:$0xf]
      %v5855 = vld [vmem:[%s5840 + $0x38] sm:$0xf]
      %v5856 = vld [vmem:[%s5840 + $0x3c] sm:$0xf]
      %v5857 = vld [vmem:[%s5840 + $0x40] sm:$0xf]
      %v5858 = vld [vmem:[%s5840 + $0x44] sm:$0xf]
      %v5859 = vld [vmem:[%s5840 + $0x48] sm:$0xf]
      %v5860 = vld [vmem:[%s5840 + $0x4c] sm:$0xf]
      %v5861 = vld [vmem:[%s5840 + $0x50] sm:$0xf]
      %v5862 = vld [vmem:[%s5840 + $0x54] sm:$0xf]
      %v5863 = vld [vmem:[%s5840 + $0x58] sm:$0xf]
      %v5864 = vld [vmem:[%s5840 + $0x5c] sm:$0xf]
      %v5865 = vld [vmem:[%s5840 + $0x60] sm:$0xf]
      %v5866 = vld [vmem:[%s5840 + $0x64] sm:$0xf]
      %v5867 = vld [vmem:[%s5840 + $0x68] sm:$0xf]
      %v5868 = vld [vmem:[%s5840 + $0x6c] sm:$0xf]
      %v5869 = vld [vmem:[%s5840 + $0x70] sm:$0xf]
      %v5870 = vld [vmem:[%s5840 + $0x74] sm:$0xf]
      %v5871 = vld [vmem:[%s5840 + $0x78] sm:$0xf]
      %v5872 = vld [vmem:[%s5840 + $0x7c] sm:$0xf]
      %v5873 = vld [vmem:[%s5840 + $0x80] sm:$0xf]
      %v5874 = vld [vmem:[%s5840 + $0x84] sm:$0xf]
      %v5875 = vld [vmem:[%s5840 + $0x88] sm:$0xf]
      %v5876 = vld [vmem:[%s5840 + $0x8c] sm:$0xf]
      %v5877 = vld [vmem:[%s5840 + $0x90] sm:$0xf]
      %v5878 = vld [vmem:[%s5840 + $0x94] sm:$0xf]
      %v5879 = vld [vmem:[%s5840 + $0x98] sm:$0xf]
      %v5880 = vld [vmem:[%s5840 + $0x9c] sm:$0xf]
      %v5881 = vld [vmem:[%s5840 + $0xa0] sm:$0xf]
      %v5882 = vld [vmem:[%s5840 + $0xa4] sm:$0xf]
      %v5883 = vld [vmem:[%s5840 + $0xa8] sm:$0xf]
      %v5884 = vld [vmem:[%s5840 + $0xac] sm:$0xf]
      %v5885 = vld [vmem:[%s5840 + $0xb0] sm:$0xf]
      %v5886 = vld [vmem:[%s5840 + $0xb4] sm:$0xf]
      %v5887 = vld [vmem:[%s5840 + $0xb8] sm:$0xf]
      %v5888 = vld [vmem:[%s5840 + $0xbc] sm:$0xf]
      %v5889 = vld [vmem:[%s5840 + $0xc0] sm:$0xf]
      %v5890 = vld [vmem:[%s5840 + $0xc4] sm:$0xf]
      %v5891 = vld [vmem:[%s5840 + $0xc8] sm:$0xf]
      %v5892 = vld [vmem:[%s5840 + $0xcc] sm:$0xf]
      %v5893 = vld [vmem:[%s5840 + $0xd0] sm:$0xf]
      %v5894 = vld [vmem:[%s5840 + $0xd4] sm:$0xf]
      %v5895 = vld [vmem:[%s5840 + $0xd8] sm:$0xf]
      %v5896 = vld [vmem:[%s5840 + $0xdc] sm:$0xf]
      %v5897 = vld [vmem:[%s5840 + $0xe0] sm:$0xf]
      %v5898 = vld [vmem:[%s5840 + $0xe4] sm:$0xf]
      %v5899 = vld [vmem:[%s5840 + $0xe8] sm:$0xf]
      %v5900 = vld [vmem:[%s5840 + $0xec] sm:$0xf]
      %v5901 = vld [vmem:[%s5840 + $0xf0] sm:$0xf]
      %v5902 = vld [vmem:[%s5840 + $0xf4] sm:$0xf]
      %v5903 = vld [vmem:[%s5840 + $0xf8] sm:$0xf]
      %v5904 = vld [vmem:[%s5840 + $0xfc] sm:$0xf]
      %v5905 = vld [vmem:[%s5840 + $0x100] sm:$0xf]
      %v5906 = vld [vmem:[%s5840 + $0x104] sm:$0xf]
      %v5907 = vld [vmem:[%s5840 + $0x108] sm:$0xf]
      %v5908 = vld [vmem:[%s5840 + $0x10c] sm:$0xf]
      %v5909 = vld [vmem:[%s5840 + $0x110] sm:$0xf]
      %v5910 = vld [vmem:[%s5840 + $0x114] sm:$0xf]
      %v5911 = vld [vmem:[%s5840 + $0x118] sm:$0xf]
      %v5912 = vld [vmem:[%s5840 + $0x11c] sm:$0xf]
      %v5913 = vld [vmem:[%s5840 + $0x120] sm:$0xf]
      %v5914 = vld [vmem:[%s5840 + $0x124] sm:$0xf]
      %v5915 = vld [vmem:[%s5840 + $0x128] sm:$0xf]
      %v5916 = vld [vmem:[%s5840 + $0x12c] sm:$0xf]
      %v5917 = vld [vmem:[%s5840 + $0x130] sm:$0xf]
      %v5918 = vld [vmem:[%s5840 + $0x134] sm:$0xf]
      %v5919 = vld [vmem:[%s5840 + $0x138] sm:$0xf]
      %v5920 = vld [vmem:[%s5840 + $0x13c] sm:$0xf]
      %v5921 = vld [vmem:[%s5840 + $0x140] sm:$0xf]
      %v5922 = vld [vmem:[%s5840 + $0x144] sm:$0xf]
      %v5923 = vld [vmem:[%s5840 + $0x148] sm:$0xf]
      %v5924 = vld [vmem:[%s5840 + $0x14c] sm:$0xf]
      %v5925 = vld [vmem:[%s5840 + $0x150] sm:$0xf]
      %v5926 = vld [vmem:[%s5840 + $0x154] sm:$0xf]
      %v5927 = vld [vmem:[%s5840 + $0x158] sm:$0xf]
      %v5928 = vld [vmem:[%s5840 + $0x15c] sm:$0xf]
      %v5929 = vld [vmem:[%s5840 + $0x160] sm:$0xf]
      %v5930 = vld [vmem:[%s5840 + $0x164] sm:$0xf]
      %v5931 = vld [vmem:[%s5840 + $0x168] sm:$0xf]
      %v5932 = vld [vmem:[%s5840 + $0x16c] sm:$0xf]
      %v5933 = vld [vmem:[%s5840 + $0x170] sm:$0xf]
      %v5934 = vld [vmem:[%s5840 + $0x174] sm:$0xf]
      %v5935 = vld [vmem:[%s5840 + $0x178] sm:$0xf]
      %v5936 = vld [vmem:[%s5840 + $0x17c] sm:$0xf]
      %v5937 = vld [vmem:[%s5840 + $0x180] sm:$0xf]
      %v5938 = vld [vmem:[%s5840 + $0x184] sm:$0xf]
      %v5939 = vld [vmem:[%s5840 + $0x188] sm:$0xf]
      %v5940 = vld [vmem:[%s5840 + $0x18c] sm:$0xf]
      %v5941 = vld [vmem:[%s5840 + $0x190] sm:$0xf]
      %v5942 = vld [vmem:[%s5840 + $0x194] sm:$0xf]
      %v5943 = vld [vmem:[%s5840 + $0x198] sm:$0xf]
      %v5944 = vld [vmem:[%s5840 + $0x19c] sm:$0xf]
      %v5945 = vld [vmem:[%s5840 + $0x1a0] sm:$0xf]
      %v5946 = vld [vmem:[%s5840 + $0x1a4] sm:$0xf]
      %v5947 = vld [vmem:[%s5840 + $0x1a8] sm:$0xf]
      %v5948 = vld [vmem:[%s5840 + $0x1ac] sm:$0xf]
      %v5949 = vld [vmem:[%s5840 + $0x1b0] sm:$0xf]
      %v5950 = vld [vmem:[%s5840 + $0x1b4] sm:$0xf]
      %v5951 = vld [vmem:[%s5840 + $0x1b8] sm:$0xf]
      %v5952 = vld [vmem:[%s5840 + $0x1bc] sm:$0xf]
      %v5953 = vld [vmem:[%s5840 + $0x1c0] sm:$0xf]
      %v5954 = vld [vmem:[%s5840 + $0x1c4] sm:$0xf]
      %v5955 = vld [vmem:[%s5840 + $0x1c8] sm:$0xf]
      %v5956 = vld [vmem:[%s5840 + $0x1cc] sm:$0xf]
      %v5957 = vld [vmem:[%s5840 + $0x1d0] sm:$0xf]
      %v5958 = vld [vmem:[%s5840 + $0x1d4] sm:$0xf]
      %v5959 = vld [vmem:[%s5840 + $0x1d8] sm:$0xf]
      %v5960 = vld [vmem:[%s5840 + $0x1dc] sm:$0xf]
      %v5961 = vld [vmem:[%s5840 + $0x1e0] sm:$0xf]
      %v5962 = vld [vmem:[%s5840 + $0x1e4] sm:$0xf]
      %v5963 = vld [vmem:[%s5840 + $0x1e8] sm:$0xf]
      %v5964 = vld [vmem:[%s5840 + $0x1ec] sm:$0xf]
      %v5965 = vld [vmem:[%s5840 + $0x1f0] sm:$0xf]
      %v5966 = vld [vmem:[%s5840 + $0x1f4] sm:$0xf]
      %v5967 = vld [vmem:[%s5840 + $0x1f8] sm:$0xf]
      %v5968 = vld [vmem:[%s5840 + $0x1fc] sm:$0xf]
      %v5969 = vld [vmem:[%s5840 + $0x200] sm:$0xf]
      %v5970 = vld [vmem:[%s5840 + $0x204] sm:$0xf]
      %v5971 = vld [vmem:[%s5840 + $0x208] sm:$0xf]
      %v5972 = vld [vmem:[%s5840 + $0x20c] sm:$0xf]
      %v5973 = vld [vmem:[%s5840 + $0x210] sm:$0xf]
      %v5974 = vld [vmem:[%s5840 + $0x214] sm:$0xf]
      %v5975 = vld [vmem:[%s5840 + $0x218] sm:$0xf]
      %v5976 = vld [vmem:[%s5840 + $0x21c] sm:$0xf]
      %v5977 = vld [vmem:[%s5840 + $0x220] sm:$0xf]
      %v5978 = vld [vmem:[%s5840 + $0x224] sm:$0xf]
      %v5979 = vld [vmem:[%s5840 + $0x228] sm:$0xf]
      %v5980 = vld [vmem:[%s5840 + $0x22c] sm:$0xf]
      %v5981 = vld [vmem:[%s5840 + $0x230] sm:$0xf]
      %v5982 = vld [vmem:[%s5840 + $0x234] sm:$0xf]
      %v5983 = vld [vmem:[%s5840 + $0x238] sm:$0xf]
      %v5984 = vld [vmem:[%s5840 + $0x23c] sm:$0xf]
      %s5985 = scalar_lea.vmem %s6, 1
      %v5986 = vld [vmem:[%s5985] sm:$0x1]
      %v5988 = vlaneseq
      %v5989 = vshrl.u32 %v5988, 7
      %v5990 = vsub.s32 0, %v5989
      %v5991 = vrot.slane %v5986, %v5990
      %v6137 = vunpack.c.l.b16 %v5841
      %v6138 = vunpack.c.l.b16 %v5842
      %v6139 = vunpack.c.l.b16 %v5843
      %v6140 = vunpack.c.l.b16 %v5844
      %v6141 = vunpack.c.l.b16 %v5845
      %v6142 = vunpack.c.l.b16 %v5846
      %v6143 = vunpack.c.l.b16 %v5847
      %v6144 = vunpack.c.l.b16 %v5848
      %v6145 = vunpack.c.l.b16 %v5849
      %v6146 = vunpack.c.l.b16 %v5850
      %v6147 = vunpack.c.l.b16 %v5851
      %v6148 = vunpack.c.l.b16 %v5852
      %v6149 = vunpack.c.l.b16 %v5853
      %v6150 = vunpack.c.l.b16 %v5854
      %v6151 = vunpack.c.l.b16 %v5855
      %v6152 = vunpack.c.l.b16 %v5856
      %v6153 = vunpack.c.l.b16 %v5857
      %v6154 = vunpack.c.l.b16 %v5858
      %v6155 = vunpack.c.l.b16 %v5859
      %v6156 = vunpack.c.l.b16 %v5860
      %v6157 = vunpack.c.l.b16 %v5861
      %v6158 = vunpack.c.l.b16 %v5862
      %v6159 = vunpack.c.l.b16 %v5863
      %v6160 = vunpack.c.l.b16 %v5864
      %v6161 = vunpack.c.l.b16 %v5865
      %v6162 = vunpack.c.l.b16 %v5866
      %v6163 = vunpack.c.l.b16 %v5867
      %v6164 = vunpack.c.l.b16 %v5868
      %v6165 = vunpack.c.l.b16 %v5869
      %v6166 = vunpack.c.l.b16 %v5870
      %v6167 = vunpack.c.l.b16 %v5871
      %v6168 = vunpack.c.l.b16 %v5872
      %v6169 = vunpack.c.l.b16 %v5873
      %v6170 = vunpack.c.l.b16 %v5874
      %v6171 = vunpack.c.l.b16 %v5875
      %v6172 = vunpack.c.l.b16 %v5876
      %v6173 = vunpack.c.l.b16 %v5877
      %v6174 = vunpack.c.l.b16 %v5878
      %v6175 = vunpack.c.l.b16 %v5879
      %v6176 = vunpack.c.l.b16 %v5880
      %v6177 = vunpack.c.l.b16 %v5881
      %v6178 = vunpack.c.l.b16 %v5882
      %v6179 = vunpack.c.l.b16 %v5883
      %v6180 = vunpack.c.l.b16 %v5884
      %v6181 = vunpack.c.l.b16 %v5885
      %v6182 = vunpack.c.l.b16 %v5886
      %v6183 = vunpack.c.l.b16 %v5887
      %v6184 = vunpack.c.l.b16 %v5888
      %v6185 = vunpack.c.l.b16 %v5889
      %v6186 = vunpack.c.l.b16 %v5890
      %v6187 = vunpack.c.l.b16 %v5891
      %v6188 = vunpack.c.l.b16 %v5892
      %v6189 = vunpack.c.l.b16 %v5893
      %v6190 = vunpack.c.l.b16 %v5894
      %v6191 = vunpack.c.l.b16 %v5895
      %v6192 = vunpack.c.l.b16 %v5896
      %v6193 = vunpack.c.l.b16 %v5897
      %v6194 = vunpack.c.l.b16 %v5898
      %v6195 = vunpack.c.l.b16 %v5899
      %v6196 = vunpack.c.l.b16 %v5900
      %v6197 = vunpack.c.l.b16 %v5901
      %v6198 = vunpack.c.l.b16 %v5902
      %v6199 = vunpack.c.l.b16 %v5903
      %v6200 = vunpack.c.l.b16 %v5904
      %v6201 = vunpack.c.l.b16 %v5905
      %v6202 = vunpack.c.l.b16 %v5906
      %v6203 = vunpack.c.l.b16 %v5907
      %v6204 = vunpack.c.l.b16 %v5908
      %v6205 = vunpack.c.l.b16 %v5909
      %v6206 = vunpack.c.l.b16 %v5910
      %v6207 = vunpack.c.l.b16 %v5911
      %v6208 = vunpack.c.l.b16 %v5912
      %v6209 = vunpack.c.l.b16 %v5913
      %v6210 = vunpack.c.l.b16 %v5914
      %v6211 = vunpack.c.l.b16 %v5915
      %v6212 = vunpack.c.l.b16 %v5916
      %v6213 = vunpack.c.l.b16 %v5917
      %v6214 = vunpack.c.l.b16 %v5918
      %v6215 = vunpack.c.l.b16 %v5919
      %v6216 = vunpack.c.l.b16 %v5920
      %v6217 = vunpack.c.l.b16 %v5921
      %v6218 = vunpack.c.l.b16 %v5922
      %v6219 = vunpack.c.l.b16 %v5923
      %v6220 = vunpack.c.l.b16 %v5924
      %v6221 = vunpack.c.l.b16 %v5925
      %v6222 = vunpack.c.l.b16 %v5926
      %v6223 = vunpack.c.l.b16 %v5927
      %v6224 = vunpack.c.l.b16 %v5928
      %v6225 = vunpack.c.l.b16 %v5929
      %v6226 = vunpack.c.l.b16 %v5930
      %v6227 = vunpack.c.l.b16 %v5931
      %v6228 = vunpack.c.l.b16 %v5932
      %v6229 = vunpack.c.l.b16 %v5933
      %v6230 = vunpack.c.l.b16 %v5934
      %v6231 = vunpack.c.l.b16 %v5935
      %v6232 = vunpack.c.l.b16 %v5936
      %v6233 = vunpack.c.l.b16 %v5937
      %v6234 = vunpack.c.l.b16 %v5938
      %v6235 = vunpack.c.l.b16 %v5939
      %v6236 = vunpack.c.l.b16 %v5940
      %v6237 = vunpack.c.l.b16 %v5941
      %v6238 = vunpack.c.l.b16 %v5942
      %v6239 = vunpack.c.l.b16 %v5943
      %v6240 = vunpack.c.l.b16 %v5944
      %v6241 = vunpack.c.l.b16 %v5945
      %v6242 = vunpack.c.l.b16 %v5946
      %v6243 = vunpack.c.l.b16 %v5947
      %v6244 = vunpack.c.l.b16 %v5948
      %v6245 = vunpack.c.l.b16 %v5949
      %v6246 = vunpack.c.l.b16 %v5950
      %v6247 = vunpack.c.l.b16 %v5951
      %v6248 = vunpack.c.l.b16 %v5952
      %v6249 = vunpack.c.l.b16 %v5953
      %v6250 = vunpack.c.l.b16 %v5954
      %v6251 = vunpack.c.l.b16 %v5955
      %v6252 = vunpack.c.l.b16 %v5956
      %v6253 = vunpack.c.l.b16 %v5957
      %v6254 = vunpack.c.l.b16 %v5958
      %v6255 = vunpack.c.l.b16 %v5959
      %v6256 = vunpack.c.l.b16 %v5960
      %v6257 = vunpack.c.l.b16 %v5961
      %v6258 = vunpack.c.l.b16 %v5962
      %v6259 = vunpack.c.l.b16 %v5963
      %v6260 = vunpack.c.l.b16 %v5964
      %v6261 = vunpack.c.l.b16 %v5965
      %v6262 = vunpack.c.l.b16 %v5966
      %v6263 = vunpack.c.l.b16 %v5967
      %v6264 = vunpack.c.l.b16 %v5968
      %v6265 = vunpack.c.l.b16 %v5969
      %v6266 = vunpack.c.l.b16 %v5970
      %v6267 = vunpack.c.l.b16 %v5971
      %v6268 = vunpack.c.l.b16 %v5972
      %v6269 = vunpack.c.l.b16 %v5973
      %v6270 = vunpack.c.l.b16 %v5974
      %v6271 = vunpack.c.l.b16 %v5975
      %v6272 = vunpack.c.l.b16 %v5976
      %v6273 = vunpack.c.l.b16 %v5977
      %v6274 = vunpack.c.l.b16 %v5978
      %v6275 = vunpack.c.l.b16 %v5979
      %v6276 = vunpack.c.l.b16 %v5980
      %v6277 = vunpack.c.l.b16 %v5981
      %v6278 = vunpack.c.l.b16 %v5982
      %v6279 = vunpack.c.l.b16 %v5983
      %v6280 = vunpack.c.l.b16 %v5984
      %v6281 = vpack.c.b16 %v6138, %v6137
      %v6282 = vpack.c.b16 %v6140, %v6139
      %v6283 = vpack.c.b16 %v6142, %v6141
      %v6284 = vpack.c.b16 %v6144, %v6143
      %v6285 = vpack.c.b16 %v6146, %v6145
      %v6286 = vpack.c.b16 %v6148, %v6147
      %v6287 = vpack.c.b16 %v6150, %v6149
      %v6288 = vpack.c.b16 %v6152, %v6151
      %v6289 = vpack.c.b16 %v6154, %v6153
      %v6290 = vpack.c.b16 %v6156, %v6155
      %v6291 = vpack.c.b16 %v6158, %v6157
      %v6292 = vpack.c.b16 %v6160, %v6159
      %v6293 = vpack.c.b16 %v6162, %v6161
      %v6294 = vpack.c.b16 %v6164, %v6163
      %v6295 = vpack.c.b16 %v6166, %v6165
      %v6296 = vpack.c.b16 %v6168, %v6167
      %v6297 = vpack.c.b16 %v6170, %v6169
      %v6298 = vpack.c.b16 %v6172, %v6171
      %v6299 = vpack.c.b16 %v6174, %v6173
      %v6300 = vpack.c.b16 %v6176, %v6175
      %v6301 = vpack.c.b16 %v6178, %v6177
      %v6302 = vpack.c.b16 %v6180, %v6179
      %v6303 = vpack.c.b16 %v6182, %v6181
      %v6304 = vpack.c.b16 %v6184, %v6183
      %v6305 = vpack.c.b16 %v6186, %v6185
      %v6306 = vpack.c.b16 %v6188, %v6187
      %v6307 = vpack.c.b16 %v6190, %v6189
      %v6308 = vpack.c.b16 %v6192, %v6191
      %v6309 = vpack.c.b16 %v6194, %v6193
      %v6310 = vpack.c.b16 %v6196, %v6195
      %v6311 = vpack.c.b16 %v6198, %v6197
      %v6312 = vpack.c.b16 %v6200, %v6199
      %v6313 = vpack.c.b16 %v6202, %v6201
      %v6314 = vpack.c.b16 %v6204, %v6203
      %v6315 = vpack.c.b16 %v6206, %v6205
      %v6316 = vpack.c.b16 %v6208, %v6207
      %v6317 = vpack.c.b16 %v6210, %v6209
      %v6318 = vpack.c.b16 %v6212, %v6211
      %v6319 = vpack.c.b16 %v6214, %v6213
      %v6320 = vpack.c.b16 %v6216, %v6215
      %v6321 = vpack.c.b16 %v6218, %v6217
      %v6322 = vpack.c.b16 %v6220, %v6219
      %v6323 = vpack.c.b16 %v6222, %v6221
      %v6324 = vpack.c.b16 %v6224, %v6223
      %v6325 = vpack.c.b16 %v6226, %v6225
      %v6326 = vpack.c.b16 %v6228, %v6227
      %v6327 = vpack.c.b16 %v6230, %v6229
      %v6328 = vpack.c.b16 %v6232, %v6231
      %v6329 = vpack.c.b16 %v6234, %v6233
      %v6330 = vpack.c.b16 %v6236, %v6235
      %v6331 = vpack.c.b16 %v6238, %v6237
      %v6332 = vpack.c.b16 %v6240, %v6239
      %v6333 = vpack.c.b16 %v6242, %v6241
      %v6334 = vpack.c.b16 %v6244, %v6243
      %v6335 = vpack.c.b16 %v6246, %v6245
      %v6336 = vpack.c.b16 %v6248, %v6247
      %v6337 = vpack.c.b16 %v6250, %v6249
      %v6338 = vpack.c.b16 %v6252, %v6251
      %v6339 = vpack.c.b16 %v6254, %v6253
      %v6340 = vpack.c.b16 %v6256, %v6255
      %v6341 = vpack.c.b16 %v6258, %v6257
      %v6342 = vpack.c.b16 %v6260, %v6259
      %v6343 = vpack.c.b16 %v6262, %v6261
      %v6344 = vpack.c.b16 %v6264, %v6263
      %v6345 = vpack.c.b16 %v6266, %v6265
      %v6346 = vpack.c.b16 %v6268, %v6267
      %v6347 = vpack.c.b16 %v6270, %v6269
      %v6348 = vpack.c.b16 %v6272, %v6271
      %v6349 = vpack.c.b16 %v6274, %v6273
      %v6350 = vpack.c.b16 %v6276, %v6275
      %v6351 = vpack.c.b16 %v6278, %v6277
      %v6352 = vpack.c.b16 %v6280, %v6279
      %6425 = vmatprep.subr.bf16.mxu0 0
      %6426 = vmatpush1.bf16.msra.mxu0 %v6281
      %6427 = vmatprep.subr.bf16.mxu0 0
      %6428 = vmatpush1.bf16.msra.mxu0 %v6282
      %6429 = vmatprep.subr.bf16.mxu0 0
      %6430 = vmatpush1.bf16.msra.mxu0 %v6283
      %6431 = vmatprep.subr.bf16.mxu0 0
      %6432 = vmatpush1.bf16.msra.mxu0 %v6284
      %6433 = vmatprep.subr.bf16.mxu0 0
      %6434 = vmatpush1.bf16.msra.mxu0 %v6285
      %6435 = vmatprep.subr.bf16.mxu0 0
      %6436 = vmatpush1.bf16.msra.mxu0 %v6286
      %6437 = vmatprep.subr.bf16.mxu0 0
      %6438 = vmatpush1.bf16.msra.mxu0 %v6287
      %6439 = vmatprep.subr.bf16.mxu0 0
      %6440 = vmatpush1.bf16.msra.mxu0 %v6288
      %6441 = vmatprep.subr.bf16.mxu0 0
      %6442 = vmatpush1.bf16.msra.mxu0 %v6289
      %6443 = vmatprep.subr.bf16.mxu0 0
      %6444 = vmatpush1.bf16.msra.mxu0 %v6290
      %6445 = vmatprep.subr.bf16.mxu0 0
      %6446 = vmatpush1.bf16.msra.mxu0 %v6291
      %6447 = vmatprep.subr.bf16.mxu0 0
      %6448 = vmatpush1.bf16.msra.mxu0 %v6292
      %6449 = vmatprep.subr.bf16.mxu0 0
      %6450 = vmatpush1.bf16.msra.mxu0 %v6293
      %6451 = vmatprep.subr.bf16.mxu0 0
      %6452 = vmatpush1.bf16.msra.mxu0 %v6294
      %6453 = vmatprep.subr.bf16.mxu0 0
      %6454 = vmatpush1.bf16.msra.mxu0 %v6295
      %6455 = vmatprep.subr.bf16.mxu0 0
      %6456 = vmatpush1.bf16.msra.mxu0 %v6296
      %6457 = vmatprep.mubr.bf16.mxu0 %v5697
      %6458 = vmatmul.mubr.bf16.gmra.mrb[0].mxu0 %v5696
      %v6459 = vpop.f32.mrb[0].mxu0
      %v6460 = vadd.f32 %v5991, %v6459
      %v6461 = vpop.f32.mrb[0].mxu0
      %v6462 = vpop.f32.mrb[0].mxu0
      %v6463 = vadd.f32 %v5991, %v6462
      %v6464 = vpop.f32.mrb[0].mxu0
      %6465 = vmatprep.mubr.bf16.mxu0 %v5706
      %6466 = vmatmul.mubr.bf16.gmra.mrb[0].mxu0 %v5705
      %v6467 = vpop.f32.mrb[0].mxu0
      %v6468 = vadd.f32 %v5991, %v6467
      %v6469 = vpop.f32.mrb[0].mxu0
      %v6470 = vpop.f32.mrb[0].mxu0
      %v6471 = vadd.f32 %v5991, %v6470
      %v6472 = vpop.f32.mrb[0].mxu0
      %6473 = vmatprep.mubr.bf16.mxu0 %v5715
      %6474 = vmatmul.mubr.bf16.gmra.mrb[0].mxu0 %v5714
      %v6475 = vpop.f32.mrb[0].mxu0
      %v6476 = vadd.f32 %v5991, %v6475
      %v6477 = vpop.f32.mrb[0].mxu0
      %v6478 = vpop.f32.mrb[0].mxu0
      %v6479 = vadd.f32 %v5991, %v6478
      %v6480 = vpop.f32.mrb[0].mxu0
      %6481 = vmatprep.mubr.bf16.mxu0 %v5724
      %6482 = vmatmul.mubr.bf16.gmra.mrb[0].mxu0 %v5723
      %v6483 = vpop.f32.mrb[0].mxu0
      %v6484 = vadd.f32 %v5991, %v6483
      %v6485 = vpop.f32.mrb[0].mxu0
      %v6486 = vpop.f32.mrb[0].mxu0
      %v6487 = vadd.f32 %v5991, %v6486
      %v6488 = vpop.f32.mrb[0].mxu0
      %6489 = vmatprep.mubr.bf16.mxu0 %v5733
      %6490 = vmatmul.mubr.bf16.gmra.mrb[0].mxu0 %v5732
      %v6491 = vpop.f32.mrb[0].mxu0
      %v6492 = vadd.f32 %v5991, %v6491
      %v6493 = vpop.f32.mrb[0].mxu0
      %v6494 = vpop.f32.mrb[0].mxu0
      %v6495 = vadd.f32 %v5991, %v6494
      %v6496 = vpop.f32.mrb[0].mxu0
      %6497 = vmatprep.mubr.bf16.mxu0 %v5742
      %6498 = vmatmul.mubr.bf16.gmra.mrb[0].mxu0 %v5741
      %v6499 = vpop.f32.mrb[0].mxu0
      %v6500 = vadd.f32 %v5991, %v6499
      %v6501 = vpop.f32.mrb[0].mxu0
      %v6502 = vpop.f32.mrb[0].mxu0
      %v6503 = vadd.f32 %v5991, %v6502
      %v6504 = vpop.f32.mrb[0].mxu0
      %6505 = vmatprep.mubr.bf16.mxu0 %v5751
      %6506 = vmatmul.mubr.bf16.gmra.mrb[0].mxu0 %v5750
      %v6507 = vpop.f32.mrb[0].mxu0
      %v6508 = vadd.f32 %v5991, %v6507
      %v6509 = vpop.f32.mrb[0].mxu0
      %v6510 = vpop.f32.mrb[0].mxu0
      %v6511 = vadd.f32 %v5991, %v6510
      %v6512 = vpop.f32.mrb[0].mxu0
      %6513 = vmatprep.mubr.bf16.mxu0 %v5760
      %6514 = vmatmul.mubr.bf16.gmra.mrb[0].mxu0 %v5759
      %v6515 = vpop.f32.mrb[0].mxu0
      %v6516 = vadd.f32 %v5991, %v6515
      %v6517 = vpop.f32.mrb[0].mxu0
      %v6518 = vpop.f32.mrb[0].mxu0
      %v6519 = vadd.f32 %v5991, %v6518
      %v6520 = vpop.f32.mrb[0].mxu0
      %6521 = vmatprep.mubr.bf16.mxu0 %v5769
      %6522 = vmatmul.mubr.bf16.gmra.mrb[0].mxu0 %v5768
      %v6523 = vpop.f32.mrb[0].mxu0
      %v6524 = vadd.f32 %v5991, %v6523
      %v6525 = vpop.f32.mrb[0].mxu0
      %v6526 = vpop.f32.mrb[0].mxu0
      %v6527 = vadd.f32 %v5991, %v6526
      %v6528 = vpop.f32.mrb[0].mxu0
      %6529 = vmatprep.mubr.bf16.mxu0 %v5778
      %6530 = vmatmul.mubr.bf16.gmra.mrb[0].mxu0 %v5777
      %v6531 = vpop.f32.mrb[0].mxu0
      %v6532 = vadd.f32 %v5991, %v6531
      %v6533 = vpop.f32.mrb[0].mxu0
      %v6534 = vpop.f32.mrb[0].mxu0
      %v6535 = vadd.f32 %v5991, %v6534
      %v6536 = vpop.f32.mrb[0].mxu0
      %6537 = vmatprep.mubr.bf16.mxu0 %v5787
      %6538 = vmatmul.mubr.bf16.gmra.mrb[0].mxu0 %v5786
      %v6539 = vpop.f32.mrb[0].mxu0
      %v6540 = vadd.f32 %v5991, %v6539
      %v6541 = vpop.f32.mrb[0].mxu0
      %v6542 = vpop.f32.mrb[0].mxu0
      %v6543 = vadd.f32 %v5991, %v6542
      %v6544 = vpop.f32.mrb[0].mxu0
      %6545 = vmatprep.mubr.bf16.mxu0 %v5796
      %6546 = vmatmul.mubr.bf16.gmra.mrb[0].mxu0 %v5795
      %v6547 = vpop.f32.mrb[0].mxu0
      %v6548 = vadd.f32 %v5991, %v6547
      %v6549 = vpop.f32.mrb[0].mxu0
      %v6550 = vpop.f32.mrb[0].mxu0
      %v6551 = vadd.f32 %v5991, %v6550
      %v6552 = vpop.f32.mrb[0].mxu0
      %6553 = vmatprep.mubr.bf16.mxu0 %v5805
      %6554 = vmatmul.mubr.bf16.gmra.mrb[0].mxu0 %v5804
      %v6555 = vpop.f32.mrb[0].mxu0
      %v6556 = vadd.f32 %v5991, %v6555
      %v6557 = vpop.f32.mrb[0].mxu0
      %v6558 = vpop.f32.mrb[0].mxu0
      %v6559 = vadd.f32 %v5991, %v6558
      %v6560 = vpop.f32.mrb[0].mxu0
      %6561 = vmatprep.mubr.bf16.mxu0 %v5814
      %6562 = vmatmul.mubr.bf16.gmra.mrb[0].mxu0 %v5813
      %v6563 = vpop.f32.mrb[0].mxu0
      %v6564 = vadd.f32 %v5991, %v6563
      %v6565 = vpop.f32.mrb[0].mxu0
      %v6566 = vpop.f32.mrb[0].mxu0
      %v6567 = vadd.f32 %v5991, %v6566
      %v6568 = vpop.f32.mrb[0].mxu0
      %6569 = vmatprep.mubr.bf16.mxu0 %v5823
      %6570 = vmatmul.mubr.bf16.gmra.mrb[0].mxu0 %v5822
      %v6571 = vpop.f32.mrb[0].mxu0
      %v6572 = vadd.f32 %v5991, %v6571
      %v6573 = vpop.f32.mrb[0].mxu0
      %v6574 = vpop.f32.mrb[0].mxu0
      %v6575 = vadd.f32 %v5991, %v6574
      %v6576 = vpop.f32.mrb[0].mxu0
      %6577 = vmatprep.mubr.bf16.mxu0 %v5832
      %6578 = vmatmul.mubr.bf16.gmra.mrb[0].mxu0 %v5831
      %v6579 = vpop.f32.mrb[0].mxu0
      %v6580 = vadd.f32 %v5991, %v6579
      %v6581 = vpop.f32.mrb[0].mxu0
      %v6582 = vpop.f32.mrb[0].mxu0
      %v6583 = vadd.f32 %v5991, %v6582
      %v6584 = vpop.f32.mrb[0].mxu0
      %6585 = vdwg.mxu0
      %6586 = vmatprep.subr.bf16.mxu0 0
      %6587 = vmatpush1.bf16.msra.mxu0 %v6297
      %6588 = vmatprep.subr.bf16.mxu0 0
      %6589 = vmatpush1.bf16.msra.mxu0 %v6298
      %6590 = vmatprep.subr.bf16.mxu0 0
      %6591 = vmatpush1.bf16.msra.mxu0 %v6299
      %6592 = vmatprep.subr.bf16.mxu0 0
      %6593 = vmatpush1.bf16.msra.mxu0 %v6300
      %6594 = vmatprep.subr.bf16.mxu0 0
      %6595 = vmatpush1.bf16.msra.mxu0 %v6301
      %6596 = vmatprep.subr.bf16.mxu0 0
      %6597 = vmatpush1.bf16.msra.mxu0 %v6302
      %6598 = vmatprep.subr.bf16.mxu0 0
      %6599 = vmatpush1.bf16.msra.mxu0 %v6303
      %6600 = vmatprep.subr.bf16.mxu0 0
      %6601 = vmatpush1.bf16.msra.mxu0 %v6304
      %6602 = vmatprep.subr.bf16.mxu0 0
      %6603 = vmatpush1.bf16.msra.mxu0 %v6305
      %6604 = vmatprep.subr.bf16.mxu0 0
      %6605 = vmatpush1.bf16.msra.mxu0 %v6306
      %6606 = vmatprep.subr.bf16.mxu0 0
      %6607 = vmatpush1.bf16.msra.mxu0 %v6307
      %6608 = vmatprep.subr.bf16.mxu0 0
      %6609 = vmatpush1.bf16.msra.mxu0 %v6308
      %6610 = vmatprep.subr.bf16.mxu0 0
      %6611 = vmatpush1.bf16.msra.mxu0 %v6309
      %6612 = vmatprep.subr.bf16.mxu0 0
      %6613 = vmatpush1.bf16.msra.mxu0 %v6310
      %6614 = vmatprep.subr.bf16.mxu0 0
      %6615 = vmatpush1.bf16.msra.mxu0 %v6311
      %6616 = vmatprep.subr.bf16.mxu0 0
      %6617 = vmatpush1.bf16.msra.mxu0 %v6312
      %6618 = vmatprep.mubr.bf16.mxu0 %v5699
      %6619 = vmatmul.mubr.bf16.gmra.mrb[0].mxu0 %v5698
      %v6620 = vpop.f32.mrb[0].mxu0
      %v6621 = vadd.f32 %v6460, %v6620
      %v6622 = vpop.f32.mrb[0].mxu0
      %v6623 = vpop.f32.mrb[0].mxu0
      %v6624 = vadd.f32 %v6463, %v6623
      %v6625 = vpop.f32.mrb[0].mxu0
      %6626 = vmatprep.mubr.bf16.mxu0 %v5708
      %6627 = vmatmul.mubr.bf16.gmra.mrb[0].mxu0 %v5707
      %v6628 = vpop.f32.mrb[0].mxu0
      %v6629 = vadd.f32 %v6468, %v6628
      %v6630 = vpop.f32.mrb[0].mxu0
      %v6631 = vpop.f32.mrb[0].mxu0
      %v6632 = vadd.f32 %v6471, %v6631
      %v6633 = vpop.f32.mrb[0].mxu0
      %6634 = vmatprep.mubr.bf16.mxu0 %v5717
      %6635 = vmatmul.mubr.bf16.gmra.mrb[0].mxu0 %v5716
      %v6636 = vpop.f32.mrb[0].mxu0
      %v6637 = vadd.f32 %v6476, %v6636
      %v6638 = vpop.f32.mrb[0].mxu0
      %v6639 = vpop.f32.mrb[0].mxu0
      %v6640 = vadd.f32 %v6479, %v6639
      %v6641 = vpop.f32.mrb[0].mxu0
      %6642 = vmatprep.mubr.bf16.mxu0 %v5726
      %6643 = vmatmul.mubr.bf16.gmra.mrb[0].mxu0 %v5725
      %v6644 = vpop.f32.mrb[0].mxu0
      %v6645 = vadd.f32 %v6484, %v6644
      %v6646 = vpop.f32.mrb[0].mxu0
      %v6647 = vpop.f32.mrb[0].mxu0
      %v6648 = vadd.f32 %v6487, %v6647
      %v6649 = vpop.f32.mrb[0].mxu0
      %6650 = vmatprep.mubr.bf16.mxu0 %v5735
      %6651 = vmatmul.mubr.bf16.gmra.mrb[0].mxu0 %v5734
      %v6652 = vpop.f32.mrb[0].mxu0
      %v6653 = vadd.f32 %v6492, %v6652
      %v6654 = vpop.f32.mrb[0].mxu0
      %v6655 = vpop.f32.mrb[0].mxu0
      %v6656 = vadd.f32 %v6495, %v6655
      %v6657 = vpop.f32.mrb[0].mxu0
      %6658 = vmatprep.mubr.bf16.mxu0 %v5744
      %6659 = vmatmul.mubr.bf16.gmra.mrb[0].mxu0 %v5743
      %v6660 = vpop.f32.mrb[0].mxu0
      %v6661 = vadd.f32 %v6500, %v6660
      %v6662 = vpop.f32.mrb[0].mxu0
      %v6663 = vpop.f32.mrb[0].mxu0
      %v6664 = vadd.f32 %v6503, %v6663
      %v6665 = vpop.f32.mrb[0].mxu0
      %6666 = vmatprep.mubr.bf16.mxu0 %v5753
      %6667 = vmatmul.mubr.bf16.gmra.mrb[0].mxu0 %v5752
      %v6668 = vpop.f32.mrb[0].mxu0
      %v6669 = vadd.f32 %v6508, %v6668
      %v6670 = vpop.f32.mrb[0].mxu0
      %v6671 = vpop.f32.mrb[0].mxu0
      %v6672 = vadd.f32 %v6511, %v6671
      %v6673 = vpop.f32.mrb[0].mxu0
      %6674 = vmatprep.mubr.bf16.mxu0 %v5762
      %6675 = vmatmul.mubr.bf16.gmra.mrb[0].mxu0 %v5761
      %v6676 = vpop.f32.mrb[0].mxu0
      %v6677 = vadd.f32 %v6516, %v6676
      %v6678 = vpop.f32.mrb[0].mxu0
      %v6679 = vpop.f32.mrb[0].mxu0
      %v6680 = vadd.f32 %v6519, %v6679
      %v6681 = vpop.f32.mrb[0].mxu0
      %6682 = vmatprep.mubr.bf16.mxu0 %v5771
      %6683 = vmatmul.mubr.bf16.gmra.mrb[0].mxu0 %v5770
      %v6684 = vpop.f32.mrb[0].mxu0
      %v6685 = vadd.f32 %v6524, %v6684
      %v6686 = vpop.f32.mrb[0].mxu0
      %v6687 = vpop.f32.mrb[0].mxu0
      %v6688 = vadd.f32 %v6527, %v6687
      %v6689 = vpop.f32.mrb[0].mxu0
      %6690 = vmatprep.mubr.bf16.mxu0 %v5780
      %6691 = vmatmul.mubr.bf16.gmra.mrb[0].mxu0 %v5779
      %v6692 = vpop.f32.mrb[0].mxu0
      %v6693 = vadd.f32 %v6532, %v6692
      %v6694 = vpop.f32.mrb[0].mxu0
      %v6695 = vpop.f32.mrb[0].mxu0
      %v6696 = vadd.f32 %v6535, %v6695
      %v6697 = vpop.f32.mrb[0].mxu0
      %6698 = vmatprep.mubr.bf16.mxu0 %v5789
      %6699 = vmatmul.mubr.bf16.gmra.mrb[0].mxu0 %v5788
      %v6700 = vpop.f32.mrb[0].mxu0
      %v6701 = vadd.f32 %v6540, %v6700
      %v6702 = vpop.f32.mrb[0].mxu0
      %v6703 = vpop.f32.mrb[0].mxu0
      %v6704 = vadd.f32 %v6543, %v6703
      %v6705 = vpop.f32.mrb[0].mxu0
      %6706 = vmatprep.mubr.bf16.mxu0 %v5798
      %6707 = vmatmul.mubr.bf16.gmra.mrb[0].mxu0 %v5797
      %v6708 = vpop.f32.mrb[0].mxu0
      %v6709 = vadd.f32 %v6548, %v6708
      %v6710 = vpop.f32.mrb[0].mxu0
      %v6711 = vpop.f32.mrb[0].mxu0
      %v6712 = vadd.f32 %v6551, %v6711
      %v6713 = vpop.f32.mrb[0].mxu0
      %6714 = vmatprep.mubr.bf16.mxu0 %v5807
      %6715 = vmatmul.mubr.bf16.gmra.mrb[0].mxu0 %v5806
      %v6716 = vpop.f32.mrb[0].mxu0
      %v6717 = vadd.f32 %v6556, %v6716
      %v6718 = vpop.f32.mrb[0].mxu0
      %v6719 = vpop.f32.mrb[0].mxu0
      %v6720 = vadd.f32 %v6559, %v6719
      %v6721 = vpop.f32.mrb[0].mxu0
      %6722 = vmatprep.mubr.bf16.mxu0 %v5816
      %6723 = vmatmul.mubr.bf16.gmra.mrb[0].mxu0 %v5815
      %v6724 = vpop.f32.mrb[0].mxu0
      %v6725 = vadd.f32 %v6564, %v6724
      %v6726 = vpop.f32.mrb[0].mxu0
      %v6727 = vpop.f32.mrb[0].mxu0
      %v6728 = vadd.f32 %v6567, %v6727
      %v6729 = vpop.f32.mrb[0].mxu0
      %6730 = vmatprep.mubr.bf16.mxu0 %v5825
      %6731 = vmatmul.mubr.bf16.gmra.mrb[0].mxu0 %v5824
      %v6732 = vpop.f32.mrb[0].mxu0
      %v6733 = vadd.f32 %v6572, %v6732
      %v6734 = vpop.f32.mrb[0].mxu0
      %v6735 = vpop.f32.mrb[0].mxu0
      %v6736 = vadd.f32 %v6575, %v6735
      %v6737 = vpop.f32.mrb[0].mxu0
      %6738 = vmatprep.mubr.bf16.mxu0 %v5834
      %6739 = vmatmul.mubr.bf16.gmra.mrb[0].mxu0 %v5833
      %v6740 = vpop.f32.mrb[0].mxu0
      %v6741 = vadd.f32 %v6580, %v6740
      %v6742 = vpop.f32.mrb[0].mxu0
      %v6743 = vpop.f32.mrb[0].mxu0
      %v6744 = vadd.f32 %v6583, %v6743
      %v6745 = vpop.f32.mrb[0].mxu0
      %6746 = vdwg.mxu0
      %6747 = vmatprep.subr.bf16.mxu0 0
      %6748 = vmatpush1.bf16.msra.mxu0 %v6313
      %6749 = vmatprep.subr.bf16.mxu0 0
      %6750 = vmatpush1.bf16.msra.mxu0 %v6314
      %6751 = vmatprep.subr.bf16.mxu0 0
      %6752 = vmatpush1.bf16.msra.mxu0 %v6315
      %6753 = vmatprep.subr.bf16.mxu0 0
      %6754 = vmatpush1.bf16.msra.mxu0 %v6316
      %6755 = vmatprep.subr.bf16.mxu0 0
      %6756 = vmatpush1.bf16.msra.mxu0 %v6317
      %6757 = vmatprep.subr.bf16.mxu0 0
      %6758 = vmatpush1.bf16.msra.mxu0 %v6318
      %6759 = vmatprep.subr.bf16.mxu0 0
      %6760 = vmatpush1.bf16.msra.mxu0 %v6319
      %6761 = vmatprep.subr.bf16.mxu0 0
      %6762 = vmatpush1.bf16.msra.mxu0 %v6320
      %6763 = vmatprep.subr.bf16.mxu0 0
      %6764 = vmatpush1.bf16.msra.mxu0 %v6321
      %6765 = vmatprep.subr.bf16.mxu0 0
      %6766 = vmatpush1.bf16.msra.mxu0 %v6322
      %6767 = vmatprep.subr.bf16.mxu0 0
      %6768 = vmatpush1.bf16.msra.mxu0 %v6323
      %6769 = vmatprep.subr.bf16.mxu0 0
      %6770 = vmatpush1.bf16.msra.mxu0 %v6324
      %6771 = vmatprep.subr.bf16.mxu0 0
      %6772 = vmatpush1.bf16.msra.mxu0 %v6325
      %6773 = vmatprep.subr.bf16.mxu0 0
      %6774 = vmatpush1.bf16.msra.mxu0 %v6326
      %6775 = vmatprep.subr.bf16.mxu0 0
      %6776 = vmatpush1.bf16.msra.mxu0 %v6327
      %6777 = vmatprep.subr.bf16.mxu0 0
      %6778 = vmatpush1.bf16.msra.mxu0 %v6328
      %6779 = vmatprep.mubr.bf16.mxu0 %v5701
      %6780 = vmatmul.mubr.bf16.gmra.mrb[0].mxu0 %v5700
      %v6781 = vpop.f32.mrb[0].mxu0
      %v6782 = vadd.f32 %v6621, %v6781
      %v6783 = vpop.f32.mrb[0].mxu0
      %v6784 = vpop.f32.mrb[0].mxu0
      %v6785 = vadd.f32 %v6624, %v6784
      %v6786 = vpop.f32.mrb[0].mxu0
      %6787 = vmatprep.mubr.bf16.mxu0 %v5710
      %6788 = vmatmul.mubr.bf16.gmra.mrb[0].mxu0 %v5709
      %v6789 = vpop.f32.mrb[0].mxu0
      %v6790 = vadd.f32 %v6629, %v6789
      %v6791 = vpop.f32.mrb[0].mxu0
      %v6792 = vpop.f32.mrb[0].mxu0
      %v6793 = vadd.f32 %v6632, %v6792
      %v6794 = vpop.f32.mrb[0].mxu0
      %6795 = vmatprep.mubr.bf16.mxu0 %v5719
      %6796 = vmatmul.mubr.bf16.gmra.mrb[0].mxu0 %v5718
      %v6797 = vpop.f32.mrb[0].mxu0
      %v6798 = vadd.f32 %v6637, %v6797
      %v6799 = vpop.f32.mrb[0].mxu0
      %v6800 = vpop.f32.mrb[0].mxu0
      %v6801 = vadd.f32 %v6640, %v6800
      %v6802 = vpop.f32.mrb[0].mxu0
      %6803 = vmatprep.mubr.bf16.mxu0 %v5728
      %6804 = vmatmul.mubr.bf16.gmra.mrb[0].mxu0 %v5727
      %v6805 = vpop.f32.mrb[0].mxu0
      %v6806 = vadd.f32 %v6645, %v6805
      %v6807 = vpop.f32.mrb[0].mxu0
      %v6808 = vpop.f32.mrb[0].mxu0
      %v6809 = vadd.f32 %v6648, %v6808
      %v6810 = vpop.f32.mrb[0].mxu0
      %6811 = vmatprep.mubr.bf16.mxu0 %v5737
      %6812 = vmatmul.mubr.bf16.gmra.mrb[0].mxu0 %v5736
      %v6813 = vpop.f32.mrb[0].mxu0
      %v6814 = vadd.f32 %v6653, %v6813
      %v6815 = vpop.f32.mrb[0].mxu0
      %v6816 = vpop.f32.mrb[0].mxu0
      %v6817 = vadd.f32 %v6656, %v6816
      %v6818 = vpop.f32.mrb[0].mxu0
      %6819 = vmatprep.mubr.bf16.mxu0 %v5746
      %6820 = vmatmul.mubr.bf16.gmra.mrb[0].mxu0 %v5745
      %v6821 = vpop.f32.mrb[0].mxu0
      %v6822 = vadd.f32 %v6661, %v6821
      %v6823 = vpop.f32.mrb[0].mxu0
      %v6824 = vpop.f32.mrb[0].mxu0
      %v6825 = vadd.f32 %v6664, %v6824
      %v6826 = vpop.f32.mrb[0].mxu0
      %6827 = vmatprep.mubr.bf16.mxu0 %v5755
      %6828 = vmatmul.mubr.bf16.gmra.mrb[0].mxu0 %v5754
      %v6829 = vpop.f32.mrb[0].mxu0
      %v6830 = vadd.f32 %v6669, %v6829
      %v6831 = vpop.f32.mrb[0].mxu0
      %v6832 = vpop.f32.mrb[0].mxu0
      %v6833 = vadd.f32 %v6672, %v6832
      %v6834 = vpop.f32.mrb[0].mxu0
      %6835 = vmatprep.mubr.bf16.mxu0 %v5764
      %6836 = vmatmul.mubr.bf16.gmra.mrb[0].mxu0 %v5763
      %v6837 = vpop.f32.mrb[0].mxu0
      %v6838 = vadd.f32 %v6677, %v6837
      %v6839 = vpop.f32.mrb[0].mxu0
      %v6840 = vpop.f32.mrb[0].mxu0
      %v6841 = vadd.f32 %v6680, %v6840
      %v6842 = vpop.f32.mrb[0].mxu0
      %6843 = vmatprep.mubr.bf16.mxu0 %v5773
      %6844 = vmatmul.mubr.bf16.gmra.mrb[0].mxu0 %v5772
      %v6845 = vpop.f32.mrb[0].mxu0
      %v6846 = vadd.f32 %v6685, %v6845
      %v6847 = vpop.f32.mrb[0].mxu0
      %v6848 = vpop.f32.mrb[0].mxu0
      %v6849 = vadd.f32 %v6688, %v6848
      %v6850 = vpop.f32.mrb[0].mxu0
      %6851 = vmatprep.mubr.bf16.mxu0 %v5782
      %6852 = vmatmul.mubr.bf16.gmra.mrb[0].mxu0 %v5781
      %v6853 = vpop.f32.mrb[0].mxu0
      %v6854 = vadd.f32 %v6693, %v6853
      %v6855 = vpop.f32.mrb[0].mxu0
      %v6856 = vpop.f32.mrb[0].mxu0
      %v6857 = vadd.f32 %v6696, %v6856
      %v6858 = vpop.f32.mrb[0].mxu0
      %6859 = vmatprep.mubr.bf16.mxu0 %v5791
      %6860 = vmatmul.mubr.bf16.gmra.mrb[0].mxu0 %v5790
      %v6861 = vpop.f32.mrb[0].mxu0
      %v6862 = vadd.f32 %v6701, %v6861
      %v6863 = vpop.f32.mrb[0].mxu0
      %v6864 = vpop.f32.mrb[0].mxu0
      %v6865 = vadd.f32 %v6704, %v6864
      %v6866 = vpop.f32.mrb[0].mxu0
      %6867 = vmatprep.mubr.bf16.mxu0 %v5800
      %6868 = vmatmul.mubr.bf16.gmra.mrb[0].mxu0 %v5799
      %v6869 = vpop.f32.mrb[0].mxu0
      %v6870 = vadd.f32 %v6709, %v6869
      %v6871 = vpop.f32.mrb[0].mxu0
      %v6872 = vpop.f32.mrb[0].mxu0
      %v6873 = vadd.f32 %v6712, %v6872
      %v6874 = vpop.f32.mrb[0].mxu0
      %6875 = vmatprep.mubr.bf16.mxu0 %v5809
      %6876 = vmatmul.mubr.bf16.gmra.mrb[0].mxu0 %v5808
      %v6877 = vpop.f32.mrb[0].mxu0
      %v6878 = vadd.f32 %v6717, %v6877
      %v6879 = vpop.f32.mrb[0].mxu0
      %v6880 = vpop.f32.mrb[0].mxu0
      %v6881 = vadd.f32 %v6720, %v6880
      %v6882 = vpop.f32.mrb[0].mxu0
      %6883 = vmatprep.mubr.bf16.mxu0 %v5818
      %6884 = vmatmul.mubr.bf16.gmra.mrb[0].mxu0 %v5817
      %v6885 = vpop.f32.mrb[0].mxu0
      %v6886 = vadd.f32 %v6725, %v6885
      %v6887 = vpop.f32.mrb[0].mxu0
      %v6888 = vpop.f32.mrb[0].mxu0
      %v6889 = vadd.f32 %v6728, %v6888
      %v6890 = vpop.f32.mrb[0].mxu0
      %6891 = vmatprep.mubr.bf16.mxu0 %v5827
      %6892 = vmatmul.mubr.bf16.gmra.mrb[0].mxu0 %v5826
      %v6893 = vpop.f32.mrb[0].mxu0
      %v6894 = vadd.f32 %v6733, %v6893
      %v6895 = vpop.f32.mrb[0].mxu0
      %v6896 = vpop.f32.mrb[0].mxu0
      %v6897 = vadd.f32 %v6736, %v6896
      %v6898 = vpop.f32.mrb[0].mxu0
      %6899 = vmatprep.mubr.bf16.mxu0 %v5836
      %6900 = vmatmul.mubr.bf16.gmra.mrb[0].mxu0 %v5835
      %v6901 = vpop.f32.mrb[0].mxu0
      %v6902 = vadd.f32 %v6741, %v6901
      %v6903 = vpop.f32.mrb[0].mxu0
      %v6904 = vpop.f32.mrb[0].mxu0
      %v6905 = vadd.f32 %v6744, %v6904
      %v6906 = vpop.f32.mrb[0].mxu0
      %6907 = vdwg.mxu0
      %6908 = vmatprep.subr.bf16.mxu0 0
      %6909 = vmatpush1.bf16.msra.mxu0 %v6329
      %6910 = vmatprep.subr.bf16.mxu0 0
      %6911 = vmatpush1.bf16.msra.mxu0 %v6330
      %6912 = vmatprep.subr.bf16.mxu0 0
      %6913 = vmatpush1.bf16.msra.mxu0 %v6331
      %6914 = vmatprep.subr.bf16.mxu0 0
      %6915 = vmatpush1.bf16.msra.mxu0 %v6332
      %6916 = vmatprep.subr.bf16.mxu0 0
      %6917 = vmatpush1.bf16.msra.mxu0 %v6333
      %6918 = vmatprep.subr.bf16.mxu0 0
      %6919 = vmatpush1.bf16.msra.mxu0 %v6334
      %6920 = vmatprep.subr.bf16.mxu0 0
      %6921 = vmatpush1.bf16.msra.mxu0 %v6335
      %6922 = vmatprep.subr.bf16.mxu0 0
      %6923 = vmatpush1.bf16.msra.mxu0 %v6336
      %6924 = vmatprep.subr.bf16.mxu0 0
      %6925 = vmatpush1.bf16.msra.mxu0 %v6337
      %6926 = vmatprep.subr.bf16.mxu0 0
      %6927 = vmatpush1.bf16.msra.mxu0 %v6338
      %6928 = vmatprep.subr.bf16.mxu0 0
      %6929 = vmatpush1.bf16.msra.mxu0 %v6339
      %6930 = vmatprep.subr.bf16.mxu0 0
      %6931 = vmatpush1.bf16.msra.mxu0 %v6340
      %6932 = vmatprep.subr.bf16.mxu0 0
      %6933 = vmatpush1.bf16.msra.mxu0 %v6341
      %6934 = vmatprep.subr.bf16.mxu0 0
      %6935 = vmatpush1.bf16.msra.mxu0 %v6342
      %6936 = vmatprep.subr.bf16.mxu0 0
      %6937 = vmatpush1.bf16.msra.mxu0 %v6343
      %6938 = vmatprep.subr.bf16.mxu0 0
      %6939 = vmatpush1.bf16.msra.mxu0 %v6344
      %6940 = vmatprep.mubr.bf16.mxu0 %v5703
      %6941 = vmatmul.mubr.bf16.gmra.mrb[0].mxu0 %v5702
      %v6942 = vpop.f32.mrb[0].mxu0
      %v6943 = vadd.f32 %v6782, %v6942
      %v6944 = vpop.f32.mrb[0].mxu0
      %v6945 = vpop.f32.mrb[0].mxu0
      %v6946 = vadd.f32 %v6785, %v6945
      %v6947 = vpop.f32.mrb[0].mxu0
      %6948 = vmatprep.mubr.bf16.mxu0 %v5712
      %6949 = vmatmul.mubr.bf16.gmra.mrb[0].mxu0 %v5711
      %v6950 = vpop.f32.mrb[0].mxu0
      %v6951 = vadd.f32 %v6790, %v6950
      %v6952 = vpop.f32.mrb[0].mxu0
      %v6953 = vpop.f32.mrb[0].mxu0
      %v6954 = vadd.f32 %v6793, %v6953
      %v6955 = vpop.f32.mrb[0].mxu0
      %6956 = vmatprep.mubr.bf16.mxu0 %v5721
      %6957 = vmatmul.mubr.bf16.gmra.mrb[0].mxu0 %v5720
      %v6958 = vpop.f32.mrb[0].mxu0
      %v6959 = vadd.f32 %v6798, %v6958
      %v6960 = vpop.f32.mrb[0].mxu0
      %v6961 = vpop.f32.mrb[0].mxu0
      %v6962 = vadd.f32 %v6801, %v6961
      %v6963 = vpop.f32.mrb[0].mxu0
      %6964 = vmatprep.mubr.bf16.mxu0 %v5730
      %6965 = vmatmul.mubr.bf16.gmra.mrb[0].mxu0 %v5729
      %v6966 = vpop.f32.mrb[0].mxu0
      %v6967 = vadd.f32 %v6806, %v6966
      %v6968 = vpop.f32.mrb[0].mxu0
      %v6969 = vpop.f32.mrb[0].mxu0
      %v6970 = vadd.f32 %v6809, %v6969
      %v6971 = vpop.f32.mrb[0].mxu0
      %6972 = vmatprep.mubr.bf16.mxu0 %v5739
      %6973 = vmatmul.mubr.bf16.gmra.mrb[0].mxu0 %v5738
      %v6974 = vpop.f32.mrb[0].mxu0
      %v6975 = vadd.f32 %v6814, %v6974
      %v6976 = vpop.f32.mrb[0].mxu0
      %v6977 = vpop.f32.mrb[0].mxu0
      %v6978 = vadd.f32 %v6817, %v6977
      %v6979 = vpop.f32.mrb[0].mxu0
      %6980 = vmatprep.mubr.bf16.mxu0 %v5748
      %6981 = vmatmul.mubr.bf16.gmra.mrb[0].mxu0 %v5747
      %v6982 = vpop.f32.mrb[0].mxu0
      %v6983 = vadd.f32 %v6822, %v6982
      %v6984 = vpop.f32.mrb[0].mxu0
      %v6985 = vpop.f32.mrb[0].mxu0
      %v6986 = vadd.f32 %v6825, %v6985
      %v6987 = vpop.f32.mrb[0].mxu0
      %6988 = vmatprep.mubr.bf16.mxu0 %v5757
      %6989 = vmatmul.mubr.bf16.gmra.mrb[0].mxu0 %v5756
      %v6990 = vpop.f32.mrb[0].mxu0
      %v6991 = vadd.f32 %v6830, %v6990
      %v6992 = vpop.f32.mrb[0].mxu0
      %v6993 = vpop.f32.mrb[0].mxu0
      %v6994 = vadd.f32 %v6833, %v6993
      %v6995 = vpop.f32.mrb[0].mxu0
      %6996 = vmatprep.mubr.bf16.mxu0 %v5766
      %6997 = vmatmul.mubr.bf16.gmra.mrb[0].mxu0 %v5765
      %v6998 = vpop.f32.mrb[0].mxu0
      %v6999 = vadd.f32 %v6838, %v6998
      %v7000 = vpop.f32.mrb[0].mxu0
      %v7001 = vpop.f32.mrb[0].mxu0
      %v7002 = vadd.f32 %v6841, %v7001
      %v7003 = vpop.f32.mrb[0].mxu0
      %7004 = vmatprep.mubr.bf16.mxu0 %v5775
      %7005 = vmatmul.mubr.bf16.gmra.mrb[0].mxu0 %v5774
      %v7006 = vpop.f32.mrb[0].mxu0
      %v7007 = vadd.f32 %v6846, %v7006
      %v7008 = vpop.f32.mrb[0].mxu0
      %v7009 = vpop.f32.mrb[0].mxu0
      %v7010 = vadd.f32 %v6849, %v7009
      %v7011 = vpop.f32.mrb[0].mxu0
      %7012 = vmatprep.mubr.bf16.mxu0 %v5784
      %7013 = vmatmul.mubr.bf16.gmra.mrb[0].mxu0 %v5783
      %v7014 = vpop.f32.mrb[0].mxu0
      %v7015 = vadd.f32 %v6854, %v7014
      %v7016 = vpop.f32.mrb[0].mxu0
      %v7017 = vpop.f32.mrb[0].mxu0
      %v7018 = vadd.f32 %v6857, %v7017
      %v7019 = vpop.f32.mrb[0].mxu0
      %7020 = vmatprep.mubr.bf16.mxu0 %v5793
      %7021 = vmatmul.mubr.bf16.gmra.mrb[0].mxu0 %v5792
      %v7022 = vpop.f32.mrb[0].mxu0
      %v7023 = vadd.f32 %v6862, %v7022
      %v7024 = vpop.f32.mrb[0].mxu0
      %v7025 = vpop.f32.mrb[0].mxu0
      %v7026 = vadd.f32 %v6865, %v7025
      %v7027 = vpop.f32.mrb[0].mxu0
      %7028 = vmatprep.mubr.bf16.mxu0 %v5802
      %7029 = vmatmul.mubr.bf16.gmra.mrb[0].mxu0 %v5801
      %v7030 = vpop.f32.mrb[0].mxu0
      %v7031 = vadd.f32 %v6870, %v7030
      %v7032 = vpop.f32.mrb[0].mxu0
      %v7033 = vpop.f32.mrb[0].mxu0
      %v7034 = vadd.f32 %v6873, %v7033
      %v7035 = vpop.f32.mrb[0].mxu0
      %7036 = vmatprep.mubr.bf16.mxu0 %v5811
      %7037 = vmatmul.mubr.bf16.gmra.mrb[0].mxu0 %v5810
      %v7038 = vpop.f32.mrb[0].mxu0
      %v7039 = vadd.f32 %v6878, %v7038
      %v7040 = vpop.f32.mrb[0].mxu0
      %v7041 = vpop.f32.mrb[0].mxu0
      %v7042 = vadd.f32 %v6881, %v7041
      %v7043 = vpop.f32.mrb[0].mxu0
      %7044 = vmatprep.mubr.bf16.mxu0 %v5820
      %7045 = vmatmul.mubr.bf16.gmra.mrb[0].mxu0 %v5819
      %v7046 = vpop.f32.mrb[0].mxu0
      %v7047 = vadd.f32 %v6886, %v7046
      %v7048 = vpop.f32.mrb[0].mxu0
      %v7049 = vpop.f32.mrb[0].mxu0
      %v7050 = vadd.f32 %v6889, %v7049
      %v7051 = vpop.f32.mrb[0].mxu0
      %7052 = vmatprep.mubr.bf16.mxu0 %v5829
      %7053 = vmatmul.mubr.bf16.gmra.mrb[0].mxu0 %v5828
      %v7054 = vpop.f32.mrb[0].mxu0
      %v7055 = vadd.f32 %v6894, %v7054
      %v7056 = vpop.f32.mrb[0].mxu0
      %v7057 = vpop.f32.mrb[0].mxu0
      %v7058 = vadd.f32 %v6897, %v7057
      %v7059 = vpop.f32.mrb[0].mxu0
      %7060 = vmatprep.mubr.bf16.mxu0 %v5838
      %7061 = vmatmul.mubr.bf16.gmra.mrb[0].mxu0 %v5837
      %v7062 = vpop.f32.mrb[0].mxu0
      %v7063 = vadd.f32 %v6902, %v7062
      %v7064 = vpop.f32.mrb[0].mxu0
      %v7065 = vpop.f32.mrb[0].mxu0
      %v7066 = vadd.f32 %v6905, %v7065
      %v7067 = vpop.f32.mrb[0].mxu0
      %7068 = vdwg.mxu0
      %7069 = vmatprep.subr.bf16.mxu0 0
      %7070 = vmatpush1.bf16.msra.mxu0 %v6345
      %7071 = vmatprep.subr.bf16.mxu0 0
      %7072 = vmatpush1.bf16.msra.mxu0 %v6346
      %7073 = vmatprep.subr.bf16.mxu0 0
      %7074 = vmatpush1.bf16.msra.mxu0 %v6347
      %7075 = vmatprep.subr.bf16.mxu0 0
      %7076 = vmatpush1.bf16.msra.mxu0 %v6348
      %7077 = vmatprep.subr.bf16.mxu0 0
      %7078 = vmatpush1.bf16.msra.mxu0 %v6349
      %7079 = vmatprep.subr.bf16.mxu0 0
      %7080 = vmatpush1.bf16.msra.mxu0 %v6350
      %7081 = vmatprep.subr.bf16.mxu0 0
      %7082 = vmatpush1.bf16.msra.mxu0 %v6351
      %7083 = vmatprep.subr.bf16.mxu0 0
      %7084 = vmatpush1.bf16.msra.mxu0 %v6352
      %7085 = vmatprep.subr.bf16.mxu0 0
      %7086 = vmatpush1.bf16.msra.mxu0 0
      %7087 = vmatprep.subr.bf16.mxu0 0
      %7088 = vmatpush1.bf16.msra.mxu0 0
      %7089 = vmatprep.subr.bf16.mxu0 0
      %7090 = vmatpush1.bf16.msra.mxu0 0
      %7091 = vmatprep.subr.bf16.mxu0 0
      %7092 = vmatpush1.bf16.msra.mxu0 0
      %7093 = vmatprep.subr.bf16.mxu0 0
      %7094 = vmatpush1.bf16.msra.mxu0 0
      %7095 = vmatprep.subr.bf16.mxu0 0
      %7096 = vmatpush1.bf16.msra.mxu0 0
      %7097 = vmatprep.subr.bf16.mxu0 0
      %7098 = vmatpush1.bf16.msra.mxu0 0
      %7099 = vmatprep.subr.bf16.mxu0 0
      %7100 = vmatpush1.bf16.msra.mxu0 0
      %7101 = vmatprep.mubr.bf16.mxu0 0
      %7102 = vmatmul.mubr.bf16.gmra.mrb[0].mxu0 %v5704
      %v7103 = vpop.f32.mrb[0].mxu0
      %v7104 = vadd.f32 %v6943, %v7103
      %v7105 = vpop.f32.mrb[0].mxu0
      %v7106 = vpop.f32.mrb[0].mxu0
      %v7107 = vadd.f32 %v6946, %v7106
      %v7108 = vpop.f32.mrb[0].mxu0
      %7109 = vmatprep.mubr.bf16.mxu0 0
      %7110 = vmatmul.mubr.bf16.gmra.mrb[0].mxu0 %v5713
      %v7111 = vpop.f32.mrb[0].mxu0
      %v7112 = vadd.f32 %v6951, %v7111
      %v7113 = vpop.f32.mrb[0].mxu0
      %v7114 = vpop.f32.mrb[0].mxu0
      %v7115 = vadd.f32 %v6954, %v7114
      %v7116 = vpop.f32.mrb[0].mxu0
      %7117 = vmatprep.mubr.bf16.mxu0 0
      %7118 = vmatmul.mubr.bf16.gmra.mrb[0].mxu0 %v5722
      %v7119 = vpop.f32.mrb[0].mxu0
      %v7120 = vadd.f32 %v6959, %v7119
      %v7121 = vpop.f32.mrb[0].mxu0
      %v7122 = vpop.f32.mrb[0].mxu0
      %v7123 = vadd.f32 %v6962, %v7122
      %v7124 = vpop.f32.mrb[0].mxu0
      %7125 = vmatprep.mubr.bf16.mxu0 0
      %7126 = vmatmul.mubr.bf16.gmra.mrb[0].mxu0 %v5731
      %v7127 = vpop.f32.mrb[0].mxu0
      %v7128 = vadd.f32 %v6967, %v7127
      %v7129 = vpop.f32.mrb[0].mxu0
      %v7130 = vpop.f32.mrb[0].mxu0
      %v7131 = vadd.f32 %v6970, %v7130
      %v7132 = vpop.f32.mrb[0].mxu0
      %7133 = vmatprep.mubr.bf16.mxu0 0
      %7134 = vmatmul.mubr.bf16.gmra.mrb[0].mxu0 %v5740
      %v7135 = vpop.f32.mrb[0].mxu0
      %v7136 = vadd.f32 %v6975, %v7135
      %v7137 = vpop.f32.mrb[0].mxu0
      %v7138 = vpop.f32.mrb[0].mxu0
      %v7139 = vadd.f32 %v6978, %v7138
      %v7140 = vpop.f32.mrb[0].mxu0
      %7141 = vmatprep.mubr.bf16.mxu0 0
      %7142 = vmatmul.mubr.bf16.gmra.mrb[0].mxu0 %v5749
      %v7143 = vpop.f32.mrb[0].mxu0
      %v7144 = vadd.f32 %v6983, %v7143
      %v7145 = vpop.f32.mrb[0].mxu0
      %v7146 = vpop.f32.mrb[0].mxu0
      %v7147 = vadd.f32 %v6986, %v7146
      %v7148 = vpop.f32.mrb[0].mxu0
      %7149 = vmatprep.mubr.bf16.mxu0 0
      %7150 = vmatmul.mubr.bf16.gmra.mrb[0].mxu0 %v5758
      %v7151 = vpop.f32.mrb[0].mxu0
      %v7152 = vadd.f32 %v6991, %v7151
      %v7153 = vpop.f32.mrb[0].mxu0
      %v7154 = vpop.f32.mrb[0].mxu0
      %v7155 = vadd.f32 %v6994, %v7154
      %v7156 = vpop.f32.mrb[0].mxu0
      %7157 = vmatprep.mubr.bf16.mxu0 0
      %7158 = vmatmul.mubr.bf16.gmra.mrb[0].mxu0 %v5767
      %v7159 = vpop.f32.mrb[0].mxu0
      %v7160 = vadd.f32 %v6999, %v7159
      %v7161 = vpop.f32.mrb[0].mxu0
      %v7162 = vpop.f32.mrb[0].mxu0
      %v7163 = vadd.f32 %v7002, %v7162
      %v7164 = vpop.f32.mrb[0].mxu0
      %7165 = vmatprep.mubr.bf16.mxu0 0
      %7166 = vmatmul.mubr.bf16.gmra.mrb[0].mxu0 %v5776
      %v7167 = vpop.f32.mrb[0].mxu0
      %v7168 = vadd.f32 %v7007, %v7167
      %v7169 = vpop.f32.mrb[0].mxu0
      %v7170 = vpop.f32.mrb[0].mxu0
      %v7171 = vadd.f32 %v7010, %v7170
      %v7172 = vpop.f32.mrb[0].mxu0
      %7173 = vmatprep.mubr.bf16.mxu0 0
      %7174 = vmatmul.mubr.bf16.gmra.mrb[0].mxu0 %v5785
      %v7175 = vpop.f32.mrb[0].mxu0
      %v7176 = vadd.f32 %v7015, %v7175
      %v7177 = vpop.f32.mrb[0].mxu0
      %v7178 = vpop.f32.mrb[0].mxu0
      %v7179 = vadd.f32 %v7018, %v7178
      %v7180 = vpop.f32.mrb[0].mxu0
      %7181 = vmatprep.mubr.bf16.mxu0 0
      %7182 = vmatmul.mubr.bf16.gmra.mrb[0].mxu0 %v5794
      %v7183 = vpop.f32.mrb[0].mxu0
      %v7184 = vadd.f32 %v7023, %v7183
      %v7185 = vpop.f32.mrb[0].mxu0
      %v7186 = vpop.f32.mrb[0].mxu0
      %v7187 = vadd.f32 %v7026, %v7186
      %v7188 = vpop.f32.mrb[0].mxu0
      %7189 = vmatprep.mubr.bf16.mxu0 0
      %7190 = vmatmul.mubr.bf16.gmra.mrb[0].mxu0 %v5803
      %v7191 = vpop.f32.mrb[0].mxu0
      %v7192 = vadd.f32 %v7031, %v7191
      %v7193 = vpop.f32.mrb[0].mxu0
      %v7194 = vpop.f32.mrb[0].mxu0
      %v7195 = vadd.f32 %v7034, %v7194
      %v7196 = vpop.f32.mrb[0].mxu0
      %7197 = vmatprep.mubr.bf16.mxu0 0
      %7198 = vmatmul.mubr.bf16.gmra.mrb[0].mxu0 %v5812
      %v7199 = vpop.f32.mrb[0].mxu0
      %v7200 = vadd.f32 %v7039, %v7199
      %v7201 = vpop.f32.mrb[0].mxu0
      %v7202 = vpop.f32.mrb[0].mxu0
      %v7203 = vadd.f32 %v7042, %v7202
      %v7204 = vpop.f32.mrb[0].mxu0
      %7205 = vmatprep.mubr.bf16.mxu0 0
      %7206 = vmatmul.mubr.bf16.gmra.mrb[0].mxu0 %v5821
      %v7207 = vpop.f32.mrb[0].mxu0
      %v7208 = vadd.f32 %v7047, %v7207
      %v7209 = vpop.f32.mrb[0].mxu0
      %v7210 = vpop.f32.mrb[0].mxu0
      %v7211 = vadd.f32 %v7050, %v7210
      %v7212 = vpop.f32.mrb[0].mxu0
      %7213 = vmatprep.mubr.bf16.mxu0 0
      %7214 = vmatmul.mubr.bf16.gmra.mrb[0].mxu0 %v5830
      %v7215 = vpop.f32.mrb[0].mxu0
      %v7216 = vadd.f32 %v7055, %v7215
      %v7217 = vpop.f32.mrb[0].mxu0
      %v7218 = vpop.f32.mrb[0].mxu0
      %v7219 = vadd.f32 %v7058, %v7218
      %v7220 = vpop.f32.mrb[0].mxu0
      %7221 = vmatprep.mubr.bf16.mxu0 0
      %7222 = vmatmul.mubr.bf16.gmra.mrb[0].mxu0 %v5839
      %v7223 = vpop.f32.mrb[0].mxu0
      %v7224 = vadd.f32 %v7063, %v7223
      %v7225 = vpop.f32.mrb[0].mxu0
      %v7226 = vpop.f32.mrb[0].mxu0
      %v7227 = vadd.f32 %v7066, %v7226
      %v7228 = vpop.f32.mrb[0].mxu0
      %7229 = vdwg.mxu0
      %v7230 = vmul.f32 %v7104, 0.5
      %v7231 = vmul.f32 %v7107, 0.5
      %v7232 = vmul.f32 %v7112, 0.5
      %v7233 = vmul.f32 %v7115, 0.5
      %v7234 = vmul.f32 %v7120, 0.5
      %v7235 = vmul.f32 %v7123, 0.5
      %v7236 = vmul.f32 %v7128, 0.5
      %v7237 = vmul.f32 %v7131, 0.5
      %v7238 = vmul.f32 %v7136, 0.5
      %v7239 = vmul.f32 %v7139, 0.5
      %v7240 = vmul.f32 %v7144, 0.5
      %v7241 = vmul.f32 %v7147, 0.5
      %v7242 = vmul.f32 %v7152, 0.5
      %v7243 = vmul.f32 %v7155, 0.5
      %v7244 = vmul.f32 %v7160, 0.5
      %v7245 = vmul.f32 %v7163, 0.5
      %v7246 = vmul.f32 %v7168, 0.5
      %v7247 = vmul.f32 %v7171, 0.5
      %v7248 = vmul.f32 %v7176, 0.5
      %v7249 = vmul.f32 %v7179, 0.5
      %v7250 = vmul.f32 %v7184, 0.5
      %v7251 = vmul.f32 %v7187, 0.5
      %v7252 = vmul.f32 %v7192, 0.5
      %v7253 = vmul.f32 %v7195, 0.5
      %v7254 = vmul.f32 %v7200, 0.5
      %v7255 = vmul.f32 %v7203, 0.5
      %v7256 = vmul.f32 %v7208, 0.5
      %v7257 = vmul.f32 %v7211, 0.5
      %v7258 = vmul.f32 %v7216, 0.5
      %v7259 = vmul.f32 %v7219, 0.5
      %v7260 = vmul.f32 %v7224, 0.5
      %v7261 = vmul.f32 %v7227, 0.5
      %v7262 = vtanh.pop %v7230
      %v7263 = vtanh.pop %v7231
      %v7264 = vtanh.pop %v7232
      %v7265 = vtanh.pop %v7233
      %v7266 = vtanh.pop %v7234
      %v7267 = vtanh.pop %v7235
      %v7268 = vtanh.pop %v7236
      %v7269 = vtanh.pop %v7237
      %v7270 = vtanh.pop %v7238
      %v7271 = vtanh.pop %v7239
      %v7272 = vtanh.pop %v7240
      %v7273 = vtanh.pop %v7241
      %v7274 = vtanh.pop %v7242
      %v7275 = vtanh.pop %v7243
      %v7276 = vtanh.pop %v7244
      %v7277 = vtanh.pop %v7245
      %v7278 = vtanh.pop %v7246
      %v7279 = vtanh.pop %v7247
      %v7280 = vtanh.pop %v7248
      %v7281 = vtanh.pop %v7249
      %v7282 = vtanh.pop %v7250
      %v7283 = vtanh.pop %v7251
      %v7284 = vtanh.pop %v7252
      %v7285 = vtanh.pop %v7253
      %v7286 = vtanh.pop %v7254
      %v7287 = vtanh.pop %v7255
      %v7288 = vtanh.pop %v7256
      %v7289 = vtanh.pop %v7257
      %v7290 = vtanh.pop %v7258
      %v7291 = vtanh.pop %v7259
      %v7292 = vtanh.pop %v7260
      %v7293 = vtanh.pop %v7261
      %v7294 = vadd.f32 %v7262, 1.0
      %v7295 = vadd.f32 %v7263, 1.0
      %v7296 = vadd.f32 %v7264, 1.0
      %v7297 = vadd.f32 %v7265, 1.0
      %v7298 = vadd.f32 %v7266, 1.0
      %v7299 = vadd.f32 %v7267, 1.0
      %v7300 = vadd.f32 %v7268, 1.0
      %v7301 = vadd.f32 %v7269, 1.0
      %v7302 = vadd.f32 %v7270, 1.0
      %v7303 = vadd.f32 %v7271, 1.0
      %v7304 = vadd.f32 %v7272, 1.0
      %v7305 = vadd.f32 %v7273, 1.0
      %v7306 = vadd.f32 %v7274, 1.0
      %v7307 = vadd.f32 %v7275, 1.0
      %v7308 = vadd.f32 %v7276, 1.0
      %v7309 = vadd.f32 %v7277, 1.0
      %v7310 = vadd.f32 %v7278, 1.0
      %v7311 = vadd.f32 %v7279, 1.0
      %v7312 = vadd.f32 %v7280, 1.0
      %v7313 = vadd.f32 %v7281, 1.0
      %v7314 = vadd.f32 %v7282, 1.0
      %v7315 = vadd.f32 %v7283, 1.0
      %v7316 = vadd.f32 %v7284, 1.0
      %v7317 = vadd.f32 %v7285, 1.0
      %v7318 = vadd.f32 %v7286, 1.0
      %v7319 = vadd.f32 %v7287, 1.0
      %v7320 = vadd.f32 %v7288, 1.0
      %v7321 = vadd.f32 %v7289, 1.0
      %v7322 = vadd.f32 %v7290, 1.0
      %v7323 = vadd.f32 %v7291, 1.0
      %v7324 = vadd.f32 %v7292, 1.0
      %v7325 = vadd.f32 %v7293, 1.0
      %v7326 = vmul.f32 %v7230, %v7294
      %v7327 = vmul.f32 %v7231, %v7295
      %v7328 = vmul.f32 %v7232, %v7296
      %v7329 = vmul.f32 %v7233, %v7297
      %v7330 = vmul.f32 %v7234, %v7298
      %v7331 = vmul.f32 %v7235, %v7299
      %v7332 = vmul.f32 %v7236, %v7300
      %v7333 = vmul.f32 %v7237, %v7301
      %v7334 = vmul.f32 %v7238, %v7302
      %v7335 = vmul.f32 %v7239, %v7303
      %v7336 = vmul.f32 %v7240, %v7304
      %v7337 = vmul.f32 %v7241, %v7305
      %v7338 = vmul.f32 %v7242, %v7306
      %v7339 = vmul.f32 %v7243, %v7307
      %v7340 = vmul.f32 %v7244, %v7308
      %v7341 = vmul.f32 %v7245, %v7309
      %v7342 = vmul.f32 %v7246, %v7310
      %v7343 = vmul.f32 %v7247, %v7311
      %v7344 = vmul.f32 %v7248, %v7312
      %v7345 = vmul.f32 %v7249, %v7313
      %v7346 = vmul.f32 %v7250, %v7314
      %v7347 = vmul.f32 %v7251, %v7315
      %v7348 = vmul.f32 %v7252, %v7316
      %v7349 = vmul.f32 %v7253, %v7317
      %v7350 = vmul.f32 %v7254, %v7318
      %v7351 = vmul.f32 %v7255, %v7319
      %v7352 = vmul.f32 %v7256, %v7320
      %v7353 = vmul.f32 %v7257, %v7321
      %v7354 = vmul.f32 %v7258, %v7322
      %v7355 = vmul.f32 %v7259, %v7323
      %v7356 = vmul.f32 %v7260, %v7324
      %v7357 = vmul.f32 %v7261, %v7325
      %v7358 = vadd.f32 %v4486, %v7326
      %v7359 = vadd.f32 %v4487, %v7327
      %v7360 = vadd.f32 %v4488, %v7328
      %v7361 = vadd.f32 %v4489, %v7329
      %v7362 = vadd.f32 %v4490, %v7330
      %v7363 = vadd.f32 %v4491, %v7331
      %v7364 = vadd.f32 %v4492, %v7332
      %v7365 = vadd.f32 %v4493, %v7333
      %v7366 = vadd.f32 %v4494, %v7334
      %v7367 = vadd.f32 %v4495, %v7335
      %v7368 = vadd.f32 %v4496, %v7336
      %v7369 = vadd.f32 %v4497, %v7337
      %v7370 = vadd.f32 %v4498, %v7338
      %v7371 = vadd.f32 %v4499, %v7339
      %v7372 = vadd.f32 %v4500, %v7340
      %v7373 = vadd.f32 %v4501, %v7341
      %v7374 = vadd.f32 %v4502, %v7342
      %v7375 = vadd.f32 %v4503, %v7343
      %v7376 = vadd.f32 %v4504, %v7344
      %v7377 = vadd.f32 %v4505, %v7345
      %v7378 = vadd.f32 %v4506, %v7346
      %v7379 = vadd.f32 %v4507, %v7347
      %v7380 = vadd.f32 %v4508, %v7348
      %v7381 = vadd.f32 %v4509, %v7349
      %v7382 = vadd.f32 %v4510, %v7350
      %v7383 = vadd.f32 %v4511, %v7351
      %v7384 = vadd.f32 %v4512, %v7352
      %v7385 = vadd.f32 %v4513, %v7353
      %v7386 = vadd.f32 %v4514, %v7354
      %v7387 = vadd.f32 %v4515, %v7355
      %v7388 = vadd.f32 %v4516, %v7356
      %v7389 = vadd.f32 %v4517, %v7357
      %7390 = vst [vmem:[#allocation3] sm:$0xff] %v1019
      %7391 = vst [vmem:[#allocation3 + $0x48] sm:$0xff] %v1020
      %7392 = vst [vmem:[#allocation3 + $0x90] sm:$0xff] %v1021
      %7393 = vst [vmem:[#allocation3 + $0xd8] sm:$0xff] %v1022
      %7394 = vst [vmem:[#allocation3 + $0x120] sm:$0xff] %v1023
      %7395 = vst [vmem:[#allocation3 + $0x168] sm:$0xff] %v1024
      %7396 = vst [vmem:[#allocation3 + $0x1b0] sm:$0xff] %v1025
      %7397 = vst [vmem:[#allocation3 + $0x1f8] sm:$0xff] %v1026
      %7398 = vst [vmem:[#allocation3 + $0x240] sm:$0xff] %v1027
      %7399 = vst [vmem:[#allocation3 + $0x288] sm:$0xff] %v1028
      %7400 = vst [vmem:[#allocation3 + $0x2d0] sm:$0xff] %v1029
      %7401 = vst [vmem:[#allocation3 + $0x318] sm:$0xff] %v1030
      %7402 = vst [vmem:[#allocation3 + $0x360] sm:$0xff] %v1031
      %7403 = vst [vmem:[#allocation3 + $0x3a8] sm:$0xff] %v1032
      %7404 = vst [vmem:[#allocation3 + $0x3f0] sm:$0xff] %v1033
      %7405 = vst [vmem:[#allocation3 + $0x438] sm:$0xff] %v1034
      %v7406 = vpack.c.bf16 %v7359, %v7358
      %v7407 = vpack.c.bf16 %v7361, %v7360
      %v7408 = vpack.c.bf16 %v7363, %v7362
      %v7409 = vpack.c.bf16 %v7365, %v7364
      %v7410 = vpack.c.bf16 %v7367, %v7366
      %v7411 = vpack.c.bf16 %v7369, %v7368
      %v7412 = vpack.c.bf16 %v7371, %v7370
      %v7413 = vpack.c.bf16 %v7373, %v7372
      %v7414 = vpack.c.bf16 %v7375, %v7374
      %v7415 = vpack.c.bf16 %v7377, %v7376
      %v7416 = vpack.c.bf16 %v7379, %v7378
      %v7417 = vpack.c.bf16 %v7381, %v7380
      %v7418 = vpack.c.bf16 %v7383, %v7382
      %v7419 = vpack.c.bf16 %v7385, %v7384
      %v7420 = vpack.c.bf16 %v7387, %v7386
      %v7421 = vpack.c.bf16 %v7389, %v7388
      %7422 = vst [vmem:[#allocation3 + $0x8] sm:$0xff] %v7406
      %7423 = vst [vmem:[#allocation3 + $0x50] sm:$0xff] %v7407
      %7424 = vst [vmem:[#allocation3 + $0x98] sm:$0xff] %v7408
      %7425 = vst [vmem:[#allocation3 + $0xe0] sm:$0xff] %v7409
      %7426 = vst [vmem:[#allocation3 + $0x128] sm:$0xff] %v7410
      %7427 = vst [vmem:[#allocation3 + $0x170] sm:$0xff] %v7411
      %7428 = vst [vmem:[#allocation3 + $0x1b8] sm:$0xff] %v7412
      %7429 = vst [vmem:[#allocation3 + $0x200] sm:$0xff] %v7413
      %7430 = vst [vmem:[#allocation3 + $0x248] sm:$0xff] %v7414
      %7431 = vst [vmem:[#allocation3 + $0x290] sm:$0xff] %v7415
      %7432 = vst [vmem:[#allocation3 + $0x2d8] sm:$0xff] %v7416
      %7433 = vst [vmem:[#allocation3 + $0x320] sm:$0xff] %v7417
      %7434 = vst [vmem:[#allocation3 + $0x368] sm:$0xff] %v7418
      %7435 = vst [vmem:[#allocation3 + $0x3b0] sm:$0xff] %v7419
      %7436 = vst [vmem:[#allocation3 + $0x3f8] sm:$0xff] %v7420
      %7437 = vst [vmem:[#allocation3 + $0x440] sm:$0xff] %v7421
      %v7438 = vld [vmem:[#allocation3] sm:$0xff]
      %v7439 = vld [vmem:[#allocation3 + $0x8] sm:$0xff]
      %v7440 = vld [vmem:[#allocation3 + $0x48] sm:$0xff]
      %v7441 = vld [vmem:[#allocation3 + $0x50] sm:$0xff]
      %v7442 = vld [vmem:[#allocation3 + $0x90] sm:$0xff]
      %v7443 = vld [vmem:[#allocation3 + $0x98] sm:$0xff]
      %v7444 = vld [vmem:[#allocation3 + $0xd8] sm:$0xff]
      %v7445 = vld [vmem:[#allocation3 + $0xe0] sm:$0xff]
      %v7446 = vld [vmem:[#allocation3 + $0x120] sm:$0xff]
      %v7447 = vld [vmem:[#allocation3 + $0x128] sm:$0xff]
      %v7448 = vld [vmem:[#allocation3 + $0x168] sm:$0xff]
      %v7449 = vld [vmem:[#allocation3 + $0x170] sm:$0xff]
      %v7450 = vld [vmem:[#allocation3 + $0x1b0] sm:$0xff]
      %v7451 = vld [vmem:[#allocation3 + $0x1b8] sm:$0xff]
      %v7452 = vld [vmem:[#allocation3 + $0x1f8] sm:$0xff]
      %v7453 = vld [vmem:[#allocation3 + $0x200] sm:$0xff]
      %v7454 = vld [vmem:[#allocation3 + $0x240] sm:$0xff]
      %v7455 = vld [vmem:[#allocation3 + $0x248] sm:$0xff]
      %v7456 = vld [vmem:[#allocation3 + $0x288] sm:$0xff]
      %v7457 = vld [vmem:[#allocation3 + $0x290] sm:$0xff]
      %v7458 = vld [vmem:[#allocation3 + $0x2d0] sm:$0xff]
      %v7459 = vld [vmem:[#allocation3 + $0x2d8] sm:$0xff]
      %v7460 = vld [vmem:[#allocation3 + $0x318] sm:$0xff]
      %v7461 = vld [vmem:[#allocation3 + $0x320] sm:$0xff]
      %v7462 = vld [vmem:[#allocation3 + $0x360] sm:$0xff]
      %v7463 = vld [vmem:[#allocation3 + $0x368] sm:$0xff]
      %v7464 = vld [vmem:[#allocation3 + $0x3a8] sm:$0xff]
      %v7465 = vld [vmem:[#allocation3 + $0x3b0] sm:$0xff]
      %v7466 = vld [vmem:[#allocation3 + $0x3f0] sm:$0xff]
      %v7467 = vld [vmem:[#allocation3 + $0x3f8] sm:$0xff]
      %v7468 = vld [vmem:[#allocation3 + $0x438] sm:$0xff]
      %v7469 = vld [vmem:[#allocation3 + $0x440] sm:$0xff]
      %v7470 = vld [vmem:[%s7] sm:$0xf]
      %v7471 = vld [vmem:[%s7 + $0x4] sm:$0xf]
      %v7472 = vld [vmem:[%s7 + $0x8] sm:$0xf]
      %v7473 = vld [vmem:[%s7 + $0xc] sm:$0xf]
      %v7474 = vld [vmem:[%s7 + $0x10] sm:$0xf]
      %v7475 = vld [vmem:[%s7 + $0x14] sm:$0xf]
      %v7476 = vld [vmem:[%s7 + $0x18] sm:$0xf]
      %v7477 = vld [vmem:[%s7 + $0x1c] sm:$0xf]
      %v7478 = vld [vmem:[%s7 + $0x20] sm:$0xf]
      %v7479 = vld [vmem:[%s7 + $0x24] sm:$0xf]
      %v7480 = vld [vmem:[%s7 + $0x28] sm:$0xf]
      %v7481 = vld [vmem:[%s7 + $0x2c] sm:$0xf]
      %v7482 = vld [vmem:[%s7 + $0x30] sm:$0xf]
      %v7483 = vld [vmem:[%s7 + $0x34] sm:$0xf]
      %v7484 = vld [vmem:[%s7 + $0x38] sm:$0xf]
      %v7485 = vld [vmem:[%s7 + $0x3c] sm:$0xf]
      %v7486 = vld [vmem:[%s7 + $0x40] sm:$0xf]
      %v7487 = vld [vmem:[%s7 + $0x44] sm:$0xf]
      %v7488 = vld [vmem:[%s7 + $0x48] sm:$0xf]
      %v7489 = vld [vmem:[%s7 + $0x4c] sm:$0xf]
      %v7490 = vld [vmem:[%s7 + $0x50] sm:$0xf]
      %v7491 = vld [vmem:[%s7 + $0x54] sm:$0xf]
      %v7492 = vld [vmem:[%s7 + $0x58] sm:$0xf]
      %v7493 = vld [vmem:[%s7 + $0x5c] sm:$0xf]
      %v7494 = vld [vmem:[%s7 + $0x60] sm:$0xf]
      %v7495 = vld [vmem:[%s7 + $0x64] sm:$0xf]
      %v7496 = vld [vmem:[%s7 + $0x68] sm:$0xf]
      %v7497 = vld [vmem:[%s7 + $0x6c] sm:$0xf]
      %v7498 = vld [vmem:[%s7 + $0x70] sm:$0xf]
      %v7499 = vld [vmem:[%s7 + $0x74] sm:$0xf]
      %v7500 = vld [vmem:[%s7 + $0x78] sm:$0xf]
      %v7501 = vld [vmem:[%s7 + $0x7c] sm:$0xf]
      %v7502 = vld [vmem:[%s8] sm:$0x1]
      %v7504 = vlaneseq
      %v7505 = vshrl.u32 %v7504, 7
      %v7506 = vsub.s32 0, %v7505
      %v7507 = vrot.slane %v7502, %v7506
      %v7541 = vunpack.c.l.b16 %v7470
      %v7542 = vunpack.c.l.b16 %v7471
      %v7543 = vunpack.c.l.b16 %v7472
      %v7544 = vunpack.c.l.b16 %v7473
      %v7545 = vunpack.c.l.b16 %v7474
      %v7546 = vunpack.c.l.b16 %v7475
      %v7547 = vunpack.c.l.b16 %v7476
      %v7548 = vunpack.c.l.b16 %v7477
      %v7549 = vunpack.c.l.b16 %v7478
      %v7550 = vunpack.c.l.b16 %v7479
      %v7551 = vunpack.c.l.b16 %v7480
      %v7552 = vunpack.c.l.b16 %v7481
      %v7553 = vunpack.c.l.b16 %v7482
      %v7554 = vunpack.c.l.b16 %v7483
      %v7555 = vunpack.c.l.b16 %v7484
      %v7556 = vunpack.c.l.b16 %v7485
      %v7557 = vunpack.c.l.b16 %v7486
      %v7558 = vunpack.c.l.b16 %v7487
      %v7559 = vunpack.c.l.b16 %v7488
      %v7560 = vunpack.c.l.b16 %v7489
      %v7561 = vunpack.c.l.b16 %v7490
      %v7562 = vunpack.c.l.b16 %v7491
      %v7563 = vunpack.c.l.b16 %v7492
      %v7564 = vunpack.c.l.b16 %v7493
      %v7565 = vunpack.c.l.b16 %v7494
      %v7566 = vunpack.c.l.b16 %v7495
      %v7567 = vunpack.c.l.b16 %v7496
      %v7568 = vunpack.c.l.b16 %v7497
      %v7569 = vunpack.c.l.b16 %v7498
      %v7570 = vunpack.c.l.b16 %v7499
      %v7571 = vunpack.c.l.b16 %v7500
      %v7572 = vunpack.c.l.b16 %v7501
      %v7573 = vpack.c.b16 %v7542, %v7541
      %v7574 = vpack.c.b16 %v7544, %v7543
      %v7575 = vpack.c.b16 %v7546, %v7545
      %v7576 = vpack.c.b16 %v7548, %v7547
      %v7577 = vpack.c.b16 %v7550, %v7549
      %v7578 = vpack.c.b16 %v7552, %v7551
      %v7579 = vpack.c.b16 %v7554, %v7553
      %v7580 = vpack.c.b16 %v7556, %v7555
      %v7581 = vpack.c.b16 %v7558, %v7557
      %v7582 = vpack.c.b16 %v7560, %v7559
      %v7583 = vpack.c.b16 %v7562, %v7561
      %v7584 = vpack.c.b16 %v7564, %v7563
      %v7585 = vpack.c.b16 %v7566, %v7565
      %v7586 = vpack.c.b16 %v7568, %v7567
      %v7587 = vpack.c.b16 %v7570, %v7569
      %v7588 = vpack.c.b16 %v7572, %v7571
      %7605 = vmatprep.subr.bf16.mxu0 0
      %7606 = vmatpush1.bf16.msra.mxu0 %v7573
      %7607 = vmatprep.subr.bf16.mxu0 0
      %7608 = vmatpush1.bf16.msra.mxu0 %v7574
      %7609 = vmatprep.subr.bf16.mxu0 0
      %7610 = vmatpush1.bf16.msra.mxu0 %v7575
      %7611 = vmatprep.subr.bf16.mxu0 0
      %7612 = vmatpush1.bf16.msra.mxu0 %v7576
      %7613 = vmatprep.subr.bf16.mxu0 0
      %7614 = vmatpush1.bf16.msra.mxu0 %v7577
      %7615 = vmatprep.subr.bf16.mxu0 0
      %7616 = vmatpush1.bf16.msra.mxu0 %v7578
      %7617 = vmatprep.subr.bf16.mxu0 0
      %7618 = vmatpush1.bf16.msra.mxu0 %v7579
      %7619 = vmatprep.subr.bf16.mxu0 0
      %7620 = vmatpush1.bf16.msra.mxu0 %v7580
      %7621 = vmatprep.subr.bf16.mxu0 0
      %7622 = vmatpush1.bf16.msra.mxu0 %v7581
      %7623 = vmatprep.subr.bf16.mxu0 0
      %7624 = vmatpush1.bf16.msra.mxu0 %v7582
      %7625 = vmatprep.subr.bf16.mxu0 0
      %7626 = vmatpush1.bf16.msra.mxu0 %v7583
      %7627 = vmatprep.subr.bf16.mxu0 0
      %7628 = vmatpush1.bf16.msra.mxu0 %v7584
      %7629 = vmatprep.subr.bf16.mxu0 0
      %7630 = vmatpush1.bf16.msra.mxu0 %v7585
      %7631 = vmatprep.subr.bf16.mxu0 0
      %7632 = vmatpush1.bf16.msra.mxu0 %v7586
      %7633 = vmatprep.subr.bf16.mxu0 0
      %7634 = vmatpush1.bf16.msra.mxu0 %v7587
      %7635 = vmatprep.subr.bf16.mxu0 0
      %7636 = vmatpush1.bf16.msra.mxu0 %v7588
      %7637 = vmatprep.mubr.bf16.mxu0 %v7439
      %7638 = vmatmul.mubr.bf16.gmra.mrb[0].mxu0 %v7438
      %v7639 = vpop.f32.mrb[0].mxu0
      %v7640 = vadd.f32 %v7507, %v7639
      %v7641 = vpop.f32.mrb[0].mxu0
      %v7642 = vpop.f32.mrb[0].mxu0
      %v7643 = vadd.f32 %v7507, %v7642
      %v7644 = vpop.f32.mrb[0].mxu0
      %7645 = vmatprep.mubr.bf16.mxu0 %v7441
      %7646 = vmatmul.mubr.bf16.gmra.mrb[0].mxu0 %v7440
      %v7647 = vpop.f32.mrb[0].mxu0
      %v7648 = vadd.f32 %v7507, %v7647
      %v7649 = vpop.f32.mrb[0].mxu0
      %v7650 = vpop.f32.mrb[0].mxu0
      %v7651 = vadd.f32 %v7507, %v7650
      %v7652 = vpop.f32.mrb[0].mxu0
      %7653 = vmatprep.mubr.bf16.mxu0 %v7443
      %7654 = vmatmul.mubr.bf16.gmra.mrb[0].mxu0 %v7442
      %v7655 = vpop.f32.mrb[0].mxu0
      %v7656 = vadd.f32 %v7507, %v7655
      %v7657 = vpop.f32.mrb[0].mxu0
      %v7658 = vpop.f32.mrb[0].mxu0
      %v7659 = vadd.f32 %v7507, %v7658
      %v7660 = vpop.f32.mrb[0].mxu0
      %7661 = vmatprep.mubr.bf16.mxu0 %v7445
      %7662 = vmatmul.mubr.bf16.gmra.mrb[0].mxu0 %v7444
      %v7663 = vpop.f32.mrb[0].mxu0
      %v7664 = vadd.f32 %v7507, %v7663
      %v7665 = vpop.f32.mrb[0].mxu0
      %v7666 = vpop.f32.mrb[0].mxu0
      %v7667 = vadd.f32 %v7507, %v7666
      %v7668 = vpop.f32.mrb[0].mxu0
      %7669 = vmatprep.mubr.bf16.mxu0 %v7447
      %7670 = vmatmul.mubr.bf16.gmra.mrb[0].mxu0 %v7446
      %v7671 = vpop.f32.mrb[0].mxu0
      %v7672 = vadd.f32 %v7507, %v7671
      %v7673 = vpop.f32.mrb[0].mxu0
      %v7674 = vpop.f32.mrb[0].mxu0
      %v7675 = vadd.f32 %v7507, %v7674
      %v7676 = vpop.f32.mrb[0].mxu0
      %7677 = vmatprep.mubr.bf16.mxu0 %v7449
      %7678 = vmatmul.mubr.bf16.gmra.mrb[0].mxu0 %v7448
      %v7679 = vpop.f32.mrb[0].mxu0
      %v7680 = vadd.f32 %v7507, %v7679
      %v7681 = vpop.f32.mrb[0].mxu0
      %v7682 = vpop.f32.mrb[0].mxu0
      %v7683 = vadd.f32 %v7507, %v7682
      %v7684 = vpop.f32.mrb[0].mxu0
      %7685 = vmatprep.mubr.bf16.mxu0 %v7451
      %7686 = vmatmul.mubr.bf16.gmra.mrb[0].mxu0 %v7450
      %v7687 = vpop.f32.mrb[0].mxu0
      %v7688 = vadd.f32 %v7507, %v7687
      %v7689 = vpop.f32.mrb[0].mxu0
      %v7690 = vpop.f32.mrb[0].mxu0
      %v7691 = vadd.f32 %v7507, %v7690
      %v7692 = vpop.f32.mrb[0].mxu0
      %7693 = vmatprep.mubr.bf16.mxu0 %v7453
      %7694 = vmatmul.mubr.bf16.gmra.mrb[0].mxu0 %v7452
      %v7695 = vpop.f32.mrb[0].mxu0
      %v7696 = vadd.f32 %v7507, %v7695
      %v7697 = vpop.f32.mrb[0].mxu0
      %v7698 = vpop.f32.mrb[0].mxu0
      %v7699 = vadd.f32 %v7507, %v7698
      %v7700 = vpop.f32.mrb[0].mxu0
      %7701 = vmatprep.mubr.bf16.mxu0 %v7455
      %7702 = vmatmul.mubr.bf16.gmra.mrb[0].mxu0 %v7454
      %v7703 = vpop.f32.mrb[0].mxu0
      %v7704 = vadd.f32 %v7507, %v7703
      %v7705 = vpop.f32.mrb[0].mxu0
      %v7706 = vpop.f32.mrb[0].mxu0
      %v7707 = vadd.f32 %v7507, %v7706
      %v7708 = vpop.f32.mrb[0].mxu0
      %7709 = vmatprep.mubr.bf16.mxu0 %v7457
      %7710 = vmatmul.mubr.bf16.gmra.mrb[0].mxu0 %v7456
      %v7711 = vpop.f32.mrb[0].mxu0
      %v7712 = vadd.f32 %v7507, %v7711
      %v7713 = vpop.f32.mrb[0].mxu0
      %v7714 = vpop.f32.mrb[0].mxu0
      %v7715 = vadd.f32 %v7507, %v7714
      %v7716 = vpop.f32.mrb[0].mxu0
      %7717 = vmatprep.mubr.bf16.mxu0 %v7459
      %7718 = vmatmul.mubr.bf16.gmra.mrb[0].mxu0 %v7458
      %v7719 = vpop.f32.mrb[0].mxu0
      %v7720 = vadd.f32 %v7507, %v7719
      %v7721 = vpop.f32.mrb[0].mxu0
      %v7722 = vpop.f32.mrb[0].mxu0
      %v7723 = vadd.f32 %v7507, %v7722
      %v7724 = vpop.f32.mrb[0].mxu0
      %7725 = vmatprep.mubr.bf16.mxu0 %v7461
      %7726 = vmatmul.mubr.bf16.gmra.mrb[0].mxu0 %v7460
      %v7727 = vpop.f32.mrb[0].mxu0
      %v7728 = vadd.f32 %v7507, %v7727
      %v7729 = vpop.f32.mrb[0].mxu0
      %v7730 = vpop.f32.mrb[0].mxu0
      %v7731 = vadd.f32 %v7507, %v7730
      %v7732 = vpop.f32.mrb[0].mxu0
      %7733 = vmatprep.mubr.bf16.mxu0 %v7463
      %7734 = vmatmul.mubr.bf16.gmra.mrb[0].mxu0 %v7462
      %v7735 = vpop.f32.mrb[0].mxu0
      %v7736 = vadd.f32 %v7507, %v7735
      %v7737 = vpop.f32.mrb[0].mxu0
      %v7738 = vpop.f32.mrb[0].mxu0
      %v7739 = vadd.f32 %v7507, %v7738
      %v7740 = vpop.f32.mrb[0].mxu0
      %7741 = vmatprep.mubr.bf16.mxu0 %v7465
      %7742 = vmatmul.mubr.bf16.gmra.mrb[0].mxu0 %v7464
      %v7743 = vpop.f32.mrb[0].mxu0
      %v7744 = vadd.f32 %v7507, %v7743
      %v7745 = vpop.f32.mrb[0].mxu0
      %v7746 = vpop.f32.mrb[0].mxu0
      %v7747 = vadd.f32 %v7507, %v7746
      %v7748 = vpop.f32.mrb[0].mxu0
      %7749 = vmatprep.mubr.bf16.mxu0 %v7467
      %7750 = vmatmul.mubr.bf16.gmra.mrb[0].mxu0 %v7466
      %v7751 = vpop.f32.mrb[0].mxu0
      %v7752 = vadd.f32 %v7507, %v7751
      %v7753 = vpop.f32.mrb[0].mxu0
      %v7754 = vpop.f32.mrb[0].mxu0
      %v7755 = vadd.f32 %v7507, %v7754
      %v7756 = vpop.f32.mrb[0].mxu0
      %7757 = vmatprep.mubr.bf16.mxu0 %v7469
      %7758 = vmatmul.mubr.bf16.gmra.mrb[0].mxu0 %v7468
      %v7759 = vpop.f32.mrb[0].mxu0
      %v7760 = vadd.f32 %v7507, %v7759
      %v7761 = vpop.f32.mrb[0].mxu0
      %v7762 = vpop.f32.mrb[0].mxu0
      %v7763 = vadd.f32 %v7507, %v7762
      %v7764 = vpop.f32.mrb[0].mxu0
      %7765 = vdwg.mxu0
      %v7766 = vmul.f32 %v7640, 0.5
      %v7767 = vmul.f32 %v7643, 0.5
      %v7768 = vmul.f32 %v7648, 0.5
      %v7769 = vmul.f32 %v7651, 0.5
      %v7770 = vmul.f32 %v7656, 0.5
      %v7771 = vmul.f32 %v7659, 0.5
      %v7772 = vmul.f32 %v7664, 0.5
      %v7773 = vmul.f32 %v7667, 0.5
      %v7774 = vmul.f32 %v7672, 0.5
      %v7775 = vmul.f32 %v7675, 0.5
      %v7776 = vmul.f32 %v7680, 0.5
      %v7777 = vmul.f32 %v7683, 0.5
      %v7778 = vmul.f32 %v7688, 0.5
      %v7779 = vmul.f32 %v7691, 0.5
      %v7780 = vmul.f32 %v7696, 0.5
      %v7781 = vmul.f32 %v7699, 0.5
      %v7782 = vmul.f32 %v7704, 0.5
      %v7783 = vmul.f32 %v7707, 0.5
      %v7784 = vmul.f32 %v7712, 0.5
      %v7785 = vmul.f32 %v7715, 0.5
      %v7786 = vmul.f32 %v7720, 0.5
      %v7787 = vmul.f32 %v7723, 0.5
      %v7788 = vmul.f32 %v7728, 0.5
      %v7789 = vmul.f32 %v7731, 0.5
      %v7790 = vmul.f32 %v7736, 0.5
      %v7791 = vmul.f32 %v7739, 0.5
      %v7792 = vmul.f32 %v7744, 0.5
      %v7793 = vmul.f32 %v7747, 0.5
      %v7794 = vmul.f32 %v7752, 0.5
      %v7795 = vmul.f32 %v7755, 0.5
      %v7796 = vmul.f32 %v7760, 0.5
      %v7797 = vmul.f32 %v7763, 0.5
      %v7798 = vtanh.pop %v7766
      %v7799 = vtanh.pop %v7767
      %v7800 = vtanh.pop %v7768
      %v7801 = vtanh.pop %v7769
      %v7802 = vtanh.pop %v7770
      %v7803 = vtanh.pop %v7771
      %v7804 = vtanh.pop %v7772
      %v7805 = vtanh.pop %v7773
      %v7806 = vtanh.pop %v7774
      %v7807 = vtanh.pop %v7775
      %v7808 = vtanh.pop %v7776
      %v7809 = vtanh.pop %v7777
      %v7810 = vtanh.pop %v7778
      %v7811 = vtanh.pop %v7779
      %v7812 = vtanh.pop %v7780
      %v7813 = vtanh.pop %v7781
      %v7814 = vtanh.pop %v7782
      %v7815 = vtanh.pop %v7783
      %v7816 = vtanh.pop %v7784
      %v7817 = vtanh.pop %v7785
      %v7818 = vtanh.pop %v7786
      %v7819 = vtanh.pop %v7787
      %v7820 = vtanh.pop %v7788
      %v7821 = vtanh.pop %v7789
      %v7822 = vtanh.pop %v7790
      %v7823 = vtanh.pop %v7791
      %v7824 = vtanh.pop %v7792
      %v7825 = vtanh.pop %v7793
      %v7826 = vtanh.pop %v7794
      %v7827 = vtanh.pop %v7795
      %v7828 = vtanh.pop %v7796
      %v7829 = vtanh.pop %v7797
      %v7830 = vadd.f32 %v7798, 1.0
      %v7831 = vadd.f32 %v7799, 1.0
      %v7832 = vadd.f32 %v7800, 1.0
      %v7833 = vadd.f32 %v7801, 1.0
      %v7834 = vadd.f32 %v7802, 1.0
      %v7835 = vadd.f32 %v7803, 1.0
      %v7836 = vadd.f32 %v7804, 1.0
      %v7837 = vadd.f32 %v7805, 1.0
      %v7838 = vadd.f32 %v7806, 1.0
      %v7839 = vadd.f32 %v7807, 1.0
      %v7840 = vadd.f32 %v7808, 1.0
      %v7841 = vadd.f32 %v7809, 1.0
      %v7842 = vadd.f32 %v7810, 1.0
      %v7843 = vadd.f32 %v7811, 1.0
      %v7844 = vadd.f32 %v7812, 1.0
      %v7845 = vadd.f32 %v7813, 1.0
      %v7846 = vadd.f32 %v7814, 1.0
      %v7847 = vadd.f32 %v7815, 1.0
      %v7848 = vadd.f32 %v7816, 1.0
      %v7849 = vadd.f32 %v7817, 1.0
      %v7850 = vadd.f32 %v7818, 1.0
      %v7851 = vadd.f32 %v7819, 1.0
      %v7852 = vadd.f32 %v7820, 1.0
      %v7853 = vadd.f32 %v7821, 1.0
      %v7854 = vadd.f32 %v7822, 1.0
      %v7855 = vadd.f32 %v7823, 1.0
      %v7856 = vadd.f32 %v7824, 1.0
      %v7857 = vadd.f32 %v7825, 1.0
      %v7858 = vadd.f32 %v7826, 1.0
      %v7859 = vadd.f32 %v7827, 1.0
      %v7860 = vadd.f32 %v7828, 1.0
      %v7861 = vadd.f32 %v7829, 1.0
      %v7862 = vmul.f32 %v7766, %v7830
      %v7863 = vmul.f32 %v7767, %v7831
      %v7864 = vmul.f32 %v7768, %v7832
      %v7865 = vmul.f32 %v7769, %v7833
      %v7866 = vmul.f32 %v7770, %v7834
      %v7867 = vmul.f32 %v7771, %v7835
      %v7868 = vmul.f32 %v7772, %v7836
      %v7869 = vmul.f32 %v7773, %v7837
      %v7870 = vmul.f32 %v7774, %v7838
      %v7871 = vmul.f32 %v7775, %v7839
      %v7872 = vmul.f32 %v7776, %v7840
      %v7873 = vmul.f32 %v7777, %v7841
      %v7874 = vmul.f32 %v7778, %v7842
      %v7875 = vmul.f32 %v7779, %v7843
      %v7876 = vmul.f32 %v7780, %v7844
      %v7877 = vmul.f32 %v7781, %v7845
      %v7878 = vmul.f32 %v7782, %v7846
      %v7879 = vmul.f32 %v7783, %v7847
      %v7880 = vmul.f32 %v7784, %v7848
      %v7881 = vmul.f32 %v7785, %v7849
      %v7882 = vmul.f32 %v7786, %v7850
      %v7883 = vmul.f32 %v7787, %v7851
      %v7884 = vmul.f32 %v7788, %v7852
      %v7885 = vmul.f32 %v7789, %v7853
      %v7886 = vmul.f32 %v7790, %v7854
      %v7887 = vmul.f32 %v7791, %v7855
      %v7888 = vmul.f32 %v7792, %v7856
      %v7889 = vmul.f32 %v7793, %v7857
      %v7890 = vmul.f32 %v7794, %v7858
      %v7891 = vmul.f32 %v7795, %v7859
      %v7892 = vmul.f32 %v7796, %v7860
      %v7893 = vmul.f32 %v7797, %v7861
      %v7894 = vpack.c.bf16 %v7863, %v7862
      %v7895 = vpack.c.bf16 %v7865, %v7864
      %v7896 = vpack.c.bf16 %v7867, %v7866
      %v7897 = vpack.c.bf16 %v7869, %v7868
      %v7898 = vpack.c.bf16 %v7871, %v7870
      %v7899 = vpack.c.bf16 %v7873, %v7872
      %v7900 = vpack.c.bf16 %v7875, %v7874
      %v7901 = vpack.c.bf16 %v7877, %v7876
      %v7902 = vpack.c.bf16 %v7879, %v7878
      %v7903 = vpack.c.bf16 %v7881, %v7880
      %v7904 = vpack.c.bf16 %v7883, %v7882
      %v7905 = vpack.c.bf16 %v7885, %v7884
      %v7906 = vpack.c.bf16 %v7887, %v7886
      %v7907 = vpack.c.bf16 %v7889, %v7888
      %v7908 = vpack.c.bf16 %v7891, %v7890
      %v7909 = vpack.c.bf16 %v7893, %v7892
      %v7926 = vunpack.c.l.b16 %v7894
      %v7927 = vunpack.c.h.b16 %v7894
      %v7928 = vunpack.c.l.b16 %v7895
      %v7929 = vunpack.c.h.b16 %v7895
      %v7930 = vunpack.c.l.b16 %v7896
      %v7931 = vunpack.c.h.b16 %v7896
      %v7932 = vunpack.c.l.b16 %v7897
      %v7933 = vunpack.c.h.b16 %v7897
      %v7934 = vunpack.c.l.b16 %v7898
      %v7935 = vunpack.c.h.b16 %v7898
      %v7936 = vunpack.c.l.b16 %v7899
      %v7937 = vunpack.c.h.b16 %v7899
      %v7938 = vunpack.c.l.b16 %v7900
      %v7939 = vunpack.c.h.b16 %v7900
      %v7940 = vunpack.c.l.b16 %v7901
      %v7941 = vunpack.c.h.b16 %v7901
      %v7942 = vunpack.c.l.b16 %v7902
      %v7943 = vunpack.c.h.b16 %v7902
      %v7944 = vunpack.c.l.b16 %v7903
      %v7945 = vunpack.c.h.b16 %v7903
      %v7946 = vunpack.c.l.b16 %v7904
      %v7947 = vunpack.c.h.b16 %v7904
      %v7948 = vunpack.c.l.b16 %v7905
      %v7949 = vunpack.c.h.b16 %v7905
      %v7950 = vunpack.c.l.b16 %v7906
      %v7951 = vunpack.c.h.b16 %v7906
      %v7952 = vunpack.c.l.b16 %v7907
      %v7953 = vunpack.c.h.b16 %v7907
      %v7954 = vunpack.c.l.b16 %v7908
      %v7955 = vunpack.c.h.b16 %v7908
      %v7956 = vunpack.c.l.b16 %v7909
      %v7957 = vunpack.c.h.b16 %v7909
      %v7958 = vpack.c.b16 %v7926, %v7926
      %v7959 = vpack.c.b16 %v7927, %v7927
      %v7960 = vpack.c.b16 %v7928, %v7928
      %v7961 = vpack.c.b16 %v7929, %v7929
      %v7962 = vpack.c.b16 %v7930, %v7930
      %v7963 = vpack.c.b16 %v7931, %v7931
      %v7964 = vpack.c.b16 %v7932, %v7932
      %v7965 = vpack.c.b16 %v7933, %v7933
      %v7966 = vpack.c.b16 %v7934, %v7934
      %v7967 = vpack.c.b16 %v7935, %v7935
      %v7968 = vpack.c.b16 %v7936, %v7936
      %v7969 = vpack.c.b16 %v7937, %v7937
      %v7970 = vpack.c.b16 %v7938, %v7938
      %v7971 = vpack.c.b16 %v7939, %v7939
      %v7972 = vpack.c.b16 %v7940, %v7940
      %v7973 = vpack.c.b16 %v7941, %v7941
      %v7974 = vpack.c.b16 %v7942, %v7942
      %v7975 = vpack.c.b16 %v7943, %v7943
      %v7976 = vpack.c.b16 %v7944, %v7944
      %v7977 = vpack.c.b16 %v7945, %v7945
      %v7978 = vpack.c.b16 %v7946, %v7946
      %v7979 = vpack.c.b16 %v7947, %v7947
      %v7980 = vpack.c.b16 %v7948, %v7948
      %v7981 = vpack.c.b16 %v7949, %v7949
      %v7982 = vpack.c.b16 %v7950, %v7950
      %v7983 = vpack.c.b16 %v7951, %v7951
      %v7984 = vpack.c.b16 %v7952, %v7952
      %v7985 = vpack.c.b16 %v7953, %v7953
      %v7986 = vpack.c.b16 %v7954, %v7954
      %v7987 = vpack.c.b16 %v7955, %v7955
      %v7988 = vpack.c.b16 %v7956, %v7956
      %v7989 = vpack.c.b16 %v7957, %v7957
      %8022 = vst [vmem:[%s332] sm:$0xf] %v7958
      %8023 = vst [vmem:[%s332 + $0x4] sm:$0xf] %v7959
      %8024 = vst [vmem:[%s332 + $0x8] sm:$0xf] %v7960
      %8025 = vst [vmem:[%s332 + $0xc] sm:$0xf] %v7961
      %8026 = vst [vmem:[%s332 + $0x10] sm:$0xf] %v7962
      %8027 = vst [vmem:[%s332 + $0x14] sm:$0xf] %v7963
      %8028 = vst [vmem:[%s332 + $0x18] sm:$0xf] %v7964
      %8029 = vst [vmem:[%s332 + $0x1c] sm:$0xf] %v7965
      %8030 = vst [vmem:[%s332 + $0x20] sm:$0xf] %v7966
      %8031 = vst [vmem:[%s332 + $0x24] sm:$0xf] %v7967
      %8032 = vst [vmem:[%s332 + $0x28] sm:$0xf] %v7968
      %8033 = vst [vmem:[%s332 + $0x2c] sm:$0xf] %v7969
      %8034 = vst [vmem:[%s332 + $0x30] sm:$0xf] %v7970
      %8035 = vst [vmem:[%s332 + $0x34] sm:$0xf] %v7971
      %8036 = vst [vmem:[%s332 + $0x38] sm:$0xf] %v7972
      %8037 = vst [vmem:[%s332 + $0x3c] sm:$0xf] %v7973
      %8038 = vst [vmem:[%s332 + $0x40] sm:$0xf] %v7974
      %8039 = vst [vmem:[%s332 + $0x44] sm:$0xf] %v7975
      %8040 = vst [vmem:[%s332 + $0x48] sm:$0xf] %v7976
      %8041 = vst [vmem:[%s332 + $0x4c] sm:$0xf] %v7977
      %8042 = vst [vmem:[%s332 + $0x50] sm:$0xf] %v7978
      %8043 = vst [vmem:[%s332 + $0x54] sm:$0xf] %v7979
      %8044 = vst [vmem:[%s332 + $0x58] sm:$0xf] %v7980
      %8045 = vst [vmem:[%s332 + $0x5c] sm:$0xf] %v7981
      %8046 = vst [vmem:[%s332 + $0x60] sm:$0xf] %v7982
      %8047 = vst [vmem:[%s332 + $0x64] sm:$0xf] %v7983
      %8048 = vst [vmem:[%s332 + $0x68] sm:$0xf] %v7984
      %8049 = vst [vmem:[%s332 + $0x6c] sm:$0xf] %v7985
      %8050 = vst [vmem:[%s332 + $0x70] sm:$0xf] %v7986
      %8051 = vst [vmem:[%s332 + $0x74] sm:$0xf] %v7987
      %8052 = vst [vmem:[%s332 + $0x78] sm:$0xf] %v7988
      %8053 = vst [vmem:[%s332 + $0x7c] sm:$0xf] %v7989
      %p8054 = scmp.lt.s32.totalorder %s20, 1
      %s8055 = scalar_select %p8054, %s20, 1
      %s8056 = smul.addr %s8055, 32
      %s8057 = smul.addr %s8056, 4
      %s8058 = scalar_lea.vmem %s9, %s8057
      // Predicated region
      $region57: #{csp_block_pallas.1} parent=55 // pred_check
        %p8059 = pneg %p232
      $region58: #{csp_block_pallas.1} parent=55 // pred_check_branch
        %8061 = sbr.rel (%p8059) target = $region60
      $region59: #{csp_block_pallas.1} parent=55 // pred_region
        _
      $region60: #{csp_block_pallas.1} parent=55 // pred_fallthru
        _
    $region56: #{csp_block_pallas.1} parent=5 // pred_fallthru
      _
    %p8062 = scmp.le.s32.totalorder 2, %s15
    // Predicated region
    $region61: #{csp_block_pallas.1} parent=5 // pred_check
      %p8063 = pneg %p8062
    $region62: #{csp_block_pallas.1} parent=5 // pred_check_branch
      %8065 = sbr.rel (%p8063) target = $region64
    $region63: #{csp_block_pallas.1} parent=5 // pred_region
      %s8066 = ssub.s32 %s15, 2
      // Predicated region
      $region65: #{csp_block_pallas.1} parent=63 // pred_check
        %p8067 = pneg %p238
      $region66: #{csp_block_pallas.1} parent=63 // pred_check_branch
        %8069 = sbr.rel (%p8067) target = $region68
      $region67: #{csp_block_pallas.1} parent=63 // pred_region
        %p8070 = scmp.lt.s32.totalorder %s21, 1
        %s8071 = scalar_select %p8070, %s21, 1
        %s8072 = smul.addr %s8071, 32
        %s8073 = smul.addr %s8072, 4
        %s8074 = scalar_lea.vmem %s9, %s8073
      $region68: #{csp_block_pallas.1} parent=63 // pred_fallthru
        _
    $region64: #{csp_block_pallas.1} parent=5 // pred_fallthru
      _
  $region6: #{csp_block_pallas.1} parent=0 // loop_footer
    %s19 = sadd.s32 1, %s15
  $region7: #{csp_block_pallas.1} parent=0 // loop_footer_branch
    %14 = sbr.rel target = $region3
  $region8: #{csp_block_pallas.1} parent=0 // loop_exit
    _

</llo_original>
